<compile_context>
chip_gen: v6e
topology: v6e:2x2x1
jax: 0.10.0
libtpu: 0.0.40
codegen_flags: <defaults>
</compile_context>

<pallas_src>
import jax
import jax.numpy as jnp
from jax.experimental import pallas as pl
from jax.experimental.pallas import tpu as pltpu


# ---------------------------------------------------------------------------
# Helpers
# ---------------------------------------------------------------------------
def _round_up(x, m):
    return ((x + m - 1) // m) * m


def _choose_tm(M):
    # Large M tiles amortize the ~0.35us per-grid-step overhead and fill the
    # 256-wide MXU; keep >= 2 grid steps when possible so both v7x TensorCores
    # get work under dimension_semantics=("parallel", ...).
    for tm in (512, 256, 128):
        if M >= 2 * tm:
            return tm
    return _round_up(max(M, 8), 8)


def _fold_bn(bn, eps=1e-3):
    gamma, beta, rmean, rvar = bn
    scale = gamma / jnp.sqrt(rvar + eps)
    bias = beta - rmean * scale
    return scale[None, :], bias[None, :]


def _im2col(x_nhwc, kh, kw, ph, pw, sh=1, sw=1):
    N, H, W, C = x_nhwc.shape
    xp = jnp.pad(x_nhwc, ((0, 0), (ph, ph), (pw, pw), (0, 0)))
    Hp, Wp = H + 2 * ph, W + 2 * pw
    Ho = (Hp - kh) // sh + 1
    Wo = (Wp - kw) // sw + 1
    taps = []
    for i in range(kh):
        for j in range(kw):
            taps.append(xp[:, i:i + sh * (Ho - 1) + 1:sh,
                           j:j + sw * (Wo - 1) + 1:sw, :])
    # tap ordering (i, j, c) matches weight flattening (KH, KW, Cin, Cout)
    patches = jnp.concatenate(taps, axis=-1)
    return patches.reshape(N * Ho * Wo, kh * kw * C), Ho, Wo


# ---------------------------------------------------------------------------
# Pallas kernel 1: (patches @ W_scaled) + bias, ReLU, K-reduction grid axis
# ---------------------------------------------------------------------------
def _matmul_bias_relu_kernel(p_ref, w_ref, b_ref, o_ref, acc_ref):
    # p_ref:(tm,tk) bf16  w_ref:(tk,Coutp) bf16 (BN scale folded in)
    # b_ref:(1,Coutp) f32  o_ref:(tm,Coutp) f32  acc_ref: f32 scratch
    @pl.when(pl.program_id(1) == 0)
    def _():
        acc_ref[...] = jnp.zeros_like(acc_ref)

    acc_ref[...] += jnp.dot(p_ref[...], w_ref[...],
                            preferred_element_type=jnp.float32)

    @pl.when(pl.program_id(1) == pl.num_programs(1) - 1)
    def _():
        o_ref[...] = jnp.maximum(acc_ref[...] + b_ref[...], 0.0)


def _matmul_bias_relu(patches, w_flat, bias, max_tk=1024):
    """(M,K) @ (K,Cout) with fused per-channel bias + ReLU.

    BN scale must already be folded into w_flat.  Pads M to the tile, Cout to
    a multiple of 128 (lane-dense stores; padded lanes have zero weight/bias)
    and splits K into an 'arbitrary' reduction grid axis when K is large."""
    M, K = patches.shape
    Cout = w_flat.shape[1]
    Coutp = _round_up(Cout, 128)
    if Coutp != Cout:
        w_flat = jnp.pad(w_flat, ((0, 0), (0, Coutp - Cout)))
        bias = jnp.pad(bias, ((0, 0), (0, Coutp - Cout)))

    tm = _choose_tm(M)
    Mpad = _round_up(M, tm)
    if Mpad != M:
        patches = jnp.pad(patches, ((0, Mpad - M), (0, 0)))

    if K <= 2 * max_tk:
        tk, Kpad = K, K                           # single K step, full-K blocks
    else:
        tk = max_tk
        Kpad = _round_up(K, tk)
        patches = jnp.pad(patches, ((0, 0), (0, Kpad - K)))
        w_flat = jnp.pad(w_flat, ((0, Kpad - K), (0, 0)))

    # bf16 operands halve HBM/VMEM traffic and double MXU rate; f32 accumulate.
    patches = patches.astype(jnp.bfloat16)
    w_flat = w_flat.astype(jnp.bfloat16)
    bias = bias.astype(jnp.float32)

    grid = (Mpad // tm, Kpad // tk)
    cost = pl.CostEstimate(
        flops=2 * Mpad * Kpad * Coutp,
        transcendentals=0,
        bytes_accessed=(Mpad * Kpad * 2 + Kpad * Coutp * 2 * grid[0]
                        + Mpad * Coutp * 4 + Coutp * 4),
    )

    out = pl.pallas_call(
        _matmul_bias_relu_kernel,
        out_shape=jax.ShapeDtypeStruct((Mpad, Coutp), jnp.float32),
        grid_spec=pltpu.PrefetchScalarGridSpec(
            num_scalar_prefetch=0,
            grid=grid,
            in_specs=[
                pl.BlockSpec((tm, tk), lambda i, k: (i, k)),      # patch rows
                pl.BlockSpec((tk, Coutp), lambda i, k: (k, 0)),   # scaled weight
                pl.BlockSpec((1, Coutp), lambda i, k: (0, 0)),    # bn bias
            ],
            out_specs=pl.BlockSpec((tm, Coutp), lambda i, k: (i, 0)),
            scratch_shapes=[pltpu.VMEM((tm, Coutp), jnp.float32)],
        ),
        compiler_params=pltpu.CompilerParams(
            dimension_semantics=("parallel", "arbitrary")),
        cost_estimate=cost,
    )(patches, w_flat, bias)
    return out[:M, :Cout]


# ---------------------------------------------------------------------------
# Pallas kernel 2: fused max_pool2d(3,2) + 1x1 conv + BN + ReLU
# ---------------------------------------------------------------------------
def _maxpool_conv_bias_relu_kernel(p_ref, w_ref, b_ref, o_ref):
    # p_ref:(9,tm,Cin) bf16 -> tap max on the VPU, then one MXU matmul.
    pooled = jnp.max(p_ref[...], axis=0)                       # (tm, Cin)
    acc = jnp.dot(pooled, w_ref[...], preferred_element_type=jnp.float32)
    o_ref[...] = jnp.maximum(acc + b_ref[...], 0.0)


def maxpool3s2_conv1_bn_relu(x_nhwc, W, bn):
    """F.max_pool2d(x, 3, stride=2) fused with the following 1x1 BasicConv2d."""
    N, H, Wd, Cin = x_nhwc.shape
    Cout = W.shape[0]
    Ho = (H - 3) // 2 + 1
    Wo = (Wd - 3) // 2 + 1
    taps = []
    for i in range(3):
        for j in range(3):
            taps.append(x_nhwc[:, i:i + 2 * (Ho - 1) + 1:2,
                               j:j + 2 * (Wo - 1) + 1:2, :])
    M = N * Ho * Wo
    patches = jnp.stack(taps, axis=0).reshape(9, M, Cin)

    scale, bias = _fold_bn(bn)
    w_flat = jnp.transpose(W[:, :, 0, 0], (1, 0)) * scale      # (Cin, Cout)
    Coutp = _round_up(Cout, 128)
    if Coutp != Cout:
        w_flat = jnp.pad(w_flat, ((0, 0), (0, Coutp - Cout)))
        bias = jnp.pad(bias, ((0, 0), (0, Coutp - Cout)))

    tm = _choose_tm(M)
    Mpad = _round_up(M, tm)
    if Mpad != M:
        patches = jnp.pad(patches, ((0, 0), (0, Mpad - M), (0, 0)))

    patches = patches.astype(jnp.bfloat16)
    w_flat = w_flat.astype(jnp.bfloat16)
    bias = bias.astype(jnp.float32)

    cost = pl.CostEstimate(
        flops=2 * Mpad * Cin * Coutp + 9 * Mpad * Cin,
        transcendentals=0,
        bytes_accessed=9 * Mpad * Cin * 2 + Cin * Coutp * 2 + Mpad * Coutp * 4,
    )

    out = pl.pallas_call(
        _maxpool_conv_bias_relu_kernel,
        out_shape=jax.ShapeDtypeStruct((Mpad, Coutp), jnp.float32),
        grid_spec=pltpu.PrefetchScalarGridSpec(
            num_scalar_prefetch=0,
            grid=(Mpad // tm,),
            in_specs=[
                pl.BlockSpec((9, tm, Cin), lambda i: (0, i, 0)),  # 9 pool taps
                pl.BlockSpec((Cin, Coutp), lambda i: (0, 0)),     # scaled weight
                pl.BlockSpec((1, Coutp), lambda i: (0, 0)),       # bn bias
            ],
            out_specs=pl.BlockSpec((tm, Coutp), lambda i: (i, 0)),
        ),
        compiler_params=pltpu.CompilerParams(
            dimension_semantics=("parallel",)),
        cost_estimate=cost,
    )(patches, w_flat, bias)
    return out[:M, :Cout].reshape(N, Ho, Wo, Cout)


# ---------------------------------------------------------------------------
# JAX glue: per-branch wrappers
# ---------------------------------------------------------------------------
def conv_bn_relu(x_nhwc, W, bn, kh, kw, ph, pw, sh=1, sw=1):
    """BasicConv2d: conv(bias=False) + BN(eval) + ReLU.  W is (Cout,Cin,KH,KW)."""
    N = x_nhwc.shape[0]
    Cin = x_nhwc.shape[3]
    Cout = W.shape[0]
    patches, Ho, Wo = _im2col(x_nhwc, kh, kw, ph, pw, sh, sw)
    scale, bias = _fold_bn(bn)
    w_flat = jnp.transpose(W, (2, 3, 1, 0)).reshape(kh * kw * Cin, Cout) * scale
    out = _matmul_bias_relu(patches, w_flat, bias)
    return out.reshape(N, Ho, Wo, Cout)


def fused_conv1x1_bn_relu(x_nhwc, param_list):
    """Several 1x1 BasicConv2d that share the same input, run as ONE kernel:
    weights/scale/bias are concatenated along Cout so x is DMA'd once."""
    N, H, Wd, Cin = x_nhwc.shape
    ws, bs, couts = [], [], []
    for p in param_list:
        scale, bias = _fold_bn(p["bn"])
        ws.append(jnp.transpose(p["W"][:, :, 0, 0], (1, 0)) * scale)
        bs.append(bias)
        couts.append(p["W"].shape[0])
    w_flat = jnp.concatenate(ws, axis=1)          # (Cin, sum Cout) = (Cin, 384)
    bias = jnp.concatenate(bs, axis=1)
    patches = x_nhwc.reshape(N * H * Wd, Cin)
    out = _matmul_bias_relu(patches, w_flat, bias)
    outs, off = [], 0
    for c in couts:
        outs.append(out[:, off:off + c].reshape(N, H, Wd, c))
        off += c
    return outs


# ---------------------------------------------------------------------------
# Module: InceptionD_smaller
# ---------------------------------------------------------------------------
def _init_basic_conv(key, cin, cout, kh, kw):
    k1, k2, k3, k4, k5 = jax.random.split(key, 5)
    fan_in = cin * kh * kw
    W = jax.random.normal(k1, (cout, cin, kh, kw), jnp.float32) / jnp.sqrt(fan_in)
    gamma = 1.0 + 0.1 * jax.random.normal(k2, (cout,), jnp.float32)
    beta = 0.1 * jax.random.normal(k3, (cout,), jnp.float32)
    rmean = 0.1 * jax.random.normal(k4, (cout,), jnp.float32)
    rvar = 0.9 + 0.1 * jnp.abs(jax.random.normal(k5, (cout,), jnp.float32))
    return dict(W=W, bn=(gamma, beta, rmean, rvar))


def init_inception_d_smaller(key, in_channels, chf=1.0):
    shapes = {
        "branch3x3_1":   (in_channels,    int(chf * 192), 1, 1),
        "branch3x3_2":   (int(chf * 192), int(chf * 216), 3, 3),
        "branch7x7x3_1": (in_channels,    int(chf * 192), 1, 1),
        "branch7x7x3_2": (int(chf * 192), int(chf * 192), 1, 7),
        "branch7x7x3_3": (int(chf * 192), int(chf * 192), 7, 1),
        "branch7x7x3_4": (int(chf * 192), int(chf * 168), 3, 3),
        "branch_pool":   (in_channels,    int(chf * 128), 1, 1),
    }
    keys = jax.random.split(key, len(shapes))
    return {name: _init_basic_conv(k, *shape)
            for k, (name, shape) in zip(keys, shapes.items())}


def inception_d_smaller(x_nchw, params):
    x = jnp.transpose(x_nchw, (0, 2, 3, 1))        # NCHW -> NHWC

    # The two 1x1 convs reading x run as a single fused matmul (384 lanes out).
    y1, y2 = fused_conv1x1_bn_relu(
        x, [params["branch3x3_1"], params["branch7x7x3_1"]])

    # branch3x3: 1x1 -> 3x3 stride 2 (valid)
    b3 = conv_bn_relu(y1, params["branch3x3_2"]["W"], params["branch3x3_2"]["bn"],
                      3, 3, 0, 0, 2, 2)

    # branch7x7x3: 1x1 -> 1x7 -> 7x1 -> 3x3 stride 2 (valid)
    z = conv_bn_relu(y2, params["branch7x7x3_2"]["W"], params["branch7x7x3_2"]["bn"],
                     1, 7, 0, 3)
    z = conv_bn_relu(z, params["branch7x7x3_3"]["W"], params["branch7x7x3_3"]["bn"],
                     7, 1, 3, 0)
    b7 = conv_bn_relu(z, params["branch7x7x3_4"]["W"], params["branch7x7x3_4"]["bn"],
                      3, 3, 0, 0, 2, 2)

    # branch_pool: max_pool(3, stride=2) + 1x1 conv, fused in one kernel.
    bp = maxpool3s2_conv1_bn_relu(x, params["branch_pool"]["W"],
                                  params["branch_pool"]["bn"])

    out = jnp.concatenate([b3, b7, bp], axis=-1)   # channel concat (NHWC)
    return jnp.transpose(out, (0, 3, 1, 2))        # back to NCHW


if __name__ == "__main__":
    key = jax.random.PRNGKey(0)
    kx, kp = jax.random.split(key)

    N, Cin, H, W = 2, 4, 16, 16
    x = jax.random.normal(kx, (N, Cin, H, W), jnp.float32)
    params = init_inception_d_smaller(kp, Cin, chf=1.0)

    out = jax.jit(inception_d_smaller)(x, params)
    out = jax.block_until_ready(out)

    # Output spatial: (16-3)//2 + 1 = 7; channels 216 + 168 + 128 = 512.
    assert out.shape == (N, 512, 7, 7), out.shape
    assert bool(jnp.all(out >= 0.0))   # ReLU output
    print("KERNEL_OK")
</pallas_src>

<mosaic_0001>
module attributes {stable_mosaic.version = 11 : i64} {
  func.func @_maxpool_conv_bias_relu_kernel(%arg0: i32, %arg1: memref<9x104x4xbf16, #tpu.memory_space<vmem>>, %arg2: memref<4x128xbf16, #tpu.memory_space<vmem>>, %arg3: memref<1x128xf32, #tpu.memory_space<vmem>>, %arg4: memref<104x128xf32, #tpu.memory_space<vmem>>) attributes {dimension_semantics = [#tpu.dimension_semantics<parallel>], iteration_bounds = array<i64: 1>, scalar_prefetch = 0 : i64, scratch_operands = 0 : i64, tpu.core_type = #tpu.core_type<tc>, window_params = [{transform_indices = @transform_0, window_bounds = array<i64: 9, 104, 4>}, {pipeline_mode = #tpu.pipeline_mode<synchronous>, transform_indices = @transform_1, window_bounds = array<i64: 4, 128>}, {pipeline_mode = #tpu.pipeline_mode<synchronous>, transform_indices = @transform_2, window_bounds = array<i64: 1, 128>}, {transform_indices = @transform_3, window_bounds = array<i64: 104, 128>}]} {
    %c0 = arith.constant 0 : index
    %c0_0 = arith.constant 0 : index
    %c0_1 = arith.constant 0 : index
    %0 = vector.load %arg1[%c0, %c0_0, %c0_1] : memref<9x104x4xbf16, #tpu.memory_space<vmem>>, vector<9x104x4xbf16>
    %cst = arith.constant dense<0xFF80> : vector<104x4xbf16>
    %1 = vector.multi_reduction <maximumf>, %0, %cst [0] : vector<9x104x4xbf16> to vector<104x4xbf16>
    %c0_2 = arith.constant 0 : index
    %c0_3 = arith.constant 0 : index
    %2 = vector.load %arg2[%c0_2, %c0_3] : memref<4x128xbf16, #tpu.memory_space<vmem>>, vector<4x128xbf16>
    %cst_4 = arith.constant dense<0.000000e+00> : vector<104x128xf32>
    %3 = tpu.matmul %1, %2, %cst_4 {dimension_numbers = #tpu.dot_dimension_numbers<[1], [0], [0], [1], [0, 0, 1, 1], [], []>} : vector<104x4xbf16>, vector<4x128xbf16>, vector<104x128xf32> -> vector<104x128xf32>
    %c0_5 = arith.constant 0 : index
    %c0_6 = arith.constant 0 : index
    %4 = vector.load %arg3[%c0_5, %c0_6] : memref<1x128xf32, #tpu.memory_space<vmem>>, vector<1x128xf32>
    %5 = vector.broadcast %4 : vector<1x128xf32> to vector<104x128xf32>
    %6 = arith.addf %3, %5 : vector<104x128xf32>
    %cst_7 = arith.constant 0.000000e+00 : f32
    %7 = vector.broadcast %cst_7 : f32 to vector<104x128xf32>
    %8 = arith.maximumf %6, %7 : vector<104x128xf32>
    %c0_8 = arith.constant 0 : index
    %c0_9 = arith.constant 0 : index
    %9 = vector.load %arg4[%c0_8, %c0_9] : memref<104x128xf32, #tpu.memory_space<vmem>>, vector<104x128xf32>
    tpu.vector_store %arg4[%c0_8, %c0_9], %8 {strides = array<i32>} : memref<104x128xf32, #tpu.memory_space<vmem>>, vector<104x128xf32>,
    return
  }
  func.func @transform_0(%arg0: i32) -> (i32, i32, i32) {
    %c0_i32 = arith.constant 0 : i32
    %c0_i32_0 = arith.constant 0 : i32
    %c0_i32_1 = arith.constant 0 : i32
    return %c0_i32, %arg0, %c0_i32_0 : i32, i32, i32
  }
  func.func @transform_1(%arg0: i32) -> (i32, i32) {
    %c0_i32 = arith.constant 0 : i32
    %c0_i32_0 = arith.constant 0 : i32
    %c0_i32_1 = arith.constant 0 : i32
    return %c0_i32, %c0_i32_0 : i32, i32
  }
  func.func @transform_2(%arg0: i32) -> (i32, i32) {
    %c0_i32 = arith.constant 0 : i32
    %c0_i32_0 = arith.constant 0 : i32
    %c0_i32_1 = arith.constant 0 : i32
    return %c0_i32, %c0_i32_0 : i32, i32
  }
  func.func @transform_3(%arg0: i32) -> (i32, i32) {
    %c0_i32 = arith.constant 0 : i32
    %c0_i32_0 = arith.constant 0 : i32
    return %arg0, %c0_i32 : i32, i32
  }
}

module attributes {stable_mosaic.version = 11 : i64} {
  func.func @_matmul_bias_relu_kernel(%arg0: i32, %arg1: i32, %arg2: memref<256x4xbf16, #tpu.memory_space<vmem>>, %arg3: memref<4x384xbf16, #tpu.memory_space<vmem>>, %arg4: memref<1x384xf32, #tpu.memory_space<vmem>>, %arg5: memref<256x384xf32, #tpu.memory_space<vmem>>, %arg6: memref<256x384xf32, #tpu.memory_space<vmem>>) attributes {dimension_semantics = [#tpu.dimension_semantics<parallel>, #tpu.dimension_semantics<arbitrary>], iteration_bounds = array<i64: 2, 1>, scalar_prefetch = 0 : i64, scratch_operands = 1 : i64, tpu.core_type = #tpu.core_type<tc>, window_params = [{transform_indices = @transform_0, window_bounds = array<i64: 256, 4>}, {transform_indices = @transform_1, window_bounds = array<i64: 4, 384>}, {pipeline_mode = #tpu.pipeline_mode<synchronous>, transform_indices = @transform_2, window_bounds = array<i64: 1, 384>}, {transform_indices = @transform_3, window_bounds = array<i64: 256, 384>}]} {
    %c0_i32 = arith.constant 0 : i32
    %0 = arith.cmpi eq, %arg1, %c0_i32 : i32
    %1 = arith.extui %0 : i1 to i32
    %c0_i32_0 = arith.constant 0 : i32
    %2 = arith.cmpi ne, %1, %c0_i32_0 : i32
    scf.if %2 {
      %cst_10 = arith.constant 0.000000e+00 : f32
      %12 = vector.broadcast %cst_10 : f32 to vector<256x384xf32>
      %c0_11 = arith.constant 0 : index
      %c0_12 = arith.constant 0 : index
      %13 = vector.load %arg6[%c0_11, %c0_12] : memref<256x384xf32, #tpu.memory_space<vmem>>, vector<256x384xf32>
      tpu.vector_store %arg6[%c0_11, %c0_12], %12 {strides = array<i32>} : memref<256x384xf32, #tpu.memory_space<vmem>>, vector<256x384xf32>,
    } else {
    }
    %c0 = arith.constant 0 : index
    %c0_1 = arith.constant 0 : index
    %3 = vector.load %arg6[%c0, %c0_1] : memref<256x384xf32, #tpu.memory_space<vmem>>, vector<256x384xf32>
    %c0_2 = arith.constant 0 : index
    %c0_3 = arith.constant 0 : index
    %4 = vector.load %arg2[%c0_2, %c0_3] : memref<256x4xbf16, #tpu.memory_space<vmem>>, vector<256x4xbf16>
    %c0_4 = arith.constant 0 : index
    %c0_5 = arith.constant 0 : index
    %5 = vector.load %arg3[%c0_4, %c0_5] : memref<4x384xbf16, #tpu.memory_space<vmem>>, vector<4x384xbf16>
    %cst = arith.constant dense<0.000000e+00> : vector<256x384xf32>
    %6 = tpu.matmul %4, %5, %cst {dimension_numbers = #tpu.dot_dimension_numbers<[1], [0], [0], [1], [0, 0, 1, 1], [], []>} : vector<256x4xbf16>, vector<4x384xbf16>, vector<256x384xf32> -> vector<256x384xf32>
    %7 = arith.addf %3, %6 : vector<256x384xf32>
    %c0_6 = arith.constant 0 : index
    %c0_7 = arith.constant 0 : index
    %8 = vector.load %arg6[%c0_6, %c0_7] : memref<256x384xf32, #tpu.memory_space<vmem>>, vector<256x384xf32>
    tpu.vector_store %arg6[%c0_6, %c0_7], %7 {strides = array<i32>} : memref<256x384xf32, #tpu.memory_space<vmem>>, vector<256x384xf32>,
    %c0_i32_8 = arith.constant 0 : i32
    %9 = arith.cmpi eq, %arg1, %c0_i32_8 : i32
    %10 = arith.extui %9 : i1 to i32
    %c0_i32_9 = arith.constant 0 : i32
    %11 = arith.cmpi ne, %10, %c0_i32_9 : i32
    scf.if %11 {
      %c0_10 = arith.constant 0 : index
      %c0_11 = arith.constant 0 : index
      %12 = vector.load %arg6[%c0_10, %c0_11] : memref<256x384xf32, #tpu.memory_space<vmem>>, vector<256x384xf32>
      %c0_12 = arith.constant 0 : index
      %c0_13 = arith.constant 0 : index
      %13 = vector.load %arg4[%c0_12, %c0_13] : memref<1x384xf32, #tpu.memory_space<vmem>>, vector<1x384xf32>
      %14 = vector.broadcast %13 : vector<1x384xf32> to vector<256x384xf32>
      %15 = arith.addf %12, %14 : vector<256x384xf32>
      %cst_14 = arith.constant 0.000000e+00 : f32
      %16 = vector.broadcast %cst_14 : f32 to vector<256x384xf32>
      %17 = arith.maximumf %15, %16 : vector<256x384xf32>
      %c0_15 = arith.constant 0 : index
      %c0_16 = arith.constant 0 : index
      %18 = vector.load %arg5[%c0_15, %c0_16] : memref<256x384xf32, #tpu.memory_space<vmem>>, vector<256x384xf32>
      tpu.vector_store %arg5[%c0_15, %c0_16], %17 {strides = array<i32>} : memref<256x384xf32, #tpu.memory_space<vmem>>, vector<256x384xf32>,
    } else {
    }
    return
  }
  func.func @transform_0(%arg0: i32, %arg1: i32) -> (i32, i32) {
    %c0_i32 = arith.constant 0 : i32
    return %arg0, %arg1 : i32, i32
  }
  func.func @transform_1(%arg0: i32, %arg1: i32) -> (i32, i32) {
    %c0_i32 = arith.constant 0 : i32
    %c0_i32_0 = arith.constant 0 : i32
    return %arg1, %c0_i32 : i32, i32
  }
  func.func @transform_2(%arg0: i32, %arg1: i32) -> (i32, i32) {
    %c0_i32 = arith.constant 0 : i32
    %c0_i32_0 = arith.constant 0 : i32
    %c0_i32_1 = arith.constant 0 : i32
    return %c0_i32, %c0_i32_0 : i32, i32
  }
  func.func @transform_3(%arg0: i32, %arg1: i32) -> (i32, i32) {
    %c0_i32 = arith.constant 0 : i32
    %c0_i32_0 = arith.constant 0 : i32
    return %arg0, %c0_i32 : i32, i32
  }
}

module attributes {stable_mosaic.version = 11 : i64} {
  func.func @_matmul_bias_relu_kernel(%arg0: i32, %arg1: i32, %arg2: memref<104x1728xbf16, #tpu.memory_space<vmem>>, %arg3: memref<1728x256xbf16, #tpu.memory_space<vmem>>, %arg4: memref<1x256xf32, #tpu.memory_space<vmem>>, %arg5: memref<104x256xf32, #tpu.memory_space<vmem>>, %arg6: memref<104x256xf32, #tpu.memory_space<vmem>>) attributes {dimension_semantics = [#tpu.dimension_semantics<parallel>, #tpu.dimension_semantics<arbitrary>], iteration_bounds = array<i64: 1, 1>, scalar_prefetch = 0 : i64, scratch_operands = 1 : i64, tpu.core_type = #tpu.core_type<tc>, window_params = [{transform_indices = @transform_0, window_bounds = array<i64: 104, 1728>}, {transform_indices = @transform_1, window_bounds = array<i64: 1728, 256>}, {pipeline_mode = #tpu.pipeline_mode<synchronous>, transform_indices = @transform_2, window_bounds = array<i64: 1, 256>}, {transform_indices = @transform_3, window_bounds = array<i64: 104, 256>}]} {
    %c0_i32 = arith.constant 0 : i32
    %0 = arith.cmpi eq, %arg1, %c0_i32 : i32
    %1 = arith.extui %0 : i1 to i32
    %c0_i32_0 = arith.constant 0 : i32
    %2 = arith.cmpi ne, %1, %c0_i32_0 : i32
    scf.if %2 {
      %cst_10 = arith.constant 0.000000e+00 : f32
      %12 = vector.broadcast %cst_10 : f32 to vector<104x256xf32>
      %c0_11 = arith.constant 0 : index
      %c0_12 = arith.constant 0 : index
      %13 = vector.load %arg6[%c0_11, %c0_12] : memref<104x256xf32, #tpu.memory_space<vmem>>, vector<104x256xf32>
      tpu.vector_store %arg6[%c0_11, %c0_12], %12 {strides = array<i32>} : memref<104x256xf32, #tpu.memory_space<vmem>>, vector<104x256xf32>,
    } else {
    }
    %c0 = arith.constant 0 : index
    %c0_1 = arith.constant 0 : index
    %3 = vector.load %arg6[%c0, %c0_1] : memref<104x256xf32, #tpu.memory_space<vmem>>, vector<104x256xf32>
    %c0_2 = arith.constant 0 : index
    %c0_3 = arith.constant 0 : index
    %4 = vector.load %arg2[%c0_2, %c0_3] : memref<104x1728xbf16, #tpu.memory_space<vmem>>, vector<104x1728xbf16>
    %c0_4 = arith.constant 0 : index
    %c0_5 = arith.constant 0 : index
    %5 = vector.load %arg3[%c0_4, %c0_5] : memref<1728x256xbf16, #tpu.memory_space<vmem>>, vector<1728x256xbf16>
    %cst = arith.constant dense<0.000000e+00> : vector<104x256xf32>
    %6 = tpu.matmul %4, %5, %cst {dimension_numbers = #tpu.dot_dimension_numbers<[1], [0], [0], [1], [0, 0, 1, 1], [], []>} : vector<104x1728xbf16>, vector<1728x256xbf16>, vector<104x256xf32> -> vector<104x256xf32>
    %7 = arith.addf %3, %6 : vector<104x256xf32>
    %c0_6 = arith.constant 0 : index
    %c0_7 = arith.constant 0 : index
    %8 = vector.load %arg6[%c0_6, %c0_7] : memref<104x256xf32, #tpu.memory_space<vmem>>, vector<104x256xf32>
    tpu.vector_store %arg6[%c0_6, %c0_7], %7 {strides = array<i32>} : memref<104x256xf32, #tpu.memory_space<vmem>>, vector<104x256xf32>,
    %c0_i32_8 = arith.constant 0 : i32
    %9 = arith.cmpi eq, %arg1, %c0_i32_8 : i32
    %10 = arith.extui %9 : i1 to i32
    %c0_i32_9 = arith.constant 0 : i32
    %11 = arith.cmpi ne, %10, %c0_i32_9 : i32
    scf.if %11 {
      %c0_10 = arith.constant 0 : index
      %c0_11 = arith.constant 0 : index
      %12 = vector.load %arg6[%c0_10, %c0_11] : memref<104x256xf32, #tpu.memory_space<vmem>>, vector<104x256xf32>
      %c0_12 = arith.constant 0 : index
      %c0_13 = arith.constant 0 : index
      %13 = vector.load %arg4[%c0_12, %c0_13] : memref<1x256xf32, #tpu.memory_space<vmem>>, vector<1x256xf32>
      %14 = vector.broadcast %13 : vector<1x256xf32> to vector<104x256xf32>
      %15 = arith.addf %12, %14 : vector<104x256xf32>
      %cst_14 = arith.constant 0.000000e+00 : f32
      %16 = vector.broadcast %cst_14 : f32 to vector<104x256xf32>
      %17 = arith.maximumf %15, %16 : vector<104x256xf32>
      %c0_15 = arith.constant 0 : index
      %c0_16 = arith.constant 0 : index
      %18 = vector.load %arg5[%c0_15, %c0_16] : memref<104x256xf32, #tpu.memory_space<vmem>>, vector<104x256xf32>
      tpu.vector_store %arg5[%c0_15, %c0_16], %17 {strides = array<i32>} : memref<104x256xf32, #tpu.memory_space<vmem>>, vector<104x256xf32>,
    } else {
    }
    return
  }
  func.func @transform_0(%arg0: i32, %arg1: i32) -> (i32, i32) {
    %c0_i32 = arith.constant 0 : i32
    return %arg0, %arg1 : i32, i32
  }
  func.func @transform_1(%arg0: i32, %arg1: i32) -> (i32, i32) {
    %c0_i32 = arith.constant 0 : i32
    %c0_i32_0 = arith.constant 0 : i32
    return %arg1, %c0_i32 : i32, i32
  }
  func.func @transform_2(%arg0: i32, %arg1: i32) -> (i32, i32) {
    %c0_i32 = arith.constant 0 : i32
    %c0_i32_0 = arith.constant 0 : i32
    %c0_i32_1 = arith.constant 0 : i32
    return %c0_i32, %c0_i32_0 : i32, i32
  }
  func.func @transform_3(%arg0: i32, %arg1: i32) -> (i32, i32) {
    %c0_i32 = arith.constant 0 : i32
    %c0_i32_0 = arith.constant 0 : i32
    return %arg0, %c0_i32 : i32, i32
  }
}

module attributes {stable_mosaic.version = 11 : i64} {
  func.func @_matmul_bias_relu_kernel(%arg0: i32, %arg1: i32, %arg2: memref<256x1344xbf16, #tpu.memory_space<vmem>>, %arg3: memref<1344x256xbf16, #tpu.memory_space<vmem>>, %arg4: memref<1x256xf32, #tpu.memory_space<vmem>>, %arg5: memref<256x256xf32, #tpu.memory_space<vmem>>, %arg6: memref<256x256xf32, #tpu.memory_space<vmem>>) attributes {dimension_semantics = [#tpu.dimension_semantics<parallel>, #tpu.dimension_semantics<arbitrary>], iteration_bounds = array<i64: 2, 1>, scalar_prefetch = 0 : i64, scratch_operands = 1 : i64, tpu.core_type = #tpu.core_type<tc>, window_params = [{transform_indices = @transform_0, window_bounds = array<i64: 256, 1344>}, {transform_indices = @transform_1, window_bounds = array<i64: 1344, 256>}, {pipeline_mode = #tpu.pipeline_mode<synchronous>, transform_indices = @transform_2, window_bounds = array<i64: 1, 256>}, {transform_indices = @transform_3, window_bounds = array<i64: 256, 256>}]} {
    %c0_i32 = arith.constant 0 : i32
    %0 = arith.cmpi eq, %arg1, %c0_i32 : i32
    %1 = arith.extui %0 : i1 to i32
    %c0_i32_0 = arith.constant 0 : i32
    %2 = arith.cmpi ne, %1, %c0_i32_0 : i32
    scf.if %2 {
      %cst_10 = arith.constant 0.000000e+00 : f32
      %12 = vector.broadcast %cst_10 : f32 to vector<256x256xf32>
      %c0_11 = arith.constant 0 : index
      %c0_12 = arith.constant 0 : index
      %13 = vector.load %arg6[%c0_11, %c0_12] : memref<256x256xf32, #tpu.memory_space<vmem>>, vector<256x256xf32>
      tpu.vector_store %arg6[%c0_11, %c0_12], %12 {strides = array<i32>} : memref<256x256xf32, #tpu.memory_space<vmem>>, vector<256x256xf32>,
    } else {
    }
    %c0 = arith.constant 0 : index
    %c0_1 = arith.constant 0 : index
    %3 = vector.load %arg6[%c0, %c0_1] : memref<256x256xf32, #tpu.memory_space<vmem>>, vector<256x256xf32>
    %c0_2 = arith.constant 0 : index
    %c0_3 = arith.constant 0 : index
    %4 = vector.load %arg2[%c0_2, %c0_3] : memref<256x1344xbf16, #tpu.memory_space<vmem>>, vector<256x1344xbf16>
    %c0_4 = arith.constant 0 : index
    %c0_5 = arith.constant 0 : index
    %5 = vector.load %arg3[%c0_4, %c0_5] : memref<1344x256xbf16, #tpu.memory_space<vmem>>, vector<1344x256xbf16>
    %cst = arith.constant dense<0.000000e+00> : vector<256x256xf32>
    %6 = tpu.matmul %4, %5, %cst {dimension_numbers = #tpu.dot_dimension_numbers<[1], [0], [0], [1], [0, 0, 1, 1], [], []>} : vector<256x1344xbf16>, vector<1344x256xbf16>, vector<256x256xf32> -> vector<256x256xf32>
    %7 = arith.addf %3, %6 : vector<256x256xf32>
    %c0_6 = arith.constant 0 : index
    %c0_7 = arith.constant 0 : index
    %8 = vector.load %arg6[%c0_6, %c0_7] : memref<256x256xf32, #tpu.memory_space<vmem>>, vector<256x256xf32>
    tpu.vector_store %arg6[%c0_6, %c0_7], %7 {strides = array<i32>} : memref<256x256xf32, #tpu.memory_space<vmem>>, vector<256x256xf32>,
    %c0_i32_8 = arith.constant 0 : i32
    %9 = arith.cmpi eq, %arg1, %c0_i32_8 : i32
    %10 = arith.extui %9 : i1 to i32
    %c0_i32_9 = arith.constant 0 : i32
    %11 = arith.cmpi ne, %10, %c0_i32_9 : i32
    scf.if %11 {
      %c0_10 = arith.constant 0 : index
      %c0_11 = arith.constant 0 : index
      %12 = vector.load %arg6[%c0_10, %c0_11] : memref<256x256xf32, #tpu.memory_space<vmem>>, vector<256x256xf32>
      %c0_12 = arith.constant 0 : index
      %c0_13 = arith.constant 0 : index
      %13 = vector.load %arg4[%c0_12, %c0_13] : memref<1x256xf32, #tpu.memory_space<vmem>>, vector<1x256xf32>
      %14 = vector.broadcast %13 : vector<1x256xf32> to vector<256x256xf32>
      %15 = arith.addf %12, %14 : vector<256x256xf32>
      %cst_14 = arith.constant 0.000000e+00 : f32
      %16 = vector.broadcast %cst_14 : f32 to vector<256x256xf32>
      %17 = arith.maximumf %15, %16 : vector<256x256xf32>
      %c0_15 = arith.constant 0 : index
      %c0_16 = arith.constant 0 : index
      %18 = vector.load %arg5[%c0_15, %c0_16] : memref<256x256xf32, #tpu.memory_space<vmem>>, vector<256x256xf32>
      tpu.vector_store %arg5[%c0_15, %c0_16], %17 {strides = array<i32>} : memref<256x256xf32, #tpu.memory_space<vmem>>, vector<256x256xf32>,
    } else {
    }
    return
  }
  func.func @transform_0(%arg0: i32, %arg1: i32) -> (i32, i32) {
    %c0_i32 = arith.constant 0 : i32
    return %arg0, %arg1 : i32, i32
  }
  func.func @transform_1(%arg0: i32, %arg1: i32) -> (i32, i32) {
    %c0_i32 = arith.constant 0 : i32
    %c0_i32_0 = arith.constant 0 : i32
    return %arg1, %c0_i32 : i32, i32
  }
  func.func @transform_2(%arg0: i32, %arg1: i32) -> (i32, i32) {
    %c0_i32 = arith.constant 0 : i32
    %c0_i32_0 = arith.constant 0 : i32
    %c0_i32_1 = arith.constant 0 : i32
    return %c0_i32, %c0_i32_0 : i32, i32
  }
  func.func @transform_3(%arg0: i32, %arg1: i32) -> (i32, i32) {
    %c0_i32 = arith.constant 0 : i32
    %c0_i32_0 = arith.constant 0 : i32
    return %arg0, %c0_i32 : i32, i32
  }
}

</mosaic_0001>

<llo_original>
// kernel: inception_d_smaller.11
$region0: #{inception_d_smaller.11}
  #allocation0 [shape = 'u32[]', space=smem, size = 0x4, offset = 0x4, fixed_abs, tag = 'smem constant byte address 0x4 - core index']
  #allocation1 [shape = 'u32[144,128]{1,0:T(1,128)}', space=vmem, size = 0x12000, scoped, tag = 'internal scratch']
  %s0 = inlined_call_operand.vmem [shape: bf16[9,104,4], index: 0, kind: input, shape index: {}]
  %s1 = inlined_call_operand.vmem [shape: bf16[4,128], index: 1, kind: input, shape index: {}]
  %s2 = inlined_call_operand.vmem [shape: f32[1,128], index: 2, kind: input, shape index: {}]
  %s3 = inlined_call_operand.vmem [shape: f32[104,128], index: 3, kind: output, shape index: {}]
  %s4 = sld [smem:[#allocation0]]
  $region22: #{inception_d_smaller.11} parent=0
    _
  %s6 = ssub.s32 1, %s4
  %s7 = scalar_select 0, %s6, %s4
  // Predicated region
  $region2: #{inception_d_smaller.11} parent=0 // pred_check
    _
  $region3: #{inception_d_smaller.11} parent=0 // pred_check_branch
    %9 = sbr.rel (0) target = $region5
  $region4: #{inception_d_smaller.11} parent=0 // pred_region
    _
  $region5: #{inception_d_smaller.11} parent=0 // pred_fallthru
    _
  // Predicated region
  $region6: #{inception_d_smaller.11} parent=0 // pred_check
    _
  $region7: #{inception_d_smaller.11} parent=0 // pred_check_branch
    %11 = sbr.rel (0) target = $region9
  $region8: #{inception_d_smaller.11} parent=0 // pred_region
    _
  $region9: #{inception_d_smaller.11} parent=0 // pred_fallthru
    _
  // Predicated region
  $region10: #{inception_d_smaller.11} parent=0 // pred_check
    _
  $region11: #{inception_d_smaller.11} parent=0 // pred_check_branch
    %13 = sbr.rel (0) target = $region13
  $region12: #{inception_d_smaller.11} parent=0 // pred_region
    _
  $region13: #{inception_d_smaller.11} parent=0 // pred_fallthru
    _
  %v16 = vld [vmem:[%s0] sm:$0xf]
  %v17 = vld [vmem:[%s0 + $0x4] sm:$0xf]
  %v18 = vld [vmem:[%s0 + $0x8] sm:$0xf]
  %v19 = vld [vmem:[%s0 + $0xc] sm:$0xf]
  %v20 = vld [vmem:[%s0 + $0x10] sm:$0xf]
  %v21 = vld [vmem:[%s0 + $0x14] sm:$0xf]
  %v22 = vld [vmem:[%s0 + $0x18] sm:$0xf]
  %v23 = vld [vmem:[%s0 + $0x1c] sm:$0xf]
  %v24 = vld [vmem:[%s0 + $0x20] sm:$0xf]
  %v25 = vld [vmem:[%s0 + $0x24] sm:$0xf]
  %v26 = vld [vmem:[%s0 + $0x28] sm:$0xf]
  %v27 = vld [vmem:[%s0 + $0x2c] sm:$0xf]
  %v28 = vld [vmem:[%s0 + $0x30] sm:$0xf]
  %v29 = vld [vmem:[%s0 + $0x34] sm:$0xf]
  %v30 = vld [vmem:[%s0 + $0x38] sm:$0xf]
  %v31 = vld [vmem:[%s0 + $0x3c] sm:$0xf]
  %v32 = vld [vmem:[%s0 + $0x40] sm:$0xf]
  %v33 = vld [vmem:[%s0 + $0x44] sm:$0xf]
  %v34 = vld [vmem:[%s0 + $0x48] sm:$0xf]
  %v35 = vld [vmem:[%s0 + $0x4c] sm:$0xf]
  %v36 = vld [vmem:[%s0 + $0x50] sm:$0xf]
  %v37 = vld [vmem:[%s0 + $0x54] sm:$0xf]
  %v38 = vld [vmem:[%s0 + $0x58] sm:$0xf]
  %v39 = vld [vmem:[%s0 + $0x5c] sm:$0xf]
  %v40 = vld [vmem:[%s0 + $0x60] sm:$0xf]
  %v41 = vld [vmem:[%s0 + $0x64] sm:$0xf]
  %v42 = vld [vmem:[%s0 + $0x68] sm:$0xf]
  %v43 = vld [vmem:[%s0 + $0x6c] sm:$0xf]
  %v44 = vld [vmem:[%s0 + $0x70] sm:$0xf]
  %v45 = vld [vmem:[%s0 + $0x74] sm:$0xf]
  %v46 = vld [vmem:[%s0 + $0x78] sm:$0xf]
  %v47 = vld [vmem:[%s0 + $0x7c] sm:$0xf]
  %v48 = vld [vmem:[%s0 + $0x80] sm:$0xf]
  %v49 = vld [vmem:[%s0 + $0x84] sm:$0xf]
  %v50 = vld [vmem:[%s0 + $0x88] sm:$0xf]
  %v51 = vld [vmem:[%s0 + $0x8c] sm:$0xf]
  %v52 = vld [vmem:[%s0 + $0x90] sm:$0xf]
  %v53 = vld [vmem:[%s0 + $0x94] sm:$0xf]
  %v54 = vld [vmem:[%s0 + $0x98] sm:$0xf]
  %v55 = vld [vmem:[%s0 + $0x9c] sm:$0xf]
  %v56 = vld [vmem:[%s0 + $0xa0] sm:$0xf]
  %v57 = vld [vmem:[%s0 + $0xa4] sm:$0xf]
  %v58 = vld [vmem:[%s0 + $0xa8] sm:$0xf]
  %v59 = vld [vmem:[%s0 + $0xac] sm:$0xf]
  %v60 = vld [vmem:[%s0 + $0xb0] sm:$0xf]
  %v61 = vld [vmem:[%s0 + $0xb4] sm:$0xf]
  %v62 = vld [vmem:[%s0 + $0xb8] sm:$0xf]
  %v63 = vld [vmem:[%s0 + $0xbc] sm:$0xf]
  %v64 = vld [vmem:[%s0 + $0xc0] sm:$0xf]
  %v65 = vld [vmem:[%s0 + $0xc4] sm:$0xf]
  %v66 = vld [vmem:[%s0 + $0xc8] sm:$0xf]
  %v67 = vld [vmem:[%s0 + $0xcc] sm:$0xf]
  %v68 = vld [vmem:[%s0 + $0xd0] sm:$0xf]
  %v69 = vld [vmem:[%s0 + $0xd4] sm:$0xf]
  %v70 = vld [vmem:[%s0 + $0xd8] sm:$0xf]
  %v71 = vld [vmem:[%s0 + $0xdc] sm:$0xf]
  %v72 = vld [vmem:[%s0 + $0xe0] sm:$0xf]
  %v73 = vld [vmem:[%s0 + $0xe4] sm:$0xf]
  %v74 = vld [vmem:[%s0 + $0xe8] sm:$0xf]
  %v75 = vld [vmem:[%s0 + $0xec] sm:$0xf]
  %v76 = vld [vmem:[%s0 + $0xf0] sm:$0xf]
  %v77 = vld [vmem:[%s0 + $0xf4] sm:$0xf]
  %v78 = vld [vmem:[%s0 + $0xf8] sm:$0xf]
  %v79 = vld [vmem:[%s0 + $0xfc] sm:$0xf]
  %v80 = vld [vmem:[%s0 + $0x100] sm:$0xf]
  %v81 = vld [vmem:[%s0 + $0x104] sm:$0xf]
  %v82 = vld [vmem:[%s0 + $0x108] sm:$0xf]
  %v83 = vld [vmem:[%s0 + $0x10c] sm:$0xf]
  %v84 = vld [vmem:[%s0 + $0x110] sm:$0xf]
  %v85 = vld [vmem:[%s0 + $0x114] sm:$0xf]
  %v86 = vld [vmem:[%s0 + $0x118] sm:$0xf]
  %v87 = vld [vmem:[%s0 + $0x11c] sm:$0xf]
  %v88 = vld [vmem:[%s0 + $0x120] sm:$0xf]
  %v89 = vld [vmem:[%s0 + $0x124] sm:$0xf]
  %v90 = vld [vmem:[%s0 + $0x128] sm:$0xf]
  %v91 = vld [vmem:[%s0 + $0x12c] sm:$0xf]
  %v92 = vld [vmem:[%s0 + $0x130] sm:$0xf]
  %v93 = vld [vmem:[%s0 + $0x134] sm:$0xf]
  %v94 = vld [vmem:[%s0 + $0x138] sm:$0xf]
  %v95 = vld [vmem:[%s0 + $0x13c] sm:$0xf]
  %v96 = vld [vmem:[%s0 + $0x140] sm:$0xf]
  %v97 = vld [vmem:[%s0 + $0x144] sm:$0xf]
  %v98 = vld [vmem:[%s0 + $0x148] sm:$0xf]
  %v99 = vld [vmem:[%s0 + $0x14c] sm:$0xf]
  %v100 = vld [vmem:[%s0 + $0x150] sm:$0xf]
  %v101 = vld [vmem:[%s0 + $0x154] sm:$0xf]
  %v102 = vld [vmem:[%s0 + $0x158] sm:$0xf]
  %v103 = vld [vmem:[%s0 + $0x15c] sm:$0xf]
  %v104 = vld [vmem:[%s0 + $0x160] sm:$0xf]
  %v105 = vld [vmem:[%s0 + $0x164] sm:$0xf]
  %v106 = vld [vmem:[%s0 + $0x168] sm:$0xf]
  %v107 = vld [vmem:[%s0 + $0x16c] sm:$0xf]
  %v108 = vld [vmem:[%s0 + $0x170] sm:$0xf]
  %v109 = vld [vmem:[%s0 + $0x174] sm:$0xf]
  %v110 = vld [vmem:[%s0 + $0x178] sm:$0xf]
  %v111 = vld [vmem:[%s0 + $0x17c] sm:$0xf]
  %v112 = vld [vmem:[%s0 + $0x180] sm:$0xf]
  %v113 = vld [vmem:[%s0 + $0x184] sm:$0xf]
  %v114 = vld [vmem:[%s0 + $0x188] sm:$0xf]
  %v115 = vld [vmem:[%s0 + $0x18c] sm:$0xf]
  %v116 = vld [vmem:[%s0 + $0x190] sm:$0xf]
  %v117 = vld [vmem:[%s0 + $0x194] sm:$0xf]
  %v118 = vld [vmem:[%s0 + $0x198] sm:$0xf]
  %v119 = vld [vmem:[%s0 + $0x19c] sm:$0xf]
  %v120 = vld [vmem:[%s0 + $0x1a0] sm:$0xf]
  %v121 = vld [vmem:[%s0 + $0x1a4] sm:$0xf]
  %v122 = vld [vmem:[%s0 + $0x1a8] sm:$0xf]
  %v123 = vld [vmem:[%s0 + $0x1ac] sm:$0xf]
  %v124 = vld [vmem:[%s0 + $0x1b0] sm:$0xf]
  %v125 = vld [vmem:[%s0 + $0x1b4] sm:$0xf]
  %v126 = vld [vmem:[%s0 + $0x1b8] sm:$0xf]
  %v127 = vld [vmem:[%s0 + $0x1bc] sm:$0xf]
  %v128 = vld [vmem:[%s0 + $0x1c0] sm:$0xf]
  %v129 = vld [vmem:[%s0 + $0x1c4] sm:$0xf]
  %v130 = vld [vmem:[%s0 + $0x1c8] sm:$0xf]
  %v131 = vld [vmem:[%s0 + $0x1cc] sm:$0xf]
  %v132 = vld [vmem:[%s0 + $0x1d0] sm:$0xf]
  %vm133 = vcmask 27648
  %v136 = vsel %vm133, %v16, 4286644096
  %v139 = vsel %vm133, %v29, 4286644096
  %v141 = vmax.bf16 %v136, %v139
  %v143 = vsel %vm133, %v42, 4286644096
  %v145 = vmax.bf16 %v141, %v143
  %v147 = vsel %vm133, %v55, 4286644096
  %v149 = vmax.bf16 %v145, %v147
  %v151 = vsel %vm133, %v68, 4286644096
  %v153 = vmax.bf16 %v149, %v151
  %v155 = vsel %vm133, %v81, 4286644096
  %v157 = vmax.bf16 %v153, %v155
  %v159 = vsel %vm133, %v94, 4286644096
  %v161 = vmax.bf16 %v157, %v159
  %v163 = vsel %vm133, %v107, 4286644096
  %v165 = vmax.bf16 %v161, %v163
  %v167 = vsel %vm133, %v120, 4286644096
  %v169 = vmax.bf16 %v165, %v167
  %v171 = vsel %vm133, %v17, 4286644096
  %v174 = vsel %vm133, %v30, 4286644096
  %v176 = vmax.bf16 %v171, %v174
  %v178 = vsel %vm133, %v43, 4286644096
  %v180 = vmax.bf16 %v176, %v178
  %v182 = vsel %vm133, %v56, 4286644096
  %v184 = vmax.bf16 %v180, %v182
  %v186 = vsel %vm133, %v69, 4286644096
  %v188 = vmax.bf16 %v184, %v186
  %v190 = vsel %vm133, %v82, 4286644096
  %v192 = vmax.bf16 %v188, %v190
  %v194 = vsel %vm133, %v95, 4286644096
  %v196 = vmax.bf16 %v192, %v194
  %v198 = vsel %vm133, %v108, 4286644096
  %v200 = vmax.bf16 %v196, %v198
  %v202 = vsel %vm133, %v121, 4286644096
  %v204 = vmax.bf16 %v200, %v202
  %v206 = vsel %vm133, %v18, 4286644096
  %v209 = vsel %vm133, %v31, 4286644096
  %v211 = vmax.bf16 %v206, %v209
  %v213 = vsel %vm133, %v44, 4286644096
  %v215 = vmax.bf16 %v211, %v213
  %v217 = vsel %vm133, %v57, 4286644096
  %v219 = vmax.bf16 %v215, %v217
  %v221 = vsel %vm133, %v70, 4286644096
  %v223 = vmax.bf16 %v219, %v221
  %v225 = vsel %vm133, %v83, 4286644096
  %v227 = vmax.bf16 %v223, %v225
  %v229 = vsel %vm133, %v96, 4286644096
  %v231 = vmax.bf16 %v227, %v229
  %v233 = vsel %vm133, %v109, 4286644096
  %v235 = vmax.bf16 %v231, %v233
  %v237 = vsel %vm133, %v122, 4286644096
  %v239 = vmax.bf16 %v235, %v237
  %v241 = vsel %vm133, %v19, 4286644096
  %v244 = vsel %vm133, %v32, 4286644096
  %v246 = vmax.bf16 %v241, %v244
  %v248 = vsel %vm133, %v45, 4286644096
  %v250 = vmax.bf16 %v246, %v248
  %v252 = vsel %vm133, %v58, 4286644096
  %v254 = vmax.bf16 %v250, %v252
  %v256 = vsel %vm133, %v71, 4286644096
  %v258 = vmax.bf16 %v254, %v256
  %v260 = vsel %vm133, %v84, 4286644096
  %v262 = vmax.bf16 %v258, %v260
  %v264 = vsel %vm133, %v97, 4286644096
  %v266 = vmax.bf16 %v262, %v264
  %v268 = vsel %vm133, %v110, 4286644096
  %v270 = vmax.bf16 %v266, %v268
  %v272 = vsel %vm133, %v123, 4286644096
  %v274 = vmax.bf16 %v270, %v272
  %v276 = vsel %vm133, %v20, 4286644096
  %v279 = vsel %vm133, %v33, 4286644096
  %v281 = vmax.bf16 %v276, %v279
  %v283 = vsel %vm133, %v46, 4286644096
  %v285 = vmax.bf16 %v281, %v283
  %v287 = vsel %vm133, %v59, 4286644096
  %v289 = vmax.bf16 %v285, %v287
  %v291 = vsel %vm133, %v72, 4286644096
  %v293 = vmax.bf16 %v289, %v291
  %v295 = vsel %vm133, %v85, 4286644096
  %v297 = vmax.bf16 %v293, %v295
  %v299 = vsel %vm133, %v98, 4286644096
  %v301 = vmax.bf16 %v297, %v299
  %v303 = vsel %vm133, %v111, 4286644096
  %v305 = vmax.bf16 %v301, %v303
  %v307 = vsel %vm133, %v124, 4286644096
  %v309 = vmax.bf16 %v305, %v307
  %v311 = vsel %vm133, %v21, 4286644096
  %v314 = vsel %vm133, %v34, 4286644096
  %v316 = vmax.bf16 %v311, %v314
  %v318 = vsel %vm133, %v47, 4286644096
  %v320 = vmax.bf16 %v316, %v318
  %v322 = vsel %vm133, %v60, 4286644096
  %v324 = vmax.bf16 %v320, %v322
  %v326 = vsel %vm133, %v73, 4286644096
  %v328 = vmax.bf16 %v324, %v326
  %v330 = vsel %vm133, %v86, 4286644096
  %v332 = vmax.bf16 %v328, %v330
  %v334 = vsel %vm133, %v99, 4286644096
  %v336 = vmax.bf16 %v332, %v334
  %v338 = vsel %vm133, %v112, 4286644096
  %v340 = vmax.bf16 %v336, %v338
  %v342 = vsel %vm133, %v125, 4286644096
  %v344 = vmax.bf16 %v340, %v342
  %v346 = vsel %vm133, %v22, 4286644096
  %v349 = vsel %vm133, %v35, 4286644096
  %v351 = vmax.bf16 %v346, %v349
  %v353 = vsel %vm133, %v48, 4286644096
  %v355 = vmax.bf16 %v351, %v353
  %v357 = vsel %vm133, %v61, 4286644096
  %v359 = vmax.bf16 %v355, %v357
  %v361 = vsel %vm133, %v74, 4286644096
  %v363 = vmax.bf16 %v359, %v361
  %v365 = vsel %vm133, %v87, 4286644096
  %v367 = vmax.bf16 %v363, %v365
  %v369 = vsel %vm133, %v100, 4286644096
  %v371 = vmax.bf16 %v367, %v369
  %v373 = vsel %vm133, %v113, 4286644096
  %v375 = vmax.bf16 %v371, %v373
  %v377 = vsel %vm133, %v126, 4286644096
  %v379 = vmax.bf16 %v375, %v377
  %v381 = vsel %vm133, %v23, 4286644096
  %v384 = vsel %vm133, %v36, 4286644096
  %v386 = vmax.bf16 %v381, %v384
  %v388 = vsel %vm133, %v49, 4286644096
  %v390 = vmax.bf16 %v386, %v388
  %v392 = vsel %vm133, %v62, 4286644096
  %v394 = vmax.bf16 %v390, %v392
  %v396 = vsel %vm133, %v75, 4286644096
  %v398 = vmax.bf16 %v394, %v396
  %v400 = vsel %vm133, %v88, 4286644096
  %v402 = vmax.bf16 %v398, %v400
  %v404 = vsel %vm133, %v101, 4286644096
  %v406 = vmax.bf16 %v402, %v404
  %v408 = vsel %vm133, %v114, 4286644096
  %v410 = vmax.bf16 %v406, %v408
  %v412 = vsel %vm133, %v127, 4286644096
  %v414 = vmax.bf16 %v410, %v412
  %v416 = vsel %vm133, %v24, 4286644096
  %v419 = vsel %vm133, %v37, 4286644096
  %v421 = vmax.bf16 %v416, %v419
  %v423 = vsel %vm133, %v50, 4286644096
  %v425 = vmax.bf16 %v421, %v423
  %v427 = vsel %vm133, %v63, 4286644096
  %v429 = vmax.bf16 %v425, %v427
  %v431 = vsel %vm133, %v76, 4286644096
  %v433 = vmax.bf16 %v429, %v431
  %v435 = vsel %vm133, %v89, 4286644096
  %v437 = vmax.bf16 %v433, %v435
  %v439 = vsel %vm133, %v102, 4286644096
  %v441 = vmax.bf16 %v437, %v439
  %v443 = vsel %vm133, %v115, 4286644096
  %v445 = vmax.bf16 %v441, %v443
  %v447 = vsel %vm133, %v128, 4286644096
  %v449 = vmax.bf16 %v445, %v447
  %v451 = vsel %vm133, %v25, 4286644096
  %v454 = vsel %vm133, %v38, 4286644096
  %v456 = vmax.bf16 %v451, %v454
  %v458 = vsel %vm133, %v51, 4286644096
  %v460 = vmax.bf16 %v456, %v458
  %v462 = vsel %vm133, %v64, 4286644096
  %v464 = vmax.bf16 %v460, %v462
  %v466 = vsel %vm133, %v77, 4286644096
  %v468 = vmax.bf16 %v464, %v466
  %v470 = vsel %vm133, %v90, 4286644096
  %v472 = vmax.bf16 %v468, %v470
  %v474 = vsel %vm133, %v103, 4286644096
  %v476 = vmax.bf16 %v472, %v474
  %v478 = vsel %vm133, %v116, 4286644096
  %v480 = vmax.bf16 %v476, %v478
  %v482 = vsel %vm133, %v129, 4286644096
  %v484 = vmax.bf16 %v480, %v482
  %v486 = vsel %vm133, %v26, 4286644096
  %v489 = vsel %vm133, %v39, 4286644096
  %v491 = vmax.bf16 %v486, %v489
  %v493 = vsel %vm133, %v52, 4286644096
  %v495 = vmax.bf16 %v491, %v493
  %v497 = vsel %vm133, %v65, 4286644096
  %v499 = vmax.bf16 %v495, %v497
  %v501 = vsel %vm133, %v78, 4286644096
  %v503 = vmax.bf16 %v499, %v501
  %v505 = vsel %vm133, %v91, 4286644096
  %v507 = vmax.bf16 %v503, %v505
  %v509 = vsel %vm133, %v104, 4286644096
  %v511 = vmax.bf16 %v507, %v509
  %v513 = vsel %vm133, %v117, 4286644096
  %v515 = vmax.bf16 %v511, %v513
  %v517 = vsel %vm133, %v130, 4286644096
  %v519 = vmax.bf16 %v515, %v517
  %v521 = vsel %vm133, %v27, 4286644096
  %v524 = vsel %vm133, %v40, 4286644096
  %v526 = vmax.bf16 %v521, %v524
  %v528 = vsel %vm133, %v53, 4286644096
  %v530 = vmax.bf16 %v526, %v528
  %v532 = vsel %vm133, %v66, 4286644096
  %v534 = vmax.bf16 %v530, %v532
  %v536 = vsel %vm133, %v79, 4286644096
  %v538 = vmax.bf16 %v534, %v536
  %v540 = vsel %vm133, %v92, 4286644096
  %v542 = vmax.bf16 %v538, %v540
  %v544 = vsel %vm133, %v105, 4286644096
  %v546 = vmax.bf16 %v542, %v544
  %v548 = vsel %vm133, %v118, 4286644096
  %v550 = vmax.bf16 %v546, %v548
  %v552 = vsel %vm133, %v131, 4286644096
  %v554 = vmax.bf16 %v550, %v552
  %v556 = vsel %vm133, %v28, 4286644096
  %v559 = vsel %vm133, %v41, 4286644096
  %v561 = vmax.bf16 %v556, %v559
  %v563 = vsel %vm133, %v54, 4286644096
  %v565 = vmax.bf16 %v561, %v563
  %v567 = vsel %vm133, %v67, 4286644096
  %v569 = vmax.bf16 %v565, %v567
  %v571 = vsel %vm133, %v80, 4286644096
  %v573 = vmax.bf16 %v569, %v571
  %v575 = vsel %vm133, %v93, 4286644096
  %v577 = vmax.bf16 %v573, %v575
  %v579 = vsel %vm133, %v106, 4286644096
  %v581 = vmax.bf16 %v577, %v579
  %v583 = vsel %vm133, %v119, 4286644096
  %v585 = vmax.bf16 %v581, %v583
  %v587 = vsel %vm133, %v132, 4286644096
  %v589 = vmax.bf16 %v585, %v587
  %v590 = vld [vmem:[%s1] sm:$0x3]
  %v591 = vld [vmem:[%s2] sm:$0x1]
  %v593 = vlaneseq
  %v594 = vshrl.u32 %v593, 7
  %v595 = vsub.s32 0, %v594
  %v596 = vrot.slane %v591, %v595
  %v611 = vunpack.c.l.b16 %v169
  %v612 = vunpack.c.l.b16 %v204
  %v613 = vunpack.c.l.b16 %v239
  %v614 = vunpack.c.l.b16 %v274
  %v615 = vunpack.c.l.b16 %v309
  %v616 = vunpack.c.l.b16 %v344
  %v617 = vunpack.c.l.b16 %v379
  %v618 = vunpack.c.l.b16 %v414
  %v619 = vunpack.c.l.b16 %v449
  %v620 = vunpack.c.l.b16 %v484
  %v621 = vunpack.c.l.b16 %v519
  %v622 = vunpack.c.l.b16 %v554
  %v623 = vunpack.c.l.b16 %v589
  %v624 = vpack.c.b16 %v612, %v611
  %v625 = vpack.c.b16 %v614, %v613
  %v626 = vpack.c.b16 %v616, %v615
  %v627 = vpack.c.b16 %v618, %v617
  %v628 = vpack.c.b16 %v620, %v619
  %v629 = vpack.c.b16 %v622, %v621
  %v630 = vpack.c.b16 %v623, %v623
  %vm631 = vcmask 31744
  %v633 = vsel %vm631, %v624, 0
  %v636 = vsel %vm631, %v625, 0
  %v639 = vsel %vm631, %v626, 0
  %v642 = vsel %vm631, %v627, 0
  %v645 = vsel %vm631, %v628, 0
  %v648 = vsel %vm631, %v629, 0
  %v651 = vsel %vm631, %v630, 0
  %vm653 = vcmask 1041408
  %v655 = vsel %vm653, %v590, 0
  %657 = vmatprep.subr.bf16.mxu0 0
  %658 = vmatpush1.bf16.msra.mxu0 0
  %659 = vmatprep.subr.bf16.mxu0 0
  %660 = vmatpush1.bf16.msra.mxu0 0
  %661 = vmatprep.subr.bf16.mxu0 0
  %662 = vmatpush1.bf16.msra.mxu0 0
  %663 = vmatprep.subr.bf16.mxu0 0
  %664 = vmatpush1.bf16.msra.mxu0 0
  %665 = vmatprep.subr.bf16.mxu0 0
  %666 = vmatpush1.bf16.msra.mxu0 0
  %667 = vmatprep.subr.bf16.mxu0 0
  %668 = vmatpush1.bf16.msra.mxu0 0
  %669 = vmatprep.subr.bf16.mxu0 0
  %670 = vmatpush1.bf16.msra.mxu0 0
  %671 = vmatprep.subr.bf16.mxu0 0
  %672 = vmatpush1.bf16.msra.mxu0 %v655
  %673 = vmatprep.subr.bf16.mxu0 0
  %674 = vmatpush2.bf16.msra.mxu0 0
  %675 = vmatprep.subr.bf16.mxu0 0
  %676 = vmatpush2.bf16.msra.mxu0 0
  %677 = vmatprep.subr.bf16.mxu0 0
  %678 = vmatpush2.bf16.msra.mxu0 0
  %679 = vmatprep.subr.bf16.mxu0 0
  %680 = vmatpush2.bf16.msra.mxu0 0
  %681 = vmatprep.subr.bf16.mxu0 0
  %682 = vmatpush2.bf16.msra.mxu0 0
  %683 = vmatprep.subr.bf16.mxu0 0
  %684 = vmatpush2.bf16.msra.mxu0 0
  %685 = vmatprep.subr.bf16.mxu0 0
  %686 = vmatpush2.bf16.msra.mxu0 0
  %687 = vmatprep.subr.bf16.mxu0 0
  %688 = vmatpush2.bf16.msra.mxu0 0
  %689 = vmatprep.mubr.bf16.mxu0 0
  %690 = vmatmul.mubr.bf16.gmra.mxu0 %v633
  %v691 = vpop.f32.mrf.mxu0
  %v692 = vadd.f32 %v596, %v691
  %v693 = vpop.f32.mrf.mxu0
  %v694 = vpop.f32.mrf.mxu0
  %v695 = vadd.f32 %v596, %v694
  %v696 = vpop.f32.mrf.mxu0
  %697 = vmatprep.mubr.bf16.mxu0 0
  %698 = vmatmul.mubr.bf16.gmra.mxu0 %v636
  %v699 = vpop.f32.mrf.mxu0
  %v700 = vadd.f32 %v596, %v699
  %v701 = vpop.f32.mrf.mxu0
  %v702 = vpop.f32.mrf.mxu0
  %v703 = vadd.f32 %v596, %v702
  %v704 = vpop.f32.mrf.mxu0
  %705 = vmatprep.mubr.bf16.mxu0 0
  %706 = vmatmul.mubr.bf16.gmra.mxu0 %v639
  %v707 = vpop.f32.mrf.mxu0
  %v708 = vadd.f32 %v596, %v707
  %v709 = vpop.f32.mrf.mxu0
  %v710 = vpop.f32.mrf.mxu0
  %v711 = vadd.f32 %v596, %v710
  %v712 = vpop.f32.mrf.mxu0
  %713 = vmatprep.mubr.bf16.mxu0 0
  %714 = vmatmul.mubr.bf16.gmra.mxu0 %v642
  %v715 = vpop.f32.mrf.mxu0
  %v716 = vadd.f32 %v596, %v715
  %v717 = vpop.f32.mrf.mxu0
  %v718 = vpop.f32.mrf.mxu0
  %v719 = vadd.f32 %v596, %v718
  %v720 = vpop.f32.mrf.mxu0
  %721 = vmatprep.mubr.bf16.mxu0 0
  %722 = vmatmul.mubr.bf16.gmra.mxu0 %v645
  %v723 = vpop.f32.mrf.mxu0
  %v724 = vadd.f32 %v596, %v723
  %v725 = vpop.f32.mrf.mxu0
  %v726 = vpop.f32.mrf.mxu0
  %v727 = vadd.f32 %v596, %v726
  %v728 = vpop.f32.mrf.mxu0
  %729 = vmatprep.mubr.bf16.mxu0 0
  %730 = vmatmul.mubr.bf16.gmra.mxu0 %v648
  %v731 = vpop.f32.mrf.mxu0
  %v732 = vadd.f32 %v596, %v731
  %v733 = vpop.f32.mrf.mxu0
  %v734 = vpop.f32.mrf.mxu0
  %v735 = vadd.f32 %v596, %v734
  %v736 = vpop.f32.mrf.mxu0
  %737 = vmatprep.mubr.bf16.mxu0 0
  %738 = vmatmul.mubr.bf16.gmra.mxu0 %v651
  %v739 = vpop.f32.mrf.mxu0
  %v740 = vadd.f32 %v596, %v739
  %v741 = vpop.f32.mrf.mxu0
  %v742 = vpop.f32.mrf.mxu0
  %v743 = vpop.f32.mrf.mxu0
  %744 = vdwg.mxu0
  %v745 = vmax.f32 %v692, 0.0
  %v746 = vmax.f32 %v695, 0.0
  %v747 = vmax.f32 %v700, 0.0
  %v748 = vmax.f32 %v703, 0.0
  %v749 = vmax.f32 %v708, 0.0
  %v750 = vmax.f32 %v711, 0.0
  %v751 = vmax.f32 %v716, 0.0
  %v752 = vmax.f32 %v719, 0.0
  %v753 = vmax.f32 %v724, 0.0
  %v754 = vmax.f32 %v727, 0.0
  %v755 = vmax.f32 %v732, 0.0
  %v756 = vmax.f32 %v735, 0.0
  %v757 = vmax.f32 %v740, 0.0
  %758 = vst [vmem:[%s3] sm:$0xff] %v745
  %759 = vst [vmem:[%s3 + $0x8] sm:$0xff] %v746
  %760 = vst [vmem:[%s3 + $0x10] sm:$0xff] %v747
  %761 = vst [vmem:[%s3 + $0x18] sm:$0xff] %v748
  %762 = vst [vmem:[%s3 + $0x20] sm:$0xff] %v749
  %763 = vst [vmem:[%s3 + $0x28] sm:$0xff] %v750
  %764 = vst [vmem:[%s3 + $0x30] sm:$0xff] %v751
  %765 = vst [vmem:[%s3 + $0x38] sm:$0xff] %v752
  %766 = vst [vmem:[%s3 + $0x40] sm:$0xff] %v753
  %767 = vst [vmem:[%s3 + $0x48] sm:$0xff] %v754
  %768 = vst [vmem:[%s3 + $0x50] sm:$0xff] %v755
  %769 = vst [vmem:[%s3 + $0x58] sm:$0xff] %v756
  %770 = vst [vmem:[%s3 + $0x60] sm:$0xff] %v757
  // Predicated region
  $region14: #{inception_d_smaller.11} parent=0 // pred_check
    _
  $region15: #{inception_d_smaller.11} parent=0 // pred_check_branch
    %772 = sbr.rel (0) target = $region17
  $region16: #{inception_d_smaller.11} parent=0 // pred_region
    _
  $region17: #{inception_d_smaller.11} parent=0 // pred_fallthru
    _
  // Predicated region
  $region18: #{inception_d_smaller.11} parent=0 // pred_check
    _
  $region19: #{inception_d_smaller.11} parent=0 // pred_check_branch
    %774 = sbr.rel (0) target = $region21
  $region20: #{inception_d_smaller.11} parent=0 // pred_region
    _
  $region21: #{inception_d_smaller.11} parent=0 // pred_fallthru
    _

// kernel: inception_d_smaller.6
$region0: #{inception_d_smaller.6}
  #allocation0 [shape = 'u32[]', space=smem, size = 0x4, offset = 0x4, fixed_abs, tag = 'smem constant byte address 0x4 - core index']
  #allocation1 [shape = 'u32[144,128]{1,0:T(1,128)}', space=vmem, size = 0x12000, scoped, tag = 'internal scratch']
  #allocation2 [shape = 'f32[256,384]{1,0:T(8,128)}', space=vmem, size = 0x60000, scoped, tag = 'scratch operand']
  %s0 = inlined_call_operand.vmem [shape: bf16[512,4], index: 0, kind: input, shape index: {}]
  %s1 = inlined_call_operand.vmem [shape: bf16[4,384], index: 1, kind: input, shape index: {}]
  %s2 = inlined_call_operand.vmem [shape: f32[1,384], index: 2, kind: input, shape index: {}]
  %s3 = inlined_call_operand.vmem [shape: f32[512,384], index: 3, kind: output, shape index: {}]
  %s4 = sld [smem:[#allocation0]]
  $region53: #{inception_d_smaller.6} parent=0
    _
  %s6 = ssub.s32 1, %s4
  %s7 = scalar_select 0, %s6, %s4
  loop: start=0, step=1, limit=4
  $region2: #{inception_d_smaller.6} parent=0 // loop_pre_header
    _
  $region3: #{inception_d_smaller.6} parent=0 // loop_header
    %s9 = sphi 0, %s13
    %p10 = scmp.ge.s32.totalorder %s9, 4
    %s16 = sphi 0, %s28
    %s17 = sphi 0, %s24
    %s18 = sphi 0, %s16
    %s19 = sphi 0, %s17
    %s20 = sphi 0, %s18
    %s21 = sphi 0, %s19
    %s33 = sphi 0, %s35
    %s36 = sphi 0, %s33
    %s37 = sphi 0, %s36
    %s53 = sphi 0, %s37
    %s59 = sphi 0, %s61
    %s62 = sphi 0, %s59
    %s63 = sphi 0, %s62
    %s79 = sphi 0, %s63
    %s83 = sphi 0, %s83
    %s85 = sphi 0, %s83
    %s86 = sphi 0, %s85
    %s100 = sphi 0, %s86
    %s106 = sphi 0, %s108
    %s109 = sphi 0, %s106
    %s110 = sphi 0, %s109
    %s126 = sphi 0, %s110
  $region4: #{inception_d_smaller.6} parent=0 // loop_header_branch
    %12 = sbr.rel (%p10) target = $region8
  $region5: #{inception_d_smaller.6} parent=0 // loop_body
    %s14 = ssub.s32 %s9, 1
    %s15 = ssub.s32 %s9, 2
    %s22 = sadd.s32 1, %s17
    %p23 = scmp.ge.s32.totalorder %s22, 1
    %s24 = scalar_select %p23, 0, %s22
    %s25 = sadd.s32 1, %s16
    %s26 = scalar_select %p23, %s25, %s16
    %p27 = scmp.ge.s32.totalorder %s26, 2
    %s28 = scalar_select %p27, 0, %s26
    %s29 = ssub.s32 %s16, %s28
    %s30 = ssub.s32 %s17, %s24
    %s31 = sor.u32 %s29, %s30
    %p32 = scmp.eq.s32.totalorder %s31, 0
    %s34 = sadd.s32 %s33, 1
    %s35 = scalar_select %p32, %s33, %s34
    %p38 = pneg %p32
    %p39 = scmp.eq.s32.totalorder %s9, 1
    %p40 = por %p38, %p39
    %p41 = scmp.ne.s32.totalorder %s33, %s36
    %p42 = scmp.eq.s32.totalorder %s9, 0
    %p43 = por %p41, %p42
    %p44 = scmp.ne.s32.totalorder %s33, %s36
    %p45 = scmp.eq.s32.totalorder %s14, 1
    %p46 = por %p44, %p45
    %p47 = scmp.ne.s32.totalorder %s36, %s37
    %p48 = scmp.eq.s32.totalorder %s14, 0
    %p49 = por %p47, %p48
    %p50 = scmp.ne.s32.totalorder %s36, %s37
    %p51 = scmp.eq.s32.totalorder %s15, 1
    %p52 = por %p50, %p51
    %p54 = scmp.ne.s32.totalorder %s37, %s53
    %p55 = scmp.eq.s32.totalorder %s15, 0
    %p56 = por %p54, %p55
    %s57 = ssub.s32 %s17, %s24
    %p58 = scmp.eq.s32.totalorder %s57, 0
    %s60 = sadd.s32 %s59, 1
    %s61 = scalar_select %p58, %s59, %s60
    %p64 = pneg %p58
    %p65 = scmp.eq.s32.totalorder %s9, 1
    %p66 = por %p64, %p65
    %p67 = scmp.ne.s32.totalorder %s59, %s62
    %p68 = scmp.eq.s32.totalorder %s9, 0
    %p69 = por %p67, %p68
    %p70 = scmp.ne.s32.totalorder %s59, %s62
    %p71 = scmp.eq.s32.totalorder %s14, 1
    %p72 = por %p70, %p71
    %p73 = scmp.ne.s32.totalorder %s62, %s63
    %p74 = scmp.eq.s32.totalorder %s14, 0
    %p75 = por %p73, %p74
    %p76 = scmp.ne.s32.totalorder %s62, %s63
    %p77 = scmp.eq.s32.totalorder %s15, 1
    %p78 = por %p76, %p77
    %p80 = scmp.ne.s32.totalorder %s63, %s79
    %p81 = scmp.eq.s32.totalorder %s15, 0
    %p82 = por %p80, %p81
    %s84 = sadd.s32 %s83, 1
    %p87 = scmp.eq.s32.totalorder %s9, 1
    %p88 = scmp.ne.s32.totalorder %s83, %s85
    %p89 = scmp.eq.s32.totalorder %s9, 0
    %p90 = por %p88, %p89
    %p91 = scmp.ne.s32.totalorder %s83, %s85
    %p92 = scmp.eq.s32.totalorder %s14, 1
    %p93 = por %p91, %p92
    %p94 = scmp.ne.s32.totalorder %s85, %s86
    %p95 = scmp.eq.s32.totalorder %s14, 0
    %p96 = por %p94, %p95
    %p97 = scmp.ne.s32.totalorder %s85, %s86
    %p98 = scmp.eq.s32.totalorder %s15, 1
    %p99 = por %p97, %p98
    %p101 = scmp.ne.s32.totalorder %s86, %s100
    %p102 = scmp.eq.s32.totalorder %s15, 0
    %p103 = por %p101, %p102
    %s104 = ssub.s32 %s16, %s28
    %p105 = scmp.eq.s32.totalorder %s104, 0
    %s107 = sadd.s32 %s106, 1
    %s108 = scalar_select %p105, %s106, %s107
    %p111 = pneg %p105
    %p112 = scmp.eq.s32.totalorder %s9, 1
    %p113 = por %p111, %p112
    %p114 = scmp.ne.s32.totalorder %s106, %s109
    %p115 = scmp.eq.s32.totalorder %s9, 0
    %p116 = por %p114, %p115
    %p117 = scmp.ne.s32.totalorder %s106, %s109
    %p118 = scmp.eq.s32.totalorder %s14, 1
    %p119 = por %p117, %p118
    %p120 = scmp.ne.s32.totalorder %s109, %s110
    %p121 = scmp.eq.s32.totalorder %s14, 0
    %p122 = por %p120, %p121
    %p123 = scmp.ne.s32.totalorder %s109, %s110
    %p124 = scmp.eq.s32.totalorder %s15, 1
    %p125 = por %p123, %p124
    %p127 = scmp.ne.s32.totalorder %s110, %s126
    %p128 = scmp.eq.s32.totalorder %s15, 0
    %p129 = por %p127, %p128
    %p130 = scmp.le.s32.totalorder 1, %s9
    %p131 = scmp.lt.s32.totalorder %s9, 3
    %p132 = pnand %p130, %p131
    %p133 = pneg %p132
    // Predicated region
    $region9: #{inception_d_smaller.6} parent=5 // pred_check
      _
    $region10: #{inception_d_smaller.6} parent=5 // pred_check_branch
      %135 = sbr.rel (%p132) target = $region12
    $region11: #{inception_d_smaller.6} parent=5 // pred_region
      %s136 = ssub.s32 %s9, 1
      // Predicated region
      $region13: #{inception_d_smaller.6} parent=11 // pred_check
        %p137 = pneg %p75
      $region14: #{inception_d_smaller.6} parent=11 // pred_check_branch
        %139 = sbr.rel (%p137) target = $region16
      $region15: #{inception_d_smaller.6} parent=11 // pred_region
        %p140 = scmp.lt.s32.totalorder %s19, 0
        %s141 = scalar_select %p140, %s19, 0
        %s142 = smul.addr %s141, 3
        %s143 = smul.addr %s142, 2
        %s144 = scalar_lea.vmem %s1, %s143
      $region16: #{inception_d_smaller.6} parent=11 // pred_fallthru
        _
      // Predicated region
      $region17: #{inception_d_smaller.6} parent=11 // pred_check
        %p145 = pneg %p96
      $region18: #{inception_d_smaller.6} parent=11 // pred_check_branch
        %147 = sbr.rel (%p145) target = $region20
      $region19: #{inception_d_smaller.6} parent=11 // pred_region
        _
      $region20: #{inception_d_smaller.6} parent=11 // pred_fallthru
        _
    $region12: #{inception_d_smaller.6} parent=5 // pred_fallthru
      _
    %p148 = scmp.lt.s32.totalorder %s9, 2
    // Predicated region
    $region21: #{inception_d_smaller.6} parent=5 // pred_check
      %p149 = pneg %p148
    $region22: #{inception_d_smaller.6} parent=5 // pred_check_branch
      %151 = sbr.rel (%p149) target = $region24
    $region23: #{inception_d_smaller.6} parent=5 // pred_region
      // Predicated region
      $region25: #{inception_d_smaller.6} parent=23 // pred_check
        %p152 = pneg %p43
      $region26: #{inception_d_smaller.6} parent=23 // pred_check_branch
        %154 = sbr.rel (%p152) target = $region28
      $region27: #{inception_d_smaller.6} parent=23 // pred_region
        %s155 = smul.u32 32, %s16
        %p156 = scmp.lt.s32.totalorder %s155, 63
        %s157 = scalar_select %p156, %s155, 63
        %p158 = scmp.lt.s32.totalorder %s17, 0
        %s159 = scalar_select %p158, %s17, 0
        %s160 = sadd.s32 %s159, %s157
        %s161 = smul.addr %s160, 4
        %s162 = scalar_lea.vmem %s0, %s161
        %s163 = smul.u32 32, %s16
      $region28: #{inception_d_smaller.6} parent=23 // pred_fallthru
        _
    $region24: #{inception_d_smaller.6} parent=5 // pred_fallthru
      _
    %p164 = scmp.le.s32.totalorder 1, %s9
    %p165 = scmp.lt.s32.totalorder %s9, 3
    %p166 = pnand %p164, %p165
    %p167 = pneg %p166
    // Predicated region
    $region29: #{inception_d_smaller.6} parent=5 // pred_check
      _
    $region30: #{inception_d_smaller.6} parent=5 // pred_check_branch
      %169 = sbr.rel (%p166) target = $region32
    $region31: #{inception_d_smaller.6} parent=5 // pred_region
      %s170 = ssub.s32 %s9, 1
      %s171 = smul.u32 32, %s18
      %p172 = scmp.lt.s32.totalorder %s171, 63
      %s173 = scalar_select %p172, %s171, 63
      %p174 = scmp.lt.s32.totalorder %s19, 0
      %s175 = scalar_select %p174, %s19, 0
      %s176 = sadd.s32 %s175, %s173
      %s177 = smul.addr %s176, 4
      %s178 = scalar_lea.vmem %s0, %s177
      %p179 = pneg %p49
      %p180 = pneg %p46
      %p181 = scmp.lt.s32.totalorder %s19, 0
      %s182 = scalar_select %p181, %s19, 0
      %s183 = smul.addr %s182, 3
      %s184 = smul.addr %s183, 2
      %s185 = scalar_lea.vmem %s1, %s184
      %p186 = pneg %p75
      %p187 = pneg %p72
      %p188 = pneg %p96
      %p189 = pneg %p93
      %p190 = pneg %p122
      %p191 = pneg %p119
      %s192 = smul.u32 32, %s18
      %p193 = scmp.lt.s32.totalorder %s192, 63
      %s194 = scalar_select %p193, %s192, 63
      %s195 = smul.addr %s194, 3
      %s196 = smul.addr %s195, 8
      %s197 = scalar_lea.vmem %s3, %s196
      %s198 = smul.u32 32, %s18
      %p199 = scmp.lt.s32.totalorder %s198, 63
      %s200 = scalar_select %p199, %s198, 63
      %p201 = scmp.lt.s32.totalorder %s19, 0
      %s202 = scalar_select %p201, %s19, 0
      %s203 = sadd.s32 %s202, %s200
      %s204 = smul.addr %s203, 4
      %s205 = scalar_lea.vmem %s0, %s204
      %s206 = smul.u32 32, %s18
      %p207 = scmp.lt.s32.totalorder %s19, 0
      %s208 = scalar_select %p207, %s19, 0
      %s209 = smul.addr %s208, 3
      %s210 = smul.addr %s209, 2
      %s211 = scalar_lea.vmem %s1, %s210
      %s212 = smul.u32 32, %s18
      %p213 = scmp.lt.s32.totalorder %s212, 63
      %s214 = scalar_select %p213, %s212, 63
      %s215 = smul.addr %s214, 3
      %s216 = smul.addr %s215, 8
      %s217 = scalar_lea.vmem %s3, %s216
      %s218 = smul.u32 32, %s18
      %p220 = scmp.eq.s32.totalorder %s19, 0
      // Predicated region
      $region33: #{inception_d_smaller.6} parent=31 // pred_check
        %p221 = pneg %p220
      $region34: #{inception_d_smaller.6} parent=31 // pred_check_branch
        %223 = sbr.rel (%p221) target = $region36
      $region35: #{inception_d_smaller.6} parent=31 // pred_region
        %224 = vst [vmem:[#allocation2] sm:$0xff] 0.0
        %225 = vst [vmem:[#allocation2 + $0x8] sm:$0xff] 0.0
        %226 = vst [vmem:[#allocation2 + $0x10] sm:$0xff] 0.0
        %227 = vst [vmem:[#allocation2 + $0x18] sm:$0xff] 0.0
        %228 = vst [vmem:[#allocation2 + $0x20] sm:$0xff] 0.0
        %229 = vst [vmem:[#allocation2 + $0x28] sm:$0xff] 0.0
        %230 = vst [vmem:[#allocation2 + $0x30] sm:$0xff] 0.0
        %231 = vst [vmem:[#allocation2 + $0x38] sm:$0xff] 0.0
        %232 = vst [vmem:[#allocation2 + $0x40] sm:$0xff] 0.0
        %233 = vst [vmem:[#allocation2 + $0x48] sm:$0xff] 0.0
        %234 = vst [vmem:[#allocation2 + $0x50] sm:$0xff] 0.0
        %235 = vst [vmem:[#allocation2 + $0x58] sm:$0xff] 0.0
        %236 = vst [vmem:[#allocation2 + $0x60] sm:$0xff] 0.0
        %237 = vst [vmem:[#allocation2 + $0x68] sm:$0xff] 0.0
        %238 = vst [vmem:[#allocation2 + $0x70] sm:$0xff] 0.0
        %239 = vst [vmem:[#allocation2 + $0x78] sm:$0xff] 0.0
        %240 = vst [vmem:[#allocation2 + $0x80] sm:$0xff] 0.0
        %241 = vst [vmem:[#allocation2 + $0x88] sm:$0xff] 0.0
        %242 = vst [vmem:[#allocation2 + $0x90] sm:$0xff] 0.0
        %243 = vst [vmem:[#allocation2 + $0x98] sm:$0xff] 0.0
        %244 = vst [vmem:[#allocation2 + $0xa0] sm:$0xff] 0.0
        %245 = vst [vmem:[#allocation2 + $0xa8] sm:$0xff] 0.0
        %246 = vst [vmem:[#allocation2 + $0xb0] sm:$0xff] 0.0
        %247 = vst [vmem:[#allocation2 + $0xb8] sm:$0xff] 0.0
        %248 = vst [vmem:[#allocation2 + $0xc0] sm:$0xff] 0.0
        %249 = vst [vmem:[#allocation2 + $0xc8] sm:$0xff] 0.0
        %250 = vst [vmem:[#allocation2 + $0xd0] sm:$0xff] 0.0
        %251 = vst [vmem:[#allocation2 + $0xd8] sm:$0xff] 0.0
        %252 = vst [vmem:[#allocation2 + $0xe0] sm:$0xff] 0.0
        %253 = vst [vmem:[#allocation2 + $0xe8] sm:$0xff] 0.0
        %254 = vst [vmem:[#allocation2 + $0xf0] sm:$0xff] 0.0
        %255 = vst [vmem:[#allocation2 + $0xf8] sm:$0xff] 0.0
        %256 = vst [vmem:[#allocation2 + $0x100] sm:$0xff] 0.0
        %257 = vst [vmem:[#allocation2 + $0x108] sm:$0xff] 0.0
        %258 = vst [vmem:[#allocation2 + $0x110] sm:$0xff] 0.0
        %259 = vst [vmem:[#allocation2 + $0x118] sm:$0xff] 0.0
        %260 = vst [vmem:[#allocation2 + $0x120] sm:$0xff] 0.0
        %261 = vst [vmem:[#allocation2 + $0x128] sm:$0xff] 0.0
        %262 = vst [vmem:[#allocation2 + $0x130] sm:$0xff] 0.0
        %263 = vst [vmem:[#allocation2 + $0x138] sm:$0xff] 0.0
        %264 = vst [vmem:[#allocation2 + $0x140] sm:$0xff] 0.0
        %265 = vst [vmem:[#allocation2 + $0x148] sm:$0xff] 0.0
        %266 = vst [vmem:[#allocation2 + $0x150] sm:$0xff] 0.0
        %267 = vst [vmem:[#allocation2 + $0x158] sm:$0xff] 0.0
        %268 = vst [vmem:[#allocation2 + $0x160] sm:$0xff] 0.0
        %269 = vst [vmem:[#allocation2 + $0x168] sm:$0xff] 0.0
        %270 = vst [vmem:[#allocation2 + $0x170] sm:$0xff] 0.0
        %271 = vst [vmem:[#allocation2 + $0x178] sm:$0xff] 0.0
        %272 = vst [vmem:[#allocation2 + $0x180] sm:$0xff] 0.0
        %273 = vst [vmem:[#allocation2 + $0x188] sm:$0xff] 0.0
        %274 = vst [vmem:[#allocation2 + $0x190] sm:$0xff] 0.0
        %275 = vst [vmem:[#allocation2 + $0x198] sm:$0xff] 0.0
        %276 = vst [vmem:[#allocation2 + $0x1a0] sm:$0xff] 0.0
        %277 = vst [vmem:[#allocation2 + $0x1a8] sm:$0xff] 0.0
        %278 = vst [vmem:[#allocation2 + $0x1b0] sm:$0xff] 0.0
        %279 = vst [vmem:[#allocation2 + $0x1b8] sm:$0xff] 0.0
        %280 = vst [vmem:[#allocation2 + $0x1c0] sm:$0xff] 0.0
        %281 = vst [vmem:[#allocation2 + $0x1c8] sm:$0xff] 0.0
        %282 = vst [vmem:[#allocation2 + $0x1d0] sm:$0xff] 0.0
        %283 = vst [vmem:[#allocation2 + $0x1d8] sm:$0xff] 0.0
        %284 = vst [vmem:[#allocation2 + $0x1e0] sm:$0xff] 0.0
        %285 = vst [vmem:[#allocation2 + $0x1e8] sm:$0xff] 0.0
        %286 = vst [vmem:[#allocation2 + $0x1f0] sm:$0xff] 0.0
        %287 = vst [vmem:[#allocation2 + $0x1f8] sm:$0xff] 0.0
        %288 = vst [vmem:[#allocation2 + $0x200] sm:$0xff] 0.0
        %289 = vst [vmem:[#allocation2 + $0x208] sm:$0xff] 0.0
        %290 = vst [vmem:[#allocation2 + $0x210] sm:$0xff] 0.0
        %291 = vst [vmem:[#allocation2 + $0x218] sm:$0xff] 0.0
        %292 = vst [vmem:[#allocation2 + $0x220] sm:$0xff] 0.0
        %293 = vst [vmem:[#allocation2 + $0x228] sm:$0xff] 0.0
        %294 = vst [vmem:[#allocation2 + $0x230] sm:$0xff] 0.0
        %295 = vst [vmem:[#allocation2 + $0x238] sm:$0xff] 0.0
        %296 = vst [vmem:[#allocation2 + $0x240] sm:$0xff] 0.0
        %297 = vst [vmem:[#allocation2 + $0x248] sm:$0xff] 0.0
        %298 = vst [vmem:[#allocation2 + $0x250] sm:$0xff] 0.0
        %299 = vst [vmem:[#allocation2 + $0x258] sm:$0xff] 0.0
        %300 = vst [vmem:[#allocation2 + $0x260] sm:$0xff] 0.0
        %301 = vst [vmem:[#allocation2 + $0x268] sm:$0xff] 0.0
        %302 = vst [vmem:[#allocation2 + $0x270] sm:$0xff] 0.0
        %303 = vst [vmem:[#allocation2 + $0x278] sm:$0xff] 0.0
        %304 = vst [vmem:[#allocation2 + $0x280] sm:$0xff] 0.0
        %305 = vst [vmem:[#allocation2 + $0x288] sm:$0xff] 0.0
        %306 = vst [vmem:[#allocation2 + $0x290] sm:$0xff] 0.0
        %307 = vst [vmem:[#allocation2 + $0x298] sm:$0xff] 0.0
        %308 = vst [vmem:[#allocation2 + $0x2a0] sm:$0xff] 0.0
        %309 = vst [vmem:[#allocation2 + $0x2a8] sm:$0xff] 0.0
        %310 = vst [vmem:[#allocation2 + $0x2b0] sm:$0xff] 0.0
        %311 = vst [vmem:[#allocation2 + $0x2b8] sm:$0xff] 0.0
        %312 = vst [vmem:[#allocation2 + $0x2c0] sm:$0xff] 0.0
        %313 = vst [vmem:[#allocation2 + $0x2c8] sm:$0xff] 0.0
        %314 = vst [vmem:[#allocation2 + $0x2d0] sm:$0xff] 0.0
        %315 = vst [vmem:[#allocation2 + $0x2d8] sm:$0xff] 0.0
        %316 = vst [vmem:[#allocation2 + $0x2e0] sm:$0xff] 0.0
        %317 = vst [vmem:[#allocation2 + $0x2e8] sm:$0xff] 0.0
        %318 = vst [vmem:[#allocation2 + $0x2f0] sm:$0xff] 0.0
        %319 = vst [vmem:[#allocation2 + $0x2f8] sm:$0xff] 0.0
      $region36: #{inception_d_smaller.6} parent=31 // pred_fallthru
        _
      %v320 = vld [vmem:[#allocation2] sm:$0xff]
      %v321 = vld [vmem:[#allocation2 + $0x8] sm:$0xff]
      %v322 = vld [vmem:[#allocation2 + $0x10] sm:$0xff]
      %v323 = vld [vmem:[#allocation2 + $0x18] sm:$0xff]
      %v324 = vld [vmem:[#allocation2 + $0x20] sm:$0xff]
      %v325 = vld [vmem:[#allocation2 + $0x28] sm:$0xff]
      %v326 = vld [vmem:[#allocation2 + $0x30] sm:$0xff]
      %v327 = vld [vmem:[#allocation2 + $0x38] sm:$0xff]
      %v328 = vld [vmem:[#allocation2 + $0x40] sm:$0xff]
      %v329 = vld [vmem:[#allocation2 + $0x48] sm:$0xff]
      %v330 = vld [vmem:[#allocation2 + $0x50] sm:$0xff]
      %v331 = vld [vmem:[#allocation2 + $0x58] sm:$0xff]
      %v332 = vld [vmem:[#allocation2 + $0x60] sm:$0xff]
      %v333 = vld [vmem:[#allocation2 + $0x68] sm:$0xff]
      %v334 = vld [vmem:[#allocation2 + $0x70] sm:$0xff]
      %v335 = vld [vmem:[#allocation2 + $0x78] sm:$0xff]
      %v336 = vld [vmem:[#allocation2 + $0x80] sm:$0xff]
      %v337 = vld [vmem:[#allocation2 + $0x88] sm:$0xff]
      %v338 = vld [vmem:[#allocation2 + $0x90] sm:$0xff]
      %v339 = vld [vmem:[#allocation2 + $0x98] sm:$0xff]
      %v340 = vld [vmem:[#allocation2 + $0xa0] sm:$0xff]
      %v341 = vld [vmem:[#allocation2 + $0xa8] sm:$0xff]
      %v342 = vld [vmem:[#allocation2 + $0xb0] sm:$0xff]
      %v343 = vld [vmem:[#allocation2 + $0xb8] sm:$0xff]
      %v344 = vld [vmem:[#allocation2 + $0xc0] sm:$0xff]
      %v345 = vld [vmem:[#allocation2 + $0xc8] sm:$0xff]
      %v346 = vld [vmem:[#allocation2 + $0xd0] sm:$0xff]
      %v347 = vld [vmem:[#allocation2 + $0xd8] sm:$0xff]
      %v348 = vld [vmem:[#allocation2 + $0xe0] sm:$0xff]
      %v349 = vld [vmem:[#allocation2 + $0xe8] sm:$0xff]
      %v350 = vld [vmem:[#allocation2 + $0xf0] sm:$0xff]
      %v351 = vld [vmem:[#allocation2 + $0xf8] sm:$0xff]
      %v352 = vld [vmem:[#allocation2 + $0x100] sm:$0xff]
      %v353 = vld [vmem:[#allocation2 + $0x108] sm:$0xff]
      %v354 = vld [vmem:[#allocation2 + $0x110] sm:$0xff]
      %v355 = vld [vmem:[#allocation2 + $0x118] sm:$0xff]
      %v356 = vld [vmem:[#allocation2 + $0x120] sm:$0xff]
      %v357 = vld [vmem:[#allocation2 + $0x128] sm:$0xff]
      %v358 = vld [vmem:[#allocation2 + $0x130] sm:$0xff]
      %v359 = vld [vmem:[#allocation2 + $0x138] sm:$0xff]
      %v360 = vld [vmem:[#allocation2 + $0x140] sm:$0xff]
      %v361 = vld [vmem:[#allocation2 + $0x148] sm:$0xff]
      %v362 = vld [vmem:[#allocation2 + $0x150] sm:$0xff]
      %v363 = vld [vmem:[#allocation2 + $0x158] sm:$0xff]
      %v364 = vld [vmem:[#allocation2 + $0x160] sm:$0xff]
      %v365 = vld [vmem:[#allocation2 + $0x168] sm:$0xff]
      %v366 = vld [vmem:[#allocation2 + $0x170] sm:$0xff]
      %v367 = vld [vmem:[#allocation2 + $0x178] sm:$0xff]
      %v368 = vld [vmem:[#allocation2 + $0x180] sm:$0xff]
      %v369 = vld [vmem:[#allocation2 + $0x188] sm:$0xff]
      %v370 = vld [vmem:[#allocation2 + $0x190] sm:$0xff]
      %v371 = vld [vmem:[#allocation2 + $0x198] sm:$0xff]
      %v372 = vld [vmem:[#allocation2 + $0x1a0] sm:$0xff]
      %v373 = vld [vmem:[#allocation2 + $0x1a8] sm:$0xff]
      %v374 = vld [vmem:[#allocation2 + $0x1b0] sm:$0xff]
      %v375 = vld [vmem:[#allocation2 + $0x1b8] sm:$0xff]
      %v376 = vld [vmem:[#allocation2 + $0x1c0] sm:$0xff]
      %v377 = vld [vmem:[#allocation2 + $0x1c8] sm:$0xff]
      %v378 = vld [vmem:[#allocation2 + $0x1d0] sm:$0xff]
      %v379 = vld [vmem:[#allocation2 + $0x1d8] sm:$0xff]
      %v380 = vld [vmem:[#allocation2 + $0x1e0] sm:$0xff]
      %v381 = vld [vmem:[#allocation2 + $0x1e8] sm:$0xff]
      %v382 = vld [vmem:[#allocation2 + $0x1f0] sm:$0xff]
      %v383 = vld [vmem:[#allocation2 + $0x1f8] sm:$0xff]
      %v384 = vld [vmem:[#allocation2 + $0x200] sm:$0xff]
      %v385 = vld [vmem:[#allocation2 + $0x208] sm:$0xff]
      %v386 = vld [vmem:[#allocation2 + $0x210] sm:$0xff]
      %v387 = vld [vmem:[#allocation2 + $0x218] sm:$0xff]
      %v388 = vld [vmem:[#allocation2 + $0x220] sm:$0xff]
      %v389 = vld [vmem:[#allocation2 + $0x228] sm:$0xff]
      %v390 = vld [vmem:[#allocation2 + $0x230] sm:$0xff]
      %v391 = vld [vmem:[#allocation2 + $0x238] sm:$0xff]
      %v392 = vld [vmem:[#allocation2 + $0x240] sm:$0xff]
      %v393 = vld [vmem:[#allocation2 + $0x248] sm:$0xff]
      %v394 = vld [vmem:[#allocation2 + $0x250] sm:$0xff]
      %v395 = vld [vmem:[#allocation2 + $0x258] sm:$0xff]
      %v396 = vld [vmem:[#allocation2 + $0x260] sm:$0xff]
      %v397 = vld [vmem:[#allocation2 + $0x268] sm:$0xff]
      %v398 = vld [vmem:[#allocation2 + $0x270] sm:$0xff]
      %v399 = vld [vmem:[#allocation2 + $0x278] sm:$0xff]
      %v400 = vld [vmem:[#allocation2 + $0x280] sm:$0xff]
      %v401 = vld [vmem:[#allocation2 + $0x288] sm:$0xff]
      %v402 = vld [vmem:[#allocation2 + $0x290] sm:$0xff]
      %v403 = vld [vmem:[#allocation2 + $0x298] sm:$0xff]
      %v404 = vld [vmem:[#allocation2 + $0x2a0] sm:$0xff]
      %v405 = vld [vmem:[#allocation2 + $0x2a8] sm:$0xff]
      %v406 = vld [vmem:[#allocation2 + $0x2b0] sm:$0xff]
      %v407 = vld [vmem:[#allocation2 + $0x2b8] sm:$0xff]
      %v408 = vld [vmem:[#allocation2 + $0x2c0] sm:$0xff]
      %v409 = vld [vmem:[#allocation2 + $0x2c8] sm:$0xff]
      %v410 = vld [vmem:[#allocation2 + $0x2d0] sm:$0xff]
      %v411 = vld [vmem:[#allocation2 + $0x2d8] sm:$0xff]
      %v412 = vld [vmem:[#allocation2 + $0x2e0] sm:$0xff]
      %v413 = vld [vmem:[#allocation2 + $0x2e8] sm:$0xff]
      %v414 = vld [vmem:[#allocation2 + $0x2f0] sm:$0xff]
      %v415 = vld [vmem:[#allocation2 + $0x2f8] sm:$0xff]
      %v416 = vld [vmem:[%s205] sm:$0xf]
      %v417 = vld [vmem:[%s205 + $0x4] sm:$0xf]
      %v418 = vld [vmem:[%s205 + $0x8] sm:$0xf]
      %v419 = vld [vmem:[%s205 + $0xc] sm:$0xf]
      %v420 = vld [vmem:[%s205 + $0x10] sm:$0xf]
      %v421 = vld [vmem:[%s205 + $0x14] sm:$0xf]
      %v422 = vld [vmem:[%s205 + $0x18] sm:$0xf]
      %v423 = vld [vmem:[%s205 + $0x1c] sm:$0xf]
      %v424 = vld [vmem:[%s205 + $0x20] sm:$0xf]
      %v425 = vld [vmem:[%s205 + $0x24] sm:$0xf]
      %v426 = vld [vmem:[%s205 + $0x28] sm:$0xf]
      %v427 = vld [vmem:[%s205 + $0x2c] sm:$0xf]
      %v428 = vld [vmem:[%s205 + $0x30] sm:$0xf]
      %v429 = vld [vmem:[%s205 + $0x34] sm:$0xf]
      %v430 = vld [vmem:[%s205 + $0x38] sm:$0xf]
      %v431 = vld [vmem:[%s205 + $0x3c] sm:$0xf]
      %v432 = vld [vmem:[%s205 + $0x40] sm:$0xf]
      %v433 = vld [vmem:[%s205 + $0x44] sm:$0xf]
      %v434 = vld [vmem:[%s205 + $0x48] sm:$0xf]
      %v435 = vld [vmem:[%s205 + $0x4c] sm:$0xf]
      %v436 = vld [vmem:[%s205 + $0x50] sm:$0xf]
      %v437 = vld [vmem:[%s205 + $0x54] sm:$0xf]
      %v438 = vld [vmem:[%s205 + $0x58] sm:$0xf]
      %v439 = vld [vmem:[%s205 + $0x5c] sm:$0xf]
      %v440 = vld [vmem:[%s205 + $0x60] sm:$0xf]
      %v441 = vld [vmem:[%s205 + $0x64] sm:$0xf]
      %v442 = vld [vmem:[%s205 + $0x68] sm:$0xf]
      %v443 = vld [vmem:[%s205 + $0x6c] sm:$0xf]
      %v444 = vld [vmem:[%s205 + $0x70] sm:$0xf]
      %v445 = vld [vmem:[%s205 + $0x74] sm:$0xf]
      %v446 = vld [vmem:[%s205 + $0x78] sm:$0xf]
      %v447 = vld [vmem:[%s205 + $0x7c] sm:$0xf]
      %v448 = vld [vmem:[%s211] sm:$0x3f]
      %v481 = vunpack.c.l.b16 %v416
      %v482 = vunpack.c.l.b16 %v417
      %v483 = vunpack.c.l.b16 %v418
      %v484 = vunpack.c.l.b16 %v419
      %v485 = vunpack.c.l.b16 %v420
      %v486 = vunpack.c.l.b16 %v421
      %v487 = vunpack.c.l.b16 %v422
      %v488 = vunpack.c.l.b16 %v423
      %v489 = vunpack.c.l.b16 %v424
      %v490 = vunpack.c.l.b16 %v425
      %v491 = vunpack.c.l.b16 %v426
      %v492 = vunpack.c.l.b16 %v427
      %v493 = vunpack.c.l.b16 %v428
      %v494 = vunpack.c.l.b16 %v429
      %v495 = vunpack.c.l.b16 %v430
      %v496 = vunpack.c.l.b16 %v431
      %v497 = vunpack.c.l.b16 %v432
      %v498 = vunpack.c.l.b16 %v433
      %v499 = vunpack.c.l.b16 %v434
      %v500 = vunpack.c.l.b16 %v435
      %v501 = vunpack.c.l.b16 %v436
      %v502 = vunpack.c.l.b16 %v437
      %v503 = vunpack.c.l.b16 %v438
      %v504 = vunpack.c.l.b16 %v439
      %v505 = vunpack.c.l.b16 %v440
      %v506 = vunpack.c.l.b16 %v441
      %v507 = vunpack.c.l.b16 %v442
      %v508 = vunpack.c.l.b16 %v443
      %v509 = vunpack.c.l.b16 %v444
      %v510 = vunpack.c.l.b16 %v445
      %v511 = vunpack.c.l.b16 %v446
      %v512 = vunpack.c.l.b16 %v447
      %v513 = vpack.c.b16 %v482, %v481
      %v514 = vpack.c.b16 %v484, %v483
      %v515 = vpack.c.b16 %v486, %v485
      %v516 = vpack.c.b16 %v488, %v487
      %v517 = vpack.c.b16 %v490, %v489
      %v518 = vpack.c.b16 %v492, %v491
      %v519 = vpack.c.b16 %v494, %v493
      %v520 = vpack.c.b16 %v496, %v495
      %v521 = vpack.c.b16 %v498, %v497
      %v522 = vpack.c.b16 %v500, %v499
      %v523 = vpack.c.b16 %v502, %v501
      %v524 = vpack.c.b16 %v504, %v503
      %v525 = vpack.c.b16 %v506, %v505
      %v526 = vpack.c.b16 %v508, %v507
      %v527 = vpack.c.b16 %v510, %v509
      %v528 = vpack.c.b16 %v512, %v511
      %v530 = vcombine.high %v448, %v448
      %v532 = vunpack.c.l.s4 1983009808
      %v533 = vunpack.c.0.s8 %v532
      %v534 = vlaneseq
      %v535 = vshrl.u32 %v534, 7
      %v536 = vsub.s32 %v533, %v535
      %v537 = vrot.slane %v448, %v536
      %v539 = vunpack.c.l.s4 1983009808
      %v540 = vunpack.c.0.s8 %v539
      %v541 = vlaneseq
      %v542 = vshrl.u32 %v541, 7
      %v543 = vsub.s32 %v540, %v542
      %v544 = vrot.slane %v530, %v543
      %v545 = vcombine.high %v537, %v537
      %vm546 = vcmask 31744
      %v548 = vsel %vm546, %v513, 0
      %v551 = vsel %vm546, %v514, 0
      %v554 = vsel %vm546, %v515, 0
      %v557 = vsel %vm546, %v516, 0
      %v560 = vsel %vm546, %v517, 0
      %v563 = vsel %vm546, %v518, 0
      %v566 = vsel %vm546, %v519, 0
      %v569 = vsel %vm546, %v520, 0
      %v572 = vsel %vm546, %v521, 0
      %v575 = vsel %vm546, %v522, 0
      %v578 = vsel %vm546, %v523, 0
      %v581 = vsel %vm546, %v524, 0
      %v584 = vsel %vm546, %v525, 0
      %v587 = vsel %vm546, %v526, 0
      %v590 = vsel %vm546, %v527, 0
      %v593 = vsel %vm546, %v528, 0
      %vm595 = vcmask 1041408
      %v597 = vsel %vm595, %v537, 0
      %v600 = vsel %vm595, %v545, 0
      %v603 = vsel %vm595, %v544, 0
      %605 = vmatprep.subr.bf16.mxu0 0
      %606 = vmatpush1.bf16.msra.mxu0 0
      %607 = vmatprep.subr.bf16.mxu0 0
      %608 = vmatpush1.bf16.msra.mxu0 0
      %609 = vmatprep.subr.bf16.mxu0 0
      %610 = vmatpush1.bf16.msra.mxu0 0
      %611 = vmatprep.subr.bf16.mxu0 0
      %612 = vmatpush1.bf16.msra.mxu0 0
      %613 = vmatprep.subr.bf16.mxu0 0
      %614 = vmatpush1.bf16.msra.mxu0 0
      %615 = vmatprep.subr.bf16.mxu0 0
      %616 = vmatpush1.bf16.msra.mxu0 0
      %617 = vmatprep.subr.bf16.mxu0 0
      %618 = vmatpush1.bf16.msra.mxu0 0
      %619 = vmatprep.subr.bf16.mxu0 %v600
      %620 = vmatpush1.bf16.msra.mxu0 %v597
      %621 = vmatprep.subr.bf16.mxu0 0
      %622 = vmatpush2.bf16.msra.mxu0 0
      %623 = vmatprep.subr.bf16.mxu0 0
      %624 = vmatpush2.bf16.msra.mxu0 0
      %625 = vmatprep.subr.bf16.mxu0 0
      %626 = vmatpush2.bf16.msra.mxu0 0
      %627 = vmatprep.subr.bf16.mxu0 0
      %628 = vmatpush2.bf16.msra.mxu0 0
      %629 = vmatprep.subr.bf16.mxu0 0
      %630 = vmatpush2.bf16.msra.mxu0 0
      %631 = vmatprep.subr.bf16.mxu0 0
      %632 = vmatpush2.bf16.msra.mxu0 0
      %633 = vmatprep.subr.bf16.mxu0 0
      %634 = vmatpush2.bf16.msra.mxu0 0
      %635 = vmatprep.subr.bf16.mxu0 0
      %636 = vmatpush2.bf16.msra.mxu0 0
      %637 = vmatprep.mubr.bf16.mxu0 0
      %638 = vmatmul.mubr.bf16.gmra.mxu0 %v548
      %v639 = vpop.f32.mrf.mxu0
      %v640 = vadd.f32 0.0, %v639
      %v641 = vpop.f32.mrf.mxu0
      %v642 = vadd.f32 0.0, %v641
      %v643 = vpop.f32.mrf.mxu0
      %v644 = vadd.f32 0.0, %v643
      %v645 = vpop.f32.mrf.mxu0
      %v646 = vadd.f32 0.0, %v645
      %647 = vmatprep.mubr.bf16.mxu0 0
      %648 = vmatmul.mubr.bf16.gmra.mxu0 %v551
      %v649 = vpop.f32.mrf.mxu0
      %v650 = vadd.f32 0.0, %v649
      %v651 = vpop.f32.mrf.mxu0
      %v652 = vadd.f32 0.0, %v651
      %v653 = vpop.f32.mrf.mxu0
      %v654 = vadd.f32 0.0, %v653
      %v655 = vpop.f32.mrf.mxu0
      %v656 = vadd.f32 0.0, %v655
      %657 = vmatprep.mubr.bf16.mxu0 0
      %658 = vmatmul.mubr.bf16.gmra.mxu0 %v554
      %v659 = vpop.f32.mrf.mxu0
      %v660 = vadd.f32 0.0, %v659
      %v661 = vpop.f32.mrf.mxu0
      %v662 = vadd.f32 0.0, %v661
      %v663 = vpop.f32.mrf.mxu0
      %v664 = vadd.f32 0.0, %v663
      %v665 = vpop.f32.mrf.mxu0
      %v666 = vadd.f32 0.0, %v665
      %667 = vmatprep.mubr.bf16.mxu0 0
      %668 = vmatmul.mubr.bf16.gmra.mxu0 %v557
      %v669 = vpop.f32.mrf.mxu0
      %v670 = vadd.f32 0.0, %v669
      %v671 = vpop.f32.mrf.mxu0
      %v672 = vadd.f32 0.0, %v671
      %v673 = vpop.f32.mrf.mxu0
      %v674 = vadd.f32 0.0, %v673
      %v675 = vpop.f32.mrf.mxu0
      %v676 = vadd.f32 0.0, %v675
      %677 = vmatprep.mubr.bf16.mxu0 0
      %678 = vmatmul.mubr.bf16.gmra.mxu0 %v560
      %v679 = vpop.f32.mrf.mxu0
      %v680 = vadd.f32 0.0, %v679
      %v681 = vpop.f32.mrf.mxu0
      %v682 = vadd.f32 0.0, %v681
      %v683 = vpop.f32.mrf.mxu0
      %v684 = vadd.f32 0.0, %v683
      %v685 = vpop.f32.mrf.mxu0
      %v686 = vadd.f32 0.0, %v685
      %687 = vmatprep.mubr.bf16.mxu0 0
      %688 = vmatmul.mubr.bf16.gmra.mxu0 %v563
      %v689 = vpop.f32.mrf.mxu0
      %v690 = vadd.f32 0.0, %v689
      %v691 = vpop.f32.mrf.mxu0
      %v692 = vadd.f32 0.0, %v691
      %v693 = vpop.f32.mrf.mxu0
      %v694 = vadd.f32 0.0, %v693
      %v695 = vpop.f32.mrf.mxu0
      %v696 = vadd.f32 0.0, %v695
      %697 = vmatprep.mubr.bf16.mxu0 0
      %698 = vmatmul.mubr.bf16.gmra.mxu0 %v566
      %v699 = vpop.f32.mrf.mxu0
      %v700 = vadd.f32 0.0, %v699
      %v701 = vpop.f32.mrf.mxu0
      %v702 = vadd.f32 0.0, %v701
      %v703 = vpop.f32.mrf.mxu0
      %v704 = vadd.f32 0.0, %v703
      %v705 = vpop.f32.mrf.mxu0
      %v706 = vadd.f32 0.0, %v705
      %707 = vmatprep.mubr.bf16.mxu0 0
      %708 = vmatmul.mubr.bf16.gmra.mxu0 %v569
      %v709 = vpop.f32.mrf.mxu0
      %v710 = vadd.f32 0.0, %v709
      %v711 = vpop.f32.mrf.mxu0
      %v712 = vadd.f32 0.0, %v711
      %v713 = vpop.f32.mrf.mxu0
      %v714 = vadd.f32 0.0, %v713
      %v715 = vpop.f32.mrf.mxu0
      %v716 = vadd.f32 0.0, %v715
      %717 = vmatprep.mubr.bf16.mxu0 0
      %718 = vmatmul.mubr.bf16.gmra.mxu0 %v572
      %v719 = vpop.f32.mrf.mxu0
      %v720 = vadd.f32 0.0, %v719
      %v721 = vpop.f32.mrf.mxu0
      %v722 = vadd.f32 0.0, %v721
      %v723 = vpop.f32.mrf.mxu0
      %v724 = vadd.f32 0.0, %v723
      %v725 = vpop.f32.mrf.mxu0
      %v726 = vadd.f32 0.0, %v725
      %727 = vmatprep.mubr.bf16.mxu0 0
      %728 = vmatmul.mubr.bf16.gmra.mxu0 %v575
      %v729 = vpop.f32.mrf.mxu0
      %v730 = vadd.f32 0.0, %v729
      %v731 = vpop.f32.mrf.mxu0
      %v732 = vadd.f32 0.0, %v731
      %v733 = vpop.f32.mrf.mxu0
      %v734 = vadd.f32 0.0, %v733
      %v735 = vpop.f32.mrf.mxu0
      %v736 = vadd.f32 0.0, %v735
      %737 = vmatprep.mubr.bf16.mxu0 0
      %738 = vmatmul.mubr.bf16.gmra.mxu0 %v578
      %v739 = vpop.f32.mrf.mxu0
      %v740 = vadd.f32 0.0, %v739
      %v741 = vpop.f32.mrf.mxu0
      %v742 = vadd.f32 0.0, %v741
      %v743 = vpop.f32.mrf.mxu0
      %v744 = vadd.f32 0.0, %v743
      %v745 = vpop.f32.mrf.mxu0
      %v746 = vadd.f32 0.0, %v745
      %747 = vmatprep.mubr.bf16.mxu0 0
      %748 = vmatmul.mubr.bf16.gmra.mxu0 %v581
      %v749 = vpop.f32.mrf.mxu0
      %v750 = vadd.f32 0.0, %v749
      %v751 = vpop.f32.mrf.mxu0
      %v752 = vadd.f32 0.0, %v751
      %v753 = vpop.f32.mrf.mxu0
      %v754 = vadd.f32 0.0, %v753
      %v755 = vpop.f32.mrf.mxu0
      %v756 = vadd.f32 0.0, %v755
      %757 = vmatprep.mubr.bf16.mxu0 0
      %758 = vmatmul.mubr.bf16.gmra.mxu0 %v584
      %v759 = vpop.f32.mrf.mxu0
      %v760 = vadd.f32 0.0, %v759
      %v761 = vpop.f32.mrf.mxu0
      %v762 = vadd.f32 0.0, %v761
      %v763 = vpop.f32.mrf.mxu0
      %v764 = vadd.f32 0.0, %v763
      %v765 = vpop.f32.mrf.mxu0
      %v766 = vadd.f32 0.0, %v765
      %767 = vmatprep.mubr.bf16.mxu0 0
      %768 = vmatmul.mubr.bf16.gmra.mxu0 %v587
      %v769 = vpop.f32.mrf.mxu0
      %v770 = vadd.f32 0.0, %v769
      %v771 = vpop.f32.mrf.mxu0
      %v772 = vadd.f32 0.0, %v771
      %v773 = vpop.f32.mrf.mxu0
      %v774 = vadd.f32 0.0, %v773
      %v775 = vpop.f32.mrf.mxu0
      %v776 = vadd.f32 0.0, %v775
      %777 = vmatprep.mubr.bf16.mxu0 0
      %778 = vmatmul.mubr.bf16.gmra.mxu0 %v590
      %v779 = vpop.f32.mrf.mxu0
      %v780 = vadd.f32 0.0, %v779
      %v781 = vpop.f32.mrf.mxu0
      %v782 = vadd.f32 0.0, %v781
      %v783 = vpop.f32.mrf.mxu0
      %v784 = vadd.f32 0.0, %v783
      %v785 = vpop.f32.mrf.mxu0
      %v786 = vadd.f32 0.0, %v785
      %787 = vmatprep.mubr.bf16.mxu0 0
      %788 = vmatmul.mubr.bf16.gmra.mxu0 %v593
      %v789 = vpop.f32.mrf.mxu0
      %v790 = vadd.f32 0.0, %v789
      %v791 = vpop.f32.mrf.mxu0
      %v792 = vadd.f32 0.0, %v791
      %v793 = vpop.f32.mrf.mxu0
      %v794 = vadd.f32 0.0, %v793
      %v795 = vpop.f32.mrf.mxu0
      %v796 = vadd.f32 0.0, %v795
      %797 = vdwg.mxu0
      %798 = vmatprep.subr.bf16.mxu0 0
      %799 = vmatpush1.bf16.msra.mxu0 0
      %800 = vmatprep.subr.bf16.mxu0 0
      %801 = vmatpush1.bf16.msra.mxu0 0
      %802 = vmatprep.subr.bf16.mxu0 0
      %803 = vmatpush1.bf16.msra.mxu0 0
      %804 = vmatprep.subr.bf16.mxu0 0
      %805 = vmatpush1.bf16.msra.mxu0 0
      %806 = vmatprep.subr.bf16.mxu0 0
      %807 = vmatpush1.bf16.msra.mxu0 0
      %808 = vmatprep.subr.bf16.mxu0 0
      %809 = vmatpush1.bf16.msra.mxu0 0
      %810 = vmatprep.subr.bf16.mxu0 0
      %811 = vmatpush1.bf16.msra.mxu0 0
      %812 = vmatprep.subr.bf16.mxu0 0
      %813 = vmatpush1.bf16.msra.mxu0 %v603
      %814 = vmatprep.subr.bf16.mxu0 0
      %815 = vmatpush2.bf16.msra.mxu0 0
      %816 = vmatprep.subr.bf16.mxu0 0
      %817 = vmatpush2.bf16.msra.mxu0 0
      %818 = vmatprep.subr.bf16.mxu0 0
      %819 = vmatpush2.bf16.msra.mxu0 0
      %820 = vmatprep.subr.bf16.mxu0 0
      %821 = vmatpush2.bf16.msra.mxu0 0
      %822 = vmatprep.subr.bf16.mxu0 0
      %823 = vmatpush2.bf16.msra.mxu0 0
      %824 = vmatprep.subr.bf16.mxu0 0
      %825 = vmatpush2.bf16.msra.mxu0 0
      %826 = vmatprep.subr.bf16.mxu0 0
      %827 = vmatpush2.bf16.msra.mxu0 0
      %828 = vmatprep.subr.bf16.mxu0 0
      %829 = vmatpush2.bf16.msra.mxu0 0
      %830 = vmatprep.mubr.bf16.mxu0 0
      %831 = vmatmul.mubr.bf16.gmra.mxu0 %v548
      %v832 = vpop.f32.mrf.mxu0
      %v833 = vadd.f32 0.0, %v832
      %v834 = vpop.f32.mrf.mxu0
      %v835 = vpop.f32.mrf.mxu0
      %v836 = vadd.f32 0.0, %v835
      %v837 = vpop.f32.mrf.mxu0
      %838 = vmatprep.mubr.bf16.mxu0 0
      %839 = vmatmul.mubr.bf16.gmra.mxu0 %v551
      %v840 = vpop.f32.mrf.mxu0
      %v841 = vadd.f32 0.0, %v840
      %v842 = vpop.f32.mrf.mxu0
      %v843 = vpop.f32.mrf.mxu0
      %v844 = vadd.f32 0.0, %v843
      %v845 = vpop.f32.mrf.mxu0
      %846 = vmatprep.mubr.bf16.mxu0 0
      %847 = vmatmul.mubr.bf16.gmra.mxu0 %v554
      %v848 = vpop.f32.mrf.mxu0
      %v849 = vadd.f32 0.0, %v848
      %v850 = vpop.f32.mrf.mxu0
      %v851 = vpop.f32.mrf.mxu0
      %v852 = vadd.f32 0.0, %v851
      %v853 = vpop.f32.mrf.mxu0
      %854 = vmatprep.mubr.bf16.mxu0 0
      %855 = vmatmul.mubr.bf16.gmra.mxu0 %v557
      %v856 = vpop.f32.mrf.mxu0
      %v857 = vadd.f32 0.0, %v856
      %v858 = vpop.f32.mrf.mxu0
      %v859 = vpop.f32.mrf.mxu0
      %v860 = vadd.f32 0.0, %v859
      %v861 = vpop.f32.mrf.mxu0
      %862 = vmatprep.mubr.bf16.mxu0 0
      %863 = vmatmul.mubr.bf16.gmra.mxu0 %v560
      %v864 = vpop.f32.mrf.mxu0
      %v865 = vadd.f32 0.0, %v864
      %v866 = vpop.f32.mrf.mxu0
      %v867 = vpop.f32.mrf.mxu0
      %v868 = vadd.f32 0.0, %v867
      %v869 = vpop.f32.mrf.mxu0
      %870 = vmatprep.mubr.bf16.mxu0 0
      %871 = vmatmul.mubr.bf16.gmra.mxu0 %v563
      %v872 = vpop.f32.mrf.mxu0
      %v873 = vadd.f32 0.0, %v872
      %v874 = vpop.f32.mrf.mxu0
      %v875 = vpop.f32.mrf.mxu0
      %v876 = vadd.f32 0.0, %v875
      %v877 = vpop.f32.mrf.mxu0
      %878 = vmatprep.mubr.bf16.mxu0 0
      %879 = vmatmul.mubr.bf16.gmra.mxu0 %v566
      %v880 = vpop.f32.mrf.mxu0
      %v881 = vadd.f32 0.0, %v880
      %v882 = vpop.f32.mrf.mxu0
      %v883 = vpop.f32.mrf.mxu0
      %v884 = vadd.f32 0.0, %v883
      %v885 = vpop.f32.mrf.mxu0
      %886 = vmatprep.mubr.bf16.mxu0 0
      %887 = vmatmul.mubr.bf16.gmra.mxu0 %v569
      %v888 = vpop.f32.mrf.mxu0
      %v889 = vadd.f32 0.0, %v888
      %v890 = vpop.f32.mrf.mxu0
      %v891 = vpop.f32.mrf.mxu0
      %v892 = vadd.f32 0.0, %v891
      %v893 = vpop.f32.mrf.mxu0
      %894 = vmatprep.mubr.bf16.mxu0 0
      %895 = vmatmul.mubr.bf16.gmra.mxu0 %v572
      %v896 = vpop.f32.mrf.mxu0
      %v897 = vadd.f32 0.0, %v896
      %v898 = vpop.f32.mrf.mxu0
      %v899 = vpop.f32.mrf.mxu0
      %v900 = vadd.f32 0.0, %v899
      %v901 = vpop.f32.mrf.mxu0
      %902 = vmatprep.mubr.bf16.mxu0 0
      %903 = vmatmul.mubr.bf16.gmra.mxu0 %v575
      %v904 = vpop.f32.mrf.mxu0
      %v905 = vadd.f32 0.0, %v904
      %v906 = vpop.f32.mrf.mxu0
      %v907 = vpop.f32.mrf.mxu0
      %v908 = vadd.f32 0.0, %v907
      %v909 = vpop.f32.mrf.mxu0
      %910 = vmatprep.mubr.bf16.mxu0 0
      %911 = vmatmul.mubr.bf16.gmra.mxu0 %v578
      %v912 = vpop.f32.mrf.mxu0
      %v913 = vadd.f32 0.0, %v912
      %v914 = vpop.f32.mrf.mxu0
      %v915 = vpop.f32.mrf.mxu0
      %v916 = vadd.f32 0.0, %v915
      %v917 = vpop.f32.mrf.mxu0
      %918 = vmatprep.mubr.bf16.mxu0 0
      %919 = vmatmul.mubr.bf16.gmra.mxu0 %v581
      %v920 = vpop.f32.mrf.mxu0
      %v921 = vadd.f32 0.0, %v920
      %v922 = vpop.f32.mrf.mxu0
      %v923 = vpop.f32.mrf.mxu0
      %v924 = vadd.f32 0.0, %v923
      %v925 = vpop.f32.mrf.mxu0
      %926 = vmatprep.mubr.bf16.mxu0 0
      %927 = vmatmul.mubr.bf16.gmra.mxu0 %v584
      %v928 = vpop.f32.mrf.mxu0
      %v929 = vadd.f32 0.0, %v928
      %v930 = vpop.f32.mrf.mxu0
      %v931 = vpop.f32.mrf.mxu0
      %v932 = vadd.f32 0.0, %v931
      %v933 = vpop.f32.mrf.mxu0
      %934 = vmatprep.mubr.bf16.mxu0 0
      %935 = vmatmul.mubr.bf16.gmra.mxu0 %v587
      %v936 = vpop.f32.mrf.mxu0
      %v937 = vadd.f32 0.0, %v936
      %v938 = vpop.f32.mrf.mxu0
      %v939 = vpop.f32.mrf.mxu0
      %v940 = vadd.f32 0.0, %v939
      %v941 = vpop.f32.mrf.mxu0
      %942 = vmatprep.mubr.bf16.mxu0 0
      %943 = vmatmul.mubr.bf16.gmra.mxu0 %v590
      %v944 = vpop.f32.mrf.mxu0
      %v945 = vadd.f32 0.0, %v944
      %v946 = vpop.f32.mrf.mxu0
      %v947 = vpop.f32.mrf.mxu0
      %v948 = vadd.f32 0.0, %v947
      %v949 = vpop.f32.mrf.mxu0
      %950 = vmatprep.mubr.bf16.mxu0 0
      %951 = vmatmul.mubr.bf16.gmra.mxu0 %v593
      %v952 = vpop.f32.mrf.mxu0
      %v953 = vadd.f32 0.0, %v952
      %v954 = vpop.f32.mrf.mxu0
      %v955 = vpop.f32.mrf.mxu0
      %v956 = vadd.f32 0.0, %v955
      %v957 = vpop.f32.mrf.mxu0
      %958 = vdwg.mxu0
      %v959 = vadd.f32 %v320, %v640
      %v960 = vadd.f32 %v321, %v642
      %v961 = vadd.f32 %v322, %v833
      %v962 = vadd.f32 %v323, %v644
      %v963 = vadd.f32 %v324, %v646
      %v964 = vadd.f32 %v325, %v836
      %v965 = vadd.f32 %v326, %v650
      %v966 = vadd.f32 %v327, %v652
      %v967 = vadd.f32 %v328, %v841
      %v968 = vadd.f32 %v329, %v654
      %v969 = vadd.f32 %v330, %v656
      %v970 = vadd.f32 %v331, %v844
      %v971 = vadd.f32 %v332, %v660
      %v972 = vadd.f32 %v333, %v662
      %v973 = vadd.f32 %v334, %v849
      %v974 = vadd.f32 %v335, %v664
      %v975 = vadd.f32 %v336, %v666
      %v976 = vadd.f32 %v337, %v852
      %v977 = vadd.f32 %v338, %v670
      %v978 = vadd.f32 %v339, %v672
      %v979 = vadd.f32 %v340, %v857
      %v980 = vadd.f32 %v341, %v674
      %v981 = vadd.f32 %v342, %v676
      %v982 = vadd.f32 %v343, %v860
      %v983 = vadd.f32 %v344, %v680
      %v984 = vadd.f32 %v345, %v682
      %v985 = vadd.f32 %v346, %v865
      %v986 = vadd.f32 %v347, %v684
      %v987 = vadd.f32 %v348, %v686
      %v988 = vadd.f32 %v349, %v868
      %v989 = vadd.f32 %v350, %v690
      %v990 = vadd.f32 %v351, %v692
      %v991 = vadd.f32 %v352, %v873
      %v992 = vadd.f32 %v353, %v694
      %v993 = vadd.f32 %v354, %v696
      %v994 = vadd.f32 %v355, %v876
      %v995 = vadd.f32 %v356, %v700
      %v996 = vadd.f32 %v357, %v702
      %v997 = vadd.f32 %v358, %v881
      %v998 = vadd.f32 %v359, %v704
      %v999 = vadd.f32 %v360, %v706
      %v1000 = vadd.f32 %v361, %v884
      %v1001 = vadd.f32 %v362, %v710
      %v1002 = vadd.f32 %v363, %v712
      %v1003 = vadd.f32 %v364, %v889
      %v1004 = vadd.f32 %v365, %v714
      %v1005 = vadd.f32 %v366, %v716
      %v1006 = vadd.f32 %v367, %v892
      %v1007 = vadd.f32 %v368, %v720
      %v1008 = vadd.f32 %v369, %v722
      %v1009 = vadd.f32 %v370, %v897
      %v1010 = vadd.f32 %v371, %v724
      %v1011 = vadd.f32 %v372, %v726
      %v1012 = vadd.f32 %v373, %v900
      %v1013 = vadd.f32 %v374, %v730
      %v1014 = vadd.f32 %v375, %v732
      %v1015 = vadd.f32 %v376, %v905
      %v1016 = vadd.f32 %v377, %v734
      %v1017 = vadd.f32 %v378, %v736
      %v1018 = vadd.f32 %v379, %v908
      %v1019 = vadd.f32 %v380, %v740
      %v1020 = vadd.f32 %v381, %v742
      %v1021 = vadd.f32 %v382, %v913
      %v1022 = vadd.f32 %v383, %v744
      %v1023 = vadd.f32 %v384, %v746
      %v1024 = vadd.f32 %v385, %v916
      %v1025 = vadd.f32 %v386, %v750
      %v1026 = vadd.f32 %v387, %v752
      %v1027 = vadd.f32 %v388, %v921
      %v1028 = vadd.f32 %v389, %v754
      %v1029 = vadd.f32 %v390, %v756
      %v1030 = vadd.f32 %v391, %v924
      %v1031 = vadd.f32 %v392, %v760
      %v1032 = vadd.f32 %v393, %v762
      %v1033 = vadd.f32 %v394, %v929
      %v1034 = vadd.f32 %v395, %v764
      %v1035 = vadd.f32 %v396, %v766
      %v1036 = vadd.f32 %v397, %v932
      %v1037 = vadd.f32 %v398, %v770
      %v1038 = vadd.f32 %v399, %v772
      %v1039 = vadd.f32 %v400, %v937
      %v1040 = vadd.f32 %v401, %v774
      %v1041 = vadd.f32 %v402, %v776
      %v1042 = vadd.f32 %v403, %v940
      %v1043 = vadd.f32 %v404, %v780
      %v1044 = vadd.f32 %v405, %v782
      %v1045 = vadd.f32 %v406, %v945
      %v1046 = vadd.f32 %v407, %v784
      %v1047 = vadd.f32 %v408, %v786
      %v1048 = vadd.f32 %v409, %v948
      %v1049 = vadd.f32 %v410, %v790
      %v1050 = vadd.f32 %v411, %v792
      %v1051 = vadd.f32 %v412, %v953
      %v1052 = vadd.f32 %v413, %v794
      %v1053 = vadd.f32 %v414, %v796
      %v1054 = vadd.f32 %v415, %v956
      %1055 = vst [vmem:[#allocation2] sm:$0xff] %v959
      %1056 = vst [vmem:[#allocation2 + $0x8] sm:$0xff] %v960
      %1057 = vst [vmem:[#allocation2 + $0x10] sm:$0xff] %v961
      %1058 = vst [vmem:[#allocation2 + $0x18] sm:$0xff] %v962
      %1059 = vst [vmem:[#allocation2 + $0x20] sm:$0xff] %v963
      %1060 = vst [vmem:[#allocation2 + $0x28] sm:$0xff] %v964
      %1061 = vst [vmem:[#allocation2 + $0x30] sm:$0xff] %v965
      %1062 = vst [vmem:[#allocation2 + $0x38] sm:$0xff] %v966
      %1063 = vst [vmem:[#allocation2 + $0x40] sm:$0xff] %v967
      %1064 = vst [vmem:[#allocation2 + $0x48] sm:$0xff] %v968
      %1065 = vst [vmem:[#allocation2 + $0x50] sm:$0xff] %v969
      %1066 = vst [vmem:[#allocation2 + $0x58] sm:$0xff] %v970
      %1067 = vst [vmem:[#allocation2 + $0x60] sm:$0xff] %v971
      %1068 = vst [vmem:[#allocation2 + $0x68] sm:$0xff] %v972
      %1069 = vst [vmem:[#allocation2 + $0x70] sm:$0xff] %v973
      %1070 = vst [vmem:[#allocation2 + $0x78] sm:$0xff] %v974
      %1071 = vst [vmem:[#allocation2 + $0x80] sm:$0xff] %v975
      %1072 = vst [vmem:[#allocation2 + $0x88] sm:$0xff] %v976
      %1073 = vst [vmem:[#allocation2 + $0x90] sm:$0xff] %v977
      %1074 = vst [vmem:[#allocation2 + $0x98] sm:$0xff] %v978
      %1075 = vst [vmem:[#allocation2 + $0xa0] sm:$0xff] %v979
      %1076 = vst [vmem:[#allocation2 + $0xa8] sm:$0xff] %v980
      %1077 = vst [vmem:[#allocation2 + $0xb0] sm:$0xff] %v981
      %1078 = vst [vmem:[#allocation2 + $0xb8] sm:$0xff] %v982
      %1079 = vst [vmem:[#allocation2 + $0xc0] sm:$0xff] %v983
      %1080 = vst [vmem:[#allocation2 + $0xc8] sm:$0xff] %v984
      %1081 = vst [vmem:[#allocation2 + $0xd0] sm:$0xff] %v985
      %1082 = vst [vmem:[#allocation2 + $0xd8] sm:$0xff] %v986
      %1083 = vst [vmem:[#allocation2 + $0xe0] sm:$0xff] %v987
      %1084 = vst [vmem:[#allocation2 + $0xe8] sm:$0xff] %v988
      %1085 = vst [vmem:[#allocation2 + $0xf0] sm:$0xff] %v989
      %1086 = vst [vmem:[#allocation2 + $0xf8] sm:$0xff] %v990
      %1087 = vst [vmem:[#allocation2 + $0x100] sm:$0xff] %v991
      %1088 = vst [vmem:[#allocation2 + $0x108] sm:$0xff] %v992
      %1089 = vst [vmem:[#allocation2 + $0x110] sm:$0xff] %v993
      %1090 = vst [vmem:[#allocation2 + $0x118] sm:$0xff] %v994
      %1091 = vst [vmem:[#allocation2 + $0x120] sm:$0xff] %v995
      %1092 = vst [vmem:[#allocation2 + $0x128] sm:$0xff] %v996
      %1093 = vst [vmem:[#allocation2 + $0x130] sm:$0xff] %v997
      %1094 = vst [vmem:[#allocation2 + $0x138] sm:$0xff] %v998
      %1095 = vst [vmem:[#allocation2 + $0x140] sm:$0xff] %v999
      %1096 = vst [vmem:[#allocation2 + $0x148] sm:$0xff] %v1000
      %1097 = vst [vmem:[#allocation2 + $0x150] sm:$0xff] %v1001
      %1098 = vst [vmem:[#allocation2 + $0x158] sm:$0xff] %v1002
      %1099 = vst [vmem:[#allocation2 + $0x160] sm:$0xff] %v1003
      %1100 = vst [vmem:[#allocation2 + $0x168] sm:$0xff] %v1004
      %1101 = vst [vmem:[#allocation2 + $0x170] sm:$0xff] %v1005
      %1102 = vst [vmem:[#allocation2 + $0x178] sm:$0xff] %v1006
      %1103 = vst [vmem:[#allocation2 + $0x180] sm:$0xff] %v1007
      %1104 = vst [vmem:[#allocation2 + $0x188] sm:$0xff] %v1008
      %1105 = vst [vmem:[#allocation2 + $0x190] sm:$0xff] %v1009
      %1106 = vst [vmem:[#allocation2 + $0x198] sm:$0xff] %v1010
      %1107 = vst [vmem:[#allocation2 + $0x1a0] sm:$0xff] %v1011
      %1108 = vst [vmem:[#allocation2 + $0x1a8] sm:$0xff] %v1012
      %1109 = vst [vmem:[#allocation2 + $0x1b0] sm:$0xff] %v1013
      %1110 = vst [vmem:[#allocation2 + $0x1b8] sm:$0xff] %v1014
      %1111 = vst [vmem:[#allocation2 + $0x1c0] sm:$0xff] %v1015
      %1112 = vst [vmem:[#allocation2 + $0x1c8] sm:$0xff] %v1016
      %1113 = vst [vmem:[#allocation2 + $0x1d0] sm:$0xff] %v1017
      %1114 = vst [vmem:[#allocation2 + $0x1d8] sm:$0xff] %v1018
      %1115 = vst [vmem:[#allocation2 + $0x1e0] sm:$0xff] %v1019
      %1116 = vst [vmem:[#allocation2 + $0x1e8] sm:$0xff] %v1020
      %1117 = vst [vmem:[#allocation2 + $0x1f0] sm:$0xff] %v1021
      %1118 = vst [vmem:[#allocation2 + $0x1f8] sm:$0xff] %v1022
      %1119 = vst [vmem:[#allocation2 + $0x200] sm:$0xff] %v1023
      %1120 = vst [vmem:[#allocation2 + $0x208] sm:$0xff] %v1024
      %1121 = vst [vmem:[#allocation2 + $0x210] sm:$0xff] %v1025
      %1122 = vst [vmem:[#allocation2 + $0x218] sm:$0xff] %v1026
      %1123 = vst [vmem:[#allocation2 + $0x220] sm:$0xff] %v1027
      %1124 = vst [vmem:[#allocation2 + $0x228] sm:$0xff] %v1028
      %1125 = vst [vmem:[#allocation2 + $0x230] sm:$0xff] %v1029
      %1126 = vst [vmem:[#allocation2 + $0x238] sm:$0xff] %v1030
      %1127 = vst [vmem:[#allocation2 + $0x240] sm:$0xff] %v1031
      %1128 = vst [vmem:[#allocation2 + $0x248] sm:$0xff] %v1032
      %1129 = vst [vmem:[#allocation2 + $0x250] sm:$0xff] %v1033
      %1130 = vst [vmem:[#allocation2 + $0x258] sm:$0xff] %v1034
      %1131 = vst [vmem:[#allocation2 + $0x260] sm:$0xff] %v1035
      %1132 = vst [vmem:[#allocation2 + $0x268] sm:$0xff] %v1036
      %1133 = vst [vmem:[#allocation2 + $0x270] sm:$0xff] %v1037
      %1134 = vst [vmem:[#allocation2 + $0x278] sm:$0xff] %v1038
      %1135 = vst [vmem:[#allocation2 + $0x280] sm:$0xff] %v1039
      %1136 = vst [vmem:[#allocation2 + $0x288] sm:$0xff] %v1040
      %1137 = vst [vmem:[#allocation2 + $0x290] sm:$0xff] %v1041
      %1138 = vst [vmem:[#allocation2 + $0x298] sm:$0xff] %v1042
      %1139 = vst [vmem:[#allocation2 + $0x2a0] sm:$0xff] %v1043
      %1140 = vst [vmem:[#allocation2 + $0x2a8] sm:$0xff] %v1044
      %1141 = vst [vmem:[#allocation2 + $0x2b0] sm:$0xff] %v1045
      %1142 = vst [vmem:[#allocation2 + $0x2b8] sm:$0xff] %v1046
      %1143 = vst [vmem:[#allocation2 + $0x2c0] sm:$0xff] %v1047
      %1144 = vst [vmem:[#allocation2 + $0x2c8] sm:$0xff] %v1048
      %1145 = vst [vmem:[#allocation2 + $0x2d0] sm:$0xff] %v1049
      %1146 = vst [vmem:[#allocation2 + $0x2d8] sm:$0xff] %v1050
      %1147 = vst [vmem:[#allocation2 + $0x2e0] sm:$0xff] %v1051
      %1148 = vst [vmem:[#allocation2 + $0x2e8] sm:$0xff] %v1052
      %1149 = vst [vmem:[#allocation2 + $0x2f0] sm:$0xff] %v1053
      %1150 = vst [vmem:[#allocation2 + $0x2f8] sm:$0xff] %v1054
      // Predicated region
      $region37: #{inception_d_smaller.6} parent=31 // pred_check
        %p1151 = pneg %p220
      $region38: #{inception_d_smaller.6} parent=31 // pred_check_branch
        %1153 = sbr.rel (%p1151) target = $region40
      $region39: #{inception_d_smaller.6} parent=31 // pred_region
        %v1154 = vld [vmem:[#allocation2] sm:$0xff]
        %v1155 = vld [vmem:[#allocation2 + $0x8] sm:$0xff]
        %v1156 = vld [vmem:[#allocation2 + $0x10] sm:$0xff]
        %v1157 = vld [vmem:[#allocation2 + $0x18] sm:$0xff]
        %v1158 = vld [vmem:[#allocation2 + $0x20] sm:$0xff]
        %v1159 = vld [vmem:[#allocation2 + $0x28] sm:$0xff]
        %v1160 = vld [vmem:[#allocation2 + $0x30] sm:$0xff]
        %v1161 = vld [vmem:[#allocation2 + $0x38] sm:$0xff]
        %v1162 = vld [vmem:[#allocation2 + $0x40] sm:$0xff]
        %v1163 = vld [vmem:[#allocation2 + $0x48] sm:$0xff]
        %v1164 = vld [vmem:[#allocation2 + $0x50] sm:$0xff]
        %v1165 = vld [vmem:[#allocation2 + $0x58] sm:$0xff]
        %v1166 = vld [vmem:[#allocation2 + $0x60] sm:$0xff]
        %v1167 = vld [vmem:[#allocation2 + $0x68] sm:$0xff]
        %v1168 = vld [vmem:[#allocation2 + $0x70] sm:$0xff]
        %v1169 = vld [vmem:[#allocation2 + $0x78] sm:$0xff]
        %v1170 = vld [vmem:[#allocation2 + $0x80] sm:$0xff]
        %v1171 = vld [vmem:[#allocation2 + $0x88] sm:$0xff]
        %v1172 = vld [vmem:[#allocation2 + $0x90] sm:$0xff]
        %v1173 = vld [vmem:[#allocation2 + $0x98] sm:$0xff]
        %v1174 = vld [vmem:[#allocation2 + $0xa0] sm:$0xff]
        %v1175 = vld [vmem:[#allocation2 + $0xa8] sm:$0xff]
        %v1176 = vld [vmem:[#allocation2 + $0xb0] sm:$0xff]
        %v1177 = vld [vmem:[#allocation2 + $0xb8] sm:$0xff]
        %v1178 = vld [vmem:[#allocation2 + $0xc0] sm:$0xff]
        %v1179 = vld [vmem:[#allocation2 + $0xc8] sm:$0xff]
        %v1180 = vld [vmem:[#allocation2 + $0xd0] sm:$0xff]
        %v1181 = vld [vmem:[#allocation2 + $0xd8] sm:$0xff]
        %v1182 = vld [vmem:[#allocation2 + $0xe0] sm:$0xff]
        %v1183 = vld [vmem:[#allocation2 + $0xe8] sm:$0xff]
        %v1184 = vld [vmem:[#allocation2 + $0xf0] sm:$0xff]
        %v1185 = vld [vmem:[#allocation2 + $0xf8] sm:$0xff]
        %v1186 = vld [vmem:[#allocation2 + $0x100] sm:$0xff]
        %v1187 = vld [vmem:[#allocation2 + $0x108] sm:$0xff]
        %v1188 = vld [vmem:[#allocation2 + $0x110] sm:$0xff]
        %v1189 = vld [vmem:[#allocation2 + $0x118] sm:$0xff]
        %v1190 = vld [vmem:[#allocation2 + $0x120] sm:$0xff]
        %v1191 = vld [vmem:[#allocation2 + $0x128] sm:$0xff]
        %v1192 = vld [vmem:[#allocation2 + $0x130] sm:$0xff]
        %v1193 = vld [vmem:[#allocation2 + $0x138] sm:$0xff]
        %v1194 = vld [vmem:[#allocation2 + $0x140] sm:$0xff]
        %v1195 = vld [vmem:[#allocation2 + $0x148] sm:$0xff]
        %v1196 = vld [vmem:[#allocation2 + $0x150] sm:$0xff]
        %v1197 = vld [vmem:[#allocation2 + $0x158] sm:$0xff]
        %v1198 = vld [vmem:[#allocation2 + $0x160] sm:$0xff]
        %v1199 = vld [vmem:[#allocation2 + $0x168] sm:$0xff]
        %v1200 = vld [vmem:[#allocation2 + $0x170] sm:$0xff]
        %v1201 = vld [vmem:[#allocation2 + $0x178] sm:$0xff]
        %v1202 = vld [vmem:[#allocation2 + $0x180] sm:$0xff]
        %v1203 = vld [vmem:[#allocation2 + $0x188] sm:$0xff]
        %v1204 = vld [vmem:[#allocation2 + $0x190] sm:$0xff]
        %v1205 = vld [vmem:[#allocation2 + $0x198] sm:$0xff]
        %v1206 = vld [vmem:[#allocation2 + $0x1a0] sm:$0xff]
        %v1207 = vld [vmem:[#allocation2 + $0x1a8] sm:$0xff]
        %v1208 = vld [vmem:[#allocation2 + $0x1b0] sm:$0xff]
        %v1209 = vld [vmem:[#allocation2 + $0x1b8] sm:$0xff]
        %v1210 = vld [vmem:[#allocation2 + $0x1c0] sm:$0xff]
        %v1211 = vld [vmem:[#allocation2 + $0x1c8] sm:$0xff]
        %v1212 = vld [vmem:[#allocation2 + $0x1d0] sm:$0xff]
        %v1213 = vld [vmem:[#allocation2 + $0x1d8] sm:$0xff]
        %v1214 = vld [vmem:[#allocation2 + $0x1e0] sm:$0xff]
        %v1215 = vld [vmem:[#allocation2 + $0x1e8] sm:$0xff]
        %v1216 = vld [vmem:[#allocation2 + $0x1f0] sm:$0xff]
        %v1217 = vld [vmem:[#allocation2 + $0x1f8] sm:$0xff]
        %v1218 = vld [vmem:[#allocation2 + $0x200] sm:$0xff]
        %v1219 = vld [vmem:[#allocation2 + $0x208] sm:$0xff]
        %v1220 = vld [vmem:[#allocation2 + $0x210] sm:$0xff]
        %v1221 = vld [vmem:[#allocation2 + $0x218] sm:$0xff]
        %v1222 = vld [vmem:[#allocation2 + $0x220] sm:$0xff]
        %v1223 = vld [vmem:[#allocation2 + $0x228] sm:$0xff]
        %v1224 = vld [vmem:[#allocation2 + $0x230] sm:$0xff]
        %v1225 = vld [vmem:[#allocation2 + $0x238] sm:$0xff]
        %v1226 = vld [vmem:[#allocation2 + $0x240] sm:$0xff]
        %v1227 = vld [vmem:[#allocation2 + $0x248] sm:$0xff]
        %v1228 = vld [vmem:[#allocation2 + $0x250] sm:$0xff]
        %v1229 = vld [vmem:[#allocation2 + $0x258] sm:$0xff]
        %v1230 = vld [vmem:[#allocation2 + $0x260] sm:$0xff]
        %v1231 = vld [vmem:[#allocation2 + $0x268] sm:$0xff]
        %v1232 = vld [vmem:[#allocation2 + $0x270] sm:$0xff]
        %v1233 = vld [vmem:[#allocation2 + $0x278] sm:$0xff]
        %v1234 = vld [vmem:[#allocation2 + $0x280] sm:$0xff]
        %v1235 = vld [vmem:[#allocation2 + $0x288] sm:$0xff]
        %v1236 = vld [vmem:[#allocation2 + $0x290] sm:$0xff]
        %v1237 = vld [vmem:[#allocation2 + $0x298] sm:$0xff]
        %v1238 = vld [vmem:[#allocation2 + $0x2a0] sm:$0xff]
        %v1239 = vld [vmem:[#allocation2 + $0x2a8] sm:$0xff]
        %v1240 = vld [vmem:[#allocation2 + $0x2b0] sm:$0xff]
        %v1241 = vld [vmem:[#allocation2 + $0x2b8] sm:$0xff]
        %v1242 = vld [vmem:[#allocation2 + $0x2c0] sm:$0xff]
        %v1243 = vld [vmem:[#allocation2 + $0x2c8] sm:$0xff]
        %v1244 = vld [vmem:[#allocation2 + $0x2d0] sm:$0xff]
        %v1245 = vld [vmem:[#allocation2 + $0x2d8] sm:$0xff]
        %v1246 = vld [vmem:[#allocation2 + $0x2e0] sm:$0xff]
        %v1247 = vld [vmem:[#allocation2 + $0x2e8] sm:$0xff]
        %v1248 = vld [vmem:[#allocation2 + $0x2f0] sm:$0xff]
        %v1249 = vld [vmem:[#allocation2 + $0x2f8] sm:$0xff]
        %v1250 = vld [vmem:[%s2] sm:$0x7]
        %v1252 = vlaneseq
        %v1253 = vshrl.u32 %v1252, 7
        %v1254 = vsub.s32 0, %v1253
        %v1255 = vrot.slane %v1250, %v1254
        %v1256 = vlaneseq
        %v1257 = vshrl.u32 %v1256, 7
        %v1258 = vsub.s32 1, %v1257
        %v1259 = vrot.slane %v1250, %v1258
        %v1260 = vlaneseq
        %v1261 = vshrl.u32 %v1260, 7
        %v1262 = vsub.s32 2, %v1261
        %v1263 = vrot.slane %v1250, %v1262
        %v1267 = vadd.f32 %v1154, %v1255
        %v1268 = vadd.f32 %v1155, %v1259
        %v1269 = vadd.f32 %v1156, %v1263
        %v1270 = vadd.f32 %v1157, %v1255
        %v1271 = vadd.f32 %v1158, %v1259
        %v1272 = vadd.f32 %v1159, %v1263
        %v1273 = vadd.f32 %v1160, %v1255
        %v1274 = vadd.f32 %v1161, %v1259
        %v1275 = vadd.f32 %v1162, %v1263
        %v1276 = vadd.f32 %v1163, %v1255
        %v1277 = vadd.f32 %v1164, %v1259
        %v1278 = vadd.f32 %v1165, %v1263
        %v1279 = vadd.f32 %v1166, %v1255
        %v1280 = vadd.f32 %v1167, %v1259
        %v1281 = vadd.f32 %v1168, %v1263
        %v1282 = vadd.f32 %v1169, %v1255
        %v1283 = vadd.f32 %v1170, %v1259
        %v1284 = vadd.f32 %v1171, %v1263
        %v1285 = vadd.f32 %v1172, %v1255
        %v1286 = vadd.f32 %v1173, %v1259
        %v1287 = vadd.f32 %v1174, %v1263
        %v1288 = vadd.f32 %v1175, %v1255
        %v1289 = vadd.f32 %v1176, %v1259
        %v1290 = vadd.f32 %v1177, %v1263
        %v1291 = vadd.f32 %v1178, %v1255
        %v1292 = vadd.f32 %v1179, %v1259
        %v1293 = vadd.f32 %v1180, %v1263
        %v1294 = vadd.f32 %v1181, %v1255
        %v1295 = vadd.f32 %v1182, %v1259
        %v1296 = vadd.f32 %v1183, %v1263
        %v1297 = vadd.f32 %v1184, %v1255
        %v1298 = vadd.f32 %v1185, %v1259
        %v1299 = vadd.f32 %v1186, %v1263
        %v1300 = vadd.f32 %v1187, %v1255
        %v1301 = vadd.f32 %v1188, %v1259
        %v1302 = vadd.f32 %v1189, %v1263
        %v1303 = vadd.f32 %v1190, %v1255
        %v1304 = vadd.f32 %v1191, %v1259
        %v1305 = vadd.f32 %v1192, %v1263
        %v1306 = vadd.f32 %v1193, %v1255
        %v1307 = vadd.f32 %v1194, %v1259
        %v1308 = vadd.f32 %v1195, %v1263
        %v1309 = vadd.f32 %v1196, %v1255
        %v1310 = vadd.f32 %v1197, %v1259
        %v1311 = vadd.f32 %v1198, %v1263
        %v1312 = vadd.f32 %v1199, %v1255
        %v1313 = vadd.f32 %v1200, %v1259
        %v1314 = vadd.f32 %v1201, %v1263
        %v1315 = vadd.f32 %v1202, %v1255
        %v1316 = vadd.f32 %v1203, %v1259
        %v1317 = vadd.f32 %v1204, %v1263
        %v1318 = vadd.f32 %v1205, %v1255
        %v1319 = vadd.f32 %v1206, %v1259
        %v1320 = vadd.f32 %v1207, %v1263
        %v1321 = vadd.f32 %v1208, %v1255
        %v1322 = vadd.f32 %v1209, %v1259
        %v1323 = vadd.f32 %v1210, %v1263
        %v1324 = vadd.f32 %v1211, %v1255
        %v1325 = vadd.f32 %v1212, %v1259
        %v1326 = vadd.f32 %v1213, %v1263
        %v1327 = vadd.f32 %v1214, %v1255
        %v1328 = vadd.f32 %v1215, %v1259
        %v1329 = vadd.f32 %v1216, %v1263
        %v1330 = vadd.f32 %v1217, %v1255
        %v1331 = vadd.f32 %v1218, %v1259
        %v1332 = vadd.f32 %v1219, %v1263
        %v1333 = vadd.f32 %v1220, %v1255
        %v1334 = vadd.f32 %v1221, %v1259
        %v1335 = vadd.f32 %v1222, %v1263
        %v1336 = vadd.f32 %v1223, %v1255
        %v1337 = vadd.f32 %v1224, %v1259
        %v1338 = vadd.f32 %v1225, %v1263
        %v1339 = vadd.f32 %v1226, %v1255
        %v1340 = vadd.f32 %v1227, %v1259
        %v1341 = vadd.f32 %v1228, %v1263
        %v1342 = vadd.f32 %v1229, %v1255
        %v1343 = vadd.f32 %v1230, %v1259
        %v1344 = vadd.f32 %v1231, %v1263
        %v1345 = vadd.f32 %v1232, %v1255
        %v1346 = vadd.f32 %v1233, %v1259
        %v1347 = vadd.f32 %v1234, %v1263
        %v1348 = vadd.f32 %v1235, %v1255
        %v1349 = vadd.f32 %v1236, %v1259
        %v1350 = vadd.f32 %v1237, %v1263
        %v1351 = vadd.f32 %v1238, %v1255
        %v1352 = vadd.f32 %v1239, %v1259
        %v1353 = vadd.f32 %v1240, %v1263
        %v1354 = vadd.f32 %v1241, %v1255
        %v1355 = vadd.f32 %v1242, %v1259
        %v1356 = vadd.f32 %v1243, %v1263
        %v1357 = vadd.f32 %v1244, %v1255
        %v1358 = vadd.f32 %v1245, %v1259
        %v1359 = vadd.f32 %v1246, %v1263
        %v1360 = vadd.f32 %v1247, %v1255
        %v1361 = vadd.f32 %v1248, %v1259
        %v1362 = vadd.f32 %v1249, %v1263
        %v1363 = vmax.f32 %v1267, 0.0
        %v1364 = vmax.f32 %v1268, 0.0
        %v1365 = vmax.f32 %v1269, 0.0
        %v1366 = vmax.f32 %v1270, 0.0
        %v1367 = vmax.f32 %v1271, 0.0
        %v1368 = vmax.f32 %v1272, 0.0
        %v1369 = vmax.f32 %v1273, 0.0
        %v1370 = vmax.f32 %v1274, 0.0
        %v1371 = vmax.f32 %v1275, 0.0
        %v1372 = vmax.f32 %v1276, 0.0
        %v1373 = vmax.f32 %v1277, 0.0
        %v1374 = vmax.f32 %v1278, 0.0
        %v1375 = vmax.f32 %v1279, 0.0
        %v1376 = vmax.f32 %v1280, 0.0
        %v1377 = vmax.f32 %v1281, 0.0
        %v1378 = vmax.f32 %v1282, 0.0
        %v1379 = vmax.f32 %v1283, 0.0
        %v1380 = vmax.f32 %v1284, 0.0
        %v1381 = vmax.f32 %v1285, 0.0
        %v1382 = vmax.f32 %v1286, 0.0
        %v1383 = vmax.f32 %v1287, 0.0
        %v1384 = vmax.f32 %v1288, 0.0
        %v1385 = vmax.f32 %v1289, 0.0
        %v1386 = vmax.f32 %v1290, 0.0
        %v1387 = vmax.f32 %v1291, 0.0
        %v1388 = vmax.f32 %v1292, 0.0
        %v1389 = vmax.f32 %v1293, 0.0
        %v1390 = vmax.f32 %v1294, 0.0
        %v1391 = vmax.f32 %v1295, 0.0
        %v1392 = vmax.f32 %v1296, 0.0
        %v1393 = vmax.f32 %v1297, 0.0
        %v1394 = vmax.f32 %v1298, 0.0
        %v1395 = vmax.f32 %v1299, 0.0
        %v1396 = vmax.f32 %v1300, 0.0
        %v1397 = vmax.f32 %v1301, 0.0
        %v1398 = vmax.f32 %v1302, 0.0
        %v1399 = vmax.f32 %v1303, 0.0
        %v1400 = vmax.f32 %v1304, 0.0
        %v1401 = vmax.f32 %v1305, 0.0
        %v1402 = vmax.f32 %v1306, 0.0
        %v1403 = vmax.f32 %v1307, 0.0
        %v1404 = vmax.f32 %v1308, 0.0
        %v1405 = vmax.f32 %v1309, 0.0
        %v1406 = vmax.f32 %v1310, 0.0
        %v1407 = vmax.f32 %v1311, 0.0
        %v1408 = vmax.f32 %v1312, 0.0
        %v1409 = vmax.f32 %v1313, 0.0
        %v1410 = vmax.f32 %v1314, 0.0
        %v1411 = vmax.f32 %v1315, 0.0
        %v1412 = vmax.f32 %v1316, 0.0
        %v1413 = vmax.f32 %v1317, 0.0
        %v1414 = vmax.f32 %v1318, 0.0
        %v1415 = vmax.f32 %v1319, 0.0
        %v1416 = vmax.f32 %v1320, 0.0
        %v1417 = vmax.f32 %v1321, 0.0
        %v1418 = vmax.f32 %v1322, 0.0
        %v1419 = vmax.f32 %v1323, 0.0
        %v1420 = vmax.f32 %v1324, 0.0
        %v1421 = vmax.f32 %v1325, 0.0
        %v1422 = vmax.f32 %v1326, 0.0
        %v1423 = vmax.f32 %v1327, 0.0
        %v1424 = vmax.f32 %v1328, 0.0
        %v1425 = vmax.f32 %v1329, 0.0
        %v1426 = vmax.f32 %v1330, 0.0
        %v1427 = vmax.f32 %v1331, 0.0
        %v1428 = vmax.f32 %v1332, 0.0
        %v1429 = vmax.f32 %v1333, 0.0
        %v1430 = vmax.f32 %v1334, 0.0
        %v1431 = vmax.f32 %v1335, 0.0
        %v1432 = vmax.f32 %v1336, 0.0
        %v1433 = vmax.f32 %v1337, 0.0
        %v1434 = vmax.f32 %v1338, 0.0
        %v1435 = vmax.f32 %v1339, 0.0
        %v1436 = vmax.f32 %v1340, 0.0
        %v1437 = vmax.f32 %v1341, 0.0
        %v1438 = vmax.f32 %v1342, 0.0
        %v1439 = vmax.f32 %v1343, 0.0
        %v1440 = vmax.f32 %v1344, 0.0
        %v1441 = vmax.f32 %v1345, 0.0
        %v1442 = vmax.f32 %v1346, 0.0
        %v1443 = vmax.f32 %v1347, 0.0
        %v1444 = vmax.f32 %v1348, 0.0
        %v1445 = vmax.f32 %v1349, 0.0
        %v1446 = vmax.f32 %v1350, 0.0
        %v1447 = vmax.f32 %v1351, 0.0
        %v1448 = vmax.f32 %v1352, 0.0
        %v1449 = vmax.f32 %v1353, 0.0
        %v1450 = vmax.f32 %v1354, 0.0
        %v1451 = vmax.f32 %v1355, 0.0
        %v1452 = vmax.f32 %v1356, 0.0
        %v1453 = vmax.f32 %v1357, 0.0
        %v1454 = vmax.f32 %v1358, 0.0
        %v1455 = vmax.f32 %v1359, 0.0
        %v1456 = vmax.f32 %v1360, 0.0
        %v1457 = vmax.f32 %v1361, 0.0
        %v1458 = vmax.f32 %v1362, 0.0
        %1459 = vst [vmem:[%s217] sm:$0xff] %v1363
        %1460 = vst [vmem:[%s217 + $0x8] sm:$0xff] %v1364
        %1461 = vst [vmem:[%s217 + $0x10] sm:$0xff] %v1365
        %1462 = vst [vmem:[%s217 + $0x18] sm:$0xff] %v1366
        %1463 = vst [vmem:[%s217 + $0x20] sm:$0xff] %v1367
        %1464 = vst [vmem:[%s217 + $0x28] sm:$0xff] %v1368
        %1465 = vst [vmem:[%s217 + $0x30] sm:$0xff] %v1369
        %1466 = vst [vmem:[%s217 + $0x38] sm:$0xff] %v1370
        %1467 = vst [vmem:[%s217 + $0x40] sm:$0xff] %v1371
        %1468 = vst [vmem:[%s217 + $0x48] sm:$0xff] %v1372
        %1469 = vst [vmem:[%s217 + $0x50] sm:$0xff] %v1373
        %1470 = vst [vmem:[%s217 + $0x58] sm:$0xff] %v1374
        %1471 = vst [vmem:[%s217 + $0x60] sm:$0xff] %v1375
        %1472 = vst [vmem:[%s217 + $0x68] sm:$0xff] %v1376
        %1473 = vst [vmem:[%s217 + $0x70] sm:$0xff] %v1377
        %1474 = vst [vmem:[%s217 + $0x78] sm:$0xff] %v1378
        %1475 = vst [vmem:[%s217 + $0x80] sm:$0xff] %v1379
        %1476 = vst [vmem:[%s217 + $0x88] sm:$0xff] %v1380
        %1477 = vst [vmem:[%s217 + $0x90] sm:$0xff] %v1381
        %1478 = vst [vmem:[%s217 + $0x98] sm:$0xff] %v1382
        %1479 = vst [vmem:[%s217 + $0xa0] sm:$0xff] %v1383
        %1480 = vst [vmem:[%s217 + $0xa8] sm:$0xff] %v1384
        %1481 = vst [vmem:[%s217 + $0xb0] sm:$0xff] %v1385
        %1482 = vst [vmem:[%s217 + $0xb8] sm:$0xff] %v1386
        %1483 = vst [vmem:[%s217 + $0xc0] sm:$0xff] %v1387
        %1484 = vst [vmem:[%s217 + $0xc8] sm:$0xff] %v1388
        %1485 = vst [vmem:[%s217 + $0xd0] sm:$0xff] %v1389
        %1486 = vst [vmem:[%s217 + $0xd8] sm:$0xff] %v1390
        %1487 = vst [vmem:[%s217 + $0xe0] sm:$0xff] %v1391
        %1488 = vst [vmem:[%s217 + $0xe8] sm:$0xff] %v1392
        %1489 = vst [vmem:[%s217 + $0xf0] sm:$0xff] %v1393
        %1490 = vst [vmem:[%s217 + $0xf8] sm:$0xff] %v1394
        %1491 = vst [vmem:[%s217 + $0x100] sm:$0xff] %v1395
        %1492 = vst [vmem:[%s217 + $0x108] sm:$0xff] %v1396
        %1493 = vst [vmem:[%s217 + $0x110] sm:$0xff] %v1397
        %1494 = vst [vmem:[%s217 + $0x118] sm:$0xff] %v1398
        %1495 = vst [vmem:[%s217 + $0x120] sm:$0xff] %v1399
        %1496 = vst [vmem:[%s217 + $0x128] sm:$0xff] %v1400
        %1497 = vst [vmem:[%s217 + $0x130] sm:$0xff] %v1401
        %1498 = vst [vmem:[%s217 + $0x138] sm:$0xff] %v1402
        %1499 = vst [vmem:[%s217 + $0x140] sm:$0xff] %v1403
        %1500 = vst [vmem:[%s217 + $0x148] sm:$0xff] %v1404
        %1501 = vst [vmem:[%s217 + $0x150] sm:$0xff] %v1405
        %1502 = vst [vmem:[%s217 + $0x158] sm:$0xff] %v1406
        %1503 = vst [vmem:[%s217 + $0x160] sm:$0xff] %v1407
        %1504 = vst [vmem:[%s217 + $0x168] sm:$0xff] %v1408
        %1505 = vst [vmem:[%s217 + $0x170] sm:$0xff] %v1409
        %1506 = vst [vmem:[%s217 + $0x178] sm:$0xff] %v1410
        %1507 = vst [vmem:[%s217 + $0x180] sm:$0xff] %v1411
        %1508 = vst [vmem:[%s217 + $0x188] sm:$0xff] %v1412
        %1509 = vst [vmem:[%s217 + $0x190] sm:$0xff] %v1413
        %1510 = vst [vmem:[%s217 + $0x198] sm:$0xff] %v1414
        %1511 = vst [vmem:[%s217 + $0x1a0] sm:$0xff] %v1415
        %1512 = vst [vmem:[%s217 + $0x1a8] sm:$0xff] %v1416
        %1513 = vst [vmem:[%s217 + $0x1b0] sm:$0xff] %v1417
        %1514 = vst [vmem:[%s217 + $0x1b8] sm:$0xff] %v1418
        %1515 = vst [vmem:[%s217 + $0x1c0] sm:$0xff] %v1419
        %1516 = vst [vmem:[%s217 + $0x1c8] sm:$0xff] %v1420
        %1517 = vst [vmem:[%s217 + $0x1d0] sm:$0xff] %v1421
        %1518 = vst [vmem:[%s217 + $0x1d8] sm:$0xff] %v1422
        %1519 = vst [vmem:[%s217 + $0x1e0] sm:$0xff] %v1423
        %1520 = vst [vmem:[%s217 + $0x1e8] sm:$0xff] %v1424
        %1521 = vst [vmem:[%s217 + $0x1f0] sm:$0xff] %v1425
        %1522 = vst [vmem:[%s217 + $0x1f8] sm:$0xff] %v1426
        %1523 = vst [vmem:[%s217 + $0x200] sm:$0xff] %v1427
        %1524 = vst [vmem:[%s217 + $0x208] sm:$0xff] %v1428
        %1525 = vst [vmem:[%s217 + $0x210] sm:$0xff] %v1429
        %1526 = vst [vmem:[%s217 + $0x218] sm:$0xff] %v1430
        %1527 = vst [vmem:[%s217 + $0x220] sm:$0xff] %v1431
        %1528 = vst [vmem:[%s217 + $0x228] sm:$0xff] %v1432
        %1529 = vst [vmem:[%s217 + $0x230] sm:$0xff] %v1433
        %1530 = vst [vmem:[%s217 + $0x238] sm:$0xff] %v1434
        %1531 = vst [vmem:[%s217 + $0x240] sm:$0xff] %v1435
        %1532 = vst [vmem:[%s217 + $0x248] sm:$0xff] %v1436
        %1533 = vst [vmem:[%s217 + $0x250] sm:$0xff] %v1437
        %1534 = vst [vmem:[%s217 + $0x258] sm:$0xff] %v1438
        %1535 = vst [vmem:[%s217 + $0x260] sm:$0xff] %v1439
        %1536 = vst [vmem:[%s217 + $0x268] sm:$0xff] %v1440
        %1537 = vst [vmem:[%s217 + $0x270] sm:$0xff] %v1441
        %1538 = vst [vmem:[%s217 + $0x278] sm:$0xff] %v1442
        %1539 = vst [vmem:[%s217 + $0x280] sm:$0xff] %v1443
        %1540 = vst [vmem:[%s217 + $0x288] sm:$0xff] %v1444
        %1541 = vst [vmem:[%s217 + $0x290] sm:$0xff] %v1445
        %1542 = vst [vmem:[%s217 + $0x298] sm:$0xff] %v1446
        %1543 = vst [vmem:[%s217 + $0x2a0] sm:$0xff] %v1447
        %1544 = vst [vmem:[%s217 + $0x2a8] sm:$0xff] %v1448
        %1545 = vst [vmem:[%s217 + $0x2b0] sm:$0xff] %v1449
        %1546 = vst [vmem:[%s217 + $0x2b8] sm:$0xff] %v1450
        %1547 = vst [vmem:[%s217 + $0x2c0] sm:$0xff] %v1451
        %1548 = vst [vmem:[%s217 + $0x2c8] sm:$0xff] %v1452
        %1549 = vst [vmem:[%s217 + $0x2d0] sm:$0xff] %v1453
        %1550 = vst [vmem:[%s217 + $0x2d8] sm:$0xff] %v1454
        %1551 = vst [vmem:[%s217 + $0x2e0] sm:$0xff] %v1455
        %1552 = vst [vmem:[%s217 + $0x2e8] sm:$0xff] %v1456
        %1553 = vst [vmem:[%s217 + $0x2f0] sm:$0xff] %v1457
        %1554 = vst [vmem:[%s217 + $0x2f8] sm:$0xff] %v1458
      $region40: #{inception_d_smaller.6} parent=31 // pred_fallthru
        _
      %s1555 = smul.u32 32, %s18
      %p1556 = scmp.lt.s32.totalorder %s1555, 63
      %s1557 = scalar_select %p1556, %s1555, 63
      %s1558 = smul.addr %s1557, 3
      %s1559 = smul.addr %s1558, 8
      %s1560 = scalar_lea.vmem %s3, %s1559
      // Predicated region
      $region41: #{inception_d_smaller.6} parent=31 // pred_check
        %p1561 = pneg %p119
      $region42: #{inception_d_smaller.6} parent=31 // pred_check_branch
        %1563 = sbr.rel (%p1561) target = $region44
      $region43: #{inception_d_smaller.6} parent=31 // pred_region
        %s1564 = smul.u32 32, %s18
      $region44: #{inception_d_smaller.6} parent=31 // pred_fallthru
        _
    $region32: #{inception_d_smaller.6} parent=5 // pred_fallthru
      _
    %p1565 = scmp.le.s32.totalorder 2, %s9
    // Predicated region
    $region45: #{inception_d_smaller.6} parent=5 // pred_check
      %p1566 = pneg %p1565
    $region46: #{inception_d_smaller.6} parent=5 // pred_check_branch
      %1568 = sbr.rel (%p1566) target = $region48
    $region47: #{inception_d_smaller.6} parent=5 // pred_region
      %s1569 = ssub.s32 %s9, 2
      // Predicated region
      $region49: #{inception_d_smaller.6} parent=47 // pred_check
        %p1570 = pneg %p125
      $region50: #{inception_d_smaller.6} parent=47 // pred_check_branch
        %1572 = sbr.rel (%p1570) target = $region52
      $region51: #{inception_d_smaller.6} parent=47 // pred_region
        %s1573 = smul.u32 32, %s20
        %p1574 = scmp.lt.s32.totalorder %s1573, 63
        %s1575 = scalar_select %p1574, %s1573, 63
        %s1576 = smul.addr %s1575, 3
        %s1577 = smul.addr %s1576, 8
        %s1578 = scalar_lea.vmem %s3, %s1577
      $region52: #{inception_d_smaller.6} parent=47 // pred_fallthru
        _
    $region48: #{inception_d_smaller.6} parent=5 // pred_fallthru
      _
  $region6: #{inception_d_smaller.6} parent=0 // loop_footer
    %s13 = sadd.s32 1, %s9
  $region7: #{inception_d_smaller.6} parent=0 // loop_footer_branch
    %8 = sbr.rel target = $region3
  $region8: #{inception_d_smaller.6} parent=0 // loop_exit
    _

// kernel: inception_d_smaller.7
$region0: #{inception_d_smaller.7}
  #allocation0 [shape = 'u32[]', space=smem, size = 0x4, offset = 0x4, fixed_abs, tag = 'smem constant byte address 0x4 - core index']
  #allocation1 [shape = 'u32[144,128]{1,0:T(1,128)}', space=vmem, size = 0x12000, scoped, tag = 'internal scratch']
  #allocation2 [shape = 'f32[104,256]{1,0:T(8,128)}', space=vmem, size = 0x1a000, scoped, tag = 'scratch operand']
  %s0 = inlined_call_operand.vmem [shape: bf16[104,1728], index: 0, kind: input, shape index: {}]
  %s1 = inlined_call_operand.vmem [shape: bf16[1728,256], index: 1, kind: input, shape index: {}]
  %s2 = inlined_call_operand.vmem [shape: f32[1,256], index: 2, kind: input, shape index: {}]
  %s3 = inlined_call_operand.vmem [shape: f32[104,256], index: 3, kind: output, shape index: {}]
  %s4 = sld [smem:[#allocation0]]
  $region30: #{inception_d_smaller.7} parent=0
    _
  %s6 = ssub.s32 1, %s4
  %s7 = scalar_select 0, %s6, %s4
  // Predicated region
  $region2: #{inception_d_smaller.7} parent=0 // pred_check
    _
  $region3: #{inception_d_smaller.7} parent=0 // pred_check_branch
    %9 = sbr.rel (0) target = $region5
  $region4: #{inception_d_smaller.7} parent=0 // pred_region
    _
  $region5: #{inception_d_smaller.7} parent=0 // pred_fallthru
    _
  // Predicated region
  $region6: #{inception_d_smaller.7} parent=0 // pred_check
    _
  $region7: #{inception_d_smaller.7} parent=0 // pred_check_branch
    %11 = sbr.rel (0) target = $region9
  $region8: #{inception_d_smaller.7} parent=0 // pred_region
    _
  $region9: #{inception_d_smaller.7} parent=0 // pred_fallthru
    _
  // Predicated region
  $region10: #{inception_d_smaller.7} parent=0 // pred_check
    _
  $region11: #{inception_d_smaller.7} parent=0 // pred_check_branch
    %13 = sbr.rel (0) target = $region13
  $region12: #{inception_d_smaller.7} parent=0 // pred_region
    _
  $region13: #{inception_d_smaller.7} parent=0 // pred_fallthru
    _
  %p15 = scmp.eq.s32.totalorder 0, 0
  // Predicated region
  $region14: #{inception_d_smaller.7} parent=0 // pred_check
    %p16 = pneg %p15
  $region15: #{inception_d_smaller.7} parent=0 // pred_check_branch
    %18 = sbr.rel (%p16) target = $region17
  $region16: #{inception_d_smaller.7} parent=0 // pred_region
    %19 = vst [vmem:[#allocation2] sm:$0xff] 0.0
    %20 = vst [vmem:[#allocation2 + $0x8] sm:$0xff] 0.0
    %21 = vst [vmem:[#allocation2 + $0x10] sm:$0xff] 0.0
    %22 = vst [vmem:[#allocation2 + $0x18] sm:$0xff] 0.0
    %23 = vst [vmem:[#allocation2 + $0x20] sm:$0xff] 0.0
    %24 = vst [vmem:[#allocation2 + $0x28] sm:$0xff] 0.0
    %25 = vst [vmem:[#allocation2 + $0x30] sm:$0xff] 0.0
    %26 = vst [vmem:[#allocation2 + $0x38] sm:$0xff] 0.0
    %27 = vst [vmem:[#allocation2 + $0x40] sm:$0xff] 0.0
    %28 = vst [vmem:[#allocation2 + $0x48] sm:$0xff] 0.0
    %29 = vst [vmem:[#allocation2 + $0x50] sm:$0xff] 0.0
    %30 = vst [vmem:[#allocation2 + $0x58] sm:$0xff] 0.0
    %31 = vst [vmem:[#allocation2 + $0x60] sm:$0xff] 0.0
    %32 = vst [vmem:[#allocation2 + $0x68] sm:$0xff] 0.0
    %33 = vst [vmem:[#allocation2 + $0x70] sm:$0xff] 0.0
    %34 = vst [vmem:[#allocation2 + $0x78] sm:$0xff] 0.0
    %35 = vst [vmem:[#allocation2 + $0x80] sm:$0xff] 0.0
    %36 = vst [vmem:[#allocation2 + $0x88] sm:$0xff] 0.0
    %37 = vst [vmem:[#allocation2 + $0x90] sm:$0xff] 0.0
    %38 = vst [vmem:[#allocation2 + $0x98] sm:$0xff] 0.0
    %39 = vst [vmem:[#allocation2 + $0xa0] sm:$0xff] 0.0
    %40 = vst [vmem:[#allocation2 + $0xa8] sm:$0xff] 0.0
    %41 = vst [vmem:[#allocation2 + $0xb0] sm:$0xff] 0.0
    %42 = vst [vmem:[#allocation2 + $0xb8] sm:$0xff] 0.0
    %43 = vst [vmem:[#allocation2 + $0xc0] sm:$0xff] 0.0
    %44 = vst [vmem:[#allocation2 + $0xc8] sm:$0xff] 0.0
  $region17: #{inception_d_smaller.7} parent=0 // pred_fallthru
    _
  %v45 = vld [vmem:[#allocation2] sm:$0xff]
  %v46 = vld [vmem:[#allocation2 + $0x8] sm:$0xff]
  %v47 = vld [vmem:[#allocation2 + $0x10] sm:$0xff]
  %v48 = vld [vmem:[#allocation2 + $0x18] sm:$0xff]
  %v49 = vld [vmem:[#allocation2 + $0x20] sm:$0xff]
  %v50 = vld [vmem:[#allocation2 + $0x28] sm:$0xff]
  %v51 = vld [vmem:[#allocation2 + $0x30] sm:$0xff]
  %v52 = vld [vmem:[#allocation2 + $0x38] sm:$0xff]
  %v53 = vld [vmem:[#allocation2 + $0x40] sm:$0xff]
  %v54 = vld [vmem:[#allocation2 + $0x48] sm:$0xff]
  %v55 = vld [vmem:[#allocation2 + $0x50] sm:$0xff]
  %v56 = vld [vmem:[#allocation2 + $0x58] sm:$0xff]
  %v57 = vld [vmem:[#allocation2 + $0x60] sm:$0xff]
  %v58 = vld [vmem:[#allocation2 + $0x68] sm:$0xff]
  %v59 = vld [vmem:[#allocation2 + $0x70] sm:$0xff]
  %v60 = vld [vmem:[#allocation2 + $0x78] sm:$0xff]
  %v61 = vld [vmem:[#allocation2 + $0x80] sm:$0xff]
  %v62 = vld [vmem:[#allocation2 + $0x88] sm:$0xff]
  %v63 = vld [vmem:[#allocation2 + $0x90] sm:$0xff]
  %v64 = vld [vmem:[#allocation2 + $0x98] sm:$0xff]
  %v65 = vld [vmem:[#allocation2 + $0xa0] sm:$0xff]
  %v66 = vld [vmem:[#allocation2 + $0xa8] sm:$0xff]
  %v67 = vld [vmem:[#allocation2 + $0xb0] sm:$0xff]
  %v68 = vld [vmem:[#allocation2 + $0xb8] sm:$0xff]
  %v69 = vld [vmem:[#allocation2 + $0xc0] sm:$0xff]
  %v70 = vld [vmem:[#allocation2 + $0xc8] sm:$0xff]
  %v71 = vld [vmem:[%s0] sm:$0xff]
  %v72 = vld [vmem:[%s0 + $0x8] sm:$0xff]
  %v73 = vld [vmem:[%s0 + $0x10] sm:$0xff]
  %v74 = vld [vmem:[%s0 + $0x18] sm:$0xff]
  %v75 = vld [vmem:[%s0 + $0x20] sm:$0xff]
  %v76 = vld [vmem:[%s0 + $0x28] sm:$0xff]
  %v77 = vld [vmem:[%s0 + $0x30] sm:$0xff]
  %v78 = vld [vmem:[%s0 + $0x38] sm:$0xff]
  %v79 = vld [vmem:[%s0 + $0x40] sm:$0xff]
  %v80 = vld [vmem:[%s0 + $0x48] sm:$0xff]
  %v81 = vld [vmem:[%s0 + $0x50] sm:$0xff]
  %v82 = vld [vmem:[%s0 + $0x58] sm:$0xff]
  %v83 = vld [vmem:[%s0 + $0x60] sm:$0xff]
  %v84 = vld [vmem:[%s0 + $0x68] sm:$0xff]
  %v85 = vld [vmem:[%s0 + $0x70] sm:$0xff]
  %v86 = vld [vmem:[%s0 + $0x78] sm:$0xff]
  %v87 = vld [vmem:[%s0 + $0x80] sm:$0xff]
  %v88 = vld [vmem:[%s0 + $0x88] sm:$0xff]
  %v89 = vld [vmem:[%s0 + $0x90] sm:$0xff]
  %v90 = vld [vmem:[%s0 + $0x98] sm:$0xff]
  %v91 = vld [vmem:[%s0 + $0xa0] sm:$0xff]
  %v92 = vld [vmem:[%s0 + $0xa8] sm:$0xff]
  %v93 = vld [vmem:[%s0 + $0xb0] sm:$0xff]
  %v94 = vld [vmem:[%s0 + $0xb8] sm:$0xff]
  %v95 = vld [vmem:[%s0 + $0xc0] sm:$0xff]
  %v96 = vld [vmem:[%s0 + $0xc8] sm:$0xff]
  %v97 = vld [vmem:[%s0 + $0xd0] sm:$0xff]
  %v98 = vld [vmem:[%s0 + $0xd8] sm:$0xff]
  %v99 = vld [vmem:[%s0 + $0xe0] sm:$0xff]
  %v100 = vld [vmem:[%s0 + $0xe8] sm:$0xff]
  %v101 = vld [vmem:[%s0 + $0xf0] sm:$0xff]
  %v102 = vld [vmem:[%s0 + $0xf8] sm:$0xff]
  %v103 = vld [vmem:[%s0 + $0x100] sm:$0xff]
  %v104 = vld [vmem:[%s0 + $0x108] sm:$0xff]
  %v105 = vld [vmem:[%s0 + $0x110] sm:$0xff]
  %v106 = vld [vmem:[%s0 + $0x118] sm:$0xff]
  %v107 = vld [vmem:[%s0 + $0x120] sm:$0xff]
  %v108 = vld [vmem:[%s0 + $0x128] sm:$0xff]
  %v109 = vld [vmem:[%s0 + $0x130] sm:$0xff]
  %v110 = vld [vmem:[%s0 + $0x138] sm:$0xff]
  %v111 = vld [vmem:[%s0 + $0x140] sm:$0xff]
  %v112 = vld [vmem:[%s0 + $0x148] sm:$0xff]
  %v113 = vld [vmem:[%s0 + $0x150] sm:$0xff]
  %v114 = vld [vmem:[%s0 + $0x158] sm:$0xff]
  %v115 = vld [vmem:[%s0 + $0x160] sm:$0xff]
  %v116 = vld [vmem:[%s0 + $0x168] sm:$0xff]
  %v117 = vld [vmem:[%s0 + $0x170] sm:$0xff]
  %v118 = vld [vmem:[%s0 + $0x178] sm:$0xff]
  %v119 = vld [vmem:[%s0 + $0x180] sm:$0xff]
  %v120 = vld [vmem:[%s0 + $0x188] sm:$0xff]
  %v121 = vld [vmem:[%s0 + $0x190] sm:$0xff]
  %v122 = vld [vmem:[%s0 + $0x198] sm:$0xff]
  %v123 = vld [vmem:[%s0 + $0x1a0] sm:$0xff]
  %v124 = vld [vmem:[%s0 + $0x1a8] sm:$0xff]
  %v125 = vld [vmem:[%s0 + $0x1b0] sm:$0xff]
  %v126 = vld [vmem:[%s0 + $0x1b8] sm:$0xff]
  %v127 = vld [vmem:[%s0 + $0x1c0] sm:$0xff]
  %v128 = vld [vmem:[%s0 + $0x1c8] sm:$0xff]
  %v129 = vld [vmem:[%s0 + $0x1d0] sm:$0xff]
  %v130 = vld [vmem:[%s0 + $0x1d8] sm:$0xff]
  %v131 = vld [vmem:[%s0 + $0x1e0] sm:$0xff]
  %v132 = vld [vmem:[%s0 + $0x1e8] sm:$0xff]
  %v133 = vld [vmem:[%s0 + $0x1f0] sm:$0xff]
  %v134 = vld [vmem:[%s0 + $0x1f8] sm:$0xff]
  %v135 = vld [vmem:[%s0 + $0x200] sm:$0xff]
  %v136 = vld [vmem:[%s0 + $0x208] sm:$0xff]
  %v137 = vld [vmem:[%s0 + $0x210] sm:$0xff]
  %v138 = vld [vmem:[%s0 + $0x218] sm:$0xff]
  %v139 = vld [vmem:[%s0 + $0x220] sm:$0xff]
  %v140 = vld [vmem:[%s0 + $0x228] sm:$0xff]
  %v141 = vld [vmem:[%s0 + $0x230] sm:$0xff]
  %v142 = vld [vmem:[%s0 + $0x238] sm:$0xff]
  %v143 = vld [vmem:[%s0 + $0x240] sm:$0xff]
  %v144 = vld [vmem:[%s0 + $0x248] sm:$0xff]
  %v145 = vld [vmem:[%s0 + $0x250] sm:$0xff]
  %v146 = vld [vmem:[%s0 + $0x258] sm:$0xff]
  %v147 = vld [vmem:[%s0 + $0x260] sm:$0xff]
  %v148 = vld [vmem:[%s0 + $0x268] sm:$0xff]
  %v149 = vld [vmem:[%s0 + $0x270] sm:$0xff]
  %v150 = vld [vmem:[%s0 + $0x278] sm:$0xff]
  %v151 = vld [vmem:[%s0 + $0x280] sm:$0xff]
  %v152 = vld [vmem:[%s0 + $0x288] sm:$0xff]
  %v153 = vld [vmem:[%s0 + $0x290] sm:$0xff]
  %v154 = vld [vmem:[%s0 + $0x298] sm:$0xff]
  %v155 = vld [vmem:[%s0 + $0x2a0] sm:$0xff]
  %v156 = vld [vmem:[%s0 + $0x2a8] sm:$0xff]
  %v157 = vld [vmem:[%s0 + $0x2b0] sm:$0xff]
  %v158 = vld [vmem:[%s0 + $0x2b8] sm:$0xff]
  %v159 = vld [vmem:[%s0 + $0x2c0] sm:$0xff]
  %v160 = vld [vmem:[%s0 + $0x2c8] sm:$0xff]
  %v161 = vld [vmem:[%s0 + $0x2d0] sm:$0xff]
  %v162 = vld [vmem:[%s1] sm:$0xff]
  %v163 = vld [vmem:[%s1 + $0x8] sm:$0xff]
  %v164 = vld [vmem:[%s1 + $0x10] sm:$0xff]
  %v165 = vld [vmem:[%s1 + $0x18] sm:$0xff]
  %v166 = vld [vmem:[%s1 + $0x20] sm:$0xff]
  %v167 = vld [vmem:[%s1 + $0x28] sm:$0xff]
  %v168 = vld [vmem:[%s1 + $0x30] sm:$0xff]
  %v169 = vld [vmem:[%s1 + $0x38] sm:$0xff]
  %v170 = vld [vmem:[%s1 + $0x40] sm:$0xff]
  %v171 = vld [vmem:[%s1 + $0x48] sm:$0xff]
  %v172 = vld [vmem:[%s1 + $0x50] sm:$0xff]
  %v173 = vld [vmem:[%s1 + $0x58] sm:$0xff]
  %v174 = vld [vmem:[%s1 + $0x60] sm:$0xff]
  %v175 = vld [vmem:[%s1 + $0x68] sm:$0xff]
  %v176 = vld [vmem:[%s1 + $0x70] sm:$0xff]
  %v177 = vld [vmem:[%s1 + $0x78] sm:$0xff]
  %v178 = vld [vmem:[%s1 + $0x80] sm:$0xff]
  %v179 = vld [vmem:[%s1 + $0x88] sm:$0xff]
  %v180 = vld [vmem:[%s1 + $0x90] sm:$0xff]
  %v181 = vld [vmem:[%s1 + $0x98] sm:$0xff]
  %v182 = vld [vmem:[%s1 + $0xa0] sm:$0xff]
  %v183 = vld [vmem:[%s1 + $0xa8] sm:$0xff]
  %v184 = vld [vmem:[%s1 + $0xb0] sm:$0xff]
  %v185 = vld [vmem:[%s1 + $0xb8] sm:$0xff]
  %v186 = vld [vmem:[%s1 + $0xc0] sm:$0xff]
  %v187 = vld [vmem:[%s1 + $0xc8] sm:$0xff]
  %v188 = vld [vmem:[%s1 + $0xd0] sm:$0xff]
  %v189 = vld [vmem:[%s1 + $0xd8] sm:$0xff]
  %v190 = vld [vmem:[%s1 + $0xe0] sm:$0xff]
  %v191 = vld [vmem:[%s1 + $0xe8] sm:$0xff]
  %v192 = vld [vmem:[%s1 + $0xf0] sm:$0xff]
  %v193 = vld [vmem:[%s1 + $0xf8] sm:$0xff]
  %v194 = vld [vmem:[%s1 + $0x100] sm:$0xff]
  %v195 = vld [vmem:[%s1 + $0x108] sm:$0xff]
  %v196 = vld [vmem:[%s1 + $0x110] sm:$0xff]
  %v197 = vld [vmem:[%s1 + $0x118] sm:$0xff]
  %v198 = vld [vmem:[%s1 + $0x120] sm:$0xff]
  %v199 = vld [vmem:[%s1 + $0x128] sm:$0xff]
  %v200 = vld [vmem:[%s1 + $0x130] sm:$0xff]
  %v201 = vld [vmem:[%s1 + $0x138] sm:$0xff]
  %v202 = vld [vmem:[%s1 + $0x140] sm:$0xff]
  %v203 = vld [vmem:[%s1 + $0x148] sm:$0xff]
  %v204 = vld [vmem:[%s1 + $0x150] sm:$0xff]
  %v205 = vld [vmem:[%s1 + $0x158] sm:$0xff]
  %v206 = vld [vmem:[%s1 + $0x160] sm:$0xff]
  %v207 = vld [vmem:[%s1 + $0x168] sm:$0xff]
  %v208 = vld [vmem:[%s1 + $0x170] sm:$0xff]
  %v209 = vld [vmem:[%s1 + $0x178] sm:$0xff]
  %v210 = vld [vmem:[%s1 + $0x180] sm:$0xff]
  %v211 = vld [vmem:[%s1 + $0x188] sm:$0xff]
  %v212 = vld [vmem:[%s1 + $0x190] sm:$0xff]
  %v213 = vld [vmem:[%s1 + $0x198] sm:$0xff]
  %v214 = vld [vmem:[%s1 + $0x1a0] sm:$0xff]
  %v215 = vld [vmem:[%s1 + $0x1a8] sm:$0xff]
  %v216 = vld [vmem:[%s1 + $0x1b0] sm:$0xff]
  %v217 = vld [vmem:[%s1 + $0x1b8] sm:$0xff]
  %v218 = vld [vmem:[%s1 + $0x1c0] sm:$0xff]
  %v219 = vld [vmem:[%s1 + $0x1c8] sm:$0xff]
  %v220 = vld [vmem:[%s1 + $0x1d0] sm:$0xff]
  %v221 = vld [vmem:[%s1 + $0x1d8] sm:$0xff]
  %v222 = vld [vmem:[%s1 + $0x1e0] sm:$0xff]
  %v223 = vld [vmem:[%s1 + $0x1e8] sm:$0xff]
  %v224 = vld [vmem:[%s1 + $0x1f0] sm:$0xff]
  %v225 = vld [vmem:[%s1 + $0x1f8] sm:$0xff]
  %v226 = vld [vmem:[%s1 + $0x200] sm:$0xff]
  %v227 = vld [vmem:[%s1 + $0x208] sm:$0xff]
  %v228 = vld [vmem:[%s1 + $0x210] sm:$0xff]
  %v229 = vld [vmem:[%s1 + $0x218] sm:$0xff]
  %v230 = vld [vmem:[%s1 + $0x220] sm:$0xff]
  %v231 = vld [vmem:[%s1 + $0x228] sm:$0xff]
  %v232 = vld [vmem:[%s1 + $0x230] sm:$0xff]
  %v233 = vld [vmem:[%s1 + $0x238] sm:$0xff]
  %v234 = vld [vmem:[%s1 + $0x240] sm:$0xff]
  %v235 = vld [vmem:[%s1 + $0x248] sm:$0xff]
  %v236 = vld [vmem:[%s1 + $0x250] sm:$0xff]
  %v237 = vld [vmem:[%s1 + $0x258] sm:$0xff]
  %v238 = vld [vmem:[%s1 + $0x260] sm:$0xff]
  %v239 = vld [vmem:[%s1 + $0x268] sm:$0xff]
  %v240 = vld [vmem:[%s1 + $0x270] sm:$0xff]
  %v241 = vld [vmem:[%s1 + $0x278] sm:$0xff]
  %v242 = vld [vmem:[%s1 + $0x280] sm:$0xff]
  %v243 = vld [vmem:[%s1 + $0x288] sm:$0xff]
  %v244 = vld [vmem:[%s1 + $0x290] sm:$0xff]
  %v245 = vld [vmem:[%s1 + $0x298] sm:$0xff]
  %v246 = vld [vmem:[%s1 + $0x2a0] sm:$0xff]
  %v247 = vld [vmem:[%s1 + $0x2a8] sm:$0xff]
  %v248 = vld [vmem:[%s1 + $0x2b0] sm:$0xff]
  %v249 = vld [vmem:[%s1 + $0x2b8] sm:$0xff]
  %v250 = vld [vmem:[%s1 + $0x2c0] sm:$0xff]
  %v251 = vld [vmem:[%s1 + $0x2c8] sm:$0xff]
  %v252 = vld [vmem:[%s1 + $0x2d0] sm:$0xff]
  %v253 = vld [vmem:[%s1 + $0x2d8] sm:$0xff]
  %v254 = vld [vmem:[%s1 + $0x2e0] sm:$0xff]
  %v255 = vld [vmem:[%s1 + $0x2e8] sm:$0xff]
  %v256 = vld [vmem:[%s1 + $0x2f0] sm:$0xff]
  %v257 = vld [vmem:[%s1 + $0x2f8] sm:$0xff]
  %v258 = vld [vmem:[%s1 + $0x300] sm:$0xff]
  %v259 = vld [vmem:[%s1 + $0x308] sm:$0xff]
  %v260 = vld [vmem:[%s1 + $0x310] sm:$0xff]
  %v261 = vld [vmem:[%s1 + $0x318] sm:$0xff]
  %v262 = vld [vmem:[%s1 + $0x320] sm:$0xff]
  %v263 = vld [vmem:[%s1 + $0x328] sm:$0xff]
  %v264 = vld [vmem:[%s1 + $0x330] sm:$0xff]
  %v265 = vld [vmem:[%s1 + $0x338] sm:$0xff]
  %v266 = vld [vmem:[%s1 + $0x340] sm:$0xff]
  %v267 = vld [vmem:[%s1 + $0x348] sm:$0xff]
  %v268 = vld [vmem:[%s1 + $0x350] sm:$0xff]
  %v269 = vld [vmem:[%s1 + $0x358] sm:$0xff]
  %v270 = vld [vmem:[%s1 + $0x360] sm:$0xff]
  %v271 = vld [vmem:[%s1 + $0x368] sm:$0xff]
  %v272 = vld [vmem:[%s1 + $0x370] sm:$0xff]
  %v273 = vld [vmem:[%s1 + $0x378] sm:$0xff]
  %v274 = vld [vmem:[%s1 + $0x380] sm:$0xff]
  %v275 = vld [vmem:[%s1 + $0x388] sm:$0xff]
  %v276 = vld [vmem:[%s1 + $0x390] sm:$0xff]
  %v277 = vld [vmem:[%s1 + $0x398] sm:$0xff]
  %v278 = vld [vmem:[%s1 + $0x3a0] sm:$0xff]
  %v279 = vld [vmem:[%s1 + $0x3a8] sm:$0xff]
  %v280 = vld [vmem:[%s1 + $0x3b0] sm:$0xff]
  %v281 = vld [vmem:[%s1 + $0x3b8] sm:$0xff]
  %v282 = vld [vmem:[%s1 + $0x3c0] sm:$0xff]
  %v283 = vld [vmem:[%s1 + $0x3c8] sm:$0xff]
  %v284 = vld [vmem:[%s1 + $0x3d0] sm:$0xff]
  %v285 = vld [vmem:[%s1 + $0x3d8] sm:$0xff]
  %v286 = vld [vmem:[%s1 + $0x3e0] sm:$0xff]
  %v287 = vld [vmem:[%s1 + $0x3e8] sm:$0xff]
  %v288 = vld [vmem:[%s1 + $0x3f0] sm:$0xff]
  %v289 = vld [vmem:[%s1 + $0x3f8] sm:$0xff]
  %v290 = vld [vmem:[%s1 + $0x400] sm:$0xff]
  %v291 = vld [vmem:[%s1 + $0x408] sm:$0xff]
  %v292 = vld [vmem:[%s1 + $0x410] sm:$0xff]
  %v293 = vld [vmem:[%s1 + $0x418] sm:$0xff]
  %v294 = vld [vmem:[%s1 + $0x420] sm:$0xff]
  %v295 = vld [vmem:[%s1 + $0x428] sm:$0xff]
  %v296 = vld [vmem:[%s1 + $0x430] sm:$0xff]
  %v297 = vld [vmem:[%s1 + $0x438] sm:$0xff]
  %v298 = vld [vmem:[%s1 + $0x440] sm:$0xff]
  %v299 = vld [vmem:[%s1 + $0x448] sm:$0xff]
  %v300 = vld [vmem:[%s1 + $0x450] sm:$0xff]
  %v301 = vld [vmem:[%s1 + $0x458] sm:$0xff]
  %v302 = vld [vmem:[%s1 + $0x460] sm:$0xff]
  %v303 = vld [vmem:[%s1 + $0x468] sm:$0xff]
  %v304 = vld [vmem:[%s1 + $0x470] sm:$0xff]
  %v305 = vld [vmem:[%s1 + $0x478] sm:$0xff]
  %v306 = vld [vmem:[%s1 + $0x480] sm:$0xff]
  %v307 = vld [vmem:[%s1 + $0x488] sm:$0xff]
  %v308 = vld [vmem:[%s1 + $0x490] sm:$0xff]
  %v309 = vld [vmem:[%s1 + $0x498] sm:$0xff]
  %v310 = vld [vmem:[%s1 + $0x4a0] sm:$0xff]
  %v311 = vld [vmem:[%s1 + $0x4a8] sm:$0xff]
  %v312 = vld [vmem:[%s1 + $0x4b0] sm:$0xff]
  %v313 = vld [vmem:[%s1 + $0x4b8] sm:$0xff]
  %v314 = vld [vmem:[%s1 + $0x4c0] sm:$0xff]
  %v315 = vld [vmem:[%s1 + $0x4c8] sm:$0xff]
  %v316 = vld [vmem:[%s1 + $0x4d0] sm:$0xff]
  %v317 = vld [vmem:[%s1 + $0x4d8] sm:$0xff]
  %v318 = vld [vmem:[%s1 + $0x4e0] sm:$0xff]
  %v319 = vld [vmem:[%s1 + $0x4e8] sm:$0xff]
  %v320 = vld [vmem:[%s1 + $0x4f0] sm:$0xff]
  %v321 = vld [vmem:[%s1 + $0x4f8] sm:$0xff]
  %v322 = vld [vmem:[%s1 + $0x500] sm:$0xff]
  %v323 = vld [vmem:[%s1 + $0x508] sm:$0xff]
  %v324 = vld [vmem:[%s1 + $0x510] sm:$0xff]
  %v325 = vld [vmem:[%s1 + $0x518] sm:$0xff]
  %v326 = vld [vmem:[%s1 + $0x520] sm:$0xff]
  %v327 = vld [vmem:[%s1 + $0x528] sm:$0xff]
  %v328 = vld [vmem:[%s1 + $0x530] sm:$0xff]
  %v329 = vld [vmem:[%s1 + $0x538] sm:$0xff]
  %v330 = vld [vmem:[%s1 + $0x540] sm:$0xff]
  %v331 = vld [vmem:[%s1 + $0x548] sm:$0xff]
  %v332 = vld [vmem:[%s1 + $0x550] sm:$0xff]
  %v333 = vld [vmem:[%s1 + $0x558] sm:$0xff]
  %v334 = vld [vmem:[%s1 + $0x560] sm:$0xff]
  %v335 = vld [vmem:[%s1 + $0x568] sm:$0xff]
  %v336 = vld [vmem:[%s1 + $0x570] sm:$0xff]
  %v337 = vld [vmem:[%s1 + $0x578] sm:$0xff]
  %v338 = vld [vmem:[%s1 + $0x580] sm:$0xff]
  %v339 = vld [vmem:[%s1 + $0x588] sm:$0xff]
  %v340 = vld [vmem:[%s1 + $0x590] sm:$0xff]
  %v341 = vld [vmem:[%s1 + $0x598] sm:$0xff]
  %v342 = vld [vmem:[%s1 + $0x5a0] sm:$0xff]
  %v343 = vld [vmem:[%s1 + $0x5a8] sm:$0xff]
  %v344 = vld [vmem:[%s1 + $0x5b0] sm:$0xff]
  %v345 = vld [vmem:[%s1 + $0x5b8] sm:$0xff]
  %v346 = vld [vmem:[%s1 + $0x5c0] sm:$0xff]
  %v347 = vld [vmem:[%s1 + $0x5c8] sm:$0xff]
  %v348 = vld [vmem:[%s1 + $0x5d0] sm:$0xff]
  %v349 = vld [vmem:[%s1 + $0x5d8] sm:$0xff]
  %v350 = vld [vmem:[%s1 + $0x5e0] sm:$0xff]
  %v351 = vld [vmem:[%s1 + $0x5e8] sm:$0xff]
  %v352 = vld [vmem:[%s1 + $0x5f0] sm:$0xff]
  %v353 = vld [vmem:[%s1 + $0x5f8] sm:$0xff]
  %v354 = vld [vmem:[%s1 + $0x600] sm:$0xff]
  %v355 = vld [vmem:[%s1 + $0x608] sm:$0xff]
  %v356 = vld [vmem:[%s1 + $0x610] sm:$0xff]
  %v357 = vld [vmem:[%s1 + $0x618] sm:$0xff]
  %v358 = vld [vmem:[%s1 + $0x620] sm:$0xff]
  %v359 = vld [vmem:[%s1 + $0x628] sm:$0xff]
  %v360 = vld [vmem:[%s1 + $0x630] sm:$0xff]
  %v361 = vld [vmem:[%s1 + $0x638] sm:$0xff]
  %v362 = vld [vmem:[%s1 + $0x640] sm:$0xff]
  %v363 = vld [vmem:[%s1 + $0x648] sm:$0xff]
  %v364 = vld [vmem:[%s1 + $0x650] sm:$0xff]
  %v365 = vld [vmem:[%s1 + $0x658] sm:$0xff]
  %v366 = vld [vmem:[%s1 + $0x660] sm:$0xff]
  %v367 = vld [vmem:[%s1 + $0x668] sm:$0xff]
  %v368 = vld [vmem:[%s1 + $0x670] sm:$0xff]
  %v369 = vld [vmem:[%s1 + $0x678] sm:$0xff]
  %v370 = vld [vmem:[%s1 + $0x680] sm:$0xff]
  %v371 = vld [vmem:[%s1 + $0x688] sm:$0xff]
  %v372 = vld [vmem:[%s1 + $0x690] sm:$0xff]
  %v373 = vld [vmem:[%s1 + $0x698] sm:$0xff]
  %v374 = vld [vmem:[%s1 + $0x6a0] sm:$0xff]
  %v375 = vld [vmem:[%s1 + $0x6a8] sm:$0xff]
  %v376 = vld [vmem:[%s1 + $0x6b0] sm:$0xff]
  %v377 = vld [vmem:[%s1 + $0x6b8] sm:$0xff]
  %v469 = vunpack.c.l.b16 %v71
  %v470 = vunpack.c.h.b16 %v71
  %v471 = vunpack.c.l.b16 %v72
  %v472 = vunpack.c.h.b16 %v72
  %v473 = vunpack.c.l.b16 %v73
  %v474 = vunpack.c.h.b16 %v73
  %v475 = vunpack.c.l.b16 %v74
  %v476 = vunpack.c.h.b16 %v74
  %v477 = vunpack.c.l.b16 %v75
  %v478 = vunpack.c.h.b16 %v75
  %v479 = vunpack.c.l.b16 %v76
  %v480 = vunpack.c.h.b16 %v76
  %v481 = vunpack.c.l.b16 %v77
  %v482 = vunpack.c.h.b16 %v77
  %v483 = vunpack.c.l.b16 %v78
  %v484 = vunpack.c.h.b16 %v78
  %v485 = vunpack.c.l.b16 %v79
  %v486 = vunpack.c.h.b16 %v79
  %v487 = vunpack.c.l.b16 %v80
  %v488 = vunpack.c.h.b16 %v80
  %v489 = vunpack.c.l.b16 %v81
  %v490 = vunpack.c.h.b16 %v81
  %v491 = vunpack.c.l.b16 %v82
  %v492 = vunpack.c.h.b16 %v82
  %v493 = vunpack.c.l.b16 %v83
  %v494 = vunpack.c.h.b16 %v83
  %v495 = vunpack.c.l.b16 %v84
  %v496 = vunpack.c.h.b16 %v84
  %v497 = vunpack.c.l.b16 %v85
  %v498 = vunpack.c.h.b16 %v85
  %v499 = vunpack.c.l.b16 %v86
  %v500 = vunpack.c.h.b16 %v86
  %v501 = vunpack.c.l.b16 %v87
  %v502 = vunpack.c.h.b16 %v87
  %v503 = vunpack.c.l.b16 %v88
  %v504 = vunpack.c.h.b16 %v88
  %v505 = vunpack.c.l.b16 %v89
  %v506 = vunpack.c.h.b16 %v89
  %v507 = vunpack.c.l.b16 %v90
  %v508 = vunpack.c.h.b16 %v90
  %v509 = vunpack.c.l.b16 %v91
  %v510 = vunpack.c.h.b16 %v91
  %v511 = vunpack.c.l.b16 %v92
  %v512 = vunpack.c.h.b16 %v92
  %v513 = vunpack.c.l.b16 %v93
  %v514 = vunpack.c.h.b16 %v93
  %v515 = vunpack.c.l.b16 %v94
  %v516 = vunpack.c.h.b16 %v94
  %v517 = vunpack.c.l.b16 %v95
  %v518 = vunpack.c.h.b16 %v95
  %v519 = vunpack.c.l.b16 %v96
  %v520 = vunpack.c.h.b16 %v96
  %v521 = vunpack.c.l.b16 %v97
  %v522 = vunpack.c.h.b16 %v97
  %v523 = vunpack.c.l.b16 %v98
  %v524 = vunpack.c.h.b16 %v98
  %v525 = vunpack.c.l.b16 %v99
  %v526 = vunpack.c.h.b16 %v99
  %v527 = vunpack.c.l.b16 %v100
  %v528 = vunpack.c.h.b16 %v100
  %v529 = vunpack.c.l.b16 %v101
  %v530 = vunpack.c.h.b16 %v101
  %v531 = vunpack.c.l.b16 %v102
  %v532 = vunpack.c.h.b16 %v102
  %v533 = vunpack.c.l.b16 %v103
  %v534 = vunpack.c.h.b16 %v103
  %v535 = vunpack.c.l.b16 %v104
  %v536 = vunpack.c.h.b16 %v104
  %v537 = vunpack.c.l.b16 %v105
  %v538 = vunpack.c.h.b16 %v105
  %v539 = vunpack.c.l.b16 %v106
  %v540 = vunpack.c.h.b16 %v106
  %v541 = vunpack.c.l.b16 %v107
  %v542 = vunpack.c.h.b16 %v107
  %v543 = vunpack.c.l.b16 %v108
  %v544 = vunpack.c.h.b16 %v108
  %v545 = vunpack.c.l.b16 %v109
  %v546 = vunpack.c.h.b16 %v109
  %v547 = vunpack.c.l.b16 %v110
  %v548 = vunpack.c.h.b16 %v110
  %v549 = vunpack.c.l.b16 %v111
  %v550 = vunpack.c.h.b16 %v111
  %v551 = vunpack.c.l.b16 %v112
  %v552 = vunpack.c.h.b16 %v112
  %v553 = vunpack.c.l.b16 %v113
  %v554 = vunpack.c.h.b16 %v113
  %v555 = vunpack.c.l.b16 %v114
  %v556 = vunpack.c.h.b16 %v114
  %v557 = vunpack.c.l.b16 %v115
  %v558 = vunpack.c.h.b16 %v115
  %v559 = vunpack.c.l.b16 %v116
  %v560 = vunpack.c.h.b16 %v116
  %v561 = vunpack.c.l.b16 %v117
  %v562 = vunpack.c.h.b16 %v117
  %v563 = vunpack.c.l.b16 %v118
  %v564 = vunpack.c.h.b16 %v118
  %v565 = vunpack.c.l.b16 %v119
  %v566 = vunpack.c.h.b16 %v119
  %v567 = vunpack.c.l.b16 %v120
  %v568 = vunpack.c.h.b16 %v120
  %v569 = vunpack.c.l.b16 %v121
  %v570 = vunpack.c.h.b16 %v121
  %v571 = vunpack.c.l.b16 %v122
  %v572 = vunpack.c.h.b16 %v122
  %v573 = vunpack.c.l.b16 %v123
  %v574 = vunpack.c.h.b16 %v123
  %v575 = vunpack.c.l.b16 %v124
  %v576 = vunpack.c.h.b16 %v124
  %v577 = vunpack.c.l.b16 %v125
  %v578 = vunpack.c.h.b16 %v125
  %v579 = vunpack.c.l.b16 %v126
  %v580 = vunpack.c.h.b16 %v126
  %v581 = vunpack.c.l.b16 %v127
  %v582 = vunpack.c.h.b16 %v127
  %v583 = vunpack.c.l.b16 %v128
  %v584 = vunpack.c.h.b16 %v128
  %v585 = vunpack.c.l.b16 %v129
  %v586 = vunpack.c.h.b16 %v129
  %v587 = vunpack.c.l.b16 %v130
  %v588 = vunpack.c.h.b16 %v130
  %v589 = vunpack.c.l.b16 %v131
  %v590 = vunpack.c.h.b16 %v131
  %v591 = vunpack.c.l.b16 %v132
  %v592 = vunpack.c.h.b16 %v132
  %v593 = vunpack.c.l.b16 %v133
  %v594 = vunpack.c.h.b16 %v133
  %v595 = vunpack.c.l.b16 %v134
  %v596 = vunpack.c.h.b16 %v134
  %v597 = vunpack.c.l.b16 %v135
  %v598 = vunpack.c.h.b16 %v135
  %v599 = vunpack.c.l.b16 %v136
  %v600 = vunpack.c.h.b16 %v136
  %v601 = vunpack.c.l.b16 %v137
  %v602 = vunpack.c.h.b16 %v137
  %v603 = vunpack.c.l.b16 %v138
  %v604 = vunpack.c.h.b16 %v138
  %v605 = vunpack.c.l.b16 %v139
  %v606 = vunpack.c.h.b16 %v139
  %v607 = vunpack.c.l.b16 %v140
  %v608 = vunpack.c.h.b16 %v140
  %v609 = vunpack.c.l.b16 %v141
  %v610 = vunpack.c.h.b16 %v141
  %v611 = vunpack.c.l.b16 %v142
  %v612 = vunpack.c.h.b16 %v142
  %v613 = vunpack.c.l.b16 %v143
  %v614 = vunpack.c.h.b16 %v143
  %v615 = vunpack.c.l.b16 %v144
  %v616 = vunpack.c.h.b16 %v144
  %v617 = vunpack.c.l.b16 %v145
  %v618 = vunpack.c.h.b16 %v145
  %v619 = vunpack.c.l.b16 %v146
  %v620 = vunpack.c.h.b16 %v146
  %v621 = vunpack.c.l.b16 %v147
  %v622 = vunpack.c.h.b16 %v147
  %v623 = vunpack.c.l.b16 %v148
  %v624 = vunpack.c.h.b16 %v148
  %v625 = vunpack.c.l.b16 %v149
  %v626 = vunpack.c.h.b16 %v149
  %v627 = vunpack.c.l.b16 %v150
  %v628 = vunpack.c.h.b16 %v150
  %v629 = vunpack.c.l.b16 %v151
  %v630 = vunpack.c.h.b16 %v151
  %v631 = vunpack.c.l.b16 %v152
  %v632 = vunpack.c.h.b16 %v152
  %v633 = vunpack.c.l.b16 %v153
  %v634 = vunpack.c.h.b16 %v153
  %v635 = vunpack.c.l.b16 %v154
  %v636 = vunpack.c.h.b16 %v154
  %v637 = vunpack.c.l.b16 %v155
  %v638 = vunpack.c.h.b16 %v155
  %v639 = vunpack.c.l.b16 %v156
  %v640 = vunpack.c.h.b16 %v156
  %v641 = vunpack.c.l.b16 %v157
  %v642 = vunpack.c.h.b16 %v157
  %v643 = vunpack.c.l.b16 %v158
  %v644 = vunpack.c.h.b16 %v158
  %v645 = vunpack.c.l.b16 %v159
  %v646 = vunpack.c.h.b16 %v159
  %v647 = vunpack.c.l.b16 %v160
  %v648 = vunpack.c.h.b16 %v160
  %v649 = vunpack.c.l.b16 %v161
  %v650 = vunpack.c.h.b16 %v161
  %v651 = vpack.c.b16 %v483, %v469
  %v652 = vpack.c.b16 %v484, %v470
  %v653 = vpack.c.b16 %v485, %v471
  %v654 = vpack.c.b16 %v486, %v472
  %v655 = vpack.c.b16 %v487, %v473
  %v656 = vpack.c.b16 %v488, %v474
  %v657 = vpack.c.b16 %v489, %v475
  %v658 = vpack.c.b16 %v490, %v476
  %v659 = vpack.c.b16 %v491, %v477
  %v660 = vpack.c.b16 %v492, %v478
  %v661 = vpack.c.b16 %v493, %v479
  %v662 = vpack.c.b16 %v494, %v480
  %v663 = vpack.c.b16 %v495, %v481
  %v664 = vpack.c.b16 %v496, %v482
  %v665 = vpack.c.b16 %v511, %v497
  %v666 = vpack.c.b16 %v512, %v498
  %v667 = vpack.c.b16 %v513, %v499
  %v668 = vpack.c.b16 %v514, %v500
  %v669 = vpack.c.b16 %v515, %v501
  %v670 = vpack.c.b16 %v516, %v502
  %v671 = vpack.c.b16 %v517, %v503
  %v672 = vpack.c.b16 %v518, %v504
  %v673 = vpack.c.b16 %v519, %v505
  %v674 = vpack.c.b16 %v520, %v506
  %v675 = vpack.c.b16 %v521, %v507
  %v676 = vpack.c.b16 %v522, %v508
  %v677 = vpack.c.b16 %v523, %v509
  %v678 = vpack.c.b16 %v524, %v510
  %v679 = vpack.c.b16 %v539, %v525
  %v680 = vpack.c.b16 %v540, %v526
  %v681 = vpack.c.b16 %v541, %v527
  %v682 = vpack.c.b16 %v542, %v528
  %v683 = vpack.c.b16 %v543, %v529
  %v684 = vpack.c.b16 %v544, %v530
  %v685 = vpack.c.b16 %v545, %v531
  %v686 = vpack.c.b16 %v546, %v532
  %v687 = vpack.c.b16 %v547, %v533
  %v688 = vpack.c.b16 %v548, %v534
  %v689 = vpack.c.b16 %v549, %v535
  %v690 = vpack.c.b16 %v550, %v536
  %v691 = vpack.c.b16 %v551, %v537
  %v692 = vpack.c.b16 %v552, %v538
  %v693 = vpack.c.b16 %v567, %v553
  %v694 = vpack.c.b16 %v568, %v554
  %v695 = vpack.c.b16 %v569, %v555
  %v696 = vpack.c.b16 %v570, %v556
  %v697 = vpack.c.b16 %v571, %v557
  %v698 = vpack.c.b16 %v572, %v558
  %v699 = vpack.c.b16 %v573, %v559
  %v700 = vpack.c.b16 %v574, %v560
  %v701 = vpack.c.b16 %v575, %v561
  %v702 = vpack.c.b16 %v576, %v562
  %v703 = vpack.c.b16 %v577, %v563
  %v704 = vpack.c.b16 %v578, %v564
  %v705 = vpack.c.b16 %v579, %v565
  %v706 = vpack.c.b16 %v580, %v566
  %v707 = vpack.c.b16 %v595, %v581
  %v708 = vpack.c.b16 %v596, %v582
  %v709 = vpack.c.b16 %v597, %v583
  %v710 = vpack.c.b16 %v598, %v584
  %v711 = vpack.c.b16 %v599, %v585
  %v712 = vpack.c.b16 %v600, %v586
  %v713 = vpack.c.b16 %v601, %v587
  %v714 = vpack.c.b16 %v602, %v588
  %v715 = vpack.c.b16 %v603, %v589
  %v716 = vpack.c.b16 %v604, %v590
  %v717 = vpack.c.b16 %v605, %v591
  %v718 = vpack.c.b16 %v606, %v592
  %v719 = vpack.c.b16 %v607, %v593
  %v720 = vpack.c.b16 %v608, %v594
  %v721 = vpack.c.b16 %v623, %v609
  %v722 = vpack.c.b16 %v624, %v610
  %v723 = vpack.c.b16 %v625, %v611
  %v724 = vpack.c.b16 %v626, %v612
  %v725 = vpack.c.b16 %v627, %v613
  %v726 = vpack.c.b16 %v628, %v614
  %v727 = vpack.c.b16 %v629, %v615
  %v728 = vpack.c.b16 %v630, %v616
  %v729 = vpack.c.b16 %v631, %v617
  %v730 = vpack.c.b16 %v632, %v618
  %v731 = vpack.c.b16 %v633, %v619
  %v732 = vpack.c.b16 %v634, %v620
  %v733 = vpack.c.b16 %v635, %v621
  %v734 = vpack.c.b16 %v636, %v622
  %v735 = vpack.c.b16 %v637, %v637
  %v736 = vpack.c.b16 %v638, %v638
  %v737 = vpack.c.b16 %v639, %v639
  %v738 = vpack.c.b16 %v640, %v640
  %v739 = vpack.c.b16 %v641, %v641
  %v740 = vpack.c.b16 %v642, %v642
  %v741 = vpack.c.b16 %v643, %v643
  %v742 = vpack.c.b16 %v644, %v644
  %v743 = vpack.c.b16 %v645, %v645
  %v744 = vpack.c.b16 %v646, %v646
  %v745 = vpack.c.b16 %v647, %v647
  %v746 = vpack.c.b16 %v648, %v648
  %v747 = vpack.c.b16 %v649, %v649
  %v748 = vpack.c.b16 %v650, %v650
  %v1056 = vunpack.c.l.b16 %v162
  %v1057 = vunpack.c.h.b16 %v162
  %v1058 = vunpack.c.l.b16 %v163
  %v1059 = vunpack.c.h.b16 %v163
  %v1060 = vunpack.c.l.b16 %v164
  %v1061 = vunpack.c.h.b16 %v164
  %v1062 = vunpack.c.l.b16 %v165
  %v1063 = vunpack.c.h.b16 %v165
  %v1064 = vunpack.c.l.b16 %v166
  %v1065 = vunpack.c.h.b16 %v166
  %v1066 = vunpack.c.l.b16 %v167
  %v1067 = vunpack.c.h.b16 %v167
  %v1068 = vunpack.c.l.b16 %v168
  %v1069 = vunpack.c.h.b16 %v168
  %v1070 = vunpack.c.l.b16 %v169
  %v1071 = vunpack.c.h.b16 %v169
  %v1072 = vunpack.c.l.b16 %v170
  %v1073 = vunpack.c.h.b16 %v170
  %v1074 = vunpack.c.l.b16 %v171
  %v1075 = vunpack.c.h.b16 %v171
  %v1076 = vunpack.c.l.b16 %v172
  %v1077 = vunpack.c.h.b16 %v172
  %v1078 = vunpack.c.l.b16 %v173
  %v1079 = vunpack.c.h.b16 %v173
  %v1080 = vunpack.c.l.b16 %v174
  %v1081 = vunpack.c.h.b16 %v174
  %v1082 = vunpack.c.l.b16 %v175
  %v1083 = vunpack.c.h.b16 %v175
  %v1084 = vunpack.c.l.b16 %v176
  %v1085 = vunpack.c.h.b16 %v176
  %v1086 = vunpack.c.l.b16 %v177
  %v1087 = vunpack.c.h.b16 %v177
  %v1088 = vunpack.c.l.b16 %v178
  %v1089 = vunpack.c.h.b16 %v178
  %v1090 = vunpack.c.l.b16 %v179
  %v1091 = vunpack.c.h.b16 %v179
  %v1092 = vunpack.c.l.b16 %v180
  %v1093 = vunpack.c.h.b16 %v180
  %v1094 = vunpack.c.l.b16 %v181
  %v1095 = vunpack.c.h.b16 %v181
  %v1096 = vunpack.c.l.b16 %v182
  %v1097 = vunpack.c.h.b16 %v182
  %v1098 = vunpack.c.l.b16 %v183
  %v1099 = vunpack.c.h.b16 %v183
  %v1100 = vunpack.c.l.b16 %v184
  %v1101 = vunpack.c.h.b16 %v184
  %v1102 = vunpack.c.l.b16 %v185
  %v1103 = vunpack.c.h.b16 %v185
  %v1104 = vunpack.c.l.b16 %v186
  %v1105 = vunpack.c.h.b16 %v186
  %v1106 = vunpack.c.l.b16 %v187
  %v1107 = vunpack.c.h.b16 %v187
  %v1108 = vunpack.c.l.b16 %v188
  %v1109 = vunpack.c.h.b16 %v188
  %v1110 = vunpack.c.l.b16 %v189
  %v1111 = vunpack.c.h.b16 %v189
  %v1112 = vunpack.c.l.b16 %v190
  %v1113 = vunpack.c.h.b16 %v190
  %v1114 = vunpack.c.l.b16 %v191
  %v1115 = vunpack.c.h.b16 %v191
  %v1116 = vunpack.c.l.b16 %v192
  %v1117 = vunpack.c.h.b16 %v192
  %v1118 = vunpack.c.l.b16 %v193
  %v1119 = vunpack.c.h.b16 %v193
  %v1120 = vunpack.c.l.b16 %v194
  %v1121 = vunpack.c.h.b16 %v194
  %v1122 = vunpack.c.l.b16 %v195
  %v1123 = vunpack.c.h.b16 %v195
  %v1124 = vunpack.c.l.b16 %v196
  %v1125 = vunpack.c.h.b16 %v196
  %v1126 = vunpack.c.l.b16 %v197
  %v1127 = vunpack.c.h.b16 %v197
  %v1128 = vunpack.c.l.b16 %v198
  %v1129 = vunpack.c.h.b16 %v198
  %v1130 = vunpack.c.l.b16 %v199
  %v1131 = vunpack.c.h.b16 %v199
  %v1132 = vunpack.c.l.b16 %v200
  %v1133 = vunpack.c.h.b16 %v200
  %v1134 = vunpack.c.l.b16 %v201
  %v1135 = vunpack.c.h.b16 %v201
  %v1136 = vunpack.c.l.b16 %v202
  %v1137 = vunpack.c.h.b16 %v202
  %v1138 = vunpack.c.l.b16 %v203
  %v1139 = vunpack.c.h.b16 %v203
  %v1140 = vunpack.c.l.b16 %v204
  %v1141 = vunpack.c.h.b16 %v204
  %v1142 = vunpack.c.l.b16 %v205
  %v1143 = vunpack.c.h.b16 %v205
  %v1144 = vunpack.c.l.b16 %v206
  %v1145 = vunpack.c.h.b16 %v206
  %v1146 = vunpack.c.l.b16 %v207
  %v1147 = vunpack.c.h.b16 %v207
  %v1148 = vunpack.c.l.b16 %v208
  %v1149 = vunpack.c.h.b16 %v208
  %v1150 = vunpack.c.l.b16 %v209
  %v1151 = vunpack.c.h.b16 %v209
  %v1152 = vunpack.c.l.b16 %v210
  %v1153 = vunpack.c.h.b16 %v210
  %v1154 = vunpack.c.l.b16 %v211
  %v1155 = vunpack.c.h.b16 %v211
  %v1156 = vunpack.c.l.b16 %v212
  %v1157 = vunpack.c.h.b16 %v212
  %v1158 = vunpack.c.l.b16 %v213
  %v1159 = vunpack.c.h.b16 %v213
  %v1160 = vunpack.c.l.b16 %v214
  %v1161 = vunpack.c.h.b16 %v214
  %v1162 = vunpack.c.l.b16 %v215
  %v1163 = vunpack.c.h.b16 %v215
  %v1164 = vunpack.c.l.b16 %v216
  %v1165 = vunpack.c.h.b16 %v216
  %v1166 = vunpack.c.l.b16 %v217
  %v1167 = vunpack.c.h.b16 %v217
  %v1168 = vunpack.c.l.b16 %v218
  %v1169 = vunpack.c.h.b16 %v218
  %v1170 = vunpack.c.l.b16 %v219
  %v1171 = vunpack.c.h.b16 %v219
  %v1172 = vunpack.c.l.b16 %v220
  %v1173 = vunpack.c.h.b16 %v220
  %v1174 = vunpack.c.l.b16 %v221
  %v1175 = vunpack.c.h.b16 %v221
  %v1176 = vunpack.c.l.b16 %v222
  %v1177 = vunpack.c.h.b16 %v222
  %v1178 = vunpack.c.l.b16 %v223
  %v1179 = vunpack.c.h.b16 %v223
  %v1180 = vunpack.c.l.b16 %v224
  %v1181 = vunpack.c.h.b16 %v224
  %v1182 = vunpack.c.l.b16 %v225
  %v1183 = vunpack.c.h.b16 %v225
  %v1184 = vunpack.c.l.b16 %v226
  %v1185 = vunpack.c.h.b16 %v226
  %v1186 = vunpack.c.l.b16 %v227
  %v1187 = vunpack.c.h.b16 %v227
  %v1188 = vunpack.c.l.b16 %v228
  %v1189 = vunpack.c.h.b16 %v228
  %v1190 = vunpack.c.l.b16 %v229
  %v1191 = vunpack.c.h.b16 %v229
  %v1192 = vunpack.c.l.b16 %v230
  %v1193 = vunpack.c.h.b16 %v230
  %v1194 = vunpack.c.l.b16 %v231
  %v1195 = vunpack.c.h.b16 %v231
  %v1196 = vunpack.c.l.b16 %v232
  %v1197 = vunpack.c.h.b16 %v232
  %v1198 = vunpack.c.l.b16 %v233
  %v1199 = vunpack.c.h.b16 %v233
  %v1200 = vunpack.c.l.b16 %v234
  %v1201 = vunpack.c.h.b16 %v234
  %v1202 = vunpack.c.l.b16 %v235
  %v1203 = vunpack.c.h.b16 %v235
  %v1204 = vunpack.c.l.b16 %v236
  %v1205 = vunpack.c.h.b16 %v236
  %v1206 = vunpack.c.l.b16 %v237
  %v1207 = vunpack.c.h.b16 %v237
  %v1208 = vunpack.c.l.b16 %v238
  %v1209 = vunpack.c.h.b16 %v238
  %v1210 = vunpack.c.l.b16 %v239
  %v1211 = vunpack.c.h.b16 %v239
  %v1212 = vunpack.c.l.b16 %v240
  %v1213 = vunpack.c.h.b16 %v240
  %v1214 = vunpack.c.l.b16 %v241
  %v1215 = vunpack.c.h.b16 %v241
  %v1216 = vunpack.c.l.b16 %v242
  %v1217 = vunpack.c.h.b16 %v242
  %v1218 = vunpack.c.l.b16 %v243
  %v1219 = vunpack.c.h.b16 %v243
  %v1220 = vunpack.c.l.b16 %v244
  %v1221 = vunpack.c.h.b16 %v244
  %v1222 = vunpack.c.l.b16 %v245
  %v1223 = vunpack.c.h.b16 %v245
  %v1224 = vunpack.c.l.b16 %v246
  %v1225 = vunpack.c.h.b16 %v246
  %v1226 = vunpack.c.l.b16 %v247
  %v1227 = vunpack.c.h.b16 %v247
  %v1228 = vunpack.c.l.b16 %v248
  %v1229 = vunpack.c.h.b16 %v248
  %v1230 = vunpack.c.l.b16 %v249
  %v1231 = vunpack.c.h.b16 %v249
  %v1232 = vunpack.c.l.b16 %v250
  %v1233 = vunpack.c.h.b16 %v250
  %v1234 = vunpack.c.l.b16 %v251
  %v1235 = vunpack.c.h.b16 %v251
  %v1236 = vunpack.c.l.b16 %v252
  %v1237 = vunpack.c.h.b16 %v252
  %v1238 = vunpack.c.l.b16 %v253
  %v1239 = vunpack.c.h.b16 %v253
  %v1240 = vunpack.c.l.b16 %v254
  %v1241 = vunpack.c.h.b16 %v254
  %v1242 = vunpack.c.l.b16 %v255
  %v1243 = vunpack.c.h.b16 %v255
  %v1244 = vunpack.c.l.b16 %v256
  %v1245 = vunpack.c.h.b16 %v256
  %v1246 = vunpack.c.l.b16 %v257
  %v1247 = vunpack.c.h.b16 %v257
  %v1248 = vunpack.c.l.b16 %v258
  %v1249 = vunpack.c.h.b16 %v258
  %v1250 = vunpack.c.l.b16 %v259
  %v1251 = vunpack.c.h.b16 %v259
  %v1252 = vunpack.c.l.b16 %v260
  %v1253 = vunpack.c.h.b16 %v260
  %v1254 = vunpack.c.l.b16 %v261
  %v1255 = vunpack.c.h.b16 %v261
  %v1256 = vunpack.c.l.b16 %v262
  %v1257 = vunpack.c.h.b16 %v262
  %v1258 = vunpack.c.l.b16 %v263
  %v1259 = vunpack.c.h.b16 %v263
  %v1260 = vunpack.c.l.b16 %v264
  %v1261 = vunpack.c.h.b16 %v264
  %v1262 = vunpack.c.l.b16 %v265
  %v1263 = vunpack.c.h.b16 %v265
  %v1264 = vunpack.c.l.b16 %v266
  %v1265 = vunpack.c.h.b16 %v266
  %v1266 = vunpack.c.l.b16 %v267
  %v1267 = vunpack.c.h.b16 %v267
  %v1268 = vunpack.c.l.b16 %v268
  %v1269 = vunpack.c.h.b16 %v268
  %v1270 = vunpack.c.l.b16 %v269
  %v1271 = vunpack.c.h.b16 %v269
  %v1272 = vunpack.c.l.b16 %v270
  %v1273 = vunpack.c.h.b16 %v270
  %v1274 = vunpack.c.l.b16 %v271
  %v1275 = vunpack.c.h.b16 %v271
  %v1276 = vunpack.c.l.b16 %v272
  %v1277 = vunpack.c.h.b16 %v272
  %v1278 = vunpack.c.l.b16 %v273
  %v1279 = vunpack.c.h.b16 %v273
  %v1280 = vunpack.c.l.b16 %v274
  %v1281 = vunpack.c.h.b16 %v274
  %v1282 = vunpack.c.l.b16 %v275
  %v1283 = vunpack.c.h.b16 %v275
  %v1284 = vunpack.c.l.b16 %v276
  %v1285 = vunpack.c.h.b16 %v276
  %v1286 = vunpack.c.l.b16 %v277
  %v1287 = vunpack.c.h.b16 %v277
  %v1288 = vunpack.c.l.b16 %v278
  %v1289 = vunpack.c.h.b16 %v278
  %v1290 = vunpack.c.l.b16 %v279
  %v1291 = vunpack.c.h.b16 %v279
  %v1292 = vunpack.c.l.b16 %v280
  %v1293 = vunpack.c.h.b16 %v280
  %v1294 = vunpack.c.l.b16 %v281
  %v1295 = vunpack.c.h.b16 %v281
  %v1296 = vunpack.c.l.b16 %v282
  %v1297 = vunpack.c.h.b16 %v282
  %v1298 = vunpack.c.l.b16 %v283
  %v1299 = vunpack.c.h.b16 %v283
  %v1300 = vunpack.c.l.b16 %v284
  %v1301 = vunpack.c.h.b16 %v284
  %v1302 = vunpack.c.l.b16 %v285
  %v1303 = vunpack.c.h.b16 %v285
  %v1304 = vunpack.c.l.b16 %v286
  %v1305 = vunpack.c.h.b16 %v286
  %v1306 = vunpack.c.l.b16 %v287
  %v1307 = vunpack.c.h.b16 %v287
  %v1308 = vunpack.c.l.b16 %v288
  %v1309 = vunpack.c.h.b16 %v288
  %v1310 = vunpack.c.l.b16 %v289
  %v1311 = vunpack.c.h.b16 %v289
  %v1312 = vunpack.c.l.b16 %v290
  %v1313 = vunpack.c.h.b16 %v290
  %v1314 = vunpack.c.l.b16 %v291
  %v1315 = vunpack.c.h.b16 %v291
  %v1316 = vunpack.c.l.b16 %v292
  %v1317 = vunpack.c.h.b16 %v292
  %v1318 = vunpack.c.l.b16 %v293
  %v1319 = vunpack.c.h.b16 %v293
  %v1320 = vunpack.c.l.b16 %v294
  %v1321 = vunpack.c.h.b16 %v294
  %v1322 = vunpack.c.l.b16 %v295
  %v1323 = vunpack.c.h.b16 %v295
  %v1324 = vunpack.c.l.b16 %v296
  %v1325 = vunpack.c.h.b16 %v296
  %v1326 = vunpack.c.l.b16 %v297
  %v1327 = vunpack.c.h.b16 %v297
  %v1328 = vunpack.c.l.b16 %v298
  %v1329 = vunpack.c.h.b16 %v298
  %v1330 = vunpack.c.l.b16 %v299
  %v1331 = vunpack.c.h.b16 %v299
  %v1332 = vunpack.c.l.b16 %v300
  %v1333 = vunpack.c.h.b16 %v300
  %v1334 = vunpack.c.l.b16 %v301
  %v1335 = vunpack.c.h.b16 %v301
  %v1336 = vunpack.c.l.b16 %v302
  %v1337 = vunpack.c.h.b16 %v302
  %v1338 = vunpack.c.l.b16 %v303
  %v1339 = vunpack.c.h.b16 %v303
  %v1340 = vunpack.c.l.b16 %v304
  %v1341 = vunpack.c.h.b16 %v304
  %v1342 = vunpack.c.l.b16 %v305
  %v1343 = vunpack.c.h.b16 %v305
  %v1344 = vunpack.c.l.b16 %v306
  %v1345 = vunpack.c.h.b16 %v306
  %v1346 = vunpack.c.l.b16 %v307
  %v1347 = vunpack.c.h.b16 %v307
  %v1348 = vunpack.c.l.b16 %v308
  %v1349 = vunpack.c.h.b16 %v308
  %v1350 = vunpack.c.l.b16 %v309
  %v1351 = vunpack.c.h.b16 %v309
  %v1352 = vunpack.c.l.b16 %v310
  %v1353 = vunpack.c.h.b16 %v310
  %v1354 = vunpack.c.l.b16 %v311
  %v1355 = vunpack.c.h.b16 %v311
  %v1356 = vunpack.c.l.b16 %v312
  %v1357 = vunpack.c.h.b16 %v312
  %v1358 = vunpack.c.l.b16 %v313
  %v1359 = vunpack.c.h.b16 %v313
  %v1360 = vunpack.c.l.b16 %v314
  %v1361 = vunpack.c.h.b16 %v314
  %v1362 = vunpack.c.l.b16 %v315
  %v1363 = vunpack.c.h.b16 %v315
  %v1364 = vunpack.c.l.b16 %v316
  %v1365 = vunpack.c.h.b16 %v316
  %v1366 = vunpack.c.l.b16 %v317
  %v1367 = vunpack.c.h.b16 %v317
  %v1368 = vunpack.c.l.b16 %v318
  %v1369 = vunpack.c.h.b16 %v318
  %v1370 = vunpack.c.l.b16 %v319
  %v1371 = vunpack.c.h.b16 %v319
  %v1372 = vunpack.c.l.b16 %v320
  %v1373 = vunpack.c.h.b16 %v320
  %v1374 = vunpack.c.l.b16 %v321
  %v1375 = vunpack.c.h.b16 %v321
  %v1376 = vunpack.c.l.b16 %v322
  %v1377 = vunpack.c.h.b16 %v322
  %v1378 = vunpack.c.l.b16 %v323
  %v1379 = vunpack.c.h.b16 %v323
  %v1380 = vunpack.c.l.b16 %v324
  %v1381 = vunpack.c.h.b16 %v324
  %v1382 = vunpack.c.l.b16 %v325
  %v1383 = vunpack.c.h.b16 %v325
  %v1384 = vunpack.c.l.b16 %v326
  %v1385 = vunpack.c.h.b16 %v326
  %v1386 = vunpack.c.l.b16 %v327
  %v1387 = vunpack.c.h.b16 %v327
  %v1388 = vunpack.c.l.b16 %v328
  %v1389 = vunpack.c.h.b16 %v328
  %v1390 = vunpack.c.l.b16 %v329
  %v1391 = vunpack.c.h.b16 %v329
  %v1392 = vunpack.c.l.b16 %v330
  %v1393 = vunpack.c.h.b16 %v330
  %v1394 = vunpack.c.l.b16 %v331
  %v1395 = vunpack.c.h.b16 %v331
  %v1396 = vunpack.c.l.b16 %v332
  %v1397 = vunpack.c.h.b16 %v332
  %v1398 = vunpack.c.l.b16 %v333
  %v1399 = vunpack.c.h.b16 %v333
  %v1400 = vunpack.c.l.b16 %v334
  %v1401 = vunpack.c.h.b16 %v334
  %v1402 = vunpack.c.l.b16 %v335
  %v1403 = vunpack.c.h.b16 %v335
  %v1404 = vunpack.c.l.b16 %v336
  %v1405 = vunpack.c.h.b16 %v336
  %v1406 = vunpack.c.l.b16 %v337
  %v1407 = vunpack.c.h.b16 %v337
  %v1408 = vunpack.c.l.b16 %v338
  %v1409 = vunpack.c.h.b16 %v338
  %v1410 = vunpack.c.l.b16 %v339
  %v1411 = vunpack.c.h.b16 %v339
  %v1412 = vunpack.c.l.b16 %v340
  %v1413 = vunpack.c.h.b16 %v340
  %v1414 = vunpack.c.l.b16 %v341
  %v1415 = vunpack.c.h.b16 %v341
  %v1416 = vunpack.c.l.b16 %v342
  %v1417 = vunpack.c.h.b16 %v342
  %v1418 = vunpack.c.l.b16 %v343
  %v1419 = vunpack.c.h.b16 %v343
  %v1420 = vunpack.c.l.b16 %v344
  %v1421 = vunpack.c.h.b16 %v344
  %v1422 = vunpack.c.l.b16 %v345
  %v1423 = vunpack.c.h.b16 %v345
  %v1424 = vunpack.c.l.b16 %v346
  %v1425 = vunpack.c.h.b16 %v346
  %v1426 = vunpack.c.l.b16 %v347
  %v1427 = vunpack.c.h.b16 %v347
  %v1428 = vunpack.c.l.b16 %v348
  %v1429 = vunpack.c.h.b16 %v348
  %v1430 = vunpack.c.l.b16 %v349
  %v1431 = vunpack.c.h.b16 %v349
  %v1432 = vunpack.c.l.b16 %v350
  %v1433 = vunpack.c.h.b16 %v350
  %v1434 = vunpack.c.l.b16 %v351
  %v1435 = vunpack.c.h.b16 %v351
  %v1436 = vunpack.c.l.b16 %v352
  %v1437 = vunpack.c.h.b16 %v352
  %v1438 = vunpack.c.l.b16 %v353
  %v1439 = vunpack.c.h.b16 %v353
  %v1440 = vunpack.c.l.b16 %v354
  %v1441 = vunpack.c.h.b16 %v354
  %v1442 = vunpack.c.l.b16 %v355
  %v1443 = vunpack.c.h.b16 %v355
  %v1444 = vunpack.c.l.b16 %v356
  %v1445 = vunpack.c.h.b16 %v356
  %v1446 = vunpack.c.l.b16 %v357
  %v1447 = vunpack.c.h.b16 %v357
  %v1448 = vunpack.c.l.b16 %v358
  %v1449 = vunpack.c.h.b16 %v358
  %v1450 = vunpack.c.l.b16 %v359
  %v1451 = vunpack.c.h.b16 %v359
  %v1452 = vunpack.c.l.b16 %v360
  %v1453 = vunpack.c.h.b16 %v360
  %v1454 = vunpack.c.l.b16 %v361
  %v1455 = vunpack.c.h.b16 %v361
  %v1456 = vunpack.c.l.b16 %v362
  %v1457 = vunpack.c.h.b16 %v362
  %v1458 = vunpack.c.l.b16 %v363
  %v1459 = vunpack.c.h.b16 %v363
  %v1460 = vunpack.c.l.b16 %v364
  %v1461 = vunpack.c.h.b16 %v364
  %v1462 = vunpack.c.l.b16 %v365
  %v1463 = vunpack.c.h.b16 %v365
  %v1464 = vunpack.c.l.b16 %v366
  %v1465 = vunpack.c.h.b16 %v366
  %v1466 = vunpack.c.l.b16 %v367
  %v1467 = vunpack.c.h.b16 %v367
  %v1468 = vunpack.c.l.b16 %v368
  %v1469 = vunpack.c.h.b16 %v368
  %v1470 = vunpack.c.l.b16 %v369
  %v1471 = vunpack.c.h.b16 %v369
  %v1472 = vunpack.c.l.b16 %v370
  %v1473 = vunpack.c.h.b16 %v370
  %v1474 = vunpack.c.l.b16 %v371
  %v1475 = vunpack.c.h.b16 %v371
  %v1476 = vunpack.c.l.b16 %v372
  %v1477 = vunpack.c.h.b16 %v372
  %v1478 = vunpack.c.l.b16 %v373
  %v1479 = vunpack.c.h.b16 %v373
  %v1480 = vunpack.c.l.b16 %v374
  %v1481 = vunpack.c.h.b16 %v374
  %v1482 = vunpack.c.l.b16 %v375
  %v1483 = vunpack.c.h.b16 %v375
  %v1484 = vunpack.c.l.b16 %v376
  %v1485 = vunpack.c.h.b16 %v376
  %v1486 = vunpack.c.l.b16 %v377
  %v1487 = vunpack.c.h.b16 %v377
  %v1488 = vpack.c.b16 %v1058, %v1056
  %v1489 = vpack.c.b16 %v1059, %v1057
  %v1490 = vpack.c.b16 %v1062, %v1060
  %v1491 = vpack.c.b16 %v1063, %v1061
  %v1492 = vpack.c.b16 %v1066, %v1064
  %v1493 = vpack.c.b16 %v1067, %v1065
  %v1494 = vpack.c.b16 %v1070, %v1068
  %v1495 = vpack.c.b16 %v1071, %v1069
  %v1496 = vpack.c.b16 %v1074, %v1072
  %v1497 = vpack.c.b16 %v1075, %v1073
  %v1498 = vpack.c.b16 %v1078, %v1076
  %v1499 = vpack.c.b16 %v1079, %v1077
  %v1500 = vpack.c.b16 %v1082, %v1080
  %v1501 = vpack.c.b16 %v1083, %v1081
  %v1502 = vpack.c.b16 %v1086, %v1084
  %v1503 = vpack.c.b16 %v1087, %v1085
  %v1504 = vpack.c.b16 %v1090, %v1088
  %v1505 = vpack.c.b16 %v1091, %v1089
  %v1506 = vpack.c.b16 %v1094, %v1092
  %v1507 = vpack.c.b16 %v1095, %v1093
  %v1508 = vpack.c.b16 %v1098, %v1096
  %v1509 = vpack.c.b16 %v1099, %v1097
  %v1510 = vpack.c.b16 %v1102, %v1100
  %v1511 = vpack.c.b16 %v1103, %v1101
  %v1512 = vpack.c.b16 %v1106, %v1104
  %v1513 = vpack.c.b16 %v1107, %v1105
  %v1514 = vpack.c.b16 %v1110, %v1108
  %v1515 = vpack.c.b16 %v1111, %v1109
  %v1516 = vpack.c.b16 %v1114, %v1112
  %v1517 = vpack.c.b16 %v1115, %v1113
  %v1518 = vpack.c.b16 %v1118, %v1116
  %v1519 = vpack.c.b16 %v1119, %v1117
  %v1520 = vpack.c.b16 %v1122, %v1120
  %v1521 = vpack.c.b16 %v1123, %v1121
  %v1522 = vpack.c.b16 %v1126, %v1124
  %v1523 = vpack.c.b16 %v1127, %v1125
  %v1524 = vpack.c.b16 %v1130, %v1128
  %v1525 = vpack.c.b16 %v1131, %v1129
  %v1526 = vpack.c.b16 %v1134, %v1132
  %v1527 = vpack.c.b16 %v1135, %v1133
  %v1528 = vpack.c.b16 %v1138, %v1136
  %v1529 = vpack.c.b16 %v1139, %v1137
  %v1530 = vpack.c.b16 %v1142, %v1140
  %v1531 = vpack.c.b16 %v1143, %v1141
  %v1532 = vpack.c.b16 %v1146, %v1144
  %v1533 = vpack.c.b16 %v1147, %v1145
  %v1534 = vpack.c.b16 %v1150, %v1148
  %v1535 = vpack.c.b16 %v1151, %v1149
  %v1536 = vpack.c.b16 %v1154, %v1152
  %v1537 = vpack.c.b16 %v1155, %v1153
  %v1538 = vpack.c.b16 %v1158, %v1156
  %v1539 = vpack.c.b16 %v1159, %v1157
  %v1540 = vpack.c.b16 %v1162, %v1160
  %v1541 = vpack.c.b16 %v1163, %v1161
  %v1542 = vpack.c.b16 %v1166, %v1164
  %v1543 = vpack.c.b16 %v1167, %v1165
  %v1544 = vpack.c.b16 %v1170, %v1168
  %v1545 = vpack.c.b16 %v1171, %v1169
  %v1546 = vpack.c.b16 %v1174, %v1172
  %v1547 = vpack.c.b16 %v1175, %v1173
  %v1548 = vpack.c.b16 %v1178, %v1176
  %v1549 = vpack.c.b16 %v1179, %v1177
  %v1550 = vpack.c.b16 %v1182, %v1180
  %v1551 = vpack.c.b16 %v1183, %v1181
  %v1552 = vpack.c.b16 %v1186, %v1184
  %v1553 = vpack.c.b16 %v1187, %v1185
  %v1554 = vpack.c.b16 %v1190, %v1188
  %v1555 = vpack.c.b16 %v1191, %v1189
  %v1556 = vpack.c.b16 %v1194, %v1192
  %v1557 = vpack.c.b16 %v1195, %v1193
  %v1558 = vpack.c.b16 %v1198, %v1196
  %v1559 = vpack.c.b16 %v1199, %v1197
  %v1560 = vpack.c.b16 %v1202, %v1200
  %v1561 = vpack.c.b16 %v1203, %v1201
  %v1562 = vpack.c.b16 %v1206, %v1204
  %v1563 = vpack.c.b16 %v1207, %v1205
  %v1564 = vpack.c.b16 %v1210, %v1208
  %v1565 = vpack.c.b16 %v1211, %v1209
  %v1566 = vpack.c.b16 %v1214, %v1212
  %v1567 = vpack.c.b16 %v1215, %v1213
  %v1568 = vpack.c.b16 %v1218, %v1216
  %v1569 = vpack.c.b16 %v1219, %v1217
  %v1570 = vpack.c.b16 %v1222, %v1220
  %v1571 = vpack.c.b16 %v1223, %v1221
  %v1572 = vpack.c.b16 %v1226, %v1224
  %v1573 = vpack.c.b16 %v1227, %v1225
  %v1574 = vpack.c.b16 %v1230, %v1228
  %v1575 = vpack.c.b16 %v1231, %v1229
  %v1576 = vpack.c.b16 %v1234, %v1232
  %v1577 = vpack.c.b16 %v1235, %v1233
  %v1578 = vpack.c.b16 %v1238, %v1236
  %v1579 = vpack.c.b16 %v1239, %v1237
  %v1580 = vpack.c.b16 %v1242, %v1240
  %v1581 = vpack.c.b16 %v1243, %v1241
  %v1582 = vpack.c.b16 %v1246, %v1244
  %v1583 = vpack.c.b16 %v1247, %v1245
  %v1584 = vpack.c.b16 %v1250, %v1248
  %v1585 = vpack.c.b16 %v1251, %v1249
  %v1586 = vpack.c.b16 %v1254, %v1252
  %v1587 = vpack.c.b16 %v1255, %v1253
  %v1588 = vpack.c.b16 %v1258, %v1256
  %v1589 = vpack.c.b16 %v1259, %v1257
  %v1590 = vpack.c.b16 %v1262, %v1260
  %v1591 = vpack.c.b16 %v1263, %v1261
  %v1592 = vpack.c.b16 %v1266, %v1264
  %v1593 = vpack.c.b16 %v1267, %v1265
  %v1594 = vpack.c.b16 %v1270, %v1268
  %v1595 = vpack.c.b16 %v1271, %v1269
  %v1596 = vpack.c.b16 %v1274, %v1272
  %v1597 = vpack.c.b16 %v1275, %v1273
  %v1598 = vpack.c.b16 %v1278, %v1276
  %v1599 = vpack.c.b16 %v1279, %v1277
  %v1600 = vpack.c.b16 %v1282, %v1280
  %v1601 = vpack.c.b16 %v1283, %v1281
  %v1602 = vpack.c.b16 %v1286, %v1284
  %v1603 = vpack.c.b16 %v1287, %v1285
  %v1604 = vpack.c.b16 %v1290, %v1288
  %v1605 = vpack.c.b16 %v1291, %v1289
  %v1606 = vpack.c.b16 %v1294, %v1292
  %v1607 = vpack.c.b16 %v1295, %v1293
  %v1608 = vpack.c.b16 %v1298, %v1296
  %v1609 = vpack.c.b16 %v1299, %v1297
  %v1610 = vpack.c.b16 %v1302, %v1300
  %v1611 = vpack.c.b16 %v1303, %v1301
  %v1612 = vpack.c.b16 %v1306, %v1304
  %v1613 = vpack.c.b16 %v1307, %v1305
  %v1614 = vpack.c.b16 %v1310, %v1308
  %v1615 = vpack.c.b16 %v1311, %v1309
  %v1616 = vpack.c.b16 %v1314, %v1312
  %v1617 = vpack.c.b16 %v1315, %v1313
  %v1618 = vpack.c.b16 %v1318, %v1316
  %v1619 = vpack.c.b16 %v1319, %v1317
  %v1620 = vpack.c.b16 %v1322, %v1320
  %v1621 = vpack.c.b16 %v1323, %v1321
  %v1622 = vpack.c.b16 %v1326, %v1324
  %v1623 = vpack.c.b16 %v1327, %v1325
  %v1624 = vpack.c.b16 %v1330, %v1328
  %v1625 = vpack.c.b16 %v1331, %v1329
  %v1626 = vpack.c.b16 %v1334, %v1332
  %v1627 = vpack.c.b16 %v1335, %v1333
  %v1628 = vpack.c.b16 %v1338, %v1336
  %v1629 = vpack.c.b16 %v1339, %v1337
  %v1630 = vpack.c.b16 %v1342, %v1340
  %v1631 = vpack.c.b16 %v1343, %v1341
  %v1632 = vpack.c.b16 %v1346, %v1344
  %v1633 = vpack.c.b16 %v1347, %v1345
  %v1634 = vpack.c.b16 %v1350, %v1348
  %v1635 = vpack.c.b16 %v1351, %v1349
  %v1636 = vpack.c.b16 %v1354, %v1352
  %v1637 = vpack.c.b16 %v1355, %v1353
  %v1638 = vpack.c.b16 %v1358, %v1356
  %v1639 = vpack.c.b16 %v1359, %v1357
  %v1640 = vpack.c.b16 %v1362, %v1360
  %v1641 = vpack.c.b16 %v1363, %v1361
  %v1642 = vpack.c.b16 %v1366, %v1364
  %v1643 = vpack.c.b16 %v1367, %v1365
  %v1644 = vpack.c.b16 %v1370, %v1368
  %v1645 = vpack.c.b16 %v1371, %v1369
  %v1646 = vpack.c.b16 %v1374, %v1372
  %v1647 = vpack.c.b16 %v1375, %v1373
  %v1648 = vpack.c.b16 %v1378, %v1376
  %v1649 = vpack.c.b16 %v1379, %v1377
  %v1650 = vpack.c.b16 %v1382, %v1380
  %v1651 = vpack.c.b16 %v1383, %v1381
  %v1652 = vpack.c.b16 %v1386, %v1384
  %v1653 = vpack.c.b16 %v1387, %v1385
  %v1654 = vpack.c.b16 %v1390, %v1388
  %v1655 = vpack.c.b16 %v1391, %v1389
  %v1656 = vpack.c.b16 %v1394, %v1392
  %v1657 = vpack.c.b16 %v1395, %v1393
  %v1658 = vpack.c.b16 %v1398, %v1396
  %v1659 = vpack.c.b16 %v1399, %v1397
  %v1660 = vpack.c.b16 %v1402, %v1400
  %v1661 = vpack.c.b16 %v1403, %v1401
  %v1662 = vpack.c.b16 %v1406, %v1404
  %v1663 = vpack.c.b16 %v1407, %v1405
  %v1664 = vpack.c.b16 %v1410, %v1408
  %v1665 = vpack.c.b16 %v1411, %v1409
  %v1666 = vpack.c.b16 %v1414, %v1412
  %v1667 = vpack.c.b16 %v1415, %v1413
  %v1668 = vpack.c.b16 %v1418, %v1416
  %v1669 = vpack.c.b16 %v1419, %v1417
  %v1670 = vpack.c.b16 %v1422, %v1420
  %v1671 = vpack.c.b16 %v1423, %v1421
  %v1672 = vpack.c.b16 %v1426, %v1424
  %v1673 = vpack.c.b16 %v1427, %v1425
  %v1674 = vpack.c.b16 %v1430, %v1428
  %v1675 = vpack.c.b16 %v1431, %v1429
  %v1676 = vpack.c.b16 %v1434, %v1432
  %v1677 = vpack.c.b16 %v1435, %v1433
  %v1678 = vpack.c.b16 %v1438, %v1436
  %v1679 = vpack.c.b16 %v1439, %v1437
  %v1680 = vpack.c.b16 %v1442, %v1440
  %v1681 = vpack.c.b16 %v1443, %v1441
  %v1682 = vpack.c.b16 %v1446, %v1444
  %v1683 = vpack.c.b16 %v1447, %v1445
  %v1684 = vpack.c.b16 %v1450, %v1448
  %v1685 = vpack.c.b16 %v1451, %v1449
  %v1686 = vpack.c.b16 %v1454, %v1452
  %v1687 = vpack.c.b16 %v1455, %v1453
  %v1688 = vpack.c.b16 %v1458, %v1456
  %v1689 = vpack.c.b16 %v1459, %v1457
  %v1690 = vpack.c.b16 %v1462, %v1460
  %v1691 = vpack.c.b16 %v1463, %v1461
  %v1692 = vpack.c.b16 %v1466, %v1464
  %v1693 = vpack.c.b16 %v1467, %v1465
  %v1694 = vpack.c.b16 %v1470, %v1468
  %v1695 = vpack.c.b16 %v1471, %v1469
  %v1696 = vpack.c.b16 %v1474, %v1472
  %v1697 = vpack.c.b16 %v1475, %v1473
  %v1698 = vpack.c.b16 %v1478, %v1476
  %v1699 = vpack.c.b16 %v1479, %v1477
  %v1700 = vpack.c.b16 %v1482, %v1480
  %v1701 = vpack.c.b16 %v1483, %v1481
  %v1702 = vpack.c.b16 %v1486, %v1484
  %v1703 = vpack.c.b16 %v1487, %v1485
  %vm1920 = vcmask 523264
  %v1922 = vsel %vm1920, %v664, 0
  %v1925 = vsel %vm1920, %v678, 0
  %v1928 = vsel %vm1920, %v692, 0
  %v1931 = vsel %vm1920, %v706, 0
  %v1934 = vsel %vm1920, %v720, 0
  %v1937 = vsel %vm1920, %v734, 0
  %v1940 = vsel %vm1920, %v748, 0
  %1942 = vmatprep.subr.bf16.mxu0 %v1503
  %1943 = vmatpush1.bf16.msra.mxu0 %v1502
  %1944 = vmatprep.subr.bf16.mxu0 %v1501
  %1945 = vmatpush1.bf16.msra.mxu0 %v1500
  %1946 = vmatprep.subr.bf16.mxu0 %v1499
  %1947 = vmatpush1.bf16.msra.mxu0 %v1498
  %1948 = vmatprep.subr.bf16.mxu0 %v1497
  %1949 = vmatpush1.bf16.msra.mxu0 %v1496
  %1950 = vmatprep.subr.bf16.mxu0 %v1495
  %1951 = vmatpush1.bf16.msra.mxu0 %v1494
  %1952 = vmatprep.subr.bf16.mxu0 %v1493
  %1953 = vmatpush1.bf16.msra.mxu0 %v1492
  %1954 = vmatprep.subr.bf16.mxu0 %v1491
  %1955 = vmatpush1.bf16.msra.mxu0 %v1490
  %1956 = vmatprep.subr.bf16.mxu0 %v1489
  %1957 = vmatpush1.bf16.msra.mxu0 %v1488
  %1958 = vmatprep.subr.bf16.mxu0 %v1519
  %1959 = vmatpush2.bf16.msra.mxu0 %v1518
  %1960 = vmatprep.subr.bf16.mxu0 %v1517
  %1961 = vmatpush2.bf16.msra.mxu0 %v1516
  %1962 = vmatprep.subr.bf16.mxu0 %v1515
  %1963 = vmatpush2.bf16.msra.mxu0 %v1514
  %1964 = vmatprep.subr.bf16.mxu0 %v1513
  %1965 = vmatpush2.bf16.msra.mxu0 %v1512
  %1966 = vmatprep.subr.bf16.mxu0 %v1511
  %1967 = vmatpush2.bf16.msra.mxu0 %v1510
  %1968 = vmatprep.subr.bf16.mxu0 %v1509
  %1969 = vmatpush2.bf16.msra.mxu0 %v1508
  %1970 = vmatprep.subr.bf16.mxu0 %v1507
  %1971 = vmatpush2.bf16.msra.mxu0 %v1506
  %1972 = vmatprep.subr.bf16.mxu0 %v1505
  %1973 = vmatpush2.bf16.msra.mxu0 %v1504
  %1974 = vmatprep.mubr.bf16.mxu0 %v652
  %1975 = vmatmul.mubr.bf16.gmra.mxu0 %v651
  %v1976 = vpop.f32.mrf.mxu0
  %v1977 = vadd.f32 0.0, %v1976
  %v1978 = vpop.f32.mrf.mxu0
  %v1979 = vadd.f32 0.0, %v1978
  %v1980 = vpop.f32.mrf.mxu0
  %v1981 = vadd.f32 0.0, %v1980
  %v1982 = vpop.f32.mrf.mxu0
  %v1983 = vadd.f32 0.0, %v1982
  %1984 = vmatprep.mubr.bf16.mxu0 %v666
  %1985 = vmatmul.mubr.bf16.gmra.mxu0 %v665
  %v1986 = vpop.f32.mrf.mxu0
  %v1987 = vadd.f32 0.0, %v1986
  %v1988 = vpop.f32.mrf.mxu0
  %v1989 = vadd.f32 0.0, %v1988
  %v1990 = vpop.f32.mrf.mxu0
  %v1991 = vadd.f32 0.0, %v1990
  %v1992 = vpop.f32.mrf.mxu0
  %v1993 = vadd.f32 0.0, %v1992
  %1994 = vmatprep.mubr.bf16.mxu0 %v680
  %1995 = vmatmul.mubr.bf16.gmra.mxu0 %v679
  %v1996 = vpop.f32.mrf.mxu0
  %v1997 = vadd.f32 0.0, %v1996
  %v1998 = vpop.f32.mrf.mxu0
  %v1999 = vadd.f32 0.0, %v1998
  %v2000 = vpop.f32.mrf.mxu0
  %v2001 = vadd.f32 0.0, %v2000
  %v2002 = vpop.f32.mrf.mxu0
  %v2003 = vadd.f32 0.0, %v2002
  %2004 = vmatprep.mubr.bf16.mxu0 %v694
  %2005 = vmatmul.mubr.bf16.gmra.mxu0 %v693
  %v2006 = vpop.f32.mrf.mxu0
  %v2007 = vadd.f32 0.0, %v2006
  %v2008 = vpop.f32.mrf.mxu0
  %v2009 = vadd.f32 0.0, %v2008
  %v2010 = vpop.f32.mrf.mxu0
  %v2011 = vadd.f32 0.0, %v2010
  %v2012 = vpop.f32.mrf.mxu0
  %v2013 = vadd.f32 0.0, %v2012
  %2014 = vmatprep.mubr.bf16.mxu0 %v708
  %2015 = vmatmul.mubr.bf16.gmra.mxu0 %v707
  %v2016 = vpop.f32.mrf.mxu0
  %v2017 = vadd.f32 0.0, %v2016
  %v2018 = vpop.f32.mrf.mxu0
  %v2019 = vadd.f32 0.0, %v2018
  %v2020 = vpop.f32.mrf.mxu0
  %v2021 = vadd.f32 0.0, %v2020
  %v2022 = vpop.f32.mrf.mxu0
  %v2023 = vadd.f32 0.0, %v2022
  %2024 = vmatprep.mubr.bf16.mxu0 %v722
  %2025 = vmatmul.mubr.bf16.gmra.mxu0 %v721
  %v2026 = vpop.f32.mrf.mxu0
  %v2027 = vadd.f32 0.0, %v2026
  %v2028 = vpop.f32.mrf.mxu0
  %v2029 = vadd.f32 0.0, %v2028
  %v2030 = vpop.f32.mrf.mxu0
  %v2031 = vadd.f32 0.0, %v2030
  %v2032 = vpop.f32.mrf.mxu0
  %v2033 = vadd.f32 0.0, %v2032
  %2034 = vmatprep.mubr.bf16.mxu0 %v736
  %2035 = vmatmul.mubr.bf16.gmra.mxu0 %v735
  %v2036 = vpop.f32.mrf.mxu0
  %v2037 = vadd.f32 0.0, %v2036
  %v2038 = vpop.f32.mrf.mxu0
  %v2039 = vadd.f32 0.0, %v2038
  %v2040 = vpop.f32.mrf.mxu0
  %v2041 = vpop.f32.mrf.mxu0
  %2042 = vdwg.mxu0
  %2043 = vmatprep.subr.bf16.mxu0 %v1535
  %2044 = vmatpush1.bf16.msra.mxu0 %v1534
  %2045 = vmatprep.subr.bf16.mxu0 %v1533
  %2046 = vmatpush1.bf16.msra.mxu0 %v1532
  %2047 = vmatprep.subr.bf16.mxu0 %v1531
  %2048 = vmatpush1.bf16.msra.mxu0 %v1530
  %2049 = vmatprep.subr.bf16.mxu0 %v1529
  %2050 = vmatpush1.bf16.msra.mxu0 %v1528
  %2051 = vmatprep.subr.bf16.mxu0 %v1527
  %2052 = vmatpush1.bf16.msra.mxu0 %v1526
  %2053 = vmatprep.subr.bf16.mxu0 %v1525
  %2054 = vmatpush1.bf16.msra.mxu0 %v1524
  %2055 = vmatprep.subr.bf16.mxu0 %v1523
  %2056 = vmatpush1.bf16.msra.mxu0 %v1522
  %2057 = vmatprep.subr.bf16.mxu0 %v1521
  %2058 = vmatpush1.bf16.msra.mxu0 %v1520
  %2059 = vmatprep.subr.bf16.mxu0 %v1551
  %2060 = vmatpush2.bf16.msra.mxu0 %v1550
  %2061 = vmatprep.subr.bf16.mxu0 %v1549
  %2062 = vmatpush2.bf16.msra.mxu0 %v1548
  %2063 = vmatprep.subr.bf16.mxu0 %v1547
  %2064 = vmatpush2.bf16.msra.mxu0 %v1546
  %2065 = vmatprep.subr.bf16.mxu0 %v1545
  %2066 = vmatpush2.bf16.msra.mxu0 %v1544
  %2067 = vmatprep.subr.bf16.mxu0 %v1543
  %2068 = vmatpush2.bf16.msra.mxu0 %v1542
  %2069 = vmatprep.subr.bf16.mxu0 %v1541
  %2070 = vmatpush2.bf16.msra.mxu0 %v1540
  %2071 = vmatprep.subr.bf16.mxu0 %v1539
  %2072 = vmatpush2.bf16.msra.mxu0 %v1538
  %2073 = vmatprep.subr.bf16.mxu0 %v1537
  %2074 = vmatpush2.bf16.msra.mxu0 %v1536
  %2075 = vmatprep.mubr.bf16.mxu0 %v654
  %2076 = vmatmul.mubr.bf16.gmra.mxu0 %v653
  %v2077 = vpop.f32.mrf.mxu0
  %v2078 = vadd.f32 %v1977, %v2077
  %v2079 = vpop.f32.mrf.mxu0
  %v2080 = vadd.f32 %v1979, %v2079
  %v2081 = vpop.f32.mrf.mxu0
  %v2082 = vadd.f32 %v1981, %v2081
  %v2083 = vpop.f32.mrf.mxu0
  %v2084 = vadd.f32 %v1983, %v2083
  %2085 = vmatprep.mubr.bf16.mxu0 %v668
  %2086 = vmatmul.mubr.bf16.gmra.mxu0 %v667
  %v2087 = vpop.f32.mrf.mxu0
  %v2088 = vadd.f32 %v1987, %v2087
  %v2089 = vpop.f32.mrf.mxu0
  %v2090 = vadd.f32 %v1989, %v2089
  %v2091 = vpop.f32.mrf.mxu0
  %v2092 = vadd.f32 %v1991, %v2091
  %v2093 = vpop.f32.mrf.mxu0
  %v2094 = vadd.f32 %v1993, %v2093
  %2095 = vmatprep.mubr.bf16.mxu0 %v682
  %2096 = vmatmul.mubr.bf16.gmra.mxu0 %v681
  %v2097 = vpop.f32.mrf.mxu0
  %v2098 = vadd.f32 %v1997, %v2097
  %v2099 = vpop.f32.mrf.mxu0
  %v2100 = vadd.f32 %v1999, %v2099
  %v2101 = vpop.f32.mrf.mxu0
  %v2102 = vadd.f32 %v2001, %v2101
  %v2103 = vpop.f32.mrf.mxu0
  %v2104 = vadd.f32 %v2003, %v2103
  %2105 = vmatprep.mubr.bf16.mxu0 %v696
  %2106 = vmatmul.mubr.bf16.gmra.mxu0 %v695
  %v2107 = vpop.f32.mrf.mxu0
  %v2108 = vadd.f32 %v2007, %v2107
  %v2109 = vpop.f32.mrf.mxu0
  %v2110 = vadd.f32 %v2009, %v2109
  %v2111 = vpop.f32.mrf.mxu0
  %v2112 = vadd.f32 %v2011, %v2111
  %v2113 = vpop.f32.mrf.mxu0
  %v2114 = vadd.f32 %v2013, %v2113
  %2115 = vmatprep.mubr.bf16.mxu0 %v710
  %2116 = vmatmul.mubr.bf16.gmra.mxu0 %v709
  %v2117 = vpop.f32.mrf.mxu0
  %v2118 = vadd.f32 %v2017, %v2117
  %v2119 = vpop.f32.mrf.mxu0
  %v2120 = vadd.f32 %v2019, %v2119
  %v2121 = vpop.f32.mrf.mxu0
  %v2122 = vadd.f32 %v2021, %v2121
  %v2123 = vpop.f32.mrf.mxu0
  %v2124 = vadd.f32 %v2023, %v2123
  %2125 = vmatprep.mubr.bf16.mxu0 %v724
  %2126 = vmatmul.mubr.bf16.gmra.mxu0 %v723
  %v2127 = vpop.f32.mrf.mxu0
  %v2128 = vadd.f32 %v2027, %v2127
  %v2129 = vpop.f32.mrf.mxu0
  %v2130 = vadd.f32 %v2029, %v2129
  %v2131 = vpop.f32.mrf.mxu0
  %v2132 = vadd.f32 %v2031, %v2131
  %v2133 = vpop.f32.mrf.mxu0
  %v2134 = vadd.f32 %v2033, %v2133
  %2135 = vmatprep.mubr.bf16.mxu0 %v738
  %2136 = vmatmul.mubr.bf16.gmra.mxu0 %v737
  %v2137 = vpop.f32.mrf.mxu0
  %v2138 = vadd.f32 %v2037, %v2137
  %v2139 = vpop.f32.mrf.mxu0
  %v2140 = vadd.f32 %v2039, %v2139
  %v2141 = vpop.f32.mrf.mxu0
  %v2142 = vpop.f32.mrf.mxu0
  %2143 = vdwg.mxu0
  %2144 = vmatprep.subr.bf16.mxu0 %v1567
  %2145 = vmatpush1.bf16.msra.mxu0 %v1566
  %2146 = vmatprep.subr.bf16.mxu0 %v1565
  %2147 = vmatpush1.bf16.msra.mxu0 %v1564
  %2148 = vmatprep.subr.bf16.mxu0 %v1563
  %2149 = vmatpush1.bf16.msra.mxu0 %v1562
  %2150 = vmatprep.subr.bf16.mxu0 %v1561
  %2151 = vmatpush1.bf16.msra.mxu0 %v1560
  %2152 = vmatprep.subr.bf16.mxu0 %v1559
  %2153 = vmatpush1.bf16.msra.mxu0 %v1558
  %2154 = vmatprep.subr.bf16.mxu0 %v1557
  %2155 = vmatpush1.bf16.msra.mxu0 %v1556
  %2156 = vmatprep.subr.bf16.mxu0 %v1555
  %2157 = vmatpush1.bf16.msra.mxu0 %v1554
  %2158 = vmatprep.subr.bf16.mxu0 %v1553
  %2159 = vmatpush1.bf16.msra.mxu0 %v1552
  %2160 = vmatprep.subr.bf16.mxu0 %v1583
  %2161 = vmatpush2.bf16.msra.mxu0 %v1582
  %2162 = vmatprep.subr.bf16.mxu0 %v1581
  %2163 = vmatpush2.bf16.msra.mxu0 %v1580
  %2164 = vmatprep.subr.bf16.mxu0 %v1579
  %2165 = vmatpush2.bf16.msra.mxu0 %v1578
  %2166 = vmatprep.subr.bf16.mxu0 %v1577
  %2167 = vmatpush2.bf16.msra.mxu0 %v1576
  %2168 = vmatprep.subr.bf16.mxu0 %v1575
  %2169 = vmatpush2.bf16.msra.mxu0 %v1574
  %2170 = vmatprep.subr.bf16.mxu0 %v1573
  %2171 = vmatpush2.bf16.msra.mxu0 %v1572
  %2172 = vmatprep.subr.bf16.mxu0 %v1571
  %2173 = vmatpush2.bf16.msra.mxu0 %v1570
  %2174 = vmatprep.subr.bf16.mxu0 %v1569
  %2175 = vmatpush2.bf16.msra.mxu0 %v1568
  %2176 = vmatprep.mubr.bf16.mxu0 %v656
  %2177 = vmatmul.mubr.bf16.gmra.mxu0 %v655
  %v2178 = vpop.f32.mrf.mxu0
  %v2179 = vadd.f32 %v2078, %v2178
  %v2180 = vpop.f32.mrf.mxu0
  %v2181 = vadd.f32 %v2080, %v2180
  %v2182 = vpop.f32.mrf.mxu0
  %v2183 = vadd.f32 %v2082, %v2182
  %v2184 = vpop.f32.mrf.mxu0
  %v2185 = vadd.f32 %v2084, %v2184
  %2186 = vmatprep.mubr.bf16.mxu0 %v670
  %2187 = vmatmul.mubr.bf16.gmra.mxu0 %v669
  %v2188 = vpop.f32.mrf.mxu0
  %v2189 = vadd.f32 %v2088, %v2188
  %v2190 = vpop.f32.mrf.mxu0
  %v2191 = vadd.f32 %v2090, %v2190
  %v2192 = vpop.f32.mrf.mxu0
  %v2193 = vadd.f32 %v2092, %v2192
  %v2194 = vpop.f32.mrf.mxu0
  %v2195 = vadd.f32 %v2094, %v2194
  %2196 = vmatprep.mubr.bf16.mxu0 %v684
  %2197 = vmatmul.mubr.bf16.gmra.mxu0 %v683
  %v2198 = vpop.f32.mrf.mxu0
  %v2199 = vadd.f32 %v2098, %v2198
  %v2200 = vpop.f32.mrf.mxu0
  %v2201 = vadd.f32 %v2100, %v2200
  %v2202 = vpop.f32.mrf.mxu0
  %v2203 = vadd.f32 %v2102, %v2202
  %v2204 = vpop.f32.mrf.mxu0
  %v2205 = vadd.f32 %v2104, %v2204
  %2206 = vmatprep.mubr.bf16.mxu0 %v698
  %2207 = vmatmul.mubr.bf16.gmra.mxu0 %v697
  %v2208 = vpop.f32.mrf.mxu0
  %v2209 = vadd.f32 %v2108, %v2208
  %v2210 = vpop.f32.mrf.mxu0
  %v2211 = vadd.f32 %v2110, %v2210
  %v2212 = vpop.f32.mrf.mxu0
  %v2213 = vadd.f32 %v2112, %v2212
  %v2214 = vpop.f32.mrf.mxu0
  %v2215 = vadd.f32 %v2114, %v2214
  %2216 = vmatprep.mubr.bf16.mxu0 %v712
  %2217 = vmatmul.mubr.bf16.gmra.mxu0 %v711
  %v2218 = vpop.f32.mrf.mxu0
  %v2219 = vadd.f32 %v2118, %v2218
  %v2220 = vpop.f32.mrf.mxu0
  %v2221 = vadd.f32 %v2120, %v2220
  %v2222 = vpop.f32.mrf.mxu0
  %v2223 = vadd.f32 %v2122, %v2222
  %v2224 = vpop.f32.mrf.mxu0
  %v2225 = vadd.f32 %v2124, %v2224
  %2226 = vmatprep.mubr.bf16.mxu0 %v726
  %2227 = vmatmul.mubr.bf16.gmra.mxu0 %v725
  %v2228 = vpop.f32.mrf.mxu0
  %v2229 = vadd.f32 %v2128, %v2228
  %v2230 = vpop.f32.mrf.mxu0
  %v2231 = vadd.f32 %v2130, %v2230
  %v2232 = vpop.f32.mrf.mxu0
  %v2233 = vadd.f32 %v2132, %v2232
  %v2234 = vpop.f32.mrf.mxu0
  %v2235 = vadd.f32 %v2134, %v2234
  %2236 = vmatprep.mubr.bf16.mxu0 %v740
  %2237 = vmatmul.mubr.bf16.gmra.mxu0 %v739
  %v2238 = vpop.f32.mrf.mxu0
  %v2239 = vadd.f32 %v2138, %v2238
  %v2240 = vpop.f32.mrf.mxu0
  %v2241 = vadd.f32 %v2140, %v2240
  %v2242 = vpop.f32.mrf.mxu0
  %v2243 = vpop.f32.mrf.mxu0
  %2244 = vdwg.mxu0
  %2245 = vmatprep.subr.bf16.mxu0 %v1599
  %2246 = vmatpush1.bf16.msra.mxu0 %v1598
  %2247 = vmatprep.subr.bf16.mxu0 %v1597
  %2248 = vmatpush1.bf16.msra.mxu0 %v1596
  %2249 = vmatprep.subr.bf16.mxu0 %v1595
  %2250 = vmatpush1.bf16.msra.mxu0 %v1594
  %2251 = vmatprep.subr.bf16.mxu0 %v1593
  %2252 = vmatpush1.bf16.msra.mxu0 %v1592
  %2253 = vmatprep.subr.bf16.mxu0 %v1591
  %2254 = vmatpush1.bf16.msra.mxu0 %v1590
  %2255 = vmatprep.subr.bf16.mxu0 %v1589
  %2256 = vmatpush1.bf16.msra.mxu0 %v1588
  %2257 = vmatprep.subr.bf16.mxu0 %v1587
  %2258 = vmatpush1.bf16.msra.mxu0 %v1586
  %2259 = vmatprep.subr.bf16.mxu0 %v1585
  %2260 = vmatpush1.bf16.msra.mxu0 %v1584
  %2261 = vmatprep.subr.bf16.mxu0 %v1615
  %2262 = vmatpush2.bf16.msra.mxu0 %v1614
  %2263 = vmatprep.subr.bf16.mxu0 %v1613
  %2264 = vmatpush2.bf16.msra.mxu0 %v1612
  %2265 = vmatprep.subr.bf16.mxu0 %v1611
  %2266 = vmatpush2.bf16.msra.mxu0 %v1610
  %2267 = vmatprep.subr.bf16.mxu0 %v1609
  %2268 = vmatpush2.bf16.msra.mxu0 %v1608
  %2269 = vmatprep.subr.bf16.mxu0 %v1607
  %2270 = vmatpush2.bf16.msra.mxu0 %v1606
  %2271 = vmatprep.subr.bf16.mxu0 %v1605
  %2272 = vmatpush2.bf16.msra.mxu0 %v1604
  %2273 = vmatprep.subr.bf16.mxu0 %v1603
  %2274 = vmatpush2.bf16.msra.mxu0 %v1602
  %2275 = vmatprep.subr.bf16.mxu0 %v1601
  %2276 = vmatpush2.bf16.msra.mxu0 %v1600
  %2277 = vmatprep.mubr.bf16.mxu0 %v658
  %2278 = vmatmul.mubr.bf16.gmra.mxu0 %v657
  %v2279 = vpop.f32.mrf.mxu0
  %v2280 = vadd.f32 %v2179, %v2279
  %v2281 = vpop.f32.mrf.mxu0
  %v2282 = vadd.f32 %v2181, %v2281
  %v2283 = vpop.f32.mrf.mxu0
  %v2284 = vadd.f32 %v2183, %v2283
  %v2285 = vpop.f32.mrf.mxu0
  %v2286 = vadd.f32 %v2185, %v2285
  %2287 = vmatprep.mubr.bf16.mxu0 %v672
  %2288 = vmatmul.mubr.bf16.gmra.mxu0 %v671
  %v2289 = vpop.f32.mrf.mxu0
  %v2290 = vadd.f32 %v2189, %v2289
  %v2291 = vpop.f32.mrf.mxu0
  %v2292 = vadd.f32 %v2191, %v2291
  %v2293 = vpop.f32.mrf.mxu0
  %v2294 = vadd.f32 %v2193, %v2293
  %v2295 = vpop.f32.mrf.mxu0
  %v2296 = vadd.f32 %v2195, %v2295
  %2297 = vmatprep.mubr.bf16.mxu0 %v686
  %2298 = vmatmul.mubr.bf16.gmra.mxu0 %v685
  %v2299 = vpop.f32.mrf.mxu0
  %v2300 = vadd.f32 %v2199, %v2299
  %v2301 = vpop.f32.mrf.mxu0
  %v2302 = vadd.f32 %v2201, %v2301
  %v2303 = vpop.f32.mrf.mxu0
  %v2304 = vadd.f32 %v2203, %v2303
  %v2305 = vpop.f32.mrf.mxu0
  %v2306 = vadd.f32 %v2205, %v2305
  %2307 = vmatprep.mubr.bf16.mxu0 %v700
  %2308 = vmatmul.mubr.bf16.gmra.mxu0 %v699
  %v2309 = vpop.f32.mrf.mxu0
  %v2310 = vadd.f32 %v2209, %v2309
  %v2311 = vpop.f32.mrf.mxu0
  %v2312 = vadd.f32 %v2211, %v2311
  %v2313 = vpop.f32.mrf.mxu0
  %v2314 = vadd.f32 %v2213, %v2313
  %v2315 = vpop.f32.mrf.mxu0
  %v2316 = vadd.f32 %v2215, %v2315
  %2317 = vmatprep.mubr.bf16.mxu0 %v714
  %2318 = vmatmul.mubr.bf16.gmra.mxu0 %v713
  %v2319 = vpop.f32.mrf.mxu0
  %v2320 = vadd.f32 %v2219, %v2319
  %v2321 = vpop.f32.mrf.mxu0
  %v2322 = vadd.f32 %v2221, %v2321
  %v2323 = vpop.f32.mrf.mxu0
  %v2324 = vadd.f32 %v2223, %v2323
  %v2325 = vpop.f32.mrf.mxu0
  %v2326 = vadd.f32 %v2225, %v2325
  %2327 = vmatprep.mubr.bf16.mxu0 %v728
  %2328 = vmatmul.mubr.bf16.gmra.mxu0 %v727
  %v2329 = vpop.f32.mrf.mxu0
  %v2330 = vadd.f32 %v2229, %v2329
  %v2331 = vpop.f32.mrf.mxu0
  %v2332 = vadd.f32 %v2231, %v2331
  %v2333 = vpop.f32.mrf.mxu0
  %v2334 = vadd.f32 %v2233, %v2333
  %v2335 = vpop.f32.mrf.mxu0
  %v2336 = vadd.f32 %v2235, %v2335
  %2337 = vmatprep.mubr.bf16.mxu0 %v742
  %2338 = vmatmul.mubr.bf16.gmra.mxu0 %v741
  %v2339 = vpop.f32.mrf.mxu0
  %v2340 = vadd.f32 %v2239, %v2339
  %v2341 = vpop.f32.mrf.mxu0
  %v2342 = vadd.f32 %v2241, %v2341
  %v2343 = vpop.f32.mrf.mxu0
  %v2344 = vpop.f32.mrf.mxu0
  %2345 = vdwg.mxu0
  %2346 = vmatprep.subr.bf16.mxu0 %v1631
  %2347 = vmatpush1.bf16.msra.mxu0 %v1630
  %2348 = vmatprep.subr.bf16.mxu0 %v1629
  %2349 = vmatpush1.bf16.msra.mxu0 %v1628
  %2350 = vmatprep.subr.bf16.mxu0 %v1627
  %2351 = vmatpush1.bf16.msra.mxu0 %v1626
  %2352 = vmatprep.subr.bf16.mxu0 %v1625
  %2353 = vmatpush1.bf16.msra.mxu0 %v1624
  %2354 = vmatprep.subr.bf16.mxu0 %v1623
  %2355 = vmatpush1.bf16.msra.mxu0 %v1622
  %2356 = vmatprep.subr.bf16.mxu0 %v1621
  %2357 = vmatpush1.bf16.msra.mxu0 %v1620
  %2358 = vmatprep.subr.bf16.mxu0 %v1619
  %2359 = vmatpush1.bf16.msra.mxu0 %v1618
  %2360 = vmatprep.subr.bf16.mxu0 %v1617
  %2361 = vmatpush1.bf16.msra.mxu0 %v1616
  %2362 = vmatprep.subr.bf16.mxu0 %v1647
  %2363 = vmatpush2.bf16.msra.mxu0 %v1646
  %2364 = vmatprep.subr.bf16.mxu0 %v1645
  %2365 = vmatpush2.bf16.msra.mxu0 %v1644
  %2366 = vmatprep.subr.bf16.mxu0 %v1643
  %2367 = vmatpush2.bf16.msra.mxu0 %v1642
  %2368 = vmatprep.subr.bf16.mxu0 %v1641
  %2369 = vmatpush2.bf16.msra.mxu0 %v1640
  %2370 = vmatprep.subr.bf16.mxu0 %v1639
  %2371 = vmatpush2.bf16.msra.mxu0 %v1638
  %2372 = vmatprep.subr.bf16.mxu0 %v1637
  %2373 = vmatpush2.bf16.msra.mxu0 %v1636
  %2374 = vmatprep.subr.bf16.mxu0 %v1635
  %2375 = vmatpush2.bf16.msra.mxu0 %v1634
  %2376 = vmatprep.subr.bf16.mxu0 %v1633
  %2377 = vmatpush2.bf16.msra.mxu0 %v1632
  %2378 = vmatprep.mubr.bf16.mxu0 %v660
  %2379 = vmatmul.mubr.bf16.gmra.mxu0 %v659
  %v2380 = vpop.f32.mrf.mxu0
  %v2381 = vadd.f32 %v2280, %v2380
  %v2382 = vpop.f32.mrf.mxu0
  %v2383 = vadd.f32 %v2282, %v2382
  %v2384 = vpop.f32.mrf.mxu0
  %v2385 = vadd.f32 %v2284, %v2384
  %v2386 = vpop.f32.mrf.mxu0
  %v2387 = vadd.f32 %v2286, %v2386
  %2388 = vmatprep.mubr.bf16.mxu0 %v674
  %2389 = vmatmul.mubr.bf16.gmra.mxu0 %v673
  %v2390 = vpop.f32.mrf.mxu0
  %v2391 = vadd.f32 %v2290, %v2390
  %v2392 = vpop.f32.mrf.mxu0
  %v2393 = vadd.f32 %v2292, %v2392
  %v2394 = vpop.f32.mrf.mxu0
  %v2395 = vadd.f32 %v2294, %v2394
  %v2396 = vpop.f32.mrf.mxu0
  %v2397 = vadd.f32 %v2296, %v2396
  %2398 = vmatprep.mubr.bf16.mxu0 %v688
  %2399 = vmatmul.mubr.bf16.gmra.mxu0 %v687
  %v2400 = vpop.f32.mrf.mxu0
  %v2401 = vadd.f32 %v2300, %v2400
  %v2402 = vpop.f32.mrf.mxu0
  %v2403 = vadd.f32 %v2302, %v2402
  %v2404 = vpop.f32.mrf.mxu0
  %v2405 = vadd.f32 %v2304, %v2404
  %v2406 = vpop.f32.mrf.mxu0
  %v2407 = vadd.f32 %v2306, %v2406
  %2408 = vmatprep.mubr.bf16.mxu0 %v702
  %2409 = vmatmul.mubr.bf16.gmra.mxu0 %v701
  %v2410 = vpop.f32.mrf.mxu0
  %v2411 = vadd.f32 %v2310, %v2410
  %v2412 = vpop.f32.mrf.mxu0
  %v2413 = vadd.f32 %v2312, %v2412
  %v2414 = vpop.f32.mrf.mxu0
  %v2415 = vadd.f32 %v2314, %v2414
  %v2416 = vpop.f32.mrf.mxu0
  %v2417 = vadd.f32 %v2316, %v2416
  %2418 = vmatprep.mubr.bf16.mxu0 %v716
  %2419 = vmatmul.mubr.bf16.gmra.mxu0 %v715
  %v2420 = vpop.f32.mrf.mxu0
  %v2421 = vadd.f32 %v2320, %v2420
  %v2422 = vpop.f32.mrf.mxu0
  %v2423 = vadd.f32 %v2322, %v2422
  %v2424 = vpop.f32.mrf.mxu0
  %v2425 = vadd.f32 %v2324, %v2424
  %v2426 = vpop.f32.mrf.mxu0
  %v2427 = vadd.f32 %v2326, %v2426
  %2428 = vmatprep.mubr.bf16.mxu0 %v730
  %2429 = vmatmul.mubr.bf16.gmra.mxu0 %v729
  %v2430 = vpop.f32.mrf.mxu0
  %v2431 = vadd.f32 %v2330, %v2430
  %v2432 = vpop.f32.mrf.mxu0
  %v2433 = vadd.f32 %v2332, %v2432
  %v2434 = vpop.f32.mrf.mxu0
  %v2435 = vadd.f32 %v2334, %v2434
  %v2436 = vpop.f32.mrf.mxu0
  %v2437 = vadd.f32 %v2336, %v2436
  %2438 = vmatprep.mubr.bf16.mxu0 %v744
  %2439 = vmatmul.mubr.bf16.gmra.mxu0 %v743
  %v2440 = vpop.f32.mrf.mxu0
  %v2441 = vadd.f32 %v2340, %v2440
  %v2442 = vpop.f32.mrf.mxu0
  %v2443 = vadd.f32 %v2342, %v2442
  %v2444 = vpop.f32.mrf.mxu0
  %v2445 = vpop.f32.mrf.mxu0
  %2446 = vdwg.mxu0
  %2447 = vmatprep.subr.bf16.mxu0 %v1663
  %2448 = vmatpush1.bf16.msra.mxu0 %v1662
  %2449 = vmatprep.subr.bf16.mxu0 %v1661
  %2450 = vmatpush1.bf16.msra.mxu0 %v1660
  %2451 = vmatprep.subr.bf16.mxu0 %v1659
  %2452 = vmatpush1.bf16.msra.mxu0 %v1658
  %2453 = vmatprep.subr.bf16.mxu0 %v1657
  %2454 = vmatpush1.bf16.msra.mxu0 %v1656
  %2455 = vmatprep.subr.bf16.mxu0 %v1655
  %2456 = vmatpush1.bf16.msra.mxu0 %v1654
  %2457 = vmatprep.subr.bf16.mxu0 %v1653
  %2458 = vmatpush1.bf16.msra.mxu0 %v1652
  %2459 = vmatprep.subr.bf16.mxu0 %v1651
  %2460 = vmatpush1.bf16.msra.mxu0 %v1650
  %2461 = vmatprep.subr.bf16.mxu0 %v1649
  %2462 = vmatpush1.bf16.msra.mxu0 %v1648
  %2463 = vmatprep.subr.bf16.mxu0 %v1679
  %2464 = vmatpush2.bf16.msra.mxu0 %v1678
  %2465 = vmatprep.subr.bf16.mxu0 %v1677
  %2466 = vmatpush2.bf16.msra.mxu0 %v1676
  %2467 = vmatprep.subr.bf16.mxu0 %v1675
  %2468 = vmatpush2.bf16.msra.mxu0 %v1674
  %2469 = vmatprep.subr.bf16.mxu0 %v1673
  %2470 = vmatpush2.bf16.msra.mxu0 %v1672
  %2471 = vmatprep.subr.bf16.mxu0 %v1671
  %2472 = vmatpush2.bf16.msra.mxu0 %v1670
  %2473 = vmatprep.subr.bf16.mxu0 %v1669
  %2474 = vmatpush2.bf16.msra.mxu0 %v1668
  %2475 = vmatprep.subr.bf16.mxu0 %v1667
  %2476 = vmatpush2.bf16.msra.mxu0 %v1666
  %2477 = vmatprep.subr.bf16.mxu0 %v1665
  %2478 = vmatpush2.bf16.msra.mxu0 %v1664
  %2479 = vmatprep.mubr.bf16.mxu0 %v662
  %2480 = vmatmul.mubr.bf16.gmra.mxu0 %v661
  %v2481 = vpop.f32.mrf.mxu0
  %v2482 = vadd.f32 %v2381, %v2481
  %v2483 = vpop.f32.mrf.mxu0
  %v2484 = vadd.f32 %v2383, %v2483
  %v2485 = vpop.f32.mrf.mxu0
  %v2486 = vadd.f32 %v2385, %v2485
  %v2487 = vpop.f32.mrf.mxu0
  %v2488 = vadd.f32 %v2387, %v2487
  %2489 = vmatprep.mubr.bf16.mxu0 %v676
  %2490 = vmatmul.mubr.bf16.gmra.mxu0 %v675
  %v2491 = vpop.f32.mrf.mxu0
  %v2492 = vadd.f32 %v2391, %v2491
  %v2493 = vpop.f32.mrf.mxu0
  %v2494 = vadd.f32 %v2393, %v2493
  %v2495 = vpop.f32.mrf.mxu0
  %v2496 = vadd.f32 %v2395, %v2495
  %v2497 = vpop.f32.mrf.mxu0
  %v2498 = vadd.f32 %v2397, %v2497
  %2499 = vmatprep.mubr.bf16.mxu0 %v690
  %2500 = vmatmul.mubr.bf16.gmra.mxu0 %v689
  %v2501 = vpop.f32.mrf.mxu0
  %v2502 = vadd.f32 %v2401, %v2501
  %v2503 = vpop.f32.mrf.mxu0
  %v2504 = vadd.f32 %v2403, %v2503
  %v2505 = vpop.f32.mrf.mxu0
  %v2506 = vadd.f32 %v2405, %v2505
  %v2507 = vpop.f32.mrf.mxu0
  %v2508 = vadd.f32 %v2407, %v2507
  %2509 = vmatprep.mubr.bf16.mxu0 %v704
  %2510 = vmatmul.mubr.bf16.gmra.mxu0 %v703
  %v2511 = vpop.f32.mrf.mxu0
  %v2512 = vadd.f32 %v2411, %v2511
  %v2513 = vpop.f32.mrf.mxu0
  %v2514 = vadd.f32 %v2413, %v2513
  %v2515 = vpop.f32.mrf.mxu0
  %v2516 = vadd.f32 %v2415, %v2515
  %v2517 = vpop.f32.mrf.mxu0
  %v2518 = vadd.f32 %v2417, %v2517
  %2519 = vmatprep.mubr.bf16.mxu0 %v718
  %2520 = vmatmul.mubr.bf16.gmra.mxu0 %v717
  %v2521 = vpop.f32.mrf.mxu0
  %v2522 = vadd.f32 %v2421, %v2521
  %v2523 = vpop.f32.mrf.mxu0
  %v2524 = vadd.f32 %v2423, %v2523
  %v2525 = vpop.f32.mrf.mxu0
  %v2526 = vadd.f32 %v2425, %v2525
  %v2527 = vpop.f32.mrf.mxu0
  %v2528 = vadd.f32 %v2427, %v2527
  %2529 = vmatprep.mubr.bf16.mxu0 %v732
  %2530 = vmatmul.mubr.bf16.gmra.mxu0 %v731
  %v2531 = vpop.f32.mrf.mxu0
  %v2532 = vadd.f32 %v2431, %v2531
  %v2533 = vpop.f32.mrf.mxu0
  %v2534 = vadd.f32 %v2433, %v2533
  %v2535 = vpop.f32.mrf.mxu0
  %v2536 = vadd.f32 %v2435, %v2535
  %v2537 = vpop.f32.mrf.mxu0
  %v2538 = vadd.f32 %v2437, %v2537
  %2539 = vmatprep.mubr.bf16.mxu0 %v746
  %2540 = vmatmul.mubr.bf16.gmra.mxu0 %v745
  %v2541 = vpop.f32.mrf.mxu0
  %v2542 = vadd.f32 %v2441, %v2541
  %v2543 = vpop.f32.mrf.mxu0
  %v2544 = vadd.f32 %v2443, %v2543
  %v2545 = vpop.f32.mrf.mxu0
  %v2546 = vpop.f32.mrf.mxu0
  %2547 = vdwg.mxu0
  %2548 = vmatprep.subr.bf16.mxu0 %v1695
  %2549 = vmatpush1.bf16.msra.mxu0 %v1694
  %2550 = vmatprep.subr.bf16.mxu0 %v1693
  %2551 = vmatpush1.bf16.msra.mxu0 %v1692
  %2552 = vmatprep.subr.bf16.mxu0 %v1691
  %2553 = vmatpush1.bf16.msra.mxu0 %v1690
  %2554 = vmatprep.subr.bf16.mxu0 %v1689
  %2555 = vmatpush1.bf16.msra.mxu0 %v1688
  %2556 = vmatprep.subr.bf16.mxu0 %v1687
  %2557 = vmatpush1.bf16.msra.mxu0 %v1686
  %2558 = vmatprep.subr.bf16.mxu0 %v1685
  %2559 = vmatpush1.bf16.msra.mxu0 %v1684
  %2560 = vmatprep.subr.bf16.mxu0 %v1683
  %2561 = vmatpush1.bf16.msra.mxu0 %v1682
  %2562 = vmatprep.subr.bf16.mxu0 %v1681
  %2563 = vmatpush1.bf16.msra.mxu0 %v1680
  %2564 = vmatprep.subr.bf16.mxu0 0
  %2565 = vmatpush2.bf16.msra.mxu0 0
  %2566 = vmatprep.subr.bf16.mxu0 0
  %2567 = vmatpush2.bf16.msra.mxu0 0
  %2568 = vmatprep.subr.bf16.mxu0 0
  %2569 = vmatpush2.bf16.msra.mxu0 0
  %2570 = vmatprep.subr.bf16.mxu0 0
  %2571 = vmatpush2.bf16.msra.mxu0 0
  %2572 = vmatprep.subr.bf16.mxu0 %v1703
  %2573 = vmatpush2.bf16.msra.mxu0 %v1702
  %2574 = vmatprep.subr.bf16.mxu0 %v1701
  %2575 = vmatpush2.bf16.msra.mxu0 %v1700
  %2576 = vmatprep.subr.bf16.mxu0 %v1699
  %2577 = vmatpush2.bf16.msra.mxu0 %v1698
  %2578 = vmatprep.subr.bf16.mxu0 %v1697
  %2579 = vmatpush2.bf16.msra.mxu0 %v1696
  %2580 = vmatprep.mubr.bf16.mxu0 %v1922
  %2581 = vmatmul.mubr.bf16.gmra.mxu0 %v663
  %v2582 = vpop.f32.mrf.mxu0
  %v2583 = vadd.f32 %v2482, %v2582
  %v2584 = vpop.f32.mrf.mxu0
  %v2585 = vadd.f32 %v2484, %v2584
  %v2586 = vpop.f32.mrf.mxu0
  %v2587 = vadd.f32 %v2486, %v2586
  %v2588 = vpop.f32.mrf.mxu0
  %v2589 = vadd.f32 %v2488, %v2588
  %2590 = vmatprep.mubr.bf16.mxu0 %v1925
  %2591 = vmatmul.mubr.bf16.gmra.mxu0 %v677
  %v2592 = vpop.f32.mrf.mxu0
  %v2593 = vadd.f32 %v2492, %v2592
  %v2594 = vpop.f32.mrf.mxu0
  %v2595 = vadd.f32 %v2494, %v2594
  %v2596 = vpop.f32.mrf.mxu0
  %v2597 = vadd.f32 %v2496, %v2596
  %v2598 = vpop.f32.mrf.mxu0
  %v2599 = vadd.f32 %v2498, %v2598
  %2600 = vmatprep.mubr.bf16.mxu0 %v1928
  %2601 = vmatmul.mubr.bf16.gmra.mxu0 %v691
  %v2602 = vpop.f32.mrf.mxu0
  %v2603 = vadd.f32 %v2502, %v2602
  %v2604 = vpop.f32.mrf.mxu0
  %v2605 = vadd.f32 %v2504, %v2604
  %v2606 = vpop.f32.mrf.mxu0
  %v2607 = vadd.f32 %v2506, %v2606
  %v2608 = vpop.f32.mrf.mxu0
  %v2609 = vadd.f32 %v2508, %v2608
  %2610 = vmatprep.mubr.bf16.mxu0 %v1931
  %2611 = vmatmul.mubr.bf16.gmra.mxu0 %v705
  %v2612 = vpop.f32.mrf.mxu0
  %v2613 = vadd.f32 %v2512, %v2612
  %v2614 = vpop.f32.mrf.mxu0
  %v2615 = vadd.f32 %v2514, %v2614
  %v2616 = vpop.f32.mrf.mxu0
  %v2617 = vadd.f32 %v2516, %v2616
  %v2618 = vpop.f32.mrf.mxu0
  %v2619 = vadd.f32 %v2518, %v2618
  %2620 = vmatprep.mubr.bf16.mxu0 %v1934
  %2621 = vmatmul.mubr.bf16.gmra.mxu0 %v719
  %v2622 = vpop.f32.mrf.mxu0
  %v2623 = vadd.f32 %v2522, %v2622
  %v2624 = vpop.f32.mrf.mxu0
  %v2625 = vadd.f32 %v2524, %v2624
  %v2626 = vpop.f32.mrf.mxu0
  %v2627 = vadd.f32 %v2526, %v2626
  %v2628 = vpop.f32.mrf.mxu0
  %v2629 = vadd.f32 %v2528, %v2628
  %2630 = vmatprep.mubr.bf16.mxu0 %v1937
  %2631 = vmatmul.mubr.bf16.gmra.mxu0 %v733
  %v2632 = vpop.f32.mrf.mxu0
  %v2633 = vadd.f32 %v2532, %v2632
  %v2634 = vpop.f32.mrf.mxu0
  %v2635 = vadd.f32 %v2534, %v2634
  %v2636 = vpop.f32.mrf.mxu0
  %v2637 = vadd.f32 %v2536, %v2636
  %v2638 = vpop.f32.mrf.mxu0
  %v2639 = vadd.f32 %v2538, %v2638
  %2640 = vmatprep.mubr.bf16.mxu0 %v1940
  %2641 = vmatmul.mubr.bf16.gmra.mxu0 %v747
  %v2642 = vpop.f32.mrf.mxu0
  %v2643 = vadd.f32 %v2542, %v2642
  %v2644 = vpop.f32.mrf.mxu0
  %v2645 = vadd.f32 %v2544, %v2644
  %v2646 = vpop.f32.mrf.mxu0
  %v2647 = vpop.f32.mrf.mxu0
  %2648 = vdwg.mxu0
  %v2649 = vadd.f32 %v45, %v2583
  %v2650 = vadd.f32 %v46, %v2585
  %v2651 = vadd.f32 %v47, %v2587
  %v2652 = vadd.f32 %v48, %v2589
  %v2653 = vadd.f32 %v49, %v2593
  %v2654 = vadd.f32 %v50, %v2595
  %v2655 = vadd.f32 %v51, %v2597
  %v2656 = vadd.f32 %v52, %v2599
  %v2657 = vadd.f32 %v53, %v2603
  %v2658 = vadd.f32 %v54, %v2605
  %v2659 = vadd.f32 %v55, %v2607
  %v2660 = vadd.f32 %v56, %v2609
  %v2661 = vadd.f32 %v57, %v2613
  %v2662 = vadd.f32 %v58, %v2615
  %v2663 = vadd.f32 %v59, %v2617
  %v2664 = vadd.f32 %v60, %v2619
  %v2665 = vadd.f32 %v61, %v2623
  %v2666 = vadd.f32 %v62, %v2625
  %v2667 = vadd.f32 %v63, %v2627
  %v2668 = vadd.f32 %v64, %v2629
  %v2669 = vadd.f32 %v65, %v2633
  %v2670 = vadd.f32 %v66, %v2635
  %v2671 = vadd.f32 %v67, %v2637
  %v2672 = vadd.f32 %v68, %v2639
  %v2673 = vadd.f32 %v69, %v2643
  %v2674 = vadd.f32 %v70, %v2645
  %2675 = vst [vmem:[#allocation2] sm:$0xff] %v2649
  %2676 = vst [vmem:[#allocation2 + $0x8] sm:$0xff] %v2650
  %2677 = vst [vmem:[#allocation2 + $0x10] sm:$0xff] %v2651
  %2678 = vst [vmem:[#allocation2 + $0x18] sm:$0xff] %v2652
  %2679 = vst [vmem:[#allocation2 + $0x20] sm:$0xff] %v2653
  %2680 = vst [vmem:[#allocation2 + $0x28] sm:$0xff] %v2654
  %2681 = vst [vmem:[#allocation2 + $0x30] sm:$0xff] %v2655
  %2682 = vst [vmem:[#allocation2 + $0x38] sm:$0xff] %v2656
  %2683 = vst [vmem:[#allocation2 + $0x40] sm:$0xff] %v2657
  %2684 = vst [vmem:[#allocation2 + $0x48] sm:$0xff] %v2658
  %2685 = vst [vmem:[#allocation2 + $0x50] sm:$0xff] %v2659
  %2686 = vst [vmem:[#allocation2 + $0x58] sm:$0xff] %v2660
  %2687 = vst [vmem:[#allocation2 + $0x60] sm:$0xff] %v2661
  %2688 = vst [vmem:[#allocation2 + $0x68] sm:$0xff] %v2662
  %2689 = vst [vmem:[#allocation2 + $0x70] sm:$0xff] %v2663
  %2690 = vst [vmem:[#allocation2 + $0x78] sm:$0xff] %v2664
  %2691 = vst [vmem:[#allocation2 + $0x80] sm:$0xff] %v2665
  %2692 = vst [vmem:[#allocation2 + $0x88] sm:$0xff] %v2666
  %2693 = vst [vmem:[#allocation2 + $0x90] sm:$0xff] %v2667
  %2694 = vst [vmem:[#allocation2 + $0x98] sm:$0xff] %v2668
  %2695 = vst [vmem:[#allocation2 + $0xa0] sm:$0xff] %v2669
  %2696 = vst [vmem:[#allocation2 + $0xa8] sm:$0xff] %v2670
  %2697 = vst [vmem:[#allocation2 + $0xb0] sm:$0xff] %v2671
  %2698 = vst [vmem:[#allocation2 + $0xb8] sm:$0xff] %v2672
  %2699 = vst [vmem:[#allocation2 + $0xc0] sm:$0xff] %v2673
  %2700 = vst [vmem:[#allocation2 + $0xc8] sm:$0xff] %v2674
  // Predicated region
  $region18: #{inception_d_smaller.7} parent=0 // pred_check
    %p2701 = pneg %p15
  $region19: #{inception_d_smaller.7} parent=0 // pred_check_branch
    %2703 = sbr.rel (%p2701) target = $region21
  $region20: #{inception_d_smaller.7} parent=0 // pred_region
    %v2704 = vld [vmem:[#allocation2] sm:$0xff]
    %v2705 = vld [vmem:[#allocation2 + $0x8] sm:$0xff]
    %v2706 = vld [vmem:[#allocation2 + $0x10] sm:$0xff]
    %v2707 = vld [vmem:[#allocation2 + $0x18] sm:$0xff]
    %v2708 = vld [vmem:[#allocation2 + $0x20] sm:$0xff]
    %v2709 = vld [vmem:[#allocation2 + $0x28] sm:$0xff]
    %v2710 = vld [vmem:[#allocation2 + $0x30] sm:$0xff]
    %v2711 = vld [vmem:[#allocation2 + $0x38] sm:$0xff]
    %v2712 = vld [vmem:[#allocation2 + $0x40] sm:$0xff]
    %v2713 = vld [vmem:[#allocation2 + $0x48] sm:$0xff]
    %v2714 = vld [vmem:[#allocation2 + $0x50] sm:$0xff]
    %v2715 = vld [vmem:[#allocation2 + $0x58] sm:$0xff]
    %v2716 = vld [vmem:[#allocation2 + $0x60] sm:$0xff]
    %v2717 = vld [vmem:[#allocation2 + $0x68] sm:$0xff]
    %v2718 = vld [vmem:[#allocation2 + $0x70] sm:$0xff]
    %v2719 = vld [vmem:[#allocation2 + $0x78] sm:$0xff]
    %v2720 = vld [vmem:[#allocation2 + $0x80] sm:$0xff]
    %v2721 = vld [vmem:[#allocation2 + $0x88] sm:$0xff]
    %v2722 = vld [vmem:[#allocation2 + $0x90] sm:$0xff]
    %v2723 = vld [vmem:[#allocation2 + $0x98] sm:$0xff]
    %v2724 = vld [vmem:[#allocation2 + $0xa0] sm:$0xff]
    %v2725 = vld [vmem:[#allocation2 + $0xa8] sm:$0xff]
    %v2726 = vld [vmem:[#allocation2 + $0xb0] sm:$0xff]
    %v2727 = vld [vmem:[#allocation2 + $0xb8] sm:$0xff]
    %v2728 = vld [vmem:[#allocation2 + $0xc0] sm:$0xff]
    %v2729 = vld [vmem:[#allocation2 + $0xc8] sm:$0xff]
    %v2730 = vld [vmem:[%s2] sm:$0x3]
    %v2732 = vlaneseq
    %v2733 = vshrl.u32 %v2732, 7
    %v2734 = vsub.s32 0, %v2733
    %v2735 = vrot.slane %v2730, %v2734
    %v2736 = vlaneseq
    %v2737 = vshrl.u32 %v2736, 7
    %v2738 = vsub.s32 1, %v2737
    %v2739 = vrot.slane %v2730, %v2738
    %v2742 = vadd.f32 %v2704, %v2735
    %v2743 = vadd.f32 %v2705, %v2739
    %v2744 = vadd.f32 %v2706, %v2735
    %v2745 = vadd.f32 %v2707, %v2739
    %v2746 = vadd.f32 %v2708, %v2735
    %v2747 = vadd.f32 %v2709, %v2739
    %v2748 = vadd.f32 %v2710, %v2735
    %v2749 = vadd.f32 %v2711, %v2739
    %v2750 = vadd.f32 %v2712, %v2735
    %v2751 = vadd.f32 %v2713, %v2739
    %v2752 = vadd.f32 %v2714, %v2735
    %v2753 = vadd.f32 %v2715, %v2739
    %v2754 = vadd.f32 %v2716, %v2735
    %v2755 = vadd.f32 %v2717, %v2739
    %v2756 = vadd.f32 %v2718, %v2735
    %v2757 = vadd.f32 %v2719, %v2739
    %v2758 = vadd.f32 %v2720, %v2735
    %v2759 = vadd.f32 %v2721, %v2739
    %v2760 = vadd.f32 %v2722, %v2735
    %v2761 = vadd.f32 %v2723, %v2739
    %v2762 = vadd.f32 %v2724, %v2735
    %v2763 = vadd.f32 %v2725, %v2739
    %v2764 = vadd.f32 %v2726, %v2735
    %v2765 = vadd.f32 %v2727, %v2739
    %v2766 = vadd.f32 %v2728, %v2735
    %v2767 = vadd.f32 %v2729, %v2739
    %v2768 = vmax.f32 %v2742, 0.0
    %v2769 = vmax.f32 %v2743, 0.0
    %v2770 = vmax.f32 %v2744, 0.0
    %v2771 = vmax.f32 %v2745, 0.0
    %v2772 = vmax.f32 %v2746, 0.0
    %v2773 = vmax.f32 %v2747, 0.0
    %v2774 = vmax.f32 %v2748, 0.0
    %v2775 = vmax.f32 %v2749, 0.0
    %v2776 = vmax.f32 %v2750, 0.0
    %v2777 = vmax.f32 %v2751, 0.0
    %v2778 = vmax.f32 %v2752, 0.0
    %v2779 = vmax.f32 %v2753, 0.0
    %v2780 = vmax.f32 %v2754, 0.0
    %v2781 = vmax.f32 %v2755, 0.0
    %v2782 = vmax.f32 %v2756, 0.0
    %v2783 = vmax.f32 %v2757, 0.0
    %v2784 = vmax.f32 %v2758, 0.0
    %v2785 = vmax.f32 %v2759, 0.0
    %v2786 = vmax.f32 %v2760, 0.0
    %v2787 = vmax.f32 %v2761, 0.0
    %v2788 = vmax.f32 %v2762, 0.0
    %v2789 = vmax.f32 %v2763, 0.0
    %v2790 = vmax.f32 %v2764, 0.0
    %v2791 = vmax.f32 %v2765, 0.0
    %v2792 = vmax.f32 %v2766, 0.0
    %v2793 = vmax.f32 %v2767, 0.0
    %2794 = vst [vmem:[%s3] sm:$0xff] %v2768
    %2795 = vst [vmem:[%s3 + $0x8] sm:$0xff] %v2769
    %2796 = vst [vmem:[%s3 + $0x10] sm:$0xff] %v2770
    %2797 = vst [vmem:[%s3 + $0x18] sm:$0xff] %v2771
    %2798 = vst [vmem:[%s3 + $0x20] sm:$0xff] %v2772
    %2799 = vst [vmem:[%s3 + $0x28] sm:$0xff] %v2773
    %2800 = vst [vmem:[%s3 + $0x30] sm:$0xff] %v2774
    %2801 = vst [vmem:[%s3 + $0x38] sm:$0xff] %v2775
    %2802 = vst [vmem:[%s3 + $0x40] sm:$0xff] %v2776
    %2803 = vst [vmem:[%s3 + $0x48] sm:$0xff] %v2777
    %2804 = vst [vmem:[%s3 + $0x50] sm:$0xff] %v2778
    %2805 = vst [vmem:[%s3 + $0x58] sm:$0xff] %v2779
    %2806 = vst [vmem:[%s3 + $0x60] sm:$0xff] %v2780
    %2807 = vst [vmem:[%s3 + $0x68] sm:$0xff] %v2781
    %2808 = vst [vmem:[%s3 + $0x70] sm:$0xff] %v2782
    %2809 = vst [vmem:[%s3 + $0x78] sm:$0xff] %v2783
    %2810 = vst [vmem:[%s3 + $0x80] sm:$0xff] %v2784
    %2811 = vst [vmem:[%s3 + $0x88] sm:$0xff] %v2785
    %2812 = vst [vmem:[%s3 + $0x90] sm:$0xff] %v2786
    %2813 = vst [vmem:[%s3 + $0x98] sm:$0xff] %v2787
    %2814 = vst [vmem:[%s3 + $0xa0] sm:$0xff] %v2788
    %2815 = vst [vmem:[%s3 + $0xa8] sm:$0xff] %v2789
    %2816 = vst [vmem:[%s3 + $0xb0] sm:$0xff] %v2790
    %2817 = vst [vmem:[%s3 + $0xb8] sm:$0xff] %v2791
    %2818 = vst [vmem:[%s3 + $0xc0] sm:$0xff] %v2792
    %2819 = vst [vmem:[%s3 + $0xc8] sm:$0xff] %v2793
  $region21: #{inception_d_smaller.7} parent=0 // pred_fallthru
    _
  // Predicated region
  $region22: #{inception_d_smaller.7} parent=0 // pred_check
    _
  $region23: #{inception_d_smaller.7} parent=0 // pred_check_branch
    %2821 = sbr.rel (0) target = $region25
  $region24: #{inception_d_smaller.7} parent=0 // pred_region
    _
  $region25: #{inception_d_smaller.7} parent=0 // pred_fallthru
    _
  // Predicated region
  $region26: #{inception_d_smaller.7} parent=0 // pred_check
    _
  $region27: #{inception_d_smaller.7} parent=0 // pred_check_branch
    %2823 = sbr.rel (0) target = $region29
  $region28: #{inception_d_smaller.7} parent=0 // pred_region
    _
  $region29: #{inception_d_smaller.7} parent=0 // pred_fallthru
    _

// kernel: inception_d_smaller.8
$region0: #{inception_d_smaller.8}
  #allocation0 [shape = 'u32[]', space=smem, size = 0x4, offset = 0x4, fixed_abs, tag = 'smem constant byte address 0x4 - core index']
  #allocation1 [shape = 'u32[144,128]{1,0:T(1,128)}', space=vmem, size = 0x12000, scoped, tag = 'internal scratch']
  #allocation2 [shape = 'f32[256,256]{1,0:T(8,128)}', space=vmem, size = 0x40000, scoped, tag = 'scratch operand']
  %s0 = inlined_call_operand.vmem [shape: bf16[512,1344], index: 0, kind: input, shape index: {}]
  %s1 = inlined_call_operand.vmem [shape: bf16[1344,256], index: 1, kind: input, shape index: {}]
  %s2 = inlined_call_operand.vmem [shape: f32[1,256], index: 2, kind: input, shape index: {}]
  %s3 = inlined_call_operand.vmem [shape: f32[512,256], index: 3, kind: output, shape index: {}]
  %s4 = sld [smem:[#allocation0]]
  $region53: #{inception_d_smaller.8} parent=0
    _
  %s6 = ssub.s32 1, %s4
  %s7 = scalar_select 0, %s6, %s4
  loop: start=0, step=1, limit=4
  $region2: #{inception_d_smaller.8} parent=0 // loop_pre_header
    _
  $region3: #{inception_d_smaller.8} parent=0 // loop_header
    %s9 = sphi 0, %s13
    %p10 = scmp.ge.s32.totalorder %s9, 4
    %s16 = sphi 0, %s28
    %s17 = sphi 0, %s24
    %s18 = sphi 0, %s16
    %s19 = sphi 0, %s17
    %s20 = sphi 0, %s18
    %s21 = sphi 0, %s19
    %s33 = sphi 0, %s35
    %s36 = sphi 0, %s33
    %s37 = sphi 0, %s36
    %s53 = sphi 0, %s37
    %s59 = sphi 0, %s61
    %s62 = sphi 0, %s59
    %s63 = sphi 0, %s62
    %s79 = sphi 0, %s63
    %s83 = sphi 0, %s83
    %s85 = sphi 0, %s83
    %s86 = sphi 0, %s85
    %s100 = sphi 0, %s86
    %s106 = sphi 0, %s108
    %s109 = sphi 0, %s106
    %s110 = sphi 0, %s109
    %s126 = sphi 0, %s110
  $region4: #{inception_d_smaller.8} parent=0 // loop_header_branch
    %12 = sbr.rel (%p10) target = $region8
  $region5: #{inception_d_smaller.8} parent=0 // loop_body
    %s14 = ssub.s32 %s9, 1
    %s15 = ssub.s32 %s9, 2
    %s22 = sadd.s32 1, %s17
    %p23 = scmp.ge.s32.totalorder %s22, 1
    %s24 = scalar_select %p23, 0, %s22
    %s25 = sadd.s32 1, %s16
    %s26 = scalar_select %p23, %s25, %s16
    %p27 = scmp.ge.s32.totalorder %s26, 2
    %s28 = scalar_select %p27, 0, %s26
    %s29 = ssub.s32 %s16, %s28
    %s30 = ssub.s32 %s17, %s24
    %s31 = sor.u32 %s29, %s30
    %p32 = scmp.eq.s32.totalorder %s31, 0
    %s34 = sadd.s32 %s33, 1
    %s35 = scalar_select %p32, %s33, %s34
    %p38 = pneg %p32
    %p39 = scmp.eq.s32.totalorder %s9, 1
    %p40 = por %p38, %p39
    %p41 = scmp.ne.s32.totalorder %s33, %s36
    %p42 = scmp.eq.s32.totalorder %s9, 0
    %p43 = por %p41, %p42
    %p44 = scmp.ne.s32.totalorder %s33, %s36
    %p45 = scmp.eq.s32.totalorder %s14, 1
    %p46 = por %p44, %p45
    %p47 = scmp.ne.s32.totalorder %s36, %s37
    %p48 = scmp.eq.s32.totalorder %s14, 0
    %p49 = por %p47, %p48
    %p50 = scmp.ne.s32.totalorder %s36, %s37
    %p51 = scmp.eq.s32.totalorder %s15, 1
    %p52 = por %p50, %p51
    %p54 = scmp.ne.s32.totalorder %s37, %s53
    %p55 = scmp.eq.s32.totalorder %s15, 0
    %p56 = por %p54, %p55
    %s57 = ssub.s32 %s17, %s24
    %p58 = scmp.eq.s32.totalorder %s57, 0
    %s60 = sadd.s32 %s59, 1
    %s61 = scalar_select %p58, %s59, %s60
    %p64 = pneg %p58
    %p65 = scmp.eq.s32.totalorder %s9, 1
    %p66 = por %p64, %p65
    %p67 = scmp.ne.s32.totalorder %s59, %s62
    %p68 = scmp.eq.s32.totalorder %s9, 0
    %p69 = por %p67, %p68
    %p70 = scmp.ne.s32.totalorder %s59, %s62
    %p71 = scmp.eq.s32.totalorder %s14, 1
    %p72 = por %p70, %p71
    %p73 = scmp.ne.s32.totalorder %s62, %s63
    %p74 = scmp.eq.s32.totalorder %s14, 0
    %p75 = por %p73, %p74
    %p76 = scmp.ne.s32.totalorder %s62, %s63
    %p77 = scmp.eq.s32.totalorder %s15, 1
    %p78 = por %p76, %p77
    %p80 = scmp.ne.s32.totalorder %s63, %s79
    %p81 = scmp.eq.s32.totalorder %s15, 0
    %p82 = por %p80, %p81
    %s84 = sadd.s32 %s83, 1
    %p87 = scmp.eq.s32.totalorder %s9, 1
    %p88 = scmp.ne.s32.totalorder %s83, %s85
    %p89 = scmp.eq.s32.totalorder %s9, 0
    %p90 = por %p88, %p89
    %p91 = scmp.ne.s32.totalorder %s83, %s85
    %p92 = scmp.eq.s32.totalorder %s14, 1
    %p93 = por %p91, %p92
    %p94 = scmp.ne.s32.totalorder %s85, %s86
    %p95 = scmp.eq.s32.totalorder %s14, 0
    %p96 = por %p94, %p95
    %p97 = scmp.ne.s32.totalorder %s85, %s86
    %p98 = scmp.eq.s32.totalorder %s15, 1
    %p99 = por %p97, %p98
    %p101 = scmp.ne.s32.totalorder %s86, %s100
    %p102 = scmp.eq.s32.totalorder %s15, 0
    %p103 = por %p101, %p102
    %s104 = ssub.s32 %s16, %s28
    %p105 = scmp.eq.s32.totalorder %s104, 0
    %s107 = sadd.s32 %s106, 1
    %s108 = scalar_select %p105, %s106, %s107
    %p111 = pneg %p105
    %p112 = scmp.eq.s32.totalorder %s9, 1
    %p113 = por %p111, %p112
    %p114 = scmp.ne.s32.totalorder %s106, %s109
    %p115 = scmp.eq.s32.totalorder %s9, 0
    %p116 = por %p114, %p115
    %p117 = scmp.ne.s32.totalorder %s106, %s109
    %p118 = scmp.eq.s32.totalorder %s14, 1
    %p119 = por %p117, %p118
    %p120 = scmp.ne.s32.totalorder %s109, %s110
    %p121 = scmp.eq.s32.totalorder %s14, 0
    %p122 = por %p120, %p121
    %p123 = scmp.ne.s32.totalorder %s109, %s110
    %p124 = scmp.eq.s32.totalorder %s15, 1
    %p125 = por %p123, %p124
    %p127 = scmp.ne.s32.totalorder %s110, %s126
    %p128 = scmp.eq.s32.totalorder %s15, 0
    %p129 = por %p127, %p128
    %p130 = scmp.le.s32.totalorder 1, %s9
    %p131 = scmp.lt.s32.totalorder %s9, 3
    %p132 = pnand %p130, %p131
    %p133 = pneg %p132
    // Predicated region
    $region9: #{inception_d_smaller.8} parent=5 // pred_check
      _
    $region10: #{inception_d_smaller.8} parent=5 // pred_check_branch
      %135 = sbr.rel (%p132) target = $region12
    $region11: #{inception_d_smaller.8} parent=5 // pred_region
      %s136 = ssub.s32 %s9, 1
      // Predicated region
      $region13: #{inception_d_smaller.8} parent=11 // pred_check
        %p137 = pneg %p75
      $region14: #{inception_d_smaller.8} parent=11 // pred_check_branch
        %139 = sbr.rel (%p137) target = $region16
      $region15: #{inception_d_smaller.8} parent=11 // pred_region
        %s140 = smul.u32 168, %s19
        %p141 = scmp.lt.s32.totalorder %s140, 167
        %s142 = scalar_select %p141, %s140, 167
        %s143 = smul.addr %s142, 2
        %s144 = smul.addr %s143, 4
        %s145 = scalar_lea.vmem %s1, %s144
        %s146 = smul.u32 168, %s19
      $region16: #{inception_d_smaller.8} parent=11 // pred_fallthru
        _
      // Predicated region
      $region17: #{inception_d_smaller.8} parent=11 // pred_check
        %p147 = pneg %p96
      $region18: #{inception_d_smaller.8} parent=11 // pred_check_branch
        %149 = sbr.rel (%p147) target = $region20
      $region19: #{inception_d_smaller.8} parent=11 // pred_region
        _
      $region20: #{inception_d_smaller.8} parent=11 // pred_fallthru
        _
    $region12: #{inception_d_smaller.8} parent=5 // pred_fallthru
      _
    %p150 = scmp.lt.s32.totalorder %s9, 2
    // Predicated region
    $region21: #{inception_d_smaller.8} parent=5 // pred_check
      %p151 = pneg %p150
    $region22: #{inception_d_smaller.8} parent=5 // pred_check_branch
      %153 = sbr.rel (%p151) target = $region24
    $region23: #{inception_d_smaller.8} parent=5 // pred_region
      // Predicated region
      $region25: #{inception_d_smaller.8} parent=23 // pred_check
        %p154 = pneg %p43
      $region26: #{inception_d_smaller.8} parent=23 // pred_check_branch
        %156 = sbr.rel (%p154) target = $region28
      $region27: #{inception_d_smaller.8} parent=23 // pred_region
        %s157 = smul.u32 32, %s16
        %s158 = smul.u32 11, %s17
        %p159 = scmp.lt.s32.totalorder %s157, 63
        %s160 = scalar_select %p159, %s157, 63
        %p161 = scmp.lt.s32.totalorder %s158, 10
        %s162 = scalar_select %p161, %s158, 10
        %s163 = smul.addr %s160, 11
        %s164 = sadd.s32 %s162, %s163
        %s165 = smul.addr %s164, 4
        %s166 = scalar_lea.vmem %s0, %s165
        %s167 = smul.u32 32, %s16
        %s168 = smul.u32 11, %s17
      $region28: #{inception_d_smaller.8} parent=23 // pred_fallthru
        _
    $region24: #{inception_d_smaller.8} parent=5 // pred_fallthru
      _
    %p169 = scmp.le.s32.totalorder 1, %s9
    %p170 = scmp.lt.s32.totalorder %s9, 3
    %p171 = pnand %p169, %p170
    %p172 = pneg %p171
    // Predicated region
    $region29: #{inception_d_smaller.8} parent=5 // pred_check
      _
    $region30: #{inception_d_smaller.8} parent=5 // pred_check_branch
      %174 = sbr.rel (%p171) target = $region32
    $region31: #{inception_d_smaller.8} parent=5 // pred_region
      %s175 = ssub.s32 %s9, 1
      %s176 = smul.u32 32, %s18
      %s177 = smul.u32 11, %s19
      %p178 = scmp.lt.s32.totalorder %s176, 63
      %s179 = scalar_select %p178, %s176, 63
      %p180 = scmp.lt.s32.totalorder %s177, 10
      %s181 = scalar_select %p180, %s177, 10
      %s182 = smul.addr %s179, 11
      %s183 = sadd.s32 %s181, %s182
      %s184 = smul.addr %s183, 4
      %s185 = scalar_lea.vmem %s0, %s184
      %p186 = pneg %p49
      %p187 = pneg %p46
      %s188 = smul.u32 168, %s19
      %p189 = scmp.lt.s32.totalorder %s188, 167
      %s190 = scalar_select %p189, %s188, 167
      %s191 = smul.addr %s190, 2
      %s192 = smul.addr %s191, 4
      %s193 = scalar_lea.vmem %s1, %s192
      %p194 = pneg %p75
      %p195 = pneg %p72
      %p196 = pneg %p96
      %p197 = pneg %p93
      %p198 = pneg %p122
      %p199 = pneg %p119
      %s200 = smul.u32 32, %s18
      %p201 = scmp.lt.s32.totalorder %s200, 63
      %s202 = scalar_select %p201, %s200, 63
      %s203 = smul.addr %s202, 2
      %s204 = smul.addr %s203, 8
      %s205 = scalar_lea.vmem %s3, %s204
      %s206 = smul.u32 32, %s18
      %s207 = smul.u32 11, %s19
      %p208 = scmp.lt.s32.totalorder %s206, 63
      %s209 = scalar_select %p208, %s206, 63
      %p210 = scmp.lt.s32.totalorder %s207, 10
      %s211 = scalar_select %p210, %s207, 10
      %s212 = smul.addr %s209, 11
      %s213 = sadd.s32 %s211, %s212
      %s214 = smul.addr %s213, 4
      %s215 = scalar_lea.vmem %s0, %s214
      %s216 = smul.u32 32, %s18
      %s217 = smul.u32 11, %s19
      %s218 = smul.u32 168, %s19
      %p219 = scmp.lt.s32.totalorder %s218, 167
      %s220 = scalar_select %p219, %s218, 167
      %s221 = smul.addr %s220, 2
      %s222 = smul.addr %s221, 4
      %s223 = scalar_lea.vmem %s1, %s222
      %s224 = smul.u32 168, %s19
      %s225 = smul.u32 32, %s18
      %p226 = scmp.lt.s32.totalorder %s225, 63
      %s227 = scalar_select %p226, %s225, 63
      %s228 = smul.addr %s227, 2
      %s229 = smul.addr %s228, 8
      %s230 = scalar_lea.vmem %s3, %s229
      %s231 = smul.u32 32, %s18
      %p233 = scmp.eq.s32.totalorder %s19, 0
      // Predicated region
      $region33: #{inception_d_smaller.8} parent=31 // pred_check
        %p234 = pneg %p233
      $region34: #{inception_d_smaller.8} parent=31 // pred_check_branch
        %236 = sbr.rel (%p234) target = $region36
      $region35: #{inception_d_smaller.8} parent=31 // pred_region
        %237 = vst [vmem:[#allocation2] sm:$0xff] 0.0
        %238 = vst [vmem:[#allocation2 + $0x8] sm:$0xff] 0.0
        %239 = vst [vmem:[#allocation2 + $0x10] sm:$0xff] 0.0
        %240 = vst [vmem:[#allocation2 + $0x18] sm:$0xff] 0.0
        %241 = vst [vmem:[#allocation2 + $0x20] sm:$0xff] 0.0
        %242 = vst [vmem:[#allocation2 + $0x28] sm:$0xff] 0.0
        %243 = vst [vmem:[#allocation2 + $0x30] sm:$0xff] 0.0
        %244 = vst [vmem:[#allocation2 + $0x38] sm:$0xff] 0.0
        %245 = vst [vmem:[#allocation2 + $0x40] sm:$0xff] 0.0
        %246 = vst [vmem:[#allocation2 + $0x48] sm:$0xff] 0.0
        %247 = vst [vmem:[#allocation2 + $0x50] sm:$0xff] 0.0
        %248 = vst [vmem:[#allocation2 + $0x58] sm:$0xff] 0.0
        %249 = vst [vmem:[#allocation2 + $0x60] sm:$0xff] 0.0
        %250 = vst [vmem:[#allocation2 + $0x68] sm:$0xff] 0.0
        %251 = vst [vmem:[#allocation2 + $0x70] sm:$0xff] 0.0
        %252 = vst [vmem:[#allocation2 + $0x78] sm:$0xff] 0.0
        %253 = vst [vmem:[#allocation2 + $0x80] sm:$0xff] 0.0
        %254 = vst [vmem:[#allocation2 + $0x88] sm:$0xff] 0.0
        %255 = vst [vmem:[#allocation2 + $0x90] sm:$0xff] 0.0
        %256 = vst [vmem:[#allocation2 + $0x98] sm:$0xff] 0.0
        %257 = vst [vmem:[#allocation2 + $0xa0] sm:$0xff] 0.0
        %258 = vst [vmem:[#allocation2 + $0xa8] sm:$0xff] 0.0
        %259 = vst [vmem:[#allocation2 + $0xb0] sm:$0xff] 0.0
        %260 = vst [vmem:[#allocation2 + $0xb8] sm:$0xff] 0.0
        %261 = vst [vmem:[#allocation2 + $0xc0] sm:$0xff] 0.0
        %262 = vst [vmem:[#allocation2 + $0xc8] sm:$0xff] 0.0
        %263 = vst [vmem:[#allocation2 + $0xd0] sm:$0xff] 0.0
        %264 = vst [vmem:[#allocation2 + $0xd8] sm:$0xff] 0.0
        %265 = vst [vmem:[#allocation2 + $0xe0] sm:$0xff] 0.0
        %266 = vst [vmem:[#allocation2 + $0xe8] sm:$0xff] 0.0
        %267 = vst [vmem:[#allocation2 + $0xf0] sm:$0xff] 0.0
        %268 = vst [vmem:[#allocation2 + $0xf8] sm:$0xff] 0.0
        %269 = vst [vmem:[#allocation2 + $0x100] sm:$0xff] 0.0
        %270 = vst [vmem:[#allocation2 + $0x108] sm:$0xff] 0.0
        %271 = vst [vmem:[#allocation2 + $0x110] sm:$0xff] 0.0
        %272 = vst [vmem:[#allocation2 + $0x118] sm:$0xff] 0.0
        %273 = vst [vmem:[#allocation2 + $0x120] sm:$0xff] 0.0
        %274 = vst [vmem:[#allocation2 + $0x128] sm:$0xff] 0.0
        %275 = vst [vmem:[#allocation2 + $0x130] sm:$0xff] 0.0
        %276 = vst [vmem:[#allocation2 + $0x138] sm:$0xff] 0.0
        %277 = vst [vmem:[#allocation2 + $0x140] sm:$0xff] 0.0
        %278 = vst [vmem:[#allocation2 + $0x148] sm:$0xff] 0.0
        %279 = vst [vmem:[#allocation2 + $0x150] sm:$0xff] 0.0
        %280 = vst [vmem:[#allocation2 + $0x158] sm:$0xff] 0.0
        %281 = vst [vmem:[#allocation2 + $0x160] sm:$0xff] 0.0
        %282 = vst [vmem:[#allocation2 + $0x168] sm:$0xff] 0.0
        %283 = vst [vmem:[#allocation2 + $0x170] sm:$0xff] 0.0
        %284 = vst [vmem:[#allocation2 + $0x178] sm:$0xff] 0.0
        %285 = vst [vmem:[#allocation2 + $0x180] sm:$0xff] 0.0
        %286 = vst [vmem:[#allocation2 + $0x188] sm:$0xff] 0.0
        %287 = vst [vmem:[#allocation2 + $0x190] sm:$0xff] 0.0
        %288 = vst [vmem:[#allocation2 + $0x198] sm:$0xff] 0.0
        %289 = vst [vmem:[#allocation2 + $0x1a0] sm:$0xff] 0.0
        %290 = vst [vmem:[#allocation2 + $0x1a8] sm:$0xff] 0.0
        %291 = vst [vmem:[#allocation2 + $0x1b0] sm:$0xff] 0.0
        %292 = vst [vmem:[#allocation2 + $0x1b8] sm:$0xff] 0.0
        %293 = vst [vmem:[#allocation2 + $0x1c0] sm:$0xff] 0.0
        %294 = vst [vmem:[#allocation2 + $0x1c8] sm:$0xff] 0.0
        %295 = vst [vmem:[#allocation2 + $0x1d0] sm:$0xff] 0.0
        %296 = vst [vmem:[#allocation2 + $0x1d8] sm:$0xff] 0.0
        %297 = vst [vmem:[#allocation2 + $0x1e0] sm:$0xff] 0.0
        %298 = vst [vmem:[#allocation2 + $0x1e8] sm:$0xff] 0.0
        %299 = vst [vmem:[#allocation2 + $0x1f0] sm:$0xff] 0.0
        %300 = vst [vmem:[#allocation2 + $0x1f8] sm:$0xff] 0.0
      $region36: #{inception_d_smaller.8} parent=31 // pred_fallthru
        _
      %v301 = vld [vmem:[#allocation2] sm:$0xff]
      %v302 = vld [vmem:[#allocation2 + $0x8] sm:$0xff]
      %v303 = vld [vmem:[#allocation2 + $0x10] sm:$0xff]
      %v304 = vld [vmem:[#allocation2 + $0x18] sm:$0xff]
      %v305 = vld [vmem:[#allocation2 + $0x20] sm:$0xff]
      %v306 = vld [vmem:[#allocation2 + $0x28] sm:$0xff]
      %v307 = vld [vmem:[#allocation2 + $0x30] sm:$0xff]
      %v308 = vld [vmem:[#allocation2 + $0x38] sm:$0xff]
      %v309 = vld [vmem:[#allocation2 + $0x40] sm:$0xff]
      %v310 = vld [vmem:[#allocation2 + $0x48] sm:$0xff]
      %v311 = vld [vmem:[#allocation2 + $0x50] sm:$0xff]
      %v312 = vld [vmem:[#allocation2 + $0x58] sm:$0xff]
      %v313 = vld [vmem:[#allocation2 + $0x60] sm:$0xff]
      %v314 = vld [vmem:[#allocation2 + $0x68] sm:$0xff]
      %v315 = vld [vmem:[#allocation2 + $0x70] sm:$0xff]
      %v316 = vld [vmem:[#allocation2 + $0x78] sm:$0xff]
      %v317 = vld [vmem:[#allocation2 + $0x80] sm:$0xff]
      %v318 = vld [vmem:[#allocation2 + $0x88] sm:$0xff]
      %v319 = vld [vmem:[#allocation2 + $0x90] sm:$0xff]
      %v320 = vld [vmem:[#allocation2 + $0x98] sm:$0xff]
      %v321 = vld [vmem:[#allocation2 + $0xa0] sm:$0xff]
      %v322 = vld [vmem:[#allocation2 + $0xa8] sm:$0xff]
      %v323 = vld [vmem:[#allocation2 + $0xb0] sm:$0xff]
      %v324 = vld [vmem:[#allocation2 + $0xb8] sm:$0xff]
      %v325 = vld [vmem:[#allocation2 + $0xc0] sm:$0xff]
      %v326 = vld [vmem:[#allocation2 + $0xc8] sm:$0xff]
      %v327 = vld [vmem:[#allocation2 + $0xd0] sm:$0xff]
      %v328 = vld [vmem:[#allocation2 + $0xd8] sm:$0xff]
      %v329 = vld [vmem:[#allocation2 + $0xe0] sm:$0xff]
      %v330 = vld [vmem:[#allocation2 + $0xe8] sm:$0xff]
      %v331 = vld [vmem:[#allocation2 + $0xf0] sm:$0xff]
      %v332 = vld [vmem:[#allocation2 + $0xf8] sm:$0xff]
      %v333 = vld [vmem:[#allocation2 + $0x100] sm:$0xff]
      %v334 = vld [vmem:[#allocation2 + $0x108] sm:$0xff]
      %v335 = vld [vmem:[#allocation2 + $0x110] sm:$0xff]
      %v336 = vld [vmem:[#allocation2 + $0x118] sm:$0xff]
      %v337 = vld [vmem:[#allocation2 + $0x120] sm:$0xff]
      %v338 = vld [vmem:[#allocation2 + $0x128] sm:$0xff]
      %v339 = vld [vmem:[#allocation2 + $0x130] sm:$0xff]
      %v340 = vld [vmem:[#allocation2 + $0x138] sm:$0xff]
      %v341 = vld [vmem:[#allocation2 + $0x140] sm:$0xff]
      %v342 = vld [vmem:[#allocation2 + $0x148] sm:$0xff]
      %v343 = vld [vmem:[#allocation2 + $0x150] sm:$0xff]
      %v344 = vld [vmem:[#allocation2 + $0x158] sm:$0xff]
      %v345 = vld [vmem:[#allocation2 + $0x160] sm:$0xff]
      %v346 = vld [vmem:[#allocation2 + $0x168] sm:$0xff]
      %v347 = vld [vmem:[#allocation2 + $0x170] sm:$0xff]
      %v348 = vld [vmem:[#allocation2 + $0x178] sm:$0xff]
      %v349 = vld [vmem:[#allocation2 + $0x180] sm:$0xff]
      %v350 = vld [vmem:[#allocation2 + $0x188] sm:$0xff]
      %v351 = vld [vmem:[#allocation2 + $0x190] sm:$0xff]
      %v352 = vld [vmem:[#allocation2 + $0x198] sm:$0xff]
      %v353 = vld [vmem:[#allocation2 + $0x1a0] sm:$0xff]
      %v354 = vld [vmem:[#allocation2 + $0x1a8] sm:$0xff]
      %v355 = vld [vmem:[#allocation2 + $0x1b0] sm:$0xff]
      %v356 = vld [vmem:[#allocation2 + $0x1b8] sm:$0xff]
      %v357 = vld [vmem:[#allocation2 + $0x1c0] sm:$0xff]
      %v358 = vld [vmem:[#allocation2 + $0x1c8] sm:$0xff]
      %v359 = vld [vmem:[#allocation2 + $0x1d0] sm:$0xff]
      %v360 = vld [vmem:[#allocation2 + $0x1d8] sm:$0xff]
      %v361 = vld [vmem:[#allocation2 + $0x1e0] sm:$0xff]
      %v362 = vld [vmem:[#allocation2 + $0x1e8] sm:$0xff]
      %v363 = vld [vmem:[#allocation2 + $0x1f0] sm:$0xff]
      %v364 = vld [vmem:[#allocation2 + $0x1f8] sm:$0xff]
      %v365 = vld [vmem:[%s215] sm:$0xff]
      %v366 = vld [vmem:[%s215 + $0x8] sm:$0xff]
      %v367 = vld [vmem:[%s215 + $0x10] sm:$0xff]
      %v368 = vld [vmem:[%s215 + $0x18] sm:$0xff]
      %v369 = vld [vmem:[%s215 + $0x20] sm:$0xff]
      %v370 = vld [vmem:[%s215 + $0x28] sm:$0xf]
      %v371 = vld [vmem:[%s215 + $0x2c] sm:$0xff]
      %v372 = vld [vmem:[%s215 + $0x34] sm:$0xff]
      %v373 = vld [vmem:[%s215 + $0x3c] sm:$0xff]
      %v374 = vld [vmem:[%s215 + $0x44] sm:$0xff]
      %v375 = vld [vmem:[%s215 + $0x4c] sm:$0xff]
      %v376 = vld [vmem:[%s215 + $0x54] sm:$0xf]
      %v377 = vld [vmem:[%s215 + $0x58] sm:$0xff]
      %v378 = vld [vmem:[%s215 + $0x60] sm:$0xff]
      %v379 = vld [vmem:[%s215 + $0x68] sm:$0xff]
      %v380 = vld [vmem:[%s215 + $0x70] sm:$0xff]
      %v381 = vld [vmem:[%s215 + $0x78] sm:$0xff]
      %v382 = vld [vmem:[%s215 + $0x80] sm:$0xf]
      %v383 = vld [vmem:[%s215 + $0x84] sm:$0xff]
      %v384 = vld [vmem:[%s215 + $0x8c] sm:$0xff]
      %v385 = vld [vmem:[%s215 + $0x94] sm:$0xff]
      %v386 = vld [vmem:[%s215 + $0x9c] sm:$0xff]
      %v387 = vld [vmem:[%s215 + $0xa4] sm:$0xff]
      %v388 = vld [vmem:[%s215 + $0xac] sm:$0xf]
      %v389 = vld [vmem:[%s215 + $0xb0] sm:$0xff]
      %v390 = vld [vmem:[%s215 + $0xb8] sm:$0xff]
      %v391 = vld [vmem:[%s215 + $0xc0] sm:$0xff]
      %v392 = vld [vmem:[%s215 + $0xc8] sm:$0xff]
      %v393 = vld [vmem:[%s215 + $0xd0] sm:$0xff]
      %v394 = vld [vmem:[%s215 + $0xd8] sm:$0xf]
      %v395 = vld [vmem:[%s215 + $0xdc] sm:$0xff]
      %v396 = vld [vmem:[%s215 + $0xe4] sm:$0xff]
      %v397 = vld [vmem:[%s215 + $0xec] sm:$0xff]
      %v398 = vld [vmem:[%s215 + $0xf4] sm:$0xff]
      %v399 = vld [vmem:[%s215 + $0xfc] sm:$0xff]
      %v400 = vld [vmem:[%s215 + $0x104] sm:$0xf]
      %v401 = vld [vmem:[%s215 + $0x108] sm:$0xff]
      %v402 = vld [vmem:[%s215 + $0x110] sm:$0xff]
      %v403 = vld [vmem:[%s215 + $0x118] sm:$0xff]
      %v404 = vld [vmem:[%s215 + $0x120] sm:$0xff]
      %v405 = vld [vmem:[%s215 + $0x128] sm:$0xff]
      %v406 = vld [vmem:[%s215 + $0x130] sm:$0xf]
      %v407 = vld [vmem:[%s215 + $0x134] sm:$0xff]
      %v408 = vld [vmem:[%s215 + $0x13c] sm:$0xff]
      %v409 = vld [vmem:[%s215 + $0x144] sm:$0xff]
      %v410 = vld [vmem:[%s215 + $0x14c] sm:$0xff]
      %v411 = vld [vmem:[%s215 + $0x154] sm:$0xff]
      %v412 = vld [vmem:[%s215 + $0x15c] sm:$0xf]
      %v413 = vld [vmem:[%s215 + $0x160] sm:$0xff]
      %v414 = vld [vmem:[%s215 + $0x168] sm:$0xff]
      %v415 = vld [vmem:[%s215 + $0x170] sm:$0xff]
      %v416 = vld [vmem:[%s215 + $0x178] sm:$0xff]
      %v417 = vld [vmem:[%s215 + $0x180] sm:$0xff]
      %v418 = vld [vmem:[%s215 + $0x188] sm:$0xf]
      %v419 = vld [vmem:[%s215 + $0x18c] sm:$0xff]
      %v420 = vld [vmem:[%s215 + $0x194] sm:$0xff]
      %v421 = vld [vmem:[%s215 + $0x19c] sm:$0xff]
      %v422 = vld [vmem:[%s215 + $0x1a4] sm:$0xff]
      %v423 = vld [vmem:[%s215 + $0x1ac] sm:$0xff]
      %v424 = vld [vmem:[%s215 + $0x1b4] sm:$0xf]
      %v425 = vld [vmem:[%s215 + $0x1b8] sm:$0xff]
      %v426 = vld [vmem:[%s215 + $0x1c0] sm:$0xff]
      %v427 = vld [vmem:[%s215 + $0x1c8] sm:$0xff]
      %v428 = vld [vmem:[%s215 + $0x1d0] sm:$0xff]
      %v429 = vld [vmem:[%s215 + $0x1d8] sm:$0xff]
      %v430 = vld [vmem:[%s215 + $0x1e0] sm:$0xf]
      %v431 = vld [vmem:[%s215 + $0x1e4] sm:$0xff]
      %v432 = vld [vmem:[%s215 + $0x1ec] sm:$0xff]
      %v433 = vld [vmem:[%s215 + $0x1f4] sm:$0xff]
      %v434 = vld [vmem:[%s215 + $0x1fc] sm:$0xff]
      %v435 = vld [vmem:[%s215 + $0x204] sm:$0xff]
      %v436 = vld [vmem:[%s215 + $0x20c] sm:$0xf]
      %v437 = vld [vmem:[%s215 + $0x210] sm:$0xff]
      %v438 = vld [vmem:[%s215 + $0x218] sm:$0xff]
      %v439 = vld [vmem:[%s215 + $0x220] sm:$0xff]
      %v440 = vld [vmem:[%s215 + $0x228] sm:$0xff]
      %v441 = vld [vmem:[%s215 + $0x230] sm:$0xff]
      %v442 = vld [vmem:[%s215 + $0x238] sm:$0xf]
      %v443 = vld [vmem:[%s215 + $0x23c] sm:$0xff]
      %v444 = vld [vmem:[%s215 + $0x244] sm:$0xff]
      %v445 = vld [vmem:[%s215 + $0x24c] sm:$0xff]
      %v446 = vld [vmem:[%s215 + $0x254] sm:$0xff]
      %v447 = vld [vmem:[%s215 + $0x25c] sm:$0xff]
      %v448 = vld [vmem:[%s215 + $0x264] sm:$0xf]
      %v449 = vld [vmem:[%s215 + $0x268] sm:$0xff]
      %v450 = vld [vmem:[%s215 + $0x270] sm:$0xff]
      %v451 = vld [vmem:[%s215 + $0x278] sm:$0xff]
      %v452 = vld [vmem:[%s215 + $0x280] sm:$0xff]
      %v453 = vld [vmem:[%s215 + $0x288] sm:$0xff]
      %v454 = vld [vmem:[%s215 + $0x290] sm:$0xf]
      %v455 = vld [vmem:[%s215 + $0x294] sm:$0xff]
      %v456 = vld [vmem:[%s215 + $0x29c] sm:$0xff]
      %v457 = vld [vmem:[%s215 + $0x2a4] sm:$0xff]
      %v458 = vld [vmem:[%s215 + $0x2ac] sm:$0xff]
      %v459 = vld [vmem:[%s215 + $0x2b4] sm:$0xff]
      %v460 = vld [vmem:[%s215 + $0x2bc] sm:$0xf]
      %v461 = vld [vmem:[%s215 + $0x2c0] sm:$0xff]
      %v462 = vld [vmem:[%s215 + $0x2c8] sm:$0xff]
      %v463 = vld [vmem:[%s215 + $0x2d0] sm:$0xff]
      %v464 = vld [vmem:[%s215 + $0x2d8] sm:$0xff]
      %v465 = vld [vmem:[%s215 + $0x2e0] sm:$0xff]
      %v466 = vld [vmem:[%s215 + $0x2e8] sm:$0xf]
      %v467 = vld [vmem:[%s215 + $0x2ec] sm:$0xff]
      %v468 = vld [vmem:[%s215 + $0x2f4] sm:$0xff]
      %v469 = vld [vmem:[%s215 + $0x2fc] sm:$0xff]
      %v470 = vld [vmem:[%s215 + $0x304] sm:$0xff]
      %v471 = vld [vmem:[%s215 + $0x30c] sm:$0xff]
      %v472 = vld [vmem:[%s215 + $0x314] sm:$0xf]
      %v473 = vld [vmem:[%s215 + $0x318] sm:$0xff]
      %v474 = vld [vmem:[%s215 + $0x320] sm:$0xff]
      %v475 = vld [vmem:[%s215 + $0x328] sm:$0xff]
      %v476 = vld [vmem:[%s215 + $0x330] sm:$0xff]
      %v477 = vld [vmem:[%s215 + $0x338] sm:$0xff]
      %v478 = vld [vmem:[%s215 + $0x340] sm:$0xf]
      %v479 = vld [vmem:[%s215 + $0x344] sm:$0xff]
      %v480 = vld [vmem:[%s215 + $0x34c] sm:$0xff]
      %v481 = vld [vmem:[%s215 + $0x354] sm:$0xff]
      %v482 = vld [vmem:[%s215 + $0x35c] sm:$0xff]
      %v483 = vld [vmem:[%s215 + $0x364] sm:$0xff]
      %v484 = vld [vmem:[%s215 + $0x36c] sm:$0xf]
      %v485 = vld [vmem:[%s215 + $0x370] sm:$0xff]
      %v486 = vld [vmem:[%s215 + $0x378] sm:$0xff]
      %v487 = vld [vmem:[%s215 + $0x380] sm:$0xff]
      %v488 = vld [vmem:[%s215 + $0x388] sm:$0xff]
      %v489 = vld [vmem:[%s215 + $0x390] sm:$0xff]
      %v490 = vld [vmem:[%s215 + $0x398] sm:$0xf]
      %v491 = vld [vmem:[%s215 + $0x39c] sm:$0xff]
      %v492 = vld [vmem:[%s215 + $0x3a4] sm:$0xff]
      %v493 = vld [vmem:[%s215 + $0x3ac] sm:$0xff]
      %v494 = vld [vmem:[%s215 + $0x3b4] sm:$0xff]
      %v495 = vld [vmem:[%s215 + $0x3bc] sm:$0xff]
      %v496 = vld [vmem:[%s215 + $0x3c4] sm:$0xf]
      %v497 = vld [vmem:[%s215 + $0x3c8] sm:$0xff]
      %v498 = vld [vmem:[%s215 + $0x3d0] sm:$0xff]
      %v499 = vld [vmem:[%s215 + $0x3d8] sm:$0xff]
      %v500 = vld [vmem:[%s215 + $0x3e0] sm:$0xff]
      %v501 = vld [vmem:[%s215 + $0x3e8] sm:$0xff]
      %v502 = vld [vmem:[%s215 + $0x3f0] sm:$0xf]
      %v503 = vld [vmem:[%s215 + $0x3f4] sm:$0xff]
      %v504 = vld [vmem:[%s215 + $0x3fc] sm:$0xff]
      %v505 = vld [vmem:[%s215 + $0x404] sm:$0xff]
      %v506 = vld [vmem:[%s215 + $0x40c] sm:$0xff]
      %v507 = vld [vmem:[%s215 + $0x414] sm:$0xff]
      %v508 = vld [vmem:[%s215 + $0x41c] sm:$0xf]
      %v509 = vld [vmem:[%s215 + $0x420] sm:$0xff]
      %v510 = vld [vmem:[%s215 + $0x428] sm:$0xff]
      %v511 = vld [vmem:[%s215 + $0x430] sm:$0xff]
      %v512 = vld [vmem:[%s215 + $0x438] sm:$0xff]
      %v513 = vld [vmem:[%s215 + $0x440] sm:$0xff]
      %v514 = vld [vmem:[%s215 + $0x448] sm:$0xf]
      %v515 = vld [vmem:[%s215 + $0x44c] sm:$0xff]
      %v516 = vld [vmem:[%s215 + $0x454] sm:$0xff]
      %v517 = vld [vmem:[%s215 + $0x45c] sm:$0xff]
      %v518 = vld [vmem:[%s215 + $0x464] sm:$0xff]
      %v519 = vld [vmem:[%s215 + $0x46c] sm:$0xff]
      %v520 = vld [vmem:[%s215 + $0x474] sm:$0xf]
      %v521 = vld [vmem:[%s215 + $0x478] sm:$0xff]
      %v522 = vld [vmem:[%s215 + $0x480] sm:$0xff]
      %v523 = vld [vmem:[%s215 + $0x488] sm:$0xff]
      %v524 = vld [vmem:[%s215 + $0x490] sm:$0xff]
      %v525 = vld [vmem:[%s215 + $0x498] sm:$0xff]
      %v526 = vld [vmem:[%s215 + $0x4a0] sm:$0xf]
      %v527 = vld [vmem:[%s215 + $0x4a4] sm:$0xff]
      %v528 = vld [vmem:[%s215 + $0x4ac] sm:$0xff]
      %v529 = vld [vmem:[%s215 + $0x4b4] sm:$0xff]
      %v530 = vld [vmem:[%s215 + $0x4bc] sm:$0xff]
      %v531 = vld [vmem:[%s215 + $0x4c4] sm:$0xff]
      %v532 = vld [vmem:[%s215 + $0x4cc] sm:$0xf]
      %v533 = vld [vmem:[%s215 + $0x4d0] sm:$0xff]
      %v534 = vld [vmem:[%s215 + $0x4d8] sm:$0xff]
      %v535 = vld [vmem:[%s215 + $0x4e0] sm:$0xff]
      %v536 = vld [vmem:[%s215 + $0x4e8] sm:$0xff]
      %v537 = vld [vmem:[%s215 + $0x4f0] sm:$0xff]
      %v538 = vld [vmem:[%s215 + $0x4f8] sm:$0xf]
      %v539 = vld [vmem:[%s215 + $0x4fc] sm:$0xff]
      %v540 = vld [vmem:[%s215 + $0x504] sm:$0xff]
      %v541 = vld [vmem:[%s215 + $0x50c] sm:$0xff]
      %v542 = vld [vmem:[%s215 + $0x514] sm:$0xff]
      %v543 = vld [vmem:[%s215 + $0x51c] sm:$0xff]
      %v544 = vld [vmem:[%s215 + $0x524] sm:$0xf]
      %v545 = vld [vmem:[%s215 + $0x528] sm:$0xff]
      %v546 = vld [vmem:[%s215 + $0x530] sm:$0xff]
      %v547 = vld [vmem:[%s215 + $0x538] sm:$0xff]
      %v548 = vld [vmem:[%s215 + $0x540] sm:$0xff]
      %v549 = vld [vmem:[%s215 + $0x548] sm:$0xff]
      %v550 = vld [vmem:[%s215 + $0x550] sm:$0xf]
      %v551 = vld [vmem:[%s215 + $0x554] sm:$0xff]
      %v552 = vld [vmem:[%s215 + $0x55c] sm:$0xff]
      %v553 = vld [vmem:[%s215 + $0x564] sm:$0xff]
      %v554 = vld [vmem:[%s215 + $0x56c] sm:$0xff]
      %v555 = vld [vmem:[%s215 + $0x574] sm:$0xff]
      %v556 = vld [vmem:[%s215 + $0x57c] sm:$0xf]
      %v557 = vld [vmem:[%s223] sm:$0xff]
      %v558 = vld [vmem:[%s223 + $0x8] sm:$0xff]
      %v559 = vld [vmem:[%s223 + $0x10] sm:$0xff]
      %v560 = vld [vmem:[%s223 + $0x18] sm:$0xff]
      %v561 = vld [vmem:[%s223 + $0x20] sm:$0xff]
      %v562 = vld [vmem:[%s223 + $0x28] sm:$0xff]
      %v563 = vld [vmem:[%s223 + $0x30] sm:$0xff]
      %v564 = vld [vmem:[%s223 + $0x38] sm:$0xff]
      %v565 = vld [vmem:[%s223 + $0x40] sm:$0xff]
      %v566 = vld [vmem:[%s223 + $0x48] sm:$0xff]
      %v567 = vld [vmem:[%s223 + $0x50] sm:$0xff]
      %v568 = vld [vmem:[%s223 + $0x58] sm:$0xff]
      %v569 = vld [vmem:[%s223 + $0x60] sm:$0xff]
      %v570 = vld [vmem:[%s223 + $0x68] sm:$0xff]
      %v571 = vld [vmem:[%s223 + $0x70] sm:$0xff]
      %v572 = vld [vmem:[%s223 + $0x78] sm:$0xff]
      %v573 = vld [vmem:[%s223 + $0x80] sm:$0xff]
      %v574 = vld [vmem:[%s223 + $0x88] sm:$0xff]
      %v575 = vld [vmem:[%s223 + $0x90] sm:$0xff]
      %v576 = vld [vmem:[%s223 + $0x98] sm:$0xff]
      %v577 = vld [vmem:[%s223 + $0xa0] sm:$0xff]
      %v578 = vld [vmem:[%s223 + $0xa8] sm:$0xff]
      %v579 = vld [vmem:[%s223 + $0xb0] sm:$0xff]
      %v580 = vld [vmem:[%s223 + $0xb8] sm:$0xff]
      %v581 = vld [vmem:[%s223 + $0xc0] sm:$0xff]
      %v582 = vld [vmem:[%s223 + $0xc8] sm:$0xff]
      %v583 = vld [vmem:[%s223 + $0xd0] sm:$0xff]
      %v584 = vld [vmem:[%s223 + $0xd8] sm:$0xff]
      %v585 = vld [vmem:[%s223 + $0xe0] sm:$0xff]
      %v586 = vld [vmem:[%s223 + $0xe8] sm:$0xff]
      %v587 = vld [vmem:[%s223 + $0xf0] sm:$0xff]
      %v588 = vld [vmem:[%s223 + $0xf8] sm:$0xff]
      %v589 = vld [vmem:[%s223 + $0x100] sm:$0xff]
      %v590 = vld [vmem:[%s223 + $0x108] sm:$0xff]
      %v591 = vld [vmem:[%s223 + $0x110] sm:$0xff]
      %v592 = vld [vmem:[%s223 + $0x118] sm:$0xff]
      %v593 = vld [vmem:[%s223 + $0x120] sm:$0xff]
      %v594 = vld [vmem:[%s223 + $0x128] sm:$0xff]
      %v595 = vld [vmem:[%s223 + $0x130] sm:$0xff]
      %v596 = vld [vmem:[%s223 + $0x138] sm:$0xff]
      %v597 = vld [vmem:[%s223 + $0x140] sm:$0xff]
      %v598 = vld [vmem:[%s223 + $0x148] sm:$0xff]
      %v599 = vld [vmem:[%s223 + $0x150] sm:$0xff]
      %v600 = vld [vmem:[%s223 + $0x158] sm:$0xff]
      %v601 = vld [vmem:[%s223 + $0x160] sm:$0xff]
      %v602 = vld [vmem:[%s223 + $0x168] sm:$0xff]
      %v603 = vld [vmem:[%s223 + $0x170] sm:$0xff]
      %v604 = vld [vmem:[%s223 + $0x178] sm:$0xff]
      %v605 = vld [vmem:[%s223 + $0x180] sm:$0xff]
      %v606 = vld [vmem:[%s223 + $0x188] sm:$0xff]
      %v607 = vld [vmem:[%s223 + $0x190] sm:$0xff]
      %v608 = vld [vmem:[%s223 + $0x198] sm:$0xff]
      %v609 = vld [vmem:[%s223 + $0x1a0] sm:$0xff]
      %v610 = vld [vmem:[%s223 + $0x1a8] sm:$0xff]
      %v611 = vld [vmem:[%s223 + $0x1b0] sm:$0xff]
      %v612 = vld [vmem:[%s223 + $0x1b8] sm:$0xff]
      %v613 = vld [vmem:[%s223 + $0x1c0] sm:$0xff]
      %v614 = vld [vmem:[%s223 + $0x1c8] sm:$0xff]
      %v615 = vld [vmem:[%s223 + $0x1d0] sm:$0xff]
      %v616 = vld [vmem:[%s223 + $0x1d8] sm:$0xff]
      %v617 = vld [vmem:[%s223 + $0x1e0] sm:$0xff]
      %v618 = vld [vmem:[%s223 + $0x1e8] sm:$0xff]
      %v619 = vld [vmem:[%s223 + $0x1f0] sm:$0xff]
      %v620 = vld [vmem:[%s223 + $0x1f8] sm:$0xff]
      %v621 = vld [vmem:[%s223 + $0x200] sm:$0xff]
      %v622 = vld [vmem:[%s223 + $0x208] sm:$0xff]
      %v623 = vld [vmem:[%s223 + $0x210] sm:$0xff]
      %v624 = vld [vmem:[%s223 + $0x218] sm:$0xff]
      %v625 = vld [vmem:[%s223 + $0x220] sm:$0xff]
      %v626 = vld [vmem:[%s223 + $0x228] sm:$0xff]
      %v627 = vld [vmem:[%s223 + $0x230] sm:$0xff]
      %v628 = vld [vmem:[%s223 + $0x238] sm:$0xff]
      %v629 = vld [vmem:[%s223 + $0x240] sm:$0xff]
      %v630 = vld [vmem:[%s223 + $0x248] sm:$0xff]
      %v631 = vld [vmem:[%s223 + $0x250] sm:$0xff]
      %v632 = vld [vmem:[%s223 + $0x258] sm:$0xff]
      %v633 = vld [vmem:[%s223 + $0x260] sm:$0xff]
      %v634 = vld [vmem:[%s223 + $0x268] sm:$0xff]
      %v635 = vld [vmem:[%s223 + $0x270] sm:$0xff]
      %v636 = vld [vmem:[%s223 + $0x278] sm:$0xff]
      %v637 = vld [vmem:[%s223 + $0x280] sm:$0xff]
      %v638 = vld [vmem:[%s223 + $0x288] sm:$0xff]
      %v639 = vld [vmem:[%s223 + $0x290] sm:$0xff]
      %v640 = vld [vmem:[%s223 + $0x298] sm:$0xff]
      %v641 = vld [vmem:[%s223 + $0x2a0] sm:$0xff]
      %v642 = vld [vmem:[%s223 + $0x2a8] sm:$0xff]
      %v643 = vld [vmem:[%s223 + $0x2b0] sm:$0xff]
      %v644 = vld [vmem:[%s223 + $0x2b8] sm:$0xff]
      %v645 = vld [vmem:[%s223 + $0x2c0] sm:$0xff]
      %v646 = vld [vmem:[%s223 + $0x2c8] sm:$0xff]
      %v647 = vld [vmem:[%s223 + $0x2d0] sm:$0xff]
      %v648 = vld [vmem:[%s223 + $0x2d8] sm:$0xff]
      %v649 = vld [vmem:[%s223 + $0x2e0] sm:$0xff]
      %v650 = vld [vmem:[%s223 + $0x2e8] sm:$0xff]
      %v651 = vld [vmem:[%s223 + $0x2f0] sm:$0xff]
      %v652 = vld [vmem:[%s223 + $0x2f8] sm:$0xff]
      %v653 = vld [vmem:[%s223 + $0x300] sm:$0xff]
      %v654 = vld [vmem:[%s223 + $0x308] sm:$0xff]
      %v655 = vld [vmem:[%s223 + $0x310] sm:$0xff]
      %v656 = vld [vmem:[%s223 + $0x318] sm:$0xff]
      %v657 = vld [vmem:[%s223 + $0x320] sm:$0xff]
      %v658 = vld [vmem:[%s223 + $0x328] sm:$0xff]
      %v659 = vld [vmem:[%s223 + $0x330] sm:$0xff]
      %v660 = vld [vmem:[%s223 + $0x338] sm:$0xff]
      %v661 = vld [vmem:[%s223 + $0x340] sm:$0xff]
      %v662 = vld [vmem:[%s223 + $0x348] sm:$0xff]
      %v663 = vld [vmem:[%s223 + $0x350] sm:$0xff]
      %v664 = vld [vmem:[%s223 + $0x358] sm:$0xff]
      %v665 = vld [vmem:[%s223 + $0x360] sm:$0xff]
      %v666 = vld [vmem:[%s223 + $0x368] sm:$0xff]
      %v667 = vld [vmem:[%s223 + $0x370] sm:$0xff]
      %v668 = vld [vmem:[%s223 + $0x378] sm:$0xff]
      %v669 = vld [vmem:[%s223 + $0x380] sm:$0xff]
      %v670 = vld [vmem:[%s223 + $0x388] sm:$0xff]
      %v671 = vld [vmem:[%s223 + $0x390] sm:$0xff]
      %v672 = vld [vmem:[%s223 + $0x398] sm:$0xff]
      %v673 = vld [vmem:[%s223 + $0x3a0] sm:$0xff]
      %v674 = vld [vmem:[%s223 + $0x3a8] sm:$0xff]
      %v675 = vld [vmem:[%s223 + $0x3b0] sm:$0xff]
      %v676 = vld [vmem:[%s223 + $0x3b8] sm:$0xff]
      %v677 = vld [vmem:[%s223 + $0x3c0] sm:$0xff]
      %v678 = vld [vmem:[%s223 + $0x3c8] sm:$0xff]
      %v679 = vld [vmem:[%s223 + $0x3d0] sm:$0xff]
      %v680 = vld [vmem:[%s223 + $0x3d8] sm:$0xff]
      %v681 = vld [vmem:[%s223 + $0x3e0] sm:$0xff]
      %v682 = vld [vmem:[%s223 + $0x3e8] sm:$0xff]
      %v683 = vld [vmem:[%s223 + $0x3f0] sm:$0xff]
      %v684 = vld [vmem:[%s223 + $0x3f8] sm:$0xff]
      %v685 = vld [vmem:[%s223 + $0x400] sm:$0xff]
      %v686 = vld [vmem:[%s223 + $0x408] sm:$0xff]
      %v687 = vld [vmem:[%s223 + $0x410] sm:$0xff]
      %v688 = vld [vmem:[%s223 + $0x418] sm:$0xff]
      %v689 = vld [vmem:[%s223 + $0x420] sm:$0xff]
      %v690 = vld [vmem:[%s223 + $0x428] sm:$0xff]
      %v691 = vld [vmem:[%s223 + $0x430] sm:$0xff]
      %v692 = vld [vmem:[%s223 + $0x438] sm:$0xff]
      %v693 = vld [vmem:[%s223 + $0x440] sm:$0xff]
      %v694 = vld [vmem:[%s223 + $0x448] sm:$0xff]
      %v695 = vld [vmem:[%s223 + $0x450] sm:$0xff]
      %v696 = vld [vmem:[%s223 + $0x458] sm:$0xff]
      %v697 = vld [vmem:[%s223 + $0x460] sm:$0xff]
      %v698 = vld [vmem:[%s223 + $0x468] sm:$0xff]
      %v699 = vld [vmem:[%s223 + $0x470] sm:$0xff]
      %v700 = vld [vmem:[%s223 + $0x478] sm:$0xff]
      %v701 = vld [vmem:[%s223 + $0x480] sm:$0xff]
      %v702 = vld [vmem:[%s223 + $0x488] sm:$0xff]
      %v703 = vld [vmem:[%s223 + $0x490] sm:$0xff]
      %v704 = vld [vmem:[%s223 + $0x498] sm:$0xff]
      %v705 = vld [vmem:[%s223 + $0x4a0] sm:$0xff]
      %v706 = vld [vmem:[%s223 + $0x4a8] sm:$0xff]
      %v707 = vld [vmem:[%s223 + $0x4b0] sm:$0xff]
      %v708 = vld [vmem:[%s223 + $0x4b8] sm:$0xff]
      %v709 = vld [vmem:[%s223 + $0x4c0] sm:$0xff]
      %v710 = vld [vmem:[%s223 + $0x4c8] sm:$0xff]
      %v711 = vld [vmem:[%s223 + $0x4d0] sm:$0xff]
      %v712 = vld [vmem:[%s223 + $0x4d8] sm:$0xff]
      %v713 = vld [vmem:[%s223 + $0x4e0] sm:$0xff]
      %v714 = vld [vmem:[%s223 + $0x4e8] sm:$0xff]
      %v715 = vld [vmem:[%s223 + $0x4f0] sm:$0xff]
      %v716 = vld [vmem:[%s223 + $0x4f8] sm:$0xff]
      %v717 = vld [vmem:[%s223 + $0x500] sm:$0xff]
      %v718 = vld [vmem:[%s223 + $0x508] sm:$0xff]
      %v719 = vld [vmem:[%s223 + $0x510] sm:$0xff]
      %v720 = vld [vmem:[%s223 + $0x518] sm:$0xff]
      %v721 = vld [vmem:[%s223 + $0x520] sm:$0xff]
      %v722 = vld [vmem:[%s223 + $0x528] sm:$0xff]
      %v723 = vld [vmem:[%s223 + $0x530] sm:$0xff]
      %v724 = vld [vmem:[%s223 + $0x538] sm:$0xff]
      %v917 = vunpack.c.l.b16 %v365
      %v918 = vunpack.c.h.b16 %v365
      %v919 = vunpack.c.l.b16 %v366
      %v920 = vunpack.c.h.b16 %v366
      %v921 = vunpack.c.l.b16 %v367
      %v922 = vunpack.c.h.b16 %v367
      %v923 = vunpack.c.l.b16 %v368
      %v924 = vunpack.c.h.b16 %v368
      %v925 = vunpack.c.l.b16 %v369
      %v926 = vunpack.c.h.b16 %v369
      %v927 = vunpack.c.l.b16 %v370
      %v928 = vunpack.c.l.b16 %v371
      %v929 = vunpack.c.h.b16 %v371
      %v930 = vunpack.c.l.b16 %v372
      %v931 = vunpack.c.h.b16 %v372
      %v932 = vunpack.c.l.b16 %v373
      %v933 = vunpack.c.h.b16 %v373
      %v934 = vunpack.c.l.b16 %v374
      %v935 = vunpack.c.h.b16 %v374
      %v936 = vunpack.c.l.b16 %v375
      %v937 = vunpack.c.h.b16 %v375
      %v938 = vunpack.c.l.b16 %v376
      %v939 = vunpack.c.l.b16 %v377
      %v940 = vunpack.c.h.b16 %v377
      %v941 = vunpack.c.l.b16 %v378
      %v942 = vunpack.c.h.b16 %v378
      %v943 = vunpack.c.l.b16 %v379
      %v944 = vunpack.c.h.b16 %v379
      %v945 = vunpack.c.l.b16 %v380
      %v946 = vunpack.c.h.b16 %v380
      %v947 = vunpack.c.l.b16 %v381
      %v948 = vunpack.c.h.b16 %v381
      %v949 = vunpack.c.l.b16 %v382
      %v950 = vunpack.c.l.b16 %v383
      %v951 = vunpack.c.h.b16 %v383
      %v952 = vunpack.c.l.b16 %v384
      %v953 = vunpack.c.h.b16 %v384
      %v954 = vunpack.c.l.b16 %v385
      %v955 = vunpack.c.h.b16 %v385
      %v956 = vunpack.c.l.b16 %v386
      %v957 = vunpack.c.h.b16 %v386
      %v958 = vunpack.c.l.b16 %v387
      %v959 = vunpack.c.h.b16 %v387
      %v960 = vunpack.c.l.b16 %v388
      %v961 = vunpack.c.l.b16 %v389
      %v962 = vunpack.c.h.b16 %v389
      %v963 = vunpack.c.l.b16 %v390
      %v964 = vunpack.c.h.b16 %v390
      %v965 = vunpack.c.l.b16 %v391
      %v966 = vunpack.c.h.b16 %v391
      %v967 = vunpack.c.l.b16 %v392
      %v968 = vunpack.c.h.b16 %v392
      %v969 = vunpack.c.l.b16 %v393
      %v970 = vunpack.c.h.b16 %v393
      %v971 = vunpack.c.l.b16 %v394
      %v972 = vunpack.c.l.b16 %v395
      %v973 = vunpack.c.h.b16 %v395
      %v974 = vunpack.c.l.b16 %v396
      %v975 = vunpack.c.h.b16 %v396
      %v976 = vunpack.c.l.b16 %v397
      %v977 = vunpack.c.h.b16 %v397
      %v978 = vunpack.c.l.b16 %v398
      %v979 = vunpack.c.h.b16 %v398
      %v980 = vunpack.c.l.b16 %v399
      %v981 = vunpack.c.h.b16 %v399
      %v982 = vunpack.c.l.b16 %v400
      %v983 = vunpack.c.l.b16 %v401
      %v984 = vunpack.c.h.b16 %v401
      %v985 = vunpack.c.l.b16 %v402
      %v986 = vunpack.c.h.b16 %v402
      %v987 = vunpack.c.l.b16 %v403
      %v988 = vunpack.c.h.b16 %v403
      %v989 = vunpack.c.l.b16 %v404
      %v990 = vunpack.c.h.b16 %v404
      %v991 = vunpack.c.l.b16 %v405
      %v992 = vunpack.c.h.b16 %v405
      %v993 = vunpack.c.l.b16 %v406
      %v994 = vunpack.c.l.b16 %v407
      %v995 = vunpack.c.h.b16 %v407
      %v996 = vunpack.c.l.b16 %v408
      %v997 = vunpack.c.h.b16 %v408
      %v998 = vunpack.c.l.b16 %v409
      %v999 = vunpack.c.h.b16 %v409
      %v1000 = vunpack.c.l.b16 %v410
      %v1001 = vunpack.c.h.b16 %v410
      %v1002 = vunpack.c.l.b16 %v411
      %v1003 = vunpack.c.h.b16 %v411
      %v1004 = vunpack.c.l.b16 %v412
      %v1005 = vunpack.c.l.b16 %v413
      %v1006 = vunpack.c.h.b16 %v413
      %v1007 = vunpack.c.l.b16 %v414
      %v1008 = vunpack.c.h.b16 %v414
      %v1009 = vunpack.c.l.b16 %v415
      %v1010 = vunpack.c.h.b16 %v415
      %v1011 = vunpack.c.l.b16 %v416
      %v1012 = vunpack.c.h.b16 %v416
      %v1013 = vunpack.c.l.b16 %v417
      %v1014 = vunpack.c.h.b16 %v417
      %v1015 = vunpack.c.l.b16 %v418
      %v1016 = vunpack.c.l.b16 %v419
      %v1017 = vunpack.c.h.b16 %v419
      %v1018 = vunpack.c.l.b16 %v420
      %v1019 = vunpack.c.h.b16 %v420
      %v1020 = vunpack.c.l.b16 %v421
      %v1021 = vunpack.c.h.b16 %v421
      %v1022 = vunpack.c.l.b16 %v422
      %v1023 = vunpack.c.h.b16 %v422
      %v1024 = vunpack.c.l.b16 %v423
      %v1025 = vunpack.c.h.b16 %v423
      %v1026 = vunpack.c.l.b16 %v424
      %v1027 = vunpack.c.l.b16 %v425
      %v1028 = vunpack.c.h.b16 %v425
      %v1029 = vunpack.c.l.b16 %v426
      %v1030 = vunpack.c.h.b16 %v426
      %v1031 = vunpack.c.l.b16 %v427
      %v1032 = vunpack.c.h.b16 %v427
      %v1033 = vunpack.c.l.b16 %v428
      %v1034 = vunpack.c.h.b16 %v428
      %v1035 = vunpack.c.l.b16 %v429
      %v1036 = vunpack.c.h.b16 %v429
      %v1037 = vunpack.c.l.b16 %v430
      %v1038 = vunpack.c.l.b16 %v431
      %v1039 = vunpack.c.h.b16 %v431
      %v1040 = vunpack.c.l.b16 %v432
      %v1041 = vunpack.c.h.b16 %v432
      %v1042 = vunpack.c.l.b16 %v433
      %v1043 = vunpack.c.h.b16 %v433
      %v1044 = vunpack.c.l.b16 %v434
      %v1045 = vunpack.c.h.b16 %v434
      %v1046 = vunpack.c.l.b16 %v435
      %v1047 = vunpack.c.h.b16 %v435
      %v1048 = vunpack.c.l.b16 %v436
      %v1049 = vunpack.c.l.b16 %v437
      %v1050 = vunpack.c.h.b16 %v437
      %v1051 = vunpack.c.l.b16 %v438
      %v1052 = vunpack.c.h.b16 %v438
      %v1053 = vunpack.c.l.b16 %v439
      %v1054 = vunpack.c.h.b16 %v439
      %v1055 = vunpack.c.l.b16 %v440
      %v1056 = vunpack.c.h.b16 %v440
      %v1057 = vunpack.c.l.b16 %v441
      %v1058 = vunpack.c.h.b16 %v441
      %v1059 = vunpack.c.l.b16 %v442
      %v1060 = vunpack.c.l.b16 %v443
      %v1061 = vunpack.c.h.b16 %v443
      %v1062 = vunpack.c.l.b16 %v444
      %v1063 = vunpack.c.h.b16 %v444
      %v1064 = vunpack.c.l.b16 %v445
      %v1065 = vunpack.c.h.b16 %v445
      %v1066 = vunpack.c.l.b16 %v446
      %v1067 = vunpack.c.h.b16 %v446
      %v1068 = vunpack.c.l.b16 %v447
      %v1069 = vunpack.c.h.b16 %v447
      %v1070 = vunpack.c.l.b16 %v448
      %v1071 = vunpack.c.l.b16 %v449
      %v1072 = vunpack.c.h.b16 %v449
      %v1073 = vunpack.c.l.b16 %v450
      %v1074 = vunpack.c.h.b16 %v450
      %v1075 = vunpack.c.l.b16 %v451
      %v1076 = vunpack.c.h.b16 %v451
      %v1077 = vunpack.c.l.b16 %v452
      %v1078 = vunpack.c.h.b16 %v452
      %v1079 = vunpack.c.l.b16 %v453
      %v1080 = vunpack.c.h.b16 %v453
      %v1081 = vunpack.c.l.b16 %v454
      %v1082 = vunpack.c.l.b16 %v455
      %v1083 = vunpack.c.h.b16 %v455
      %v1084 = vunpack.c.l.b16 %v456
      %v1085 = vunpack.c.h.b16 %v456
      %v1086 = vunpack.c.l.b16 %v457
      %v1087 = vunpack.c.h.b16 %v457
      %v1088 = vunpack.c.l.b16 %v458
      %v1089 = vunpack.c.h.b16 %v458
      %v1090 = vunpack.c.l.b16 %v459
      %v1091 = vunpack.c.h.b16 %v459
      %v1092 = vunpack.c.l.b16 %v460
      %v1093 = vunpack.c.l.b16 %v461
      %v1094 = vunpack.c.h.b16 %v461
      %v1095 = vunpack.c.l.b16 %v462
      %v1096 = vunpack.c.h.b16 %v462
      %v1097 = vunpack.c.l.b16 %v463
      %v1098 = vunpack.c.h.b16 %v463
      %v1099 = vunpack.c.l.b16 %v464
      %v1100 = vunpack.c.h.b16 %v464
      %v1101 = vunpack.c.l.b16 %v465
      %v1102 = vunpack.c.h.b16 %v465
      %v1103 = vunpack.c.l.b16 %v466
      %v1104 = vunpack.c.l.b16 %v467
      %v1105 = vunpack.c.h.b16 %v467
      %v1106 = vunpack.c.l.b16 %v468
      %v1107 = vunpack.c.h.b16 %v468
      %v1108 = vunpack.c.l.b16 %v469
      %v1109 = vunpack.c.h.b16 %v469
      %v1110 = vunpack.c.l.b16 %v470
      %v1111 = vunpack.c.h.b16 %v470
      %v1112 = vunpack.c.l.b16 %v471
      %v1113 = vunpack.c.h.b16 %v471
      %v1114 = vunpack.c.l.b16 %v472
      %v1115 = vunpack.c.l.b16 %v473
      %v1116 = vunpack.c.h.b16 %v473
      %v1117 = vunpack.c.l.b16 %v474
      %v1118 = vunpack.c.h.b16 %v474
      %v1119 = vunpack.c.l.b16 %v475
      %v1120 = vunpack.c.h.b16 %v475
      %v1121 = vunpack.c.l.b16 %v476
      %v1122 = vunpack.c.h.b16 %v476
      %v1123 = vunpack.c.l.b16 %v477
      %v1124 = vunpack.c.h.b16 %v477
      %v1125 = vunpack.c.l.b16 %v478
      %v1126 = vunpack.c.l.b16 %v479
      %v1127 = vunpack.c.h.b16 %v479
      %v1128 = vunpack.c.l.b16 %v480
      %v1129 = vunpack.c.h.b16 %v480
      %v1130 = vunpack.c.l.b16 %v481
      %v1131 = vunpack.c.h.b16 %v481
      %v1132 = vunpack.c.l.b16 %v482
      %v1133 = vunpack.c.h.b16 %v482
      %v1134 = vunpack.c.l.b16 %v483
      %v1135 = vunpack.c.h.b16 %v483
      %v1136 = vunpack.c.l.b16 %v484
      %v1137 = vunpack.c.l.b16 %v485
      %v1138 = vunpack.c.h.b16 %v485
      %v1139 = vunpack.c.l.b16 %v486
      %v1140 = vunpack.c.h.b16 %v486
      %v1141 = vunpack.c.l.b16 %v487
      %v1142 = vunpack.c.h.b16 %v487
      %v1143 = vunpack.c.l.b16 %v488
      %v1144 = vunpack.c.h.b16 %v488
      %v1145 = vunpack.c.l.b16 %v489
      %v1146 = vunpack.c.h.b16 %v489
      %v1147 = vunpack.c.l.b16 %v490
      %v1148 = vunpack.c.l.b16 %v491
      %v1149 = vunpack.c.h.b16 %v491
      %v1150 = vunpack.c.l.b16 %v492
      %v1151 = vunpack.c.h.b16 %v492
      %v1152 = vunpack.c.l.b16 %v493
      %v1153 = vunpack.c.h.b16 %v493
      %v1154 = vunpack.c.l.b16 %v494
      %v1155 = vunpack.c.h.b16 %v494
      %v1156 = vunpack.c.l.b16 %v495
      %v1157 = vunpack.c.h.b16 %v495
      %v1158 = vunpack.c.l.b16 %v496
      %v1159 = vunpack.c.l.b16 %v497
      %v1160 = vunpack.c.h.b16 %v497
      %v1161 = vunpack.c.l.b16 %v498
      %v1162 = vunpack.c.h.b16 %v498
      %v1163 = vunpack.c.l.b16 %v499
      %v1164 = vunpack.c.h.b16 %v499
      %v1165 = vunpack.c.l.b16 %v500
      %v1166 = vunpack.c.h.b16 %v500
      %v1167 = vunpack.c.l.b16 %v501
      %v1168 = vunpack.c.h.b16 %v501
      %v1169 = vunpack.c.l.b16 %v502
      %v1170 = vunpack.c.l.b16 %v503
      %v1171 = vunpack.c.h.b16 %v503
      %v1172 = vunpack.c.l.b16 %v504
      %v1173 = vunpack.c.h.b16 %v504
      %v1174 = vunpack.c.l.b16 %v505
      %v1175 = vunpack.c.h.b16 %v505
      %v1176 = vunpack.c.l.b16 %v506
      %v1177 = vunpack.c.h.b16 %v506
      %v1178 = vunpack.c.l.b16 %v507
      %v1179 = vunpack.c.h.b16 %v507
      %v1180 = vunpack.c.l.b16 %v508
      %v1181 = vunpack.c.l.b16 %v509
      %v1182 = vunpack.c.h.b16 %v509
      %v1183 = vunpack.c.l.b16 %v510
      %v1184 = vunpack.c.h.b16 %v510
      %v1185 = vunpack.c.l.b16 %v511
      %v1186 = vunpack.c.h.b16 %v511
      %v1187 = vunpack.c.l.b16 %v512
      %v1188 = vunpack.c.h.b16 %v512
      %v1189 = vunpack.c.l.b16 %v513
      %v1190 = vunpack.c.h.b16 %v513
      %v1191 = vunpack.c.l.b16 %v514
      %v1192 = vunpack.c.l.b16 %v515
      %v1193 = vunpack.c.h.b16 %v515
      %v1194 = vunpack.c.l.b16 %v516
      %v1195 = vunpack.c.h.b16 %v516
      %v1196 = vunpack.c.l.b16 %v517
      %v1197 = vunpack.c.h.b16 %v517
      %v1198 = vunpack.c.l.b16 %v518
      %v1199 = vunpack.c.h.b16 %v518
      %v1200 = vunpack.c.l.b16 %v519
      %v1201 = vunpack.c.h.b16 %v519
      %v1202 = vunpack.c.l.b16 %v520
      %v1203 = vunpack.c.l.b16 %v521
      %v1204 = vunpack.c.h.b16 %v521
      %v1205 = vunpack.c.l.b16 %v522
      %v1206 = vunpack.c.h.b16 %v522
      %v1207 = vunpack.c.l.b16 %v523
      %v1208 = vunpack.c.h.b16 %v523
      %v1209 = vunpack.c.l.b16 %v524
      %v1210 = vunpack.c.h.b16 %v524
      %v1211 = vunpack.c.l.b16 %v525
      %v1212 = vunpack.c.h.b16 %v525
      %v1213 = vunpack.c.l.b16 %v526
      %v1214 = vunpack.c.l.b16 %v527
      %v1215 = vunpack.c.h.b16 %v527
      %v1216 = vunpack.c.l.b16 %v528
      %v1217 = vunpack.c.h.b16 %v528
      %v1218 = vunpack.c.l.b16 %v529
      %v1219 = vunpack.c.h.b16 %v529
      %v1220 = vunpack.c.l.b16 %v530
      %v1221 = vunpack.c.h.b16 %v530
      %v1222 = vunpack.c.l.b16 %v531
      %v1223 = vunpack.c.h.b16 %v531
      %v1224 = vunpack.c.l.b16 %v532
      %v1225 = vunpack.c.l.b16 %v533
      %v1226 = vunpack.c.h.b16 %v533
      %v1227 = vunpack.c.l.b16 %v534
      %v1228 = vunpack.c.h.b16 %v534
      %v1229 = vunpack.c.l.b16 %v535
      %v1230 = vunpack.c.h.b16 %v535
      %v1231 = vunpack.c.l.b16 %v536
      %v1232 = vunpack.c.h.b16 %v536
      %v1233 = vunpack.c.l.b16 %v537
      %v1234 = vunpack.c.h.b16 %v537
      %v1235 = vunpack.c.l.b16 %v538
      %v1236 = vunpack.c.l.b16 %v539
      %v1237 = vunpack.c.h.b16 %v539
      %v1238 = vunpack.c.l.b16 %v540
      %v1239 = vunpack.c.h.b16 %v540
      %v1240 = vunpack.c.l.b16 %v541
      %v1241 = vunpack.c.h.b16 %v541
      %v1242 = vunpack.c.l.b16 %v542
      %v1243 = vunpack.c.h.b16 %v542
      %v1244 = vunpack.c.l.b16 %v543
      %v1245 = vunpack.c.h.b16 %v543
      %v1246 = vunpack.c.l.b16 %v544
      %v1247 = vunpack.c.l.b16 %v545
      %v1248 = vunpack.c.h.b16 %v545
      %v1249 = vunpack.c.l.b16 %v546
      %v1250 = vunpack.c.h.b16 %v546
      %v1251 = vunpack.c.l.b16 %v547
      %v1252 = vunpack.c.h.b16 %v547
      %v1253 = vunpack.c.l.b16 %v548
      %v1254 = vunpack.c.h.b16 %v548
      %v1255 = vunpack.c.l.b16 %v549
      %v1256 = vunpack.c.h.b16 %v549
      %v1257 = vunpack.c.l.b16 %v550
      %v1258 = vunpack.c.l.b16 %v551
      %v1259 = vunpack.c.h.b16 %v551
      %v1260 = vunpack.c.l.b16 %v552
      %v1261 = vunpack.c.h.b16 %v552
      %v1262 = vunpack.c.l.b16 %v553
      %v1263 = vunpack.c.h.b16 %v553
      %v1264 = vunpack.c.l.b16 %v554
      %v1265 = vunpack.c.h.b16 %v554
      %v1266 = vunpack.c.l.b16 %v555
      %v1267 = vunpack.c.h.b16 %v555
      %v1268 = vunpack.c.l.b16 %v556
      %v1269 = vpack.c.b16 %v928, %v917
      %v1270 = vpack.c.b16 %v929, %v918
      %v1271 = vpack.c.b16 %v930, %v919
      %v1272 = vpack.c.b16 %v931, %v920
      %v1273 = vpack.c.b16 %v932, %v921
      %v1274 = vpack.c.b16 %v933, %v922
      %v1275 = vpack.c.b16 %v934, %v923
      %v1276 = vpack.c.b16 %v935, %v924
      %v1277 = vpack.c.b16 %v936, %v925
      %v1278 = vpack.c.b16 %v937, %v926
      %v1279 = vpack.c.b16 %v938, %v927
      %v1280 = vpack.c.b16 %v950, %v939
      %v1281 = vpack.c.b16 %v951, %v940
      %v1282 = vpack.c.b16 %v952, %v941
      %v1283 = vpack.c.b16 %v953, %v942
      %v1284 = vpack.c.b16 %v954, %v943
      %v1285 = vpack.c.b16 %v955, %v944
      %v1286 = vpack.c.b16 %v956, %v945
      %v1287 = vpack.c.b16 %v957, %v946
      %v1288 = vpack.c.b16 %v958, %v947
      %v1289 = vpack.c.b16 %v959, %v948
      %v1290 = vpack.c.b16 %v960, %v949
      %v1291 = vpack.c.b16 %v972, %v961
      %v1292 = vpack.c.b16 %v973, %v962
      %v1293 = vpack.c.b16 %v974, %v963
      %v1294 = vpack.c.b16 %v975, %v964
      %v1295 = vpack.c.b16 %v976, %v965
      %v1296 = vpack.c.b16 %v977, %v966
      %v1297 = vpack.c.b16 %v978, %v967
      %v1298 = vpack.c.b16 %v979, %v968
      %v1299 = vpack.c.b16 %v980, %v969
      %v1300 = vpack.c.b16 %v981, %v970
      %v1301 = vpack.c.b16 %v982, %v971
      %v1302 = vpack.c.b16 %v994, %v983
      %v1303 = vpack.c.b16 %v995, %v984
      %v1304 = vpack.c.b16 %v996, %v985
      %v1305 = vpack.c.b16 %v997, %v986
      %v1306 = vpack.c.b16 %v998, %v987
      %v1307 = vpack.c.b16 %v999, %v988
      %v1308 = vpack.c.b16 %v1000, %v989
      %v1309 = vpack.c.b16 %v1001, %v990
      %v1310 = vpack.c.b16 %v1002, %v991
      %v1311 = vpack.c.b16 %v1003, %v992
      %v1312 = vpack.c.b16 %v1004, %v993
      %v1313 = vpack.c.b16 %v1016, %v1005
      %v1314 = vpack.c.b16 %v1017, %v1006
      %v1315 = vpack.c.b16 %v1018, %v1007
      %v1316 = vpack.c.b16 %v1019, %v1008
      %v1317 = vpack.c.b16 %v1020, %v1009
      %v1318 = vpack.c.b16 %v1021, %v1010
      %v1319 = vpack.c.b16 %v1022, %v1011
      %v1320 = vpack.c.b16 %v1023, %v1012
      %v1321 = vpack.c.b16 %v1024, %v1013
      %v1322 = vpack.c.b16 %v1025, %v1014
      %v1323 = vpack.c.b16 %v1026, %v1015
      %v1324 = vpack.c.b16 %v1038, %v1027
      %v1325 = vpack.c.b16 %v1039, %v1028
      %v1326 = vpack.c.b16 %v1040, %v1029
      %v1327 = vpack.c.b16 %v1041, %v1030
      %v1328 = vpack.c.b16 %v1042, %v1031
      %v1329 = vpack.c.b16 %v1043, %v1032
      %v1330 = vpack.c.b16 %v1044, %v1033
      %v1331 = vpack.c.b16 %v1045, %v1034
      %v1332 = vpack.c.b16 %v1046, %v1035
      %v1333 = vpack.c.b16 %v1047, %v1036
      %v1334 = vpack.c.b16 %v1048, %v1037
      %v1335 = vpack.c.b16 %v1060, %v1049
      %v1336 = vpack.c.b16 %v1061, %v1050
      %v1337 = vpack.c.b16 %v1062, %v1051
      %v1338 = vpack.c.b16 %v1063, %v1052
      %v1339 = vpack.c.b16 %v1064, %v1053
      %v1340 = vpack.c.b16 %v1065, %v1054
      %v1341 = vpack.c.b16 %v1066, %v1055
      %v1342 = vpack.c.b16 %v1067, %v1056
      %v1343 = vpack.c.b16 %v1068, %v1057
      %v1344 = vpack.c.b16 %v1069, %v1058
      %v1345 = vpack.c.b16 %v1070, %v1059
      %v1346 = vpack.c.b16 %v1082, %v1071
      %v1347 = vpack.c.b16 %v1083, %v1072
      %v1348 = vpack.c.b16 %v1084, %v1073
      %v1349 = vpack.c.b16 %v1085, %v1074
      %v1350 = vpack.c.b16 %v1086, %v1075
      %v1351 = vpack.c.b16 %v1087, %v1076
      %v1352 = vpack.c.b16 %v1088, %v1077
      %v1353 = vpack.c.b16 %v1089, %v1078
      %v1354 = vpack.c.b16 %v1090, %v1079
      %v1355 = vpack.c.b16 %v1091, %v1080
      %v1356 = vpack.c.b16 %v1092, %v1081
      %v1357 = vpack.c.b16 %v1104, %v1093
      %v1358 = vpack.c.b16 %v1105, %v1094
      %v1359 = vpack.c.b16 %v1106, %v1095
      %v1360 = vpack.c.b16 %v1107, %v1096
      %v1361 = vpack.c.b16 %v1108, %v1097
      %v1362 = vpack.c.b16 %v1109, %v1098
      %v1363 = vpack.c.b16 %v1110, %v1099
      %v1364 = vpack.c.b16 %v1111, %v1100
      %v1365 = vpack.c.b16 %v1112, %v1101
      %v1366 = vpack.c.b16 %v1113, %v1102
      %v1367 = vpack.c.b16 %v1114, %v1103
      %v1368 = vpack.c.b16 %v1126, %v1115
      %v1369 = vpack.c.b16 %v1127, %v1116
      %v1370 = vpack.c.b16 %v1128, %v1117
      %v1371 = vpack.c.b16 %v1129, %v1118
      %v1372 = vpack.c.b16 %v1130, %v1119
      %v1373 = vpack.c.b16 %v1131, %v1120
      %v1374 = vpack.c.b16 %v1132, %v1121
      %v1375 = vpack.c.b16 %v1133, %v1122
      %v1376 = vpack.c.b16 %v1134, %v1123
      %v1377 = vpack.c.b16 %v1135, %v1124
      %v1378 = vpack.c.b16 %v1136, %v1125
      %v1379 = vpack.c.b16 %v1148, %v1137
      %v1380 = vpack.c.b16 %v1149, %v1138
      %v1381 = vpack.c.b16 %v1150, %v1139
      %v1382 = vpack.c.b16 %v1151, %v1140
      %v1383 = vpack.c.b16 %v1152, %v1141
      %v1384 = vpack.c.b16 %v1153, %v1142
      %v1385 = vpack.c.b16 %v1154, %v1143
      %v1386 = vpack.c.b16 %v1155, %v1144
      %v1387 = vpack.c.b16 %v1156, %v1145
      %v1388 = vpack.c.b16 %v1157, %v1146
      %v1389 = vpack.c.b16 %v1158, %v1147
      %v1390 = vpack.c.b16 %v1170, %v1159
      %v1391 = vpack.c.b16 %v1171, %v1160
      %v1392 = vpack.c.b16 %v1172, %v1161
      %v1393 = vpack.c.b16 %v1173, %v1162
      %v1394 = vpack.c.b16 %v1174, %v1163
      %v1395 = vpack.c.b16 %v1175, %v1164
      %v1396 = vpack.c.b16 %v1176, %v1165
      %v1397 = vpack.c.b16 %v1177, %v1166
      %v1398 = vpack.c.b16 %v1178, %v1167
      %v1399 = vpack.c.b16 %v1179, %v1168
      %v1400 = vpack.c.b16 %v1180, %v1169
      %v1401 = vpack.c.b16 %v1192, %v1181
      %v1402 = vpack.c.b16 %v1193, %v1182
      %v1403 = vpack.c.b16 %v1194, %v1183
      %v1404 = vpack.c.b16 %v1195, %v1184
      %v1405 = vpack.c.b16 %v1196, %v1185
      %v1406 = vpack.c.b16 %v1197, %v1186
      %v1407 = vpack.c.b16 %v1198, %v1187
      %v1408 = vpack.c.b16 %v1199, %v1188
      %v1409 = vpack.c.b16 %v1200, %v1189
      %v1410 = vpack.c.b16 %v1201, %v1190
      %v1411 = vpack.c.b16 %v1202, %v1191
      %v1412 = vpack.c.b16 %v1214, %v1203
      %v1413 = vpack.c.b16 %v1215, %v1204
      %v1414 = vpack.c.b16 %v1216, %v1205
      %v1415 = vpack.c.b16 %v1217, %v1206
      %v1416 = vpack.c.b16 %v1218, %v1207
      %v1417 = vpack.c.b16 %v1219, %v1208
      %v1418 = vpack.c.b16 %v1220, %v1209
      %v1419 = vpack.c.b16 %v1221, %v1210
      %v1420 = vpack.c.b16 %v1222, %v1211
      %v1421 = vpack.c.b16 %v1223, %v1212
      %v1422 = vpack.c.b16 %v1224, %v1213
      %v1423 = vpack.c.b16 %v1236, %v1225
      %v1424 = vpack.c.b16 %v1237, %v1226
      %v1425 = vpack.c.b16 %v1238, %v1227
      %v1426 = vpack.c.b16 %v1239, %v1228
      %v1427 = vpack.c.b16 %v1240, %v1229
      %v1428 = vpack.c.b16 %v1241, %v1230
      %v1429 = vpack.c.b16 %v1242, %v1231
      %v1430 = vpack.c.b16 %v1243, %v1232
      %v1431 = vpack.c.b16 %v1244, %v1233
      %v1432 = vpack.c.b16 %v1245, %v1234
      %v1433 = vpack.c.b16 %v1246, %v1235
      %v1434 = vpack.c.b16 %v1258, %v1247
      %v1435 = vpack.c.b16 %v1259, %v1248
      %v1436 = vpack.c.b16 %v1260, %v1249
      %v1437 = vpack.c.b16 %v1261, %v1250
      %v1438 = vpack.c.b16 %v1262, %v1251
      %v1439 = vpack.c.b16 %v1263, %v1252
      %v1440 = vpack.c.b16 %v1264, %v1253
      %v1441 = vpack.c.b16 %v1265, %v1254
      %v1442 = vpack.c.b16 %v1266, %v1255
      %v1443 = vpack.c.b16 %v1267, %v1256
      %v1444 = vpack.c.b16 %v1268, %v1257
      %v1773 = vunpack.c.l.b16 %v557
      %v1774 = vunpack.c.h.b16 %v557
      %v1775 = vunpack.c.l.b16 %v558
      %v1776 = vunpack.c.h.b16 %v558
      %v1777 = vunpack.c.l.b16 %v559
      %v1778 = vunpack.c.h.b16 %v559
      %v1779 = vunpack.c.l.b16 %v560
      %v1780 = vunpack.c.h.b16 %v560
      %v1781 = vunpack.c.l.b16 %v561
      %v1782 = vunpack.c.h.b16 %v561
      %v1783 = vunpack.c.l.b16 %v562
      %v1784 = vunpack.c.h.b16 %v562
      %v1785 = vunpack.c.l.b16 %v563
      %v1786 = vunpack.c.h.b16 %v563
      %v1787 = vunpack.c.l.b16 %v564
      %v1788 = vunpack.c.h.b16 %v564
      %v1789 = vunpack.c.l.b16 %v565
      %v1790 = vunpack.c.h.b16 %v565
      %v1791 = vunpack.c.l.b16 %v566
      %v1792 = vunpack.c.h.b16 %v566
      %v1793 = vunpack.c.l.b16 %v567
      %v1794 = vunpack.c.h.b16 %v567
      %v1795 = vunpack.c.l.b16 %v568
      %v1796 = vunpack.c.h.b16 %v568
      %v1797 = vunpack.c.l.b16 %v569
      %v1798 = vunpack.c.h.b16 %v569
      %v1799 = vunpack.c.l.b16 %v570
      %v1800 = vunpack.c.h.b16 %v570
      %v1801 = vunpack.c.l.b16 %v571
      %v1802 = vunpack.c.h.b16 %v571
      %v1803 = vunpack.c.l.b16 %v572
      %v1804 = vunpack.c.h.b16 %v572
      %v1805 = vunpack.c.l.b16 %v573
      %v1806 = vunpack.c.h.b16 %v573
      %v1807 = vunpack.c.l.b16 %v574
      %v1808 = vunpack.c.h.b16 %v574
      %v1809 = vunpack.c.l.b16 %v575
      %v1810 = vunpack.c.h.b16 %v575
      %v1811 = vunpack.c.l.b16 %v576
      %v1812 = vunpack.c.h.b16 %v576
      %v1813 = vunpack.c.l.b16 %v577
      %v1814 = vunpack.c.h.b16 %v577
      %v1815 = vunpack.c.l.b16 %v578
      %v1816 = vunpack.c.h.b16 %v578
      %v1817 = vunpack.c.l.b16 %v579
      %v1818 = vunpack.c.h.b16 %v579
      %v1819 = vunpack.c.l.b16 %v580
      %v1820 = vunpack.c.h.b16 %v580
      %v1821 = vunpack.c.l.b16 %v581
      %v1822 = vunpack.c.h.b16 %v581
      %v1823 = vunpack.c.l.b16 %v582
      %v1824 = vunpack.c.h.b16 %v582
      %v1825 = vunpack.c.l.b16 %v583
      %v1826 = vunpack.c.h.b16 %v583
      %v1827 = vunpack.c.l.b16 %v584
      %v1828 = vunpack.c.h.b16 %v584
      %v1829 = vunpack.c.l.b16 %v585
      %v1830 = vunpack.c.h.b16 %v585
      %v1831 = vunpack.c.l.b16 %v586
      %v1832 = vunpack.c.h.b16 %v586
      %v1833 = vunpack.c.l.b16 %v587
      %v1834 = vunpack.c.h.b16 %v587
      %v1835 = vunpack.c.l.b16 %v588
      %v1836 = vunpack.c.h.b16 %v588
      %v1837 = vunpack.c.l.b16 %v589
      %v1838 = vunpack.c.h.b16 %v589
      %v1839 = vunpack.c.l.b16 %v590
      %v1840 = vunpack.c.h.b16 %v590
      %v1841 = vunpack.c.l.b16 %v591
      %v1842 = vunpack.c.h.b16 %v591
      %v1843 = vunpack.c.l.b16 %v592
      %v1844 = vunpack.c.h.b16 %v592
      %v1845 = vunpack.c.l.b16 %v593
      %v1846 = vunpack.c.h.b16 %v593
      %v1847 = vunpack.c.l.b16 %v594
      %v1848 = vunpack.c.h.b16 %v594
      %v1849 = vunpack.c.l.b16 %v595
      %v1850 = vunpack.c.h.b16 %v595
      %v1851 = vunpack.c.l.b16 %v596
      %v1852 = vunpack.c.h.b16 %v596
      %v1853 = vunpack.c.l.b16 %v597
      %v1854 = vunpack.c.h.b16 %v597
      %v1855 = vunpack.c.l.b16 %v598
      %v1856 = vunpack.c.h.b16 %v598
      %v1857 = vunpack.c.l.b16 %v599
      %v1858 = vunpack.c.h.b16 %v599
      %v1859 = vunpack.c.l.b16 %v600
      %v1860 = vunpack.c.h.b16 %v600
      %v1861 = vunpack.c.l.b16 %v601
      %v1862 = vunpack.c.h.b16 %v601
      %v1863 = vunpack.c.l.b16 %v602
      %v1864 = vunpack.c.h.b16 %v602
      %v1865 = vunpack.c.l.b16 %v603
      %v1866 = vunpack.c.h.b16 %v603
      %v1867 = vunpack.c.l.b16 %v604
      %v1868 = vunpack.c.h.b16 %v604
      %v1869 = vunpack.c.l.b16 %v605
      %v1870 = vunpack.c.h.b16 %v605
      %v1871 = vunpack.c.l.b16 %v606
      %v1872 = vunpack.c.h.b16 %v606
      %v1873 = vunpack.c.l.b16 %v607
      %v1874 = vunpack.c.h.b16 %v607
      %v1875 = vunpack.c.l.b16 %v608
      %v1876 = vunpack.c.h.b16 %v608
      %v1877 = vunpack.c.l.b16 %v609
      %v1878 = vunpack.c.h.b16 %v609
      %v1879 = vunpack.c.l.b16 %v610
      %v1880 = vunpack.c.h.b16 %v610
      %v1881 = vunpack.c.l.b16 %v611
      %v1882 = vunpack.c.h.b16 %v611
      %v1883 = vunpack.c.l.b16 %v612
      %v1884 = vunpack.c.h.b16 %v612
      %v1885 = vunpack.c.l.b16 %v613
      %v1886 = vunpack.c.h.b16 %v613
      %v1887 = vunpack.c.l.b16 %v614
      %v1888 = vunpack.c.h.b16 %v614
      %v1889 = vunpack.c.l.b16 %v615
      %v1890 = vunpack.c.h.b16 %v615
      %v1891 = vunpack.c.l.b16 %v616
      %v1892 = vunpack.c.h.b16 %v616
      %v1893 = vunpack.c.l.b16 %v617
      %v1894 = vunpack.c.h.b16 %v617
      %v1895 = vunpack.c.l.b16 %v618
      %v1896 = vunpack.c.h.b16 %v618
      %v1897 = vunpack.c.l.b16 %v619
      %v1898 = vunpack.c.h.b16 %v619
      %v1899 = vunpack.c.l.b16 %v620
      %v1900 = vunpack.c.h.b16 %v620
      %v1901 = vunpack.c.l.b16 %v621
      %v1902 = vunpack.c.h.b16 %v621
      %v1903 = vunpack.c.l.b16 %v622
      %v1904 = vunpack.c.h.b16 %v622
      %v1905 = vunpack.c.l.b16 %v623
      %v1906 = vunpack.c.h.b16 %v623
      %v1907 = vunpack.c.l.b16 %v624
      %v1908 = vunpack.c.h.b16 %v624
      %v1909 = vunpack.c.l.b16 %v625
      %v1910 = vunpack.c.h.b16 %v625
      %v1911 = vunpack.c.l.b16 %v626
      %v1912 = vunpack.c.h.b16 %v626
      %v1913 = vunpack.c.l.b16 %v627
      %v1914 = vunpack.c.h.b16 %v627
      %v1915 = vunpack.c.l.b16 %v628
      %v1916 = vunpack.c.h.b16 %v628
      %v1917 = vunpack.c.l.b16 %v629
      %v1918 = vunpack.c.h.b16 %v629
      %v1919 = vunpack.c.l.b16 %v630
      %v1920 = vunpack.c.h.b16 %v630
      %v1921 = vunpack.c.l.b16 %v631
      %v1922 = vunpack.c.h.b16 %v631
      %v1923 = vunpack.c.l.b16 %v632
      %v1924 = vunpack.c.h.b16 %v632
      %v1925 = vunpack.c.l.b16 %v633
      %v1926 = vunpack.c.h.b16 %v633
      %v1927 = vunpack.c.l.b16 %v634
      %v1928 = vunpack.c.h.b16 %v634
      %v1929 = vunpack.c.l.b16 %v635
      %v1930 = vunpack.c.h.b16 %v635
      %v1931 = vunpack.c.l.b16 %v636
      %v1932 = vunpack.c.h.b16 %v636
      %v1933 = vunpack.c.l.b16 %v637
      %v1934 = vunpack.c.h.b16 %v637
      %v1935 = vunpack.c.l.b16 %v638
      %v1936 = vunpack.c.h.b16 %v638
      %v1937 = vunpack.c.l.b16 %v639
      %v1938 = vunpack.c.h.b16 %v639
      %v1939 = vunpack.c.l.b16 %v640
      %v1940 = vunpack.c.h.b16 %v640
      %v1941 = vunpack.c.l.b16 %v641
      %v1942 = vunpack.c.h.b16 %v641
      %v1943 = vunpack.c.l.b16 %v642
      %v1944 = vunpack.c.h.b16 %v642
      %v1945 = vunpack.c.l.b16 %v643
      %v1946 = vunpack.c.h.b16 %v643
      %v1947 = vunpack.c.l.b16 %v644
      %v1948 = vunpack.c.h.b16 %v644
      %v1949 = vunpack.c.l.b16 %v645
      %v1950 = vunpack.c.h.b16 %v645
      %v1951 = vunpack.c.l.b16 %v646
      %v1952 = vunpack.c.h.b16 %v646
      %v1953 = vunpack.c.l.b16 %v647
      %v1954 = vunpack.c.h.b16 %v647
      %v1955 = vunpack.c.l.b16 %v648
      %v1956 = vunpack.c.h.b16 %v648
      %v1957 = vunpack.c.l.b16 %v649
      %v1958 = vunpack.c.h.b16 %v649
      %v1959 = vunpack.c.l.b16 %v650
      %v1960 = vunpack.c.h.b16 %v650
      %v1961 = vunpack.c.l.b16 %v651
      %v1962 = vunpack.c.h.b16 %v651
      %v1963 = vunpack.c.l.b16 %v652
      %v1964 = vunpack.c.h.b16 %v652
      %v1965 = vunpack.c.l.b16 %v653
      %v1966 = vunpack.c.h.b16 %v653
      %v1967 = vunpack.c.l.b16 %v654
      %v1968 = vunpack.c.h.b16 %v654
      %v1969 = vunpack.c.l.b16 %v655
      %v1970 = vunpack.c.h.b16 %v655
      %v1971 = vunpack.c.l.b16 %v656
      %v1972 = vunpack.c.h.b16 %v656
      %v1973 = vunpack.c.l.b16 %v657
      %v1974 = vunpack.c.h.b16 %v657
      %v1975 = vunpack.c.l.b16 %v658
      %v1976 = vunpack.c.h.b16 %v658
      %v1977 = vunpack.c.l.b16 %v659
      %v1978 = vunpack.c.h.b16 %v659
      %v1979 = vunpack.c.l.b16 %v660
      %v1980 = vunpack.c.h.b16 %v660
      %v1981 = vunpack.c.l.b16 %v661
      %v1982 = vunpack.c.h.b16 %v661
      %v1983 = vunpack.c.l.b16 %v662
      %v1984 = vunpack.c.h.b16 %v662
      %v1985 = vunpack.c.l.b16 %v663
      %v1986 = vunpack.c.h.b16 %v663
      %v1987 = vunpack.c.l.b16 %v664
      %v1988 = vunpack.c.h.b16 %v664
      %v1989 = vunpack.c.l.b16 %v665
      %v1990 = vunpack.c.h.b16 %v665
      %v1991 = vunpack.c.l.b16 %v666
      %v1992 = vunpack.c.h.b16 %v666
      %v1993 = vunpack.c.l.b16 %v667
      %v1994 = vunpack.c.h.b16 %v667
      %v1995 = vunpack.c.l.b16 %v668
      %v1996 = vunpack.c.h.b16 %v668
      %v1997 = vunpack.c.l.b16 %v669
      %v1998 = vunpack.c.h.b16 %v669
      %v1999 = vunpack.c.l.b16 %v670
      %v2000 = vunpack.c.h.b16 %v670
      %v2001 = vunpack.c.l.b16 %v671
      %v2002 = vunpack.c.h.b16 %v671
      %v2003 = vunpack.c.l.b16 %v672
      %v2004 = vunpack.c.h.b16 %v672
      %v2005 = vunpack.c.l.b16 %v673
      %v2006 = vunpack.c.h.b16 %v673
      %v2007 = vunpack.c.l.b16 %v674
      %v2008 = vunpack.c.h.b16 %v674
      %v2009 = vunpack.c.l.b16 %v675
      %v2010 = vunpack.c.h.b16 %v675
      %v2011 = vunpack.c.l.b16 %v676
      %v2012 = vunpack.c.h.b16 %v676
      %v2013 = vunpack.c.l.b16 %v677
      %v2014 = vunpack.c.h.b16 %v677
      %v2015 = vunpack.c.l.b16 %v678
      %v2016 = vunpack.c.h.b16 %v678
      %v2017 = vunpack.c.l.b16 %v679
      %v2018 = vunpack.c.h.b16 %v679
      %v2019 = vunpack.c.l.b16 %v680
      %v2020 = vunpack.c.h.b16 %v680
      %v2021 = vunpack.c.l.b16 %v681
      %v2022 = vunpack.c.h.b16 %v681
      %v2023 = vunpack.c.l.b16 %v682
      %v2024 = vunpack.c.h.b16 %v682
      %v2025 = vunpack.c.l.b16 %v683
      %v2026 = vunpack.c.h.b16 %v683
      %v2027 = vunpack.c.l.b16 %v684
      %v2028 = vunpack.c.h.b16 %v684
      %v2029 = vunpack.c.l.b16 %v685
      %v2030 = vunpack.c.h.b16 %v685
      %v2031 = vunpack.c.l.b16 %v686
      %v2032 = vunpack.c.h.b16 %v686
      %v2033 = vunpack.c.l.b16 %v687
      %v2034 = vunpack.c.h.b16 %v687
      %v2035 = vunpack.c.l.b16 %v688
      %v2036 = vunpack.c.h.b16 %v688
      %v2037 = vunpack.c.l.b16 %v689
      %v2038 = vunpack.c.h.b16 %v689
      %v2039 = vunpack.c.l.b16 %v690
      %v2040 = vunpack.c.h.b16 %v690
      %v2041 = vunpack.c.l.b16 %v691
      %v2042 = vunpack.c.h.b16 %v691
      %v2043 = vunpack.c.l.b16 %v692
      %v2044 = vunpack.c.h.b16 %v692
      %v2045 = vunpack.c.l.b16 %v693
      %v2046 = vunpack.c.h.b16 %v693
      %v2047 = vunpack.c.l.b16 %v694
      %v2048 = vunpack.c.h.b16 %v694
      %v2049 = vunpack.c.l.b16 %v695
      %v2050 = vunpack.c.h.b16 %v695
      %v2051 = vunpack.c.l.b16 %v696
      %v2052 = vunpack.c.h.b16 %v696
      %v2053 = vunpack.c.l.b16 %v697
      %v2054 = vunpack.c.h.b16 %v697
      %v2055 = vunpack.c.l.b16 %v698
      %v2056 = vunpack.c.h.b16 %v698
      %v2057 = vunpack.c.l.b16 %v699
      %v2058 = vunpack.c.h.b16 %v699
      %v2059 = vunpack.c.l.b16 %v700
      %v2060 = vunpack.c.h.b16 %v700
      %v2061 = vunpack.c.l.b16 %v701
      %v2062 = vunpack.c.h.b16 %v701
      %v2063 = vunpack.c.l.b16 %v702
      %v2064 = vunpack.c.h.b16 %v702
      %v2065 = vunpack.c.l.b16 %v703
      %v2066 = vunpack.c.h.b16 %v703
      %v2067 = vunpack.c.l.b16 %v704
      %v2068 = vunpack.c.h.b16 %v704
      %v2069 = vunpack.c.l.b16 %v705
      %v2070 = vunpack.c.h.b16 %v705
      %v2071 = vunpack.c.l.b16 %v706
      %v2072 = vunpack.c.h.b16 %v706
      %v2073 = vunpack.c.l.b16 %v707
      %v2074 = vunpack.c.h.b16 %v707
      %v2075 = vunpack.c.l.b16 %v708
      %v2076 = vunpack.c.h.b16 %v708
      %v2077 = vunpack.c.l.b16 %v709
      %v2078 = vunpack.c.h.b16 %v709
      %v2079 = vunpack.c.l.b16 %v710
      %v2080 = vunpack.c.h.b16 %v710
      %v2081 = vunpack.c.l.b16 %v711
      %v2082 = vunpack.c.h.b16 %v711
      %v2083 = vunpack.c.l.b16 %v712
      %v2084 = vunpack.c.h.b16 %v712
      %v2085 = vunpack.c.l.b16 %v713
      %v2086 = vunpack.c.h.b16 %v713
      %v2087 = vunpack.c.l.b16 %v714
      %v2088 = vunpack.c.h.b16 %v714
      %v2089 = vunpack.c.l.b16 %v715
      %v2090 = vunpack.c.h.b16 %v715
      %v2091 = vunpack.c.l.b16 %v716
      %v2092 = vunpack.c.h.b16 %v716
      %v2093 = vunpack.c.l.b16 %v717
      %v2094 = vunpack.c.h.b16 %v717
      %v2095 = vunpack.c.l.b16 %v718
      %v2096 = vunpack.c.h.b16 %v718
      %v2097 = vunpack.c.l.b16 %v719
      %v2098 = vunpack.c.h.b16 %v719
      %v2099 = vunpack.c.l.b16 %v720
      %v2100 = vunpack.c.h.b16 %v720
      %v2101 = vunpack.c.l.b16 %v721
      %v2102 = vunpack.c.h.b16 %v721
      %v2103 = vunpack.c.l.b16 %v722
      %v2104 = vunpack.c.h.b16 %v722
      %v2105 = vunpack.c.l.b16 %v723
      %v2106 = vunpack.c.h.b16 %v723
      %v2107 = vunpack.c.l.b16 %v724
      %v2108 = vunpack.c.h.b16 %v724
      %v2109 = vpack.c.b16 %v1775, %v1773
      %v2110 = vpack.c.b16 %v1776, %v1774
      %v2111 = vpack.c.b16 %v1779, %v1777
      %v2112 = vpack.c.b16 %v1780, %v1778
      %v2113 = vpack.c.b16 %v1783, %v1781
      %v2114 = vpack.c.b16 %v1784, %v1782
      %v2115 = vpack.c.b16 %v1787, %v1785
      %v2116 = vpack.c.b16 %v1788, %v1786
      %v2117 = vpack.c.b16 %v1791, %v1789
      %v2118 = vpack.c.b16 %v1792, %v1790
      %v2119 = vpack.c.b16 %v1795, %v1793
      %v2120 = vpack.c.b16 %v1796, %v1794
      %v2121 = vpack.c.b16 %v1799, %v1797
      %v2122 = vpack.c.b16 %v1800, %v1798
      %v2123 = vpack.c.b16 %v1803, %v1801
      %v2124 = vpack.c.b16 %v1804, %v1802
      %v2125 = vpack.c.b16 %v1807, %v1805
      %v2126 = vpack.c.b16 %v1808, %v1806
      %v2127 = vpack.c.b16 %v1811, %v1809
      %v2128 = vpack.c.b16 %v1812, %v1810
      %v2129 = vpack.c.b16 %v1815, %v1813
      %v2130 = vpack.c.b16 %v1816, %v1814
      %v2131 = vpack.c.b16 %v1819, %v1817
      %v2132 = vpack.c.b16 %v1820, %v1818
      %v2133 = vpack.c.b16 %v1823, %v1821
      %v2134 = vpack.c.b16 %v1824, %v1822
      %v2135 = vpack.c.b16 %v1827, %v1825
      %v2136 = vpack.c.b16 %v1828, %v1826
      %v2137 = vpack.c.b16 %v1831, %v1829
      %v2138 = vpack.c.b16 %v1832, %v1830
      %v2139 = vpack.c.b16 %v1835, %v1833
      %v2140 = vpack.c.b16 %v1836, %v1834
      %v2141 = vpack.c.b16 %v1839, %v1837
      %v2142 = vpack.c.b16 %v1840, %v1838
      %v2143 = vpack.c.b16 %v1843, %v1841
      %v2144 = vpack.c.b16 %v1844, %v1842
      %v2145 = vpack.c.b16 %v1847, %v1845
      %v2146 = vpack.c.b16 %v1848, %v1846
      %v2147 = vpack.c.b16 %v1851, %v1849
      %v2148 = vpack.c.b16 %v1852, %v1850
      %v2149 = vpack.c.b16 %v1855, %v1853
      %v2150 = vpack.c.b16 %v1856, %v1854
      %v2151 = vpack.c.b16 %v1859, %v1857
      %v2152 = vpack.c.b16 %v1860, %v1858
      %v2153 = vpack.c.b16 %v1863, %v1861
      %v2154 = vpack.c.b16 %v1864, %v1862
      %v2155 = vpack.c.b16 %v1867, %v1865
      %v2156 = vpack.c.b16 %v1868, %v1866
      %v2157 = vpack.c.b16 %v1871, %v1869
      %v2158 = vpack.c.b16 %v1872, %v1870
      %v2159 = vpack.c.b16 %v1875, %v1873
      %v2160 = vpack.c.b16 %v1876, %v1874
      %v2161 = vpack.c.b16 %v1879, %v1877
      %v2162 = vpack.c.b16 %v1880, %v1878
      %v2163 = vpack.c.b16 %v1883, %v1881
      %v2164 = vpack.c.b16 %v1884, %v1882
      %v2165 = vpack.c.b16 %v1887, %v1885
      %v2166 = vpack.c.b16 %v1888, %v1886
      %v2167 = vpack.c.b16 %v1891, %v1889
      %v2168 = vpack.c.b16 %v1892, %v1890
      %v2169 = vpack.c.b16 %v1895, %v1893
      %v2170 = vpack.c.b16 %v1896, %v1894
      %v2171 = vpack.c.b16 %v1899, %v1897
      %v2172 = vpack.c.b16 %v1900, %v1898
      %v2173 = vpack.c.b16 %v1903, %v1901
      %v2174 = vpack.c.b16 %v1904, %v1902
      %v2175 = vpack.c.b16 %v1907, %v1905
      %v2176 = vpack.c.b16 %v1908, %v1906
      %v2177 = vpack.c.b16 %v1911, %v1909
      %v2178 = vpack.c.b16 %v1912, %v1910
      %v2179 = vpack.c.b16 %v1915, %v1913
      %v2180 = vpack.c.b16 %v1916, %v1914
      %v2181 = vpack.c.b16 %v1919, %v1917
      %v2182 = vpack.c.b16 %v1920, %v1918
      %v2183 = vpack.c.b16 %v1923, %v1921
      %v2184 = vpack.c.b16 %v1924, %v1922
      %v2185 = vpack.c.b16 %v1927, %v1925
      %v2186 = vpack.c.b16 %v1928, %v1926
      %v2187 = vpack.c.b16 %v1931, %v1929
      %v2188 = vpack.c.b16 %v1932, %v1930
      %v2189 = vpack.c.b16 %v1935, %v1933
      %v2190 = vpack.c.b16 %v1936, %v1934
      %v2191 = vpack.c.b16 %v1939, %v1937
      %v2192 = vpack.c.b16 %v1940, %v1938
      %v2193 = vpack.c.b16 %v1943, %v1941
      %v2194 = vpack.c.b16 %v1944, %v1942
      %v2195 = vpack.c.b16 %v1947, %v1945
      %v2196 = vpack.c.b16 %v1948, %v1946
      %v2197 = vpack.c.b16 %v1951, %v1949
      %v2198 = vpack.c.b16 %v1952, %v1950
      %v2199 = vpack.c.b16 %v1955, %v1953
      %v2200 = vpack.c.b16 %v1956, %v1954
      %v2201 = vpack.c.b16 %v1959, %v1957
      %v2202 = vpack.c.b16 %v1960, %v1958
      %v2203 = vpack.c.b16 %v1963, %v1961
      %v2204 = vpack.c.b16 %v1964, %v1962
      %v2205 = vpack.c.b16 %v1967, %v1965
      %v2206 = vpack.c.b16 %v1968, %v1966
      %v2207 = vpack.c.b16 %v1971, %v1969
      %v2208 = vpack.c.b16 %v1972, %v1970
      %v2209 = vpack.c.b16 %v1975, %v1973
      %v2210 = vpack.c.b16 %v1976, %v1974
      %v2211 = vpack.c.b16 %v1979, %v1977
      %v2212 = vpack.c.b16 %v1980, %v1978
      %v2213 = vpack.c.b16 %v1983, %v1981
      %v2214 = vpack.c.b16 %v1984, %v1982
      %v2215 = vpack.c.b16 %v1987, %v1985
      %v2216 = vpack.c.b16 %v1988, %v1986
      %v2217 = vpack.c.b16 %v1991, %v1989
      %v2218 = vpack.c.b16 %v1992, %v1990
      %v2219 = vpack.c.b16 %v1995, %v1993
      %v2220 = vpack.c.b16 %v1996, %v1994
      %v2221 = vpack.c.b16 %v1999, %v1997
      %v2222 = vpack.c.b16 %v2000, %v1998
      %v2223 = vpack.c.b16 %v2003, %v2001
      %v2224 = vpack.c.b16 %v2004, %v2002
      %v2225 = vpack.c.b16 %v2007, %v2005
      %v2226 = vpack.c.b16 %v2008, %v2006
      %v2227 = vpack.c.b16 %v2011, %v2009
      %v2228 = vpack.c.b16 %v2012, %v2010
      %v2229 = vpack.c.b16 %v2015, %v2013
      %v2230 = vpack.c.b16 %v2016, %v2014
      %v2231 = vpack.c.b16 %v2019, %v2017
      %v2232 = vpack.c.b16 %v2020, %v2018
      %v2233 = vpack.c.b16 %v2023, %v2021
      %v2234 = vpack.c.b16 %v2024, %v2022
      %v2235 = vpack.c.b16 %v2027, %v2025
      %v2236 = vpack.c.b16 %v2028, %v2026
      %v2237 = vpack.c.b16 %v2031, %v2029
      %v2238 = vpack.c.b16 %v2032, %v2030
      %v2239 = vpack.c.b16 %v2035, %v2033
      %v2240 = vpack.c.b16 %v2036, %v2034
      %v2241 = vpack.c.b16 %v2039, %v2037
      %v2242 = vpack.c.b16 %v2040, %v2038
      %v2243 = vpack.c.b16 %v2043, %v2041
      %v2244 = vpack.c.b16 %v2044, %v2042
      %v2245 = vpack.c.b16 %v2047, %v2045
      %v2246 = vpack.c.b16 %v2048, %v2046
      %v2247 = vpack.c.b16 %v2051, %v2049
      %v2248 = vpack.c.b16 %v2052, %v2050
      %v2249 = vpack.c.b16 %v2055, %v2053
      %v2250 = vpack.c.b16 %v2056, %v2054
      %v2251 = vpack.c.b16 %v2059, %v2057
      %v2252 = vpack.c.b16 %v2060, %v2058
      %v2253 = vpack.c.b16 %v2063, %v2061
      %v2254 = vpack.c.b16 %v2064, %v2062
      %v2255 = vpack.c.b16 %v2067, %v2065
      %v2256 = vpack.c.b16 %v2068, %v2066
      %v2257 = vpack.c.b16 %v2071, %v2069
      %v2258 = vpack.c.b16 %v2072, %v2070
      %v2259 = vpack.c.b16 %v2075, %v2073
      %v2260 = vpack.c.b16 %v2076, %v2074
      %v2261 = vpack.c.b16 %v2079, %v2077
      %v2262 = vpack.c.b16 %v2080, %v2078
      %v2263 = vpack.c.b16 %v2083, %v2081
      %v2264 = vpack.c.b16 %v2084, %v2082
      %v2265 = vpack.c.b16 %v2087, %v2085
      %v2266 = vpack.c.b16 %v2088, %v2086
      %v2267 = vpack.c.b16 %v2091, %v2089
      %v2268 = vpack.c.b16 %v2092, %v2090
      %v2269 = vpack.c.b16 %v2095, %v2093
      %v2270 = vpack.c.b16 %v2096, %v2094
      %v2271 = vpack.c.b16 %v2099, %v2097
      %v2272 = vpack.c.b16 %v2100, %v2098
      %v2273 = vpack.c.b16 %v2103, %v2101
      %v2274 = vpack.c.b16 %v2104, %v2102
      %v2275 = vpack.c.b16 %v2107, %v2105
      %v2276 = vpack.c.b16 %v2108, %v2106
      %vm2445 = vcmask 523264
      %v2447 = vsel %vm2445, %v1279, 0
      %v2450 = vsel %vm2445, %v1290, 0
      %v2453 = vsel %vm2445, %v1301, 0
      %v2456 = vsel %vm2445, %v1312, 0
      %v2459 = vsel %vm2445, %v1323, 0
      %v2462 = vsel %vm2445, %v1334, 0
      %v2465 = vsel %vm2445, %v1345, 0
      %v2468 = vsel %vm2445, %v1356, 0
      %v2471 = vsel %vm2445, %v1367, 0
      %v2474 = vsel %vm2445, %v1378, 0
      %v2477 = vsel %vm2445, %v1389, 0
      %v2480 = vsel %vm2445, %v1400, 0
      %v2483 = vsel %vm2445, %v1411, 0
      %v2486 = vsel %vm2445, %v1422, 0
      %v2489 = vsel %vm2445, %v1433, 0
      %v2492 = vsel %vm2445, %v1444, 0
      %2494 = vmatprep.subr.bf16.mxu0 %v2124
      %2495 = vmatpush1.bf16.msra.mxu0 %v2123
      %2496 = vmatprep.subr.bf16.mxu0 %v2122
      %2497 = vmatpush1.bf16.msra.mxu0 %v2121
      %2498 = vmatprep.subr.bf16.mxu0 %v2120
      %2499 = vmatpush1.bf16.msra.mxu0 %v2119
      %2500 = vmatprep.subr.bf16.mxu0 %v2118
      %2501 = vmatpush1.bf16.msra.mxu0 %v2117
      %2502 = vmatprep.subr.bf16.mxu0 %v2116
      %2503 = vmatpush1.bf16.msra.mxu0 %v2115
      %2504 = vmatprep.subr.bf16.mxu0 %v2114
      %2505 = vmatpush1.bf16.msra.mxu0 %v2113
      %2506 = vmatprep.subr.bf16.mxu0 %v2112
      %2507 = vmatpush1.bf16.msra.mxu0 %v2111
      %2508 = vmatprep.subr.bf16.mxu0 %v2110
      %2509 = vmatpush1.bf16.msra.mxu0 %v2109
      %2510 = vmatprep.subr.bf16.mxu0 %v2140
      %2511 = vmatpush2.bf16.msra.mxu0 %v2139
      %2512 = vmatprep.subr.bf16.mxu0 %v2138
      %2513 = vmatpush2.bf16.msra.mxu0 %v2137
      %2514 = vmatprep.subr.bf16.mxu0 %v2136
      %2515 = vmatpush2.bf16.msra.mxu0 %v2135
      %2516 = vmatprep.subr.bf16.mxu0 %v2134
      %2517 = vmatpush2.bf16.msra.mxu0 %v2133
      %2518 = vmatprep.subr.bf16.mxu0 %v2132
      %2519 = vmatpush2.bf16.msra.mxu0 %v2131
      %2520 = vmatprep.subr.bf16.mxu0 %v2130
      %2521 = vmatpush2.bf16.msra.mxu0 %v2129
      %2522 = vmatprep.subr.bf16.mxu0 %v2128
      %2523 = vmatpush2.bf16.msra.mxu0 %v2127
      %2524 = vmatprep.subr.bf16.mxu0 %v2126
      %2525 = vmatpush2.bf16.msra.mxu0 %v2125
      %2526 = vmatprep.mubr.bf16.mxu0 %v1270
      %2527 = vmatmul.mubr.bf16.gmra.mxu0 %v1269
      %v2528 = vpop.f32.mrf.mxu0
      %v2529 = vadd.f32 0.0, %v2528
      %v2530 = vpop.f32.mrf.mxu0
      %v2531 = vadd.f32 0.0, %v2530
      %v2532 = vpop.f32.mrf.mxu0
      %v2533 = vadd.f32 0.0, %v2532
      %v2534 = vpop.f32.mrf.mxu0
      %v2535 = vadd.f32 0.0, %v2534
      %2536 = vmatprep.mubr.bf16.mxu0 %v1281
      %2537 = vmatmul.mubr.bf16.gmra.mxu0 %v1280
      %v2538 = vpop.f32.mrf.mxu0
      %v2539 = vadd.f32 0.0, %v2538
      %v2540 = vpop.f32.mrf.mxu0
      %v2541 = vadd.f32 0.0, %v2540
      %v2542 = vpop.f32.mrf.mxu0
      %v2543 = vadd.f32 0.0, %v2542
      %v2544 = vpop.f32.mrf.mxu0
      %v2545 = vadd.f32 0.0, %v2544
      %2546 = vmatprep.mubr.bf16.mxu0 %v1292
      %2547 = vmatmul.mubr.bf16.gmra.mxu0 %v1291
      %v2548 = vpop.f32.mrf.mxu0
      %v2549 = vadd.f32 0.0, %v2548
      %v2550 = vpop.f32.mrf.mxu0
      %v2551 = vadd.f32 0.0, %v2550
      %v2552 = vpop.f32.mrf.mxu0
      %v2553 = vadd.f32 0.0, %v2552
      %v2554 = vpop.f32.mrf.mxu0
      %v2555 = vadd.f32 0.0, %v2554
      %2556 = vmatprep.mubr.bf16.mxu0 %v1303
      %2557 = vmatmul.mubr.bf16.gmra.mxu0 %v1302
      %v2558 = vpop.f32.mrf.mxu0
      %v2559 = vadd.f32 0.0, %v2558
      %v2560 = vpop.f32.mrf.mxu0
      %v2561 = vadd.f32 0.0, %v2560
      %v2562 = vpop.f32.mrf.mxu0
      %v2563 = vadd.f32 0.0, %v2562
      %v2564 = vpop.f32.mrf.mxu0
      %v2565 = vadd.f32 0.0, %v2564
      %2566 = vmatprep.mubr.bf16.mxu0 %v1314
      %2567 = vmatmul.mubr.bf16.gmra.mxu0 %v1313
      %v2568 = vpop.f32.mrf.mxu0
      %v2569 = vadd.f32 0.0, %v2568
      %v2570 = vpop.f32.mrf.mxu0
      %v2571 = vadd.f32 0.0, %v2570
      %v2572 = vpop.f32.mrf.mxu0
      %v2573 = vadd.f32 0.0, %v2572
      %v2574 = vpop.f32.mrf.mxu0
      %v2575 = vadd.f32 0.0, %v2574
      %2576 = vmatprep.mubr.bf16.mxu0 %v1325
      %2577 = vmatmul.mubr.bf16.gmra.mxu0 %v1324
      %v2578 = vpop.f32.mrf.mxu0
      %v2579 = vadd.f32 0.0, %v2578
      %v2580 = vpop.f32.mrf.mxu0
      %v2581 = vadd.f32 0.0, %v2580
      %v2582 = vpop.f32.mrf.mxu0
      %v2583 = vadd.f32 0.0, %v2582
      %v2584 = vpop.f32.mrf.mxu0
      %v2585 = vadd.f32 0.0, %v2584
      %2586 = vmatprep.mubr.bf16.mxu0 %v1336
      %2587 = vmatmul.mubr.bf16.gmra.mxu0 %v1335
      %v2588 = vpop.f32.mrf.mxu0
      %v2589 = vadd.f32 0.0, %v2588
      %v2590 = vpop.f32.mrf.mxu0
      %v2591 = vadd.f32 0.0, %v2590
      %v2592 = vpop.f32.mrf.mxu0
      %v2593 = vadd.f32 0.0, %v2592
      %v2594 = vpop.f32.mrf.mxu0
      %v2595 = vadd.f32 0.0, %v2594
      %2596 = vmatprep.mubr.bf16.mxu0 %v1347
      %2597 = vmatmul.mubr.bf16.gmra.mxu0 %v1346
      %v2598 = vpop.f32.mrf.mxu0
      %v2599 = vadd.f32 0.0, %v2598
      %v2600 = vpop.f32.mrf.mxu0
      %v2601 = vadd.f32 0.0, %v2600
      %v2602 = vpop.f32.mrf.mxu0
      %v2603 = vadd.f32 0.0, %v2602
      %v2604 = vpop.f32.mrf.mxu0
      %v2605 = vadd.f32 0.0, %v2604
      %2606 = vmatprep.mubr.bf16.mxu0 %v1358
      %2607 = vmatmul.mubr.bf16.gmra.mxu0 %v1357
      %v2608 = vpop.f32.mrf.mxu0
      %v2609 = vadd.f32 0.0, %v2608
      %v2610 = vpop.f32.mrf.mxu0
      %v2611 = vadd.f32 0.0, %v2610
      %v2612 = vpop.f32.mrf.mxu0
      %v2613 = vadd.f32 0.0, %v2612
      %v2614 = vpop.f32.mrf.mxu0
      %v2615 = vadd.f32 0.0, %v2614
      %2616 = vmatprep.mubr.bf16.mxu0 %v1369
      %2617 = vmatmul.mubr.bf16.gmra.mxu0 %v1368
      %v2618 = vpop.f32.mrf.mxu0
      %v2619 = vadd.f32 0.0, %v2618
      %v2620 = vpop.f32.mrf.mxu0
      %v2621 = vadd.f32 0.0, %v2620
      %v2622 = vpop.f32.mrf.mxu0
      %v2623 = vadd.f32 0.0, %v2622
      %v2624 = vpop.f32.mrf.mxu0
      %v2625 = vadd.f32 0.0, %v2624
      %2626 = vmatprep.mubr.bf16.mxu0 %v1380
      %2627 = vmatmul.mubr.bf16.gmra.mxu0 %v1379
      %v2628 = vpop.f32.mrf.mxu0
      %v2629 = vadd.f32 0.0, %v2628
      %v2630 = vpop.f32.mrf.mxu0
      %v2631 = vadd.f32 0.0, %v2630
      %v2632 = vpop.f32.mrf.mxu0
      %v2633 = vadd.f32 0.0, %v2632
      %v2634 = vpop.f32.mrf.mxu0
      %v2635 = vadd.f32 0.0, %v2634
      %2636 = vmatprep.mubr.bf16.mxu0 %v1391
      %2637 = vmatmul.mubr.bf16.gmra.mxu0 %v1390
      %v2638 = vpop.f32.mrf.mxu0
      %v2639 = vadd.f32 0.0, %v2638
      %v2640 = vpop.f32.mrf.mxu0
      %v2641 = vadd.f32 0.0, %v2640
      %v2642 = vpop.f32.mrf.mxu0
      %v2643 = vadd.f32 0.0, %v2642
      %v2644 = vpop.f32.mrf.mxu0
      %v2645 = vadd.f32 0.0, %v2644
      %2646 = vmatprep.mubr.bf16.mxu0 %v1402
      %2647 = vmatmul.mubr.bf16.gmra.mxu0 %v1401
      %v2648 = vpop.f32.mrf.mxu0
      %v2649 = vadd.f32 0.0, %v2648
      %v2650 = vpop.f32.mrf.mxu0
      %v2651 = vadd.f32 0.0, %v2650
      %v2652 = vpop.f32.mrf.mxu0
      %v2653 = vadd.f32 0.0, %v2652
      %v2654 = vpop.f32.mrf.mxu0
      %v2655 = vadd.f32 0.0, %v2654
      %2656 = vmatprep.mubr.bf16.mxu0 %v1413
      %2657 = vmatmul.mubr.bf16.gmra.mxu0 %v1412
      %v2658 = vpop.f32.mrf.mxu0
      %v2659 = vadd.f32 0.0, %v2658
      %v2660 = vpop.f32.mrf.mxu0
      %v2661 = vadd.f32 0.0, %v2660
      %v2662 = vpop.f32.mrf.mxu0
      %v2663 = vadd.f32 0.0, %v2662
      %v2664 = vpop.f32.mrf.mxu0
      %v2665 = vadd.f32 0.0, %v2664
      %2666 = vmatprep.mubr.bf16.mxu0 %v1424
      %2667 = vmatmul.mubr.bf16.gmra.mxu0 %v1423
      %v2668 = vpop.f32.mrf.mxu0
      %v2669 = vadd.f32 0.0, %v2668
      %v2670 = vpop.f32.mrf.mxu0
      %v2671 = vadd.f32 0.0, %v2670
      %v2672 = vpop.f32.mrf.mxu0
      %v2673 = vadd.f32 0.0, %v2672
      %v2674 = vpop.f32.mrf.mxu0
      %v2675 = vadd.f32 0.0, %v2674
      %2676 = vmatprep.mubr.bf16.mxu0 %v1435
      %2677 = vmatmul.mubr.bf16.gmra.mxu0 %v1434
      %v2678 = vpop.f32.mrf.mxu0
      %v2679 = vadd.f32 0.0, %v2678
      %v2680 = vpop.f32.mrf.mxu0
      %v2681 = vadd.f32 0.0, %v2680
      %v2682 = vpop.f32.mrf.mxu0
      %v2683 = vadd.f32 0.0, %v2682
      %v2684 = vpop.f32.mrf.mxu0
      %v2685 = vadd.f32 0.0, %v2684
      %2686 = vdwg.mxu0
      %2687 = vmatprep.subr.bf16.mxu0 %v2156
      %2688 = vmatpush1.bf16.msra.mxu0 %v2155
      %2689 = vmatprep.subr.bf16.mxu0 %v2154
      %2690 = vmatpush1.bf16.msra.mxu0 %v2153
      %2691 = vmatprep.subr.bf16.mxu0 %v2152
      %2692 = vmatpush1.bf16.msra.mxu0 %v2151
      %2693 = vmatprep.subr.bf16.mxu0 %v2150
      %2694 = vmatpush1.bf16.msra.mxu0 %v2149
      %2695 = vmatprep.subr.bf16.mxu0 %v2148
      %2696 = vmatpush1.bf16.msra.mxu0 %v2147
      %2697 = vmatprep.subr.bf16.mxu0 %v2146
      %2698 = vmatpush1.bf16.msra.mxu0 %v2145
      %2699 = vmatprep.subr.bf16.mxu0 %v2144
      %2700 = vmatpush1.bf16.msra.mxu0 %v2143
      %2701 = vmatprep.subr.bf16.mxu0 %v2142
      %2702 = vmatpush1.bf16.msra.mxu0 %v2141
      %2703 = vmatprep.subr.bf16.mxu0 %v2172
      %2704 = vmatpush2.bf16.msra.mxu0 %v2171
      %2705 = vmatprep.subr.bf16.mxu0 %v2170
      %2706 = vmatpush2.bf16.msra.mxu0 %v2169
      %2707 = vmatprep.subr.bf16.mxu0 %v2168
      %2708 = vmatpush2.bf16.msra.mxu0 %v2167
      %2709 = vmatprep.subr.bf16.mxu0 %v2166
      %2710 = vmatpush2.bf16.msra.mxu0 %v2165
      %2711 = vmatprep.subr.bf16.mxu0 %v2164
      %2712 = vmatpush2.bf16.msra.mxu0 %v2163
      %2713 = vmatprep.subr.bf16.mxu0 %v2162
      %2714 = vmatpush2.bf16.msra.mxu0 %v2161
      %2715 = vmatprep.subr.bf16.mxu0 %v2160
      %2716 = vmatpush2.bf16.msra.mxu0 %v2159
      %2717 = vmatprep.subr.bf16.mxu0 %v2158
      %2718 = vmatpush2.bf16.msra.mxu0 %v2157
      %2719 = vmatprep.mubr.bf16.mxu0 %v1272
      %2720 = vmatmul.mubr.bf16.gmra.mxu0 %v1271
      %v2721 = vpop.f32.mrf.mxu0
      %v2722 = vadd.f32 %v2529, %v2721
      %v2723 = vpop.f32.mrf.mxu0
      %v2724 = vadd.f32 %v2531, %v2723
      %v2725 = vpop.f32.mrf.mxu0
      %v2726 = vadd.f32 %v2533, %v2725
      %v2727 = vpop.f32.mrf.mxu0
      %v2728 = vadd.f32 %v2535, %v2727
      %2729 = vmatprep.mubr.bf16.mxu0 %v1283
      %2730 = vmatmul.mubr.bf16.gmra.mxu0 %v1282
      %v2731 = vpop.f32.mrf.mxu0
      %v2732 = vadd.f32 %v2539, %v2731
      %v2733 = vpop.f32.mrf.mxu0
      %v2734 = vadd.f32 %v2541, %v2733
      %v2735 = vpop.f32.mrf.mxu0
      %v2736 = vadd.f32 %v2543, %v2735
      %v2737 = vpop.f32.mrf.mxu0
      %v2738 = vadd.f32 %v2545, %v2737
      %2739 = vmatprep.mubr.bf16.mxu0 %v1294
      %2740 = vmatmul.mubr.bf16.gmra.mxu0 %v1293
      %v2741 = vpop.f32.mrf.mxu0
      %v2742 = vadd.f32 %v2549, %v2741
      %v2743 = vpop.f32.mrf.mxu0
      %v2744 = vadd.f32 %v2551, %v2743
      %v2745 = vpop.f32.mrf.mxu0
      %v2746 = vadd.f32 %v2553, %v2745
      %v2747 = vpop.f32.mrf.mxu0
      %v2748 = vadd.f32 %v2555, %v2747
      %2749 = vmatprep.mubr.bf16.mxu0 %v1305
      %2750 = vmatmul.mubr.bf16.gmra.mxu0 %v1304
      %v2751 = vpop.f32.mrf.mxu0
      %v2752 = vadd.f32 %v2559, %v2751
      %v2753 = vpop.f32.mrf.mxu0
      %v2754 = vadd.f32 %v2561, %v2753
      %v2755 = vpop.f32.mrf.mxu0
      %v2756 = vadd.f32 %v2563, %v2755
      %v2757 = vpop.f32.mrf.mxu0
      %v2758 = vadd.f32 %v2565, %v2757
      %2759 = vmatprep.mubr.bf16.mxu0 %v1316
      %2760 = vmatmul.mubr.bf16.gmra.mxu0 %v1315
      %v2761 = vpop.f32.mrf.mxu0
      %v2762 = vadd.f32 %v2569, %v2761
      %v2763 = vpop.f32.mrf.mxu0
      %v2764 = vadd.f32 %v2571, %v2763
      %v2765 = vpop.f32.mrf.mxu0
      %v2766 = vadd.f32 %v2573, %v2765
      %v2767 = vpop.f32.mrf.mxu0
      %v2768 = vadd.f32 %v2575, %v2767
      %2769 = vmatprep.mubr.bf16.mxu0 %v1327
      %2770 = vmatmul.mubr.bf16.gmra.mxu0 %v1326
      %v2771 = vpop.f32.mrf.mxu0
      %v2772 = vadd.f32 %v2579, %v2771
      %v2773 = vpop.f32.mrf.mxu0
      %v2774 = vadd.f32 %v2581, %v2773
      %v2775 = vpop.f32.mrf.mxu0
      %v2776 = vadd.f32 %v2583, %v2775
      %v2777 = vpop.f32.mrf.mxu0
      %v2778 = vadd.f32 %v2585, %v2777
      %2779 = vmatprep.mubr.bf16.mxu0 %v1338
      %2780 = vmatmul.mubr.bf16.gmra.mxu0 %v1337
      %v2781 = vpop.f32.mrf.mxu0
      %v2782 = vadd.f32 %v2589, %v2781
      %v2783 = vpop.f32.mrf.mxu0
      %v2784 = vadd.f32 %v2591, %v2783
      %v2785 = vpop.f32.mrf.mxu0
      %v2786 = vadd.f32 %v2593, %v2785
      %v2787 = vpop.f32.mrf.mxu0
      %v2788 = vadd.f32 %v2595, %v2787
      %2789 = vmatprep.mubr.bf16.mxu0 %v1349
      %2790 = vmatmul.mubr.bf16.gmra.mxu0 %v1348
      %v2791 = vpop.f32.mrf.mxu0
      %v2792 = vadd.f32 %v2599, %v2791
      %v2793 = vpop.f32.mrf.mxu0
      %v2794 = vadd.f32 %v2601, %v2793
      %v2795 = vpop.f32.mrf.mxu0
      %v2796 = vadd.f32 %v2603, %v2795
      %v2797 = vpop.f32.mrf.mxu0
      %v2798 = vadd.f32 %v2605, %v2797
      %2799 = vmatprep.mubr.bf16.mxu0 %v1360
      %2800 = vmatmul.mubr.bf16.gmra.mxu0 %v1359
      %v2801 = vpop.f32.mrf.mxu0
      %v2802 = vadd.f32 %v2609, %v2801
      %v2803 = vpop.f32.mrf.mxu0
      %v2804 = vadd.f32 %v2611, %v2803
      %v2805 = vpop.f32.mrf.mxu0
      %v2806 = vadd.f32 %v2613, %v2805
      %v2807 = vpop.f32.mrf.mxu0
      %v2808 = vadd.f32 %v2615, %v2807
      %2809 = vmatprep.mubr.bf16.mxu0 %v1371
      %2810 = vmatmul.mubr.bf16.gmra.mxu0 %v1370
      %v2811 = vpop.f32.mrf.mxu0
      %v2812 = vadd.f32 %v2619, %v2811
      %v2813 = vpop.f32.mrf.mxu0
      %v2814 = vadd.f32 %v2621, %v2813
      %v2815 = vpop.f32.mrf.mxu0
      %v2816 = vadd.f32 %v2623, %v2815
      %v2817 = vpop.f32.mrf.mxu0
      %v2818 = vadd.f32 %v2625, %v2817
      %2819 = vmatprep.mubr.bf16.mxu0 %v1382
      %2820 = vmatmul.mubr.bf16.gmra.mxu0 %v1381
      %v2821 = vpop.f32.mrf.mxu0
      %v2822 = vadd.f32 %v2629, %v2821
      %v2823 = vpop.f32.mrf.mxu0
      %v2824 = vadd.f32 %v2631, %v2823
      %v2825 = vpop.f32.mrf.mxu0
      %v2826 = vadd.f32 %v2633, %v2825
      %v2827 = vpop.f32.mrf.mxu0
      %v2828 = vadd.f32 %v2635, %v2827
      %2829 = vmatprep.mubr.bf16.mxu0 %v1393
      %2830 = vmatmul.mubr.bf16.gmra.mxu0 %v1392
      %v2831 = vpop.f32.mrf.mxu0
      %v2832 = vadd.f32 %v2639, %v2831
      %v2833 = vpop.f32.mrf.mxu0
      %v2834 = vadd.f32 %v2641, %v2833
      %v2835 = vpop.f32.mrf.mxu0
      %v2836 = vadd.f32 %v2643, %v2835
      %v2837 = vpop.f32.mrf.mxu0
      %v2838 = vadd.f32 %v2645, %v2837
      %2839 = vmatprep.mubr.bf16.mxu0 %v1404
      %2840 = vmatmul.mubr.bf16.gmra.mxu0 %v1403
      %v2841 = vpop.f32.mrf.mxu0
      %v2842 = vadd.f32 %v2649, %v2841
      %v2843 = vpop.f32.mrf.mxu0
      %v2844 = vadd.f32 %v2651, %v2843
      %v2845 = vpop.f32.mrf.mxu0
      %v2846 = vadd.f32 %v2653, %v2845
      %v2847 = vpop.f32.mrf.mxu0
      %v2848 = vadd.f32 %v2655, %v2847
      %2849 = vmatprep.mubr.bf16.mxu0 %v1415
      %2850 = vmatmul.mubr.bf16.gmra.mxu0 %v1414
      %v2851 = vpop.f32.mrf.mxu0
      %v2852 = vadd.f32 %v2659, %v2851
      %v2853 = vpop.f32.mrf.mxu0
      %v2854 = vadd.f32 %v2661, %v2853
      %v2855 = vpop.f32.mrf.mxu0
      %v2856 = vadd.f32 %v2663, %v2855
      %v2857 = vpop.f32.mrf.mxu0
      %v2858 = vadd.f32 %v2665, %v2857
      %2859 = vmatprep.mubr.bf16.mxu0 %v1426
      %2860 = vmatmul.mubr.bf16.gmra.mxu0 %v1425
      %v2861 = vpop.f32.mrf.mxu0
      %v2862 = vadd.f32 %v2669, %v2861
      %v2863 = vpop.f32.mrf.mxu0
      %v2864 = vadd.f32 %v2671, %v2863
      %v2865 = vpop.f32.mrf.mxu0
      %v2866 = vadd.f32 %v2673, %v2865
      %v2867 = vpop.f32.mrf.mxu0
      %v2868 = vadd.f32 %v2675, %v2867
      %2869 = vmatprep.mubr.bf16.mxu0 %v1437
      %2870 = vmatmul.mubr.bf16.gmra.mxu0 %v1436
      %v2871 = vpop.f32.mrf.mxu0
      %v2872 = vadd.f32 %v2679, %v2871
      %v2873 = vpop.f32.mrf.mxu0
      %v2874 = vadd.f32 %v2681, %v2873
      %v2875 = vpop.f32.mrf.mxu0
      %v2876 = vadd.f32 %v2683, %v2875
      %v2877 = vpop.f32.mrf.mxu0
      %v2878 = vadd.f32 %v2685, %v2877
      %2879 = vdwg.mxu0
      %2880 = vmatprep.subr.bf16.mxu0 %v2188
      %2881 = vmatpush1.bf16.msra.mxu0 %v2187
      %2882 = vmatprep.subr.bf16.mxu0 %v2186
      %2883 = vmatpush1.bf16.msra.mxu0 %v2185
      %2884 = vmatprep.subr.bf16.mxu0 %v2184
      %2885 = vmatpush1.bf16.msra.mxu0 %v2183
      %2886 = vmatprep.subr.bf16.mxu0 %v2182
      %2887 = vmatpush1.bf16.msra.mxu0 %v2181
      %2888 = vmatprep.subr.bf16.mxu0 %v2180
      %2889 = vmatpush1.bf16.msra.mxu0 %v2179
      %2890 = vmatprep.subr.bf16.mxu0 %v2178
      %2891 = vmatpush1.bf16.msra.mxu0 %v2177
      %2892 = vmatprep.subr.bf16.mxu0 %v2176
      %2893 = vmatpush1.bf16.msra.mxu0 %v2175
      %2894 = vmatprep.subr.bf16.mxu0 %v2174
      %2895 = vmatpush1.bf16.msra.mxu0 %v2173
      %2896 = vmatprep.subr.bf16.mxu0 %v2204
      %2897 = vmatpush2.bf16.msra.mxu0 %v2203
      %2898 = vmatprep.subr.bf16.mxu0 %v2202
      %2899 = vmatpush2.bf16.msra.mxu0 %v2201
      %2900 = vmatprep.subr.bf16.mxu0 %v2200
      %2901 = vmatpush2.bf16.msra.mxu0 %v2199
      %2902 = vmatprep.subr.bf16.mxu0 %v2198
      %2903 = vmatpush2.bf16.msra.mxu0 %v2197
      %2904 = vmatprep.subr.bf16.mxu0 %v2196
      %2905 = vmatpush2.bf16.msra.mxu0 %v2195
      %2906 = vmatprep.subr.bf16.mxu0 %v2194
      %2907 = vmatpush2.bf16.msra.mxu0 %v2193
      %2908 = vmatprep.subr.bf16.mxu0 %v2192
      %2909 = vmatpush2.bf16.msra.mxu0 %v2191
      %2910 = vmatprep.subr.bf16.mxu0 %v2190
      %2911 = vmatpush2.bf16.msra.mxu0 %v2189
      %2912 = vmatprep.mubr.bf16.mxu0 %v1274
      %2913 = vmatmul.mubr.bf16.gmra.mxu0 %v1273
      %v2914 = vpop.f32.mrf.mxu0
      %v2915 = vadd.f32 %v2722, %v2914
      %v2916 = vpop.f32.mrf.mxu0
      %v2917 = vadd.f32 %v2724, %v2916
      %v2918 = vpop.f32.mrf.mxu0
      %v2919 = vadd.f32 %v2726, %v2918
      %v2920 = vpop.f32.mrf.mxu0
      %v2921 = vadd.f32 %v2728, %v2920
      %2922 = vmatprep.mubr.bf16.mxu0 %v1285
      %2923 = vmatmul.mubr.bf16.gmra.mxu0 %v1284
      %v2924 = vpop.f32.mrf.mxu0
      %v2925 = vadd.f32 %v2732, %v2924
      %v2926 = vpop.f32.mrf.mxu0
      %v2927 = vadd.f32 %v2734, %v2926
      %v2928 = vpop.f32.mrf.mxu0
      %v2929 = vadd.f32 %v2736, %v2928
      %v2930 = vpop.f32.mrf.mxu0
      %v2931 = vadd.f32 %v2738, %v2930
      %2932 = vmatprep.mubr.bf16.mxu0 %v1296
      %2933 = vmatmul.mubr.bf16.gmra.mxu0 %v1295
      %v2934 = vpop.f32.mrf.mxu0
      %v2935 = vadd.f32 %v2742, %v2934
      %v2936 = vpop.f32.mrf.mxu0
      %v2937 = vadd.f32 %v2744, %v2936
      %v2938 = vpop.f32.mrf.mxu0
      %v2939 = vadd.f32 %v2746, %v2938
      %v2940 = vpop.f32.mrf.mxu0
      %v2941 = vadd.f32 %v2748, %v2940
      %2942 = vmatprep.mubr.bf16.mxu0 %v1307
      %2943 = vmatmul.mubr.bf16.gmra.mxu0 %v1306
      %v2944 = vpop.f32.mrf.mxu0
      %v2945 = vadd.f32 %v2752, %v2944
      %v2946 = vpop.f32.mrf.mxu0
      %v2947 = vadd.f32 %v2754, %v2946
      %v2948 = vpop.f32.mrf.mxu0
      %v2949 = vadd.f32 %v2756, %v2948
      %v2950 = vpop.f32.mrf.mxu0
      %v2951 = vadd.f32 %v2758, %v2950
      %2952 = vmatprep.mubr.bf16.mxu0 %v1318
      %2953 = vmatmul.mubr.bf16.gmra.mxu0 %v1317
      %v2954 = vpop.f32.mrf.mxu0
      %v2955 = vadd.f32 %v2762, %v2954
      %v2956 = vpop.f32.mrf.mxu0
      %v2957 = vadd.f32 %v2764, %v2956
      %v2958 = vpop.f32.mrf.mxu0
      %v2959 = vadd.f32 %v2766, %v2958
      %v2960 = vpop.f32.mrf.mxu0
      %v2961 = vadd.f32 %v2768, %v2960
      %2962 = vmatprep.mubr.bf16.mxu0 %v1329
      %2963 = vmatmul.mubr.bf16.gmra.mxu0 %v1328
      %v2964 = vpop.f32.mrf.mxu0
      %v2965 = vadd.f32 %v2772, %v2964
      %v2966 = vpop.f32.mrf.mxu0
      %v2967 = vadd.f32 %v2774, %v2966
      %v2968 = vpop.f32.mrf.mxu0
      %v2969 = vadd.f32 %v2776, %v2968
      %v2970 = vpop.f32.mrf.mxu0
      %v2971 = vadd.f32 %v2778, %v2970
      %2972 = vmatprep.mubr.bf16.mxu0 %v1340
      %2973 = vmatmul.mubr.bf16.gmra.mxu0 %v1339
      %v2974 = vpop.f32.mrf.mxu0
      %v2975 = vadd.f32 %v2782, %v2974
      %v2976 = vpop.f32.mrf.mxu0
      %v2977 = vadd.f32 %v2784, %v2976
      %v2978 = vpop.f32.mrf.mxu0
      %v2979 = vadd.f32 %v2786, %v2978
      %v2980 = vpop.f32.mrf.mxu0
      %v2981 = vadd.f32 %v2788, %v2980
      %2982 = vmatprep.mubr.bf16.mxu0 %v1351
      %2983 = vmatmul.mubr.bf16.gmra.mxu0 %v1350
      %v2984 = vpop.f32.mrf.mxu0
      %v2985 = vadd.f32 %v2792, %v2984
      %v2986 = vpop.f32.mrf.mxu0
      %v2987 = vadd.f32 %v2794, %v2986
      %v2988 = vpop.f32.mrf.mxu0
      %v2989 = vadd.f32 %v2796, %v2988
      %v2990 = vpop.f32.mrf.mxu0
      %v2991 = vadd.f32 %v2798, %v2990
      %2992 = vmatprep.mubr.bf16.mxu0 %v1362
      %2993 = vmatmul.mubr.bf16.gmra.mxu0 %v1361
      %v2994 = vpop.f32.mrf.mxu0
      %v2995 = vadd.f32 %v2802, %v2994
      %v2996 = vpop.f32.mrf.mxu0
      %v2997 = vadd.f32 %v2804, %v2996
      %v2998 = vpop.f32.mrf.mxu0
      %v2999 = vadd.f32 %v2806, %v2998
      %v3000 = vpop.f32.mrf.mxu0
      %v3001 = vadd.f32 %v2808, %v3000
      %3002 = vmatprep.mubr.bf16.mxu0 %v1373
      %3003 = vmatmul.mubr.bf16.gmra.mxu0 %v1372
      %v3004 = vpop.f32.mrf.mxu0
      %v3005 = vadd.f32 %v2812, %v3004
      %v3006 = vpop.f32.mrf.mxu0
      %v3007 = vadd.f32 %v2814, %v3006
      %v3008 = vpop.f32.mrf.mxu0
      %v3009 = vadd.f32 %v2816, %v3008
      %v3010 = vpop.f32.mrf.mxu0
      %v3011 = vadd.f32 %v2818, %v3010
      %3012 = vmatprep.mubr.bf16.mxu0 %v1384
      %3013 = vmatmul.mubr.bf16.gmra.mxu0 %v1383
      %v3014 = vpop.f32.mrf.mxu0
      %v3015 = vadd.f32 %v2822, %v3014
      %v3016 = vpop.f32.mrf.mxu0
      %v3017 = vadd.f32 %v2824, %v3016
      %v3018 = vpop.f32.mrf.mxu0
      %v3019 = vadd.f32 %v2826, %v3018
      %v3020 = vpop.f32.mrf.mxu0
      %v3021 = vadd.f32 %v2828, %v3020
      %3022 = vmatprep.mubr.bf16.mxu0 %v1395
      %3023 = vmatmul.mubr.bf16.gmra.mxu0 %v1394
      %v3024 = vpop.f32.mrf.mxu0
      %v3025 = vadd.f32 %v2832, %v3024
      %v3026 = vpop.f32.mrf.mxu0
      %v3027 = vadd.f32 %v2834, %v3026
      %v3028 = vpop.f32.mrf.mxu0
      %v3029 = vadd.f32 %v2836, %v3028
      %v3030 = vpop.f32.mrf.mxu0
      %v3031 = vadd.f32 %v2838, %v3030
      %3032 = vmatprep.mubr.bf16.mxu0 %v1406
      %3033 = vmatmul.mubr.bf16.gmra.mxu0 %v1405
      %v3034 = vpop.f32.mrf.mxu0
      %v3035 = vadd.f32 %v2842, %v3034
      %v3036 = vpop.f32.mrf.mxu0
      %v3037 = vadd.f32 %v2844, %v3036
      %v3038 = vpop.f32.mrf.mxu0
      %v3039 = vadd.f32 %v2846, %v3038
      %v3040 = vpop.f32.mrf.mxu0
      %v3041 = vadd.f32 %v2848, %v3040
      %3042 = vmatprep.mubr.bf16.mxu0 %v1417
      %3043 = vmatmul.mubr.bf16.gmra.mxu0 %v1416
      %v3044 = vpop.f32.mrf.mxu0
      %v3045 = vadd.f32 %v2852, %v3044
      %v3046 = vpop.f32.mrf.mxu0
      %v3047 = vadd.f32 %v2854, %v3046
      %v3048 = vpop.f32.mrf.mxu0
      %v3049 = vadd.f32 %v2856, %v3048
      %v3050 = vpop.f32.mrf.mxu0
      %v3051 = vadd.f32 %v2858, %v3050
      %3052 = vmatprep.mubr.bf16.mxu0 %v1428
      %3053 = vmatmul.mubr.bf16.gmra.mxu0 %v1427
      %v3054 = vpop.f32.mrf.mxu0
      %v3055 = vadd.f32 %v2862, %v3054
      %v3056 = vpop.f32.mrf.mxu0
      %v3057 = vadd.f32 %v2864, %v3056
      %v3058 = vpop.f32.mrf.mxu0
      %v3059 = vadd.f32 %v2866, %v3058
      %v3060 = vpop.f32.mrf.mxu0
      %v3061 = vadd.f32 %v2868, %v3060
      %3062 = vmatprep.mubr.bf16.mxu0 %v1439
      %3063 = vmatmul.mubr.bf16.gmra.mxu0 %v1438
      %v3064 = vpop.f32.mrf.mxu0
      %v3065 = vadd.f32 %v2872, %v3064
      %v3066 = vpop.f32.mrf.mxu0
      %v3067 = vadd.f32 %v2874, %v3066
      %v3068 = vpop.f32.mrf.mxu0
      %v3069 = vadd.f32 %v2876, %v3068
      %v3070 = vpop.f32.mrf.mxu0
      %v3071 = vadd.f32 %v2878, %v3070
      %3072 = vdwg.mxu0
      %3073 = vmatprep.subr.bf16.mxu0 %v2220
      %3074 = vmatpush1.bf16.msra.mxu0 %v2219
      %3075 = vmatprep.subr.bf16.mxu0 %v2218
      %3076 = vmatpush1.bf16.msra.mxu0 %v2217
      %3077 = vmatprep.subr.bf16.mxu0 %v2216
      %3078 = vmatpush1.bf16.msra.mxu0 %v2215
      %3079 = vmatprep.subr.bf16.mxu0 %v2214
      %3080 = vmatpush1.bf16.msra.mxu0 %v2213
      %3081 = vmatprep.subr.bf16.mxu0 %v2212
      %3082 = vmatpush1.bf16.msra.mxu0 %v2211
      %3083 = vmatprep.subr.bf16.mxu0 %v2210
      %3084 = vmatpush1.bf16.msra.mxu0 %v2209
      %3085 = vmatprep.subr.bf16.mxu0 %v2208
      %3086 = vmatpush1.bf16.msra.mxu0 %v2207
      %3087 = vmatprep.subr.bf16.mxu0 %v2206
      %3088 = vmatpush1.bf16.msra.mxu0 %v2205
      %3089 = vmatprep.subr.bf16.mxu0 %v2236
      %3090 = vmatpush2.bf16.msra.mxu0 %v2235
      %3091 = vmatprep.subr.bf16.mxu0 %v2234
      %3092 = vmatpush2.bf16.msra.mxu0 %v2233
      %3093 = vmatprep.subr.bf16.mxu0 %v2232
      %3094 = vmatpush2.bf16.msra.mxu0 %v2231
      %3095 = vmatprep.subr.bf16.mxu0 %v2230
      %3096 = vmatpush2.bf16.msra.mxu0 %v2229
      %3097 = vmatprep.subr.bf16.mxu0 %v2228
      %3098 = vmatpush2.bf16.msra.mxu0 %v2227
      %3099 = vmatprep.subr.bf16.mxu0 %v2226
      %3100 = vmatpush2.bf16.msra.mxu0 %v2225
      %3101 = vmatprep.subr.bf16.mxu0 %v2224
      %3102 = vmatpush2.bf16.msra.mxu0 %v2223
      %3103 = vmatprep.subr.bf16.mxu0 %v2222
      %3104 = vmatpush2.bf16.msra.mxu0 %v2221
      %3105 = vmatprep.mubr.bf16.mxu0 %v1276
      %3106 = vmatmul.mubr.bf16.gmra.mxu0 %v1275
      %v3107 = vpop.f32.mrf.mxu0
      %v3108 = vadd.f32 %v2915, %v3107
      %v3109 = vpop.f32.mrf.mxu0
      %v3110 = vadd.f32 %v2917, %v3109
      %v3111 = vpop.f32.mrf.mxu0
      %v3112 = vadd.f32 %v2919, %v3111
      %v3113 = vpop.f32.mrf.mxu0
      %v3114 = vadd.f32 %v2921, %v3113
      %3115 = vmatprep.mubr.bf16.mxu0 %v1287
      %3116 = vmatmul.mubr.bf16.gmra.mxu0 %v1286
      %v3117 = vpop.f32.mrf.mxu0
      %v3118 = vadd.f32 %v2925, %v3117
      %v3119 = vpop.f32.mrf.mxu0
      %v3120 = vadd.f32 %v2927, %v3119
      %v3121 = vpop.f32.mrf.mxu0
      %v3122 = vadd.f32 %v2929, %v3121
      %v3123 = vpop.f32.mrf.mxu0
      %v3124 = vadd.f32 %v2931, %v3123
      %3125 = vmatprep.mubr.bf16.mxu0 %v1298
      %3126 = vmatmul.mubr.bf16.gmra.mxu0 %v1297
      %v3127 = vpop.f32.mrf.mxu0
      %v3128 = vadd.f32 %v2935, %v3127
      %v3129 = vpop.f32.mrf.mxu0
      %v3130 = vadd.f32 %v2937, %v3129
      %v3131 = vpop.f32.mrf.mxu0
      %v3132 = vadd.f32 %v2939, %v3131
      %v3133 = vpop.f32.mrf.mxu0
      %v3134 = vadd.f32 %v2941, %v3133
      %3135 = vmatprep.mubr.bf16.mxu0 %v1309
      %3136 = vmatmul.mubr.bf16.gmra.mxu0 %v1308
      %v3137 = vpop.f32.mrf.mxu0
      %v3138 = vadd.f32 %v2945, %v3137
      %v3139 = vpop.f32.mrf.mxu0
      %v3140 = vadd.f32 %v2947, %v3139
      %v3141 = vpop.f32.mrf.mxu0
      %v3142 = vadd.f32 %v2949, %v3141
      %v3143 = vpop.f32.mrf.mxu0
      %v3144 = vadd.f32 %v2951, %v3143
      %3145 = vmatprep.mubr.bf16.mxu0 %v1320
      %3146 = vmatmul.mubr.bf16.gmra.mxu0 %v1319
      %v3147 = vpop.f32.mrf.mxu0
      %v3148 = vadd.f32 %v2955, %v3147
      %v3149 = vpop.f32.mrf.mxu0
      %v3150 = vadd.f32 %v2957, %v3149
      %v3151 = vpop.f32.mrf.mxu0
      %v3152 = vadd.f32 %v2959, %v3151
      %v3153 = vpop.f32.mrf.mxu0
      %v3154 = vadd.f32 %v2961, %v3153
      %3155 = vmatprep.mubr.bf16.mxu0 %v1331
      %3156 = vmatmul.mubr.bf16.gmra.mxu0 %v1330
      %v3157 = vpop.f32.mrf.mxu0
      %v3158 = vadd.f32 %v2965, %v3157
      %v3159 = vpop.f32.mrf.mxu0
      %v3160 = vadd.f32 %v2967, %v3159
      %v3161 = vpop.f32.mrf.mxu0
      %v3162 = vadd.f32 %v2969, %v3161
      %v3163 = vpop.f32.mrf.mxu0
      %v3164 = vadd.f32 %v2971, %v3163
      %3165 = vmatprep.mubr.bf16.mxu0 %v1342
      %3166 = vmatmul.mubr.bf16.gmra.mxu0 %v1341
      %v3167 = vpop.f32.mrf.mxu0
      %v3168 = vadd.f32 %v2975, %v3167
      %v3169 = vpop.f32.mrf.mxu0
      %v3170 = vadd.f32 %v2977, %v3169
      %v3171 = vpop.f32.mrf.mxu0
      %v3172 = vadd.f32 %v2979, %v3171
      %v3173 = vpop.f32.mrf.mxu0
      %v3174 = vadd.f32 %v2981, %v3173
      %3175 = vmatprep.mubr.bf16.mxu0 %v1353
      %3176 = vmatmul.mubr.bf16.gmra.mxu0 %v1352
      %v3177 = vpop.f32.mrf.mxu0
      %v3178 = vadd.f32 %v2985, %v3177
      %v3179 = vpop.f32.mrf.mxu0
      %v3180 = vadd.f32 %v2987, %v3179
      %v3181 = vpop.f32.mrf.mxu0
      %v3182 = vadd.f32 %v2989, %v3181
      %v3183 = vpop.f32.mrf.mxu0
      %v3184 = vadd.f32 %v2991, %v3183
      %3185 = vmatprep.mubr.bf16.mxu0 %v1364
      %3186 = vmatmul.mubr.bf16.gmra.mxu0 %v1363
      %v3187 = vpop.f32.mrf.mxu0
      %v3188 = vadd.f32 %v2995, %v3187
      %v3189 = vpop.f32.mrf.mxu0
      %v3190 = vadd.f32 %v2997, %v3189
      %v3191 = vpop.f32.mrf.mxu0
      %v3192 = vadd.f32 %v2999, %v3191
      %v3193 = vpop.f32.mrf.mxu0
      %v3194 = vadd.f32 %v3001, %v3193
      %3195 = vmatprep.mubr.bf16.mxu0 %v1375
      %3196 = vmatmul.mubr.bf16.gmra.mxu0 %v1374
      %v3197 = vpop.f32.mrf.mxu0
      %v3198 = vadd.f32 %v3005, %v3197
      %v3199 = vpop.f32.mrf.mxu0
      %v3200 = vadd.f32 %v3007, %v3199
      %v3201 = vpop.f32.mrf.mxu0
      %v3202 = vadd.f32 %v3009, %v3201
      %v3203 = vpop.f32.mrf.mxu0
      %v3204 = vadd.f32 %v3011, %v3203
      %3205 = vmatprep.mubr.bf16.mxu0 %v1386
      %3206 = vmatmul.mubr.bf16.gmra.mxu0 %v1385
      %v3207 = vpop.f32.mrf.mxu0
      %v3208 = vadd.f32 %v3015, %v3207
      %v3209 = vpop.f32.mrf.mxu0
      %v3210 = vadd.f32 %v3017, %v3209
      %v3211 = vpop.f32.mrf.mxu0
      %v3212 = vadd.f32 %v3019, %v3211
      %v3213 = vpop.f32.mrf.mxu0
      %v3214 = vadd.f32 %v3021, %v3213
      %3215 = vmatprep.mubr.bf16.mxu0 %v1397
      %3216 = vmatmul.mubr.bf16.gmra.mxu0 %v1396
      %v3217 = vpop.f32.mrf.mxu0
      %v3218 = vadd.f32 %v3025, %v3217
      %v3219 = vpop.f32.mrf.mxu0
      %v3220 = vadd.f32 %v3027, %v3219
      %v3221 = vpop.f32.mrf.mxu0
      %v3222 = vadd.f32 %v3029, %v3221
      %v3223 = vpop.f32.mrf.mxu0
      %v3224 = vadd.f32 %v3031, %v3223
      %3225 = vmatprep.mubr.bf16.mxu0 %v1408
      %3226 = vmatmul.mubr.bf16.gmra.mxu0 %v1407
      %v3227 = vpop.f32.mrf.mxu0
      %v3228 = vadd.f32 %v3035, %v3227
      %v3229 = vpop.f32.mrf.mxu0
      %v3230 = vadd.f32 %v3037, %v3229
      %v3231 = vpop.f32.mrf.mxu0
      %v3232 = vadd.f32 %v3039, %v3231
      %v3233 = vpop.f32.mrf.mxu0
      %v3234 = vadd.f32 %v3041, %v3233
      %3235 = vmatprep.mubr.bf16.mxu0 %v1419
      %3236 = vmatmul.mubr.bf16.gmra.mxu0 %v1418
      %v3237 = vpop.f32.mrf.mxu0
      %v3238 = vadd.f32 %v3045, %v3237
      %v3239 = vpop.f32.mrf.mxu0
      %v3240 = vadd.f32 %v3047, %v3239
      %v3241 = vpop.f32.mrf.mxu0
      %v3242 = vadd.f32 %v3049, %v3241
      %v3243 = vpop.f32.mrf.mxu0
      %v3244 = vadd.f32 %v3051, %v3243
      %3245 = vmatprep.mubr.bf16.mxu0 %v1430
      %3246 = vmatmul.mubr.bf16.gmra.mxu0 %v1429
      %v3247 = vpop.f32.mrf.mxu0
      %v3248 = vadd.f32 %v3055, %v3247
      %v3249 = vpop.f32.mrf.mxu0
      %v3250 = vadd.f32 %v3057, %v3249
      %v3251 = vpop.f32.mrf.mxu0
      %v3252 = vadd.f32 %v3059, %v3251
      %v3253 = vpop.f32.mrf.mxu0
      %v3254 = vadd.f32 %v3061, %v3253
      %3255 = vmatprep.mubr.bf16.mxu0 %v1441
      %3256 = vmatmul.mubr.bf16.gmra.mxu0 %v1440
      %v3257 = vpop.f32.mrf.mxu0
      %v3258 = vadd.f32 %v3065, %v3257
      %v3259 = vpop.f32.mrf.mxu0
      %v3260 = vadd.f32 %v3067, %v3259
      %v3261 = vpop.f32.mrf.mxu0
      %v3262 = vadd.f32 %v3069, %v3261
      %v3263 = vpop.f32.mrf.mxu0
      %v3264 = vadd.f32 %v3071, %v3263
      %3265 = vdwg.mxu0
      %3266 = vmatprep.subr.bf16.mxu0 %v2252
      %3267 = vmatpush1.bf16.msra.mxu0 %v2251
      %3268 = vmatprep.subr.bf16.mxu0 %v2250
      %3269 = vmatpush1.bf16.msra.mxu0 %v2249
      %3270 = vmatprep.subr.bf16.mxu0 %v2248
      %3271 = vmatpush1.bf16.msra.mxu0 %v2247
      %3272 = vmatprep.subr.bf16.mxu0 %v2246
      %3273 = vmatpush1.bf16.msra.mxu0 %v2245
      %3274 = vmatprep.subr.bf16.mxu0 %v2244
      %3275 = vmatpush1.bf16.msra.mxu0 %v2243
      %3276 = vmatprep.subr.bf16.mxu0 %v2242
      %3277 = vmatpush1.bf16.msra.mxu0 %v2241
      %3278 = vmatprep.subr.bf16.mxu0 %v2240
      %3279 = vmatpush1.bf16.msra.mxu0 %v2239
      %3280 = vmatprep.subr.bf16.mxu0 %v2238
      %3281 = vmatpush1.bf16.msra.mxu0 %v2237
      %3282 = vmatprep.subr.bf16.mxu0 %v2268
      %3283 = vmatpush2.bf16.msra.mxu0 %v2267
      %3284 = vmatprep.subr.bf16.mxu0 %v2266
      %3285 = vmatpush2.bf16.msra.mxu0 %v2265
      %3286 = vmatprep.subr.bf16.mxu0 %v2264
      %3287 = vmatpush2.bf16.msra.mxu0 %v2263
      %3288 = vmatprep.subr.bf16.mxu0 %v2262
      %3289 = vmatpush2.bf16.msra.mxu0 %v2261
      %3290 = vmatprep.subr.bf16.mxu0 %v2260
      %3291 = vmatpush2.bf16.msra.mxu0 %v2259
      %3292 = vmatprep.subr.bf16.mxu0 %v2258
      %3293 = vmatpush2.bf16.msra.mxu0 %v2257
      %3294 = vmatprep.subr.bf16.mxu0 %v2256
      %3295 = vmatpush2.bf16.msra.mxu0 %v2255
      %3296 = vmatprep.subr.bf16.mxu0 %v2254
      %3297 = vmatpush2.bf16.msra.mxu0 %v2253
      %3298 = vmatprep.mubr.bf16.mxu0 %v1278
      %3299 = vmatmul.mubr.bf16.gmra.mxu0 %v1277
      %v3300 = vpop.f32.mrf.mxu0
      %v3301 = vadd.f32 %v3108, %v3300
      %v3302 = vpop.f32.mrf.mxu0
      %v3303 = vadd.f32 %v3110, %v3302
      %v3304 = vpop.f32.mrf.mxu0
      %v3305 = vadd.f32 %v3112, %v3304
      %v3306 = vpop.f32.mrf.mxu0
      %v3307 = vadd.f32 %v3114, %v3306
      %3308 = vmatprep.mubr.bf16.mxu0 %v1289
      %3309 = vmatmul.mubr.bf16.gmra.mxu0 %v1288
      %v3310 = vpop.f32.mrf.mxu0
      %v3311 = vadd.f32 %v3118, %v3310
      %v3312 = vpop.f32.mrf.mxu0
      %v3313 = vadd.f32 %v3120, %v3312
      %v3314 = vpop.f32.mrf.mxu0
      %v3315 = vadd.f32 %v3122, %v3314
      %v3316 = vpop.f32.mrf.mxu0
      %v3317 = vadd.f32 %v3124, %v3316
      %3318 = vmatprep.mubr.bf16.mxu0 %v1300
      %3319 = vmatmul.mubr.bf16.gmra.mxu0 %v1299
      %v3320 = vpop.f32.mrf.mxu0
      %v3321 = vadd.f32 %v3128, %v3320
      %v3322 = vpop.f32.mrf.mxu0
      %v3323 = vadd.f32 %v3130, %v3322
      %v3324 = vpop.f32.mrf.mxu0
      %v3325 = vadd.f32 %v3132, %v3324
      %v3326 = vpop.f32.mrf.mxu0
      %v3327 = vadd.f32 %v3134, %v3326
      %3328 = vmatprep.mubr.bf16.mxu0 %v1311
      %3329 = vmatmul.mubr.bf16.gmra.mxu0 %v1310
      %v3330 = vpop.f32.mrf.mxu0
      %v3331 = vadd.f32 %v3138, %v3330
      %v3332 = vpop.f32.mrf.mxu0
      %v3333 = vadd.f32 %v3140, %v3332
      %v3334 = vpop.f32.mrf.mxu0
      %v3335 = vadd.f32 %v3142, %v3334
      %v3336 = vpop.f32.mrf.mxu0
      %v3337 = vadd.f32 %v3144, %v3336
      %3338 = vmatprep.mubr.bf16.mxu0 %v1322
      %3339 = vmatmul.mubr.bf16.gmra.mxu0 %v1321
      %v3340 = vpop.f32.mrf.mxu0
      %v3341 = vadd.f32 %v3148, %v3340
      %v3342 = vpop.f32.mrf.mxu0
      %v3343 = vadd.f32 %v3150, %v3342
      %v3344 = vpop.f32.mrf.mxu0
      %v3345 = vadd.f32 %v3152, %v3344
      %v3346 = vpop.f32.mrf.mxu0
      %v3347 = vadd.f32 %v3154, %v3346
      %3348 = vmatprep.mubr.bf16.mxu0 %v1333
      %3349 = vmatmul.mubr.bf16.gmra.mxu0 %v1332
      %v3350 = vpop.f32.mrf.mxu0
      %v3351 = vadd.f32 %v3158, %v3350
      %v3352 = vpop.f32.mrf.mxu0
      %v3353 = vadd.f32 %v3160, %v3352
      %v3354 = vpop.f32.mrf.mxu0
      %v3355 = vadd.f32 %v3162, %v3354
      %v3356 = vpop.f32.mrf.mxu0
      %v3357 = vadd.f32 %v3164, %v3356
      %3358 = vmatprep.mubr.bf16.mxu0 %v1344
      %3359 = vmatmul.mubr.bf16.gmra.mxu0 %v1343
      %v3360 = vpop.f32.mrf.mxu0
      %v3361 = vadd.f32 %v3168, %v3360
      %v3362 = vpop.f32.mrf.mxu0
      %v3363 = vadd.f32 %v3170, %v3362
      %v3364 = vpop.f32.mrf.mxu0
      %v3365 = vadd.f32 %v3172, %v3364
      %v3366 = vpop.f32.mrf.mxu0
      %v3367 = vadd.f32 %v3174, %v3366
      %3368 = vmatprep.mubr.bf16.mxu0 %v1355
      %3369 = vmatmul.mubr.bf16.gmra.mxu0 %v1354
      %v3370 = vpop.f32.mrf.mxu0
      %v3371 = vadd.f32 %v3178, %v3370
      %v3372 = vpop.f32.mrf.mxu0
      %v3373 = vadd.f32 %v3180, %v3372
      %v3374 = vpop.f32.mrf.mxu0
      %v3375 = vadd.f32 %v3182, %v3374
      %v3376 = vpop.f32.mrf.mxu0
      %v3377 = vadd.f32 %v3184, %v3376
      %3378 = vmatprep.mubr.bf16.mxu0 %v1366
      %3379 = vmatmul.mubr.bf16.gmra.mxu0 %v1365
      %v3380 = vpop.f32.mrf.mxu0
      %v3381 = vadd.f32 %v3188, %v3380
      %v3382 = vpop.f32.mrf.mxu0
      %v3383 = vadd.f32 %v3190, %v3382
      %v3384 = vpop.f32.mrf.mxu0
      %v3385 = vadd.f32 %v3192, %v3384
      %v3386 = vpop.f32.mrf.mxu0
      %v3387 = vadd.f32 %v3194, %v3386
      %3388 = vmatprep.mubr.bf16.mxu0 %v1377
      %3389 = vmatmul.mubr.bf16.gmra.mxu0 %v1376
      %v3390 = vpop.f32.mrf.mxu0
      %v3391 = vadd.f32 %v3198, %v3390
      %v3392 = vpop.f32.mrf.mxu0
      %v3393 = vadd.f32 %v3200, %v3392
      %v3394 = vpop.f32.mrf.mxu0
      %v3395 = vadd.f32 %v3202, %v3394
      %v3396 = vpop.f32.mrf.mxu0
      %v3397 = vadd.f32 %v3204, %v3396
      %3398 = vmatprep.mubr.bf16.mxu0 %v1388
      %3399 = vmatmul.mubr.bf16.gmra.mxu0 %v1387
      %v3400 = vpop.f32.mrf.mxu0
      %v3401 = vadd.f32 %v3208, %v3400
      %v3402 = vpop.f32.mrf.mxu0
      %v3403 = vadd.f32 %v3210, %v3402
      %v3404 = vpop.f32.mrf.mxu0
      %v3405 = vadd.f32 %v3212, %v3404
      %v3406 = vpop.f32.mrf.mxu0
      %v3407 = vadd.f32 %v3214, %v3406
      %3408 = vmatprep.mubr.bf16.mxu0 %v1399
      %3409 = vmatmul.mubr.bf16.gmra.mxu0 %v1398
      %v3410 = vpop.f32.mrf.mxu0
      %v3411 = vadd.f32 %v3218, %v3410
      %v3412 = vpop.f32.mrf.mxu0
      %v3413 = vadd.f32 %v3220, %v3412
      %v3414 = vpop.f32.mrf.mxu0
      %v3415 = vadd.f32 %v3222, %v3414
      %v3416 = vpop.f32.mrf.mxu0
      %v3417 = vadd.f32 %v3224, %v3416
      %3418 = vmatprep.mubr.bf16.mxu0 %v1410
      %3419 = vmatmul.mubr.bf16.gmra.mxu0 %v1409
      %v3420 = vpop.f32.mrf.mxu0
      %v3421 = vadd.f32 %v3228, %v3420
      %v3422 = vpop.f32.mrf.mxu0
      %v3423 = vadd.f32 %v3230, %v3422
      %v3424 = vpop.f32.mrf.mxu0
      %v3425 = vadd.f32 %v3232, %v3424
      %v3426 = vpop.f32.mrf.mxu0
      %v3427 = vadd.f32 %v3234, %v3426
      %3428 = vmatprep.mubr.bf16.mxu0 %v1421
      %3429 = vmatmul.mubr.bf16.gmra.mxu0 %v1420
      %v3430 = vpop.f32.mrf.mxu0
      %v3431 = vadd.f32 %v3238, %v3430
      %v3432 = vpop.f32.mrf.mxu0
      %v3433 = vadd.f32 %v3240, %v3432
      %v3434 = vpop.f32.mrf.mxu0
      %v3435 = vadd.f32 %v3242, %v3434
      %v3436 = vpop.f32.mrf.mxu0
      %v3437 = vadd.f32 %v3244, %v3436
      %3438 = vmatprep.mubr.bf16.mxu0 %v1432
      %3439 = vmatmul.mubr.bf16.gmra.mxu0 %v1431
      %v3440 = vpop.f32.mrf.mxu0
      %v3441 = vadd.f32 %v3248, %v3440
      %v3442 = vpop.f32.mrf.mxu0
      %v3443 = vadd.f32 %v3250, %v3442
      %v3444 = vpop.f32.mrf.mxu0
      %v3445 = vadd.f32 %v3252, %v3444
      %v3446 = vpop.f32.mrf.mxu0
      %v3447 = vadd.f32 %v3254, %v3446
      %3448 = vmatprep.mubr.bf16.mxu0 %v1443
      %3449 = vmatmul.mubr.bf16.gmra.mxu0 %v1442
      %v3450 = vpop.f32.mrf.mxu0
      %v3451 = vadd.f32 %v3258, %v3450
      %v3452 = vpop.f32.mrf.mxu0
      %v3453 = vadd.f32 %v3260, %v3452
      %v3454 = vpop.f32.mrf.mxu0
      %v3455 = vadd.f32 %v3262, %v3454
      %v3456 = vpop.f32.mrf.mxu0
      %v3457 = vadd.f32 %v3264, %v3456
      %3458 = vdwg.mxu0
      %3459 = vmatprep.subr.bf16.mxu0 0
      %3460 = vmatpush1.bf16.msra.mxu0 0
      %3461 = vmatprep.subr.bf16.mxu0 0
      %3462 = vmatpush1.bf16.msra.mxu0 0
      %3463 = vmatprep.subr.bf16.mxu0 0
      %3464 = vmatpush1.bf16.msra.mxu0 0
      %3465 = vmatprep.subr.bf16.mxu0 0
      %3466 = vmatpush1.bf16.msra.mxu0 0
      %3467 = vmatprep.subr.bf16.mxu0 %v2276
      %3468 = vmatpush1.bf16.msra.mxu0 %v2275
      %3469 = vmatprep.subr.bf16.mxu0 %v2274
      %3470 = vmatpush1.bf16.msra.mxu0 %v2273
      %3471 = vmatprep.subr.bf16.mxu0 %v2272
      %3472 = vmatpush1.bf16.msra.mxu0 %v2271
      %3473 = vmatprep.subr.bf16.mxu0 %v2270
      %3474 = vmatpush1.bf16.msra.mxu0 %v2269
      %3475 = vmatprep.subr.bf16.mxu0 0
      %3476 = vmatpush2.bf16.msra.mxu0 0
      %3477 = vmatprep.subr.bf16.mxu0 0
      %3478 = vmatpush2.bf16.msra.mxu0 0
      %3479 = vmatprep.subr.bf16.mxu0 0
      %3480 = vmatpush2.bf16.msra.mxu0 0
      %3481 = vmatprep.subr.bf16.mxu0 0
      %3482 = vmatpush2.bf16.msra.mxu0 0
      %3483 = vmatprep.subr.bf16.mxu0 0
      %3484 = vmatpush2.bf16.msra.mxu0 0
      %3485 = vmatprep.subr.bf16.mxu0 0
      %3486 = vmatpush2.bf16.msra.mxu0 0
      %3487 = vmatprep.subr.bf16.mxu0 0
      %3488 = vmatpush2.bf16.msra.mxu0 0
      %3489 = vmatprep.subr.bf16.mxu0 0
      %3490 = vmatpush2.bf16.msra.mxu0 0
      %3491 = vmatprep.mubr.bf16.mxu0 0
      %3492 = vmatmul.mubr.bf16.gmra.mxu0 %v2447
      %v3493 = vpop.f32.mrf.mxu0
      %v3494 = vadd.f32 %v3301, %v3493
      %v3495 = vpop.f32.mrf.mxu0
      %v3496 = vadd.f32 %v3303, %v3495
      %v3497 = vpop.f32.mrf.mxu0
      %v3498 = vadd.f32 %v3305, %v3497
      %v3499 = vpop.f32.mrf.mxu0
      %v3500 = vadd.f32 %v3307, %v3499
      %3501 = vmatprep.mubr.bf16.mxu0 0
      %3502 = vmatmul.mubr.bf16.gmra.mxu0 %v2450
      %v3503 = vpop.f32.mrf.mxu0
      %v3504 = vadd.f32 %v3311, %v3503
      %v3505 = vpop.f32.mrf.mxu0
      %v3506 = vadd.f32 %v3313, %v3505
      %v3507 = vpop.f32.mrf.mxu0
      %v3508 = vadd.f32 %v3315, %v3507
      %v3509 = vpop.f32.mrf.mxu0
      %v3510 = vadd.f32 %v3317, %v3509
      %3511 = vmatprep.mubr.bf16.mxu0 0
      %3512 = vmatmul.mubr.bf16.gmra.mxu0 %v2453
      %v3513 = vpop.f32.mrf.mxu0
      %v3514 = vadd.f32 %v3321, %v3513
      %v3515 = vpop.f32.mrf.mxu0
      %v3516 = vadd.f32 %v3323, %v3515
      %v3517 = vpop.f32.mrf.mxu0
      %v3518 = vadd.f32 %v3325, %v3517
      %v3519 = vpop.f32.mrf.mxu0
      %v3520 = vadd.f32 %v3327, %v3519
      %3521 = vmatprep.mubr.bf16.mxu0 0
      %3522 = vmatmul.mubr.bf16.gmra.mxu0 %v2456
      %v3523 = vpop.f32.mrf.mxu0
      %v3524 = vadd.f32 %v3331, %v3523
      %v3525 = vpop.f32.mrf.mxu0
      %v3526 = vadd.f32 %v3333, %v3525
      %v3527 = vpop.f32.mrf.mxu0
      %v3528 = vadd.f32 %v3335, %v3527
      %v3529 = vpop.f32.mrf.mxu0
      %v3530 = vadd.f32 %v3337, %v3529
      %3531 = vmatprep.mubr.bf16.mxu0 0
      %3532 = vmatmul.mubr.bf16.gmra.mxu0 %v2459
      %v3533 = vpop.f32.mrf.mxu0
      %v3534 = vadd.f32 %v3341, %v3533
      %v3535 = vpop.f32.mrf.mxu0
      %v3536 = vadd.f32 %v3343, %v3535
      %v3537 = vpop.f32.mrf.mxu0
      %v3538 = vadd.f32 %v3345, %v3537
      %v3539 = vpop.f32.mrf.mxu0
      %v3540 = vadd.f32 %v3347, %v3539
      %3541 = vmatprep.mubr.bf16.mxu0 0
      %3542 = vmatmul.mubr.bf16.gmra.mxu0 %v2462
      %v3543 = vpop.f32.mrf.mxu0
      %v3544 = vadd.f32 %v3351, %v3543
      %v3545 = vpop.f32.mrf.mxu0
      %v3546 = vadd.f32 %v3353, %v3545
      %v3547 = vpop.f32.mrf.mxu0
      %v3548 = vadd.f32 %v3355, %v3547
      %v3549 = vpop.f32.mrf.mxu0
      %v3550 = vadd.f32 %v3357, %v3549
      %3551 = vmatprep.mubr.bf16.mxu0 0
      %3552 = vmatmul.mubr.bf16.gmra.mxu0 %v2465
      %v3553 = vpop.f32.mrf.mxu0
      %v3554 = vadd.f32 %v3361, %v3553
      %v3555 = vpop.f32.mrf.mxu0
      %v3556 = vadd.f32 %v3363, %v3555
      %v3557 = vpop.f32.mrf.mxu0
      %v3558 = vadd.f32 %v3365, %v3557
      %v3559 = vpop.f32.mrf.mxu0
      %v3560 = vadd.f32 %v3367, %v3559
      %3561 = vmatprep.mubr.bf16.mxu0 0
      %3562 = vmatmul.mubr.bf16.gmra.mxu0 %v2468
      %v3563 = vpop.f32.mrf.mxu0
      %v3564 = vadd.f32 %v3371, %v3563
      %v3565 = vpop.f32.mrf.mxu0
      %v3566 = vadd.f32 %v3373, %v3565
      %v3567 = vpop.f32.mrf.mxu0
      %v3568 = vadd.f32 %v3375, %v3567
      %v3569 = vpop.f32.mrf.mxu0
      %v3570 = vadd.f32 %v3377, %v3569
      %3571 = vmatprep.mubr.bf16.mxu0 0
      %3572 = vmatmul.mubr.bf16.gmra.mxu0 %v2471
      %v3573 = vpop.f32.mrf.mxu0
      %v3574 = vadd.f32 %v3381, %v3573
      %v3575 = vpop.f32.mrf.mxu0
      %v3576 = vadd.f32 %v3383, %v3575
      %v3577 = vpop.f32.mrf.mxu0
      %v3578 = vadd.f32 %v3385, %v3577
      %v3579 = vpop.f32.mrf.mxu0
      %v3580 = vadd.f32 %v3387, %v3579
      %3581 = vmatprep.mubr.bf16.mxu0 0
      %3582 = vmatmul.mubr.bf16.gmra.mxu0 %v2474
      %v3583 = vpop.f32.mrf.mxu0
      %v3584 = vadd.f32 %v3391, %v3583
      %v3585 = vpop.f32.mrf.mxu0
      %v3586 = vadd.f32 %v3393, %v3585
      %v3587 = vpop.f32.mrf.mxu0
      %v3588 = vadd.f32 %v3395, %v3587
      %v3589 = vpop.f32.mrf.mxu0
      %v3590 = vadd.f32 %v3397, %v3589
      %3591 = vmatprep.mubr.bf16.mxu0 0
      %3592 = vmatmul.mubr.bf16.gmra.mxu0 %v2477
      %v3593 = vpop.f32.mrf.mxu0
      %v3594 = vadd.f32 %v3401, %v3593
      %v3595 = vpop.f32.mrf.mxu0
      %v3596 = vadd.f32 %v3403, %v3595
      %v3597 = vpop.f32.mrf.mxu0
      %v3598 = vadd.f32 %v3405, %v3597
      %v3599 = vpop.f32.mrf.mxu0
      %v3600 = vadd.f32 %v3407, %v3599
      %3601 = vmatprep.mubr.bf16.mxu0 0
      %3602 = vmatmul.mubr.bf16.gmra.mxu0 %v2480
      %v3603 = vpop.f32.mrf.mxu0
      %v3604 = vadd.f32 %v3411, %v3603
      %v3605 = vpop.f32.mrf.mxu0
      %v3606 = vadd.f32 %v3413, %v3605
      %v3607 = vpop.f32.mrf.mxu0
      %v3608 = vadd.f32 %v3415, %v3607
      %v3609 = vpop.f32.mrf.mxu0
      %v3610 = vadd.f32 %v3417, %v3609
      %3611 = vmatprep.mubr.bf16.mxu0 0
      %3612 = vmatmul.mubr.bf16.gmra.mxu0 %v2483
      %v3613 = vpop.f32.mrf.mxu0
      %v3614 = vadd.f32 %v3421, %v3613
      %v3615 = vpop.f32.mrf.mxu0
      %v3616 = vadd.f32 %v3423, %v3615
      %v3617 = vpop.f32.mrf.mxu0
      %v3618 = vadd.f32 %v3425, %v3617
      %v3619 = vpop.f32.mrf.mxu0
      %v3620 = vadd.f32 %v3427, %v3619
      %3621 = vmatprep.mubr.bf16.mxu0 0
      %3622 = vmatmul.mubr.bf16.gmra.mxu0 %v2486
      %v3623 = vpop.f32.mrf.mxu0
      %v3624 = vadd.f32 %v3431, %v3623
      %v3625 = vpop.f32.mrf.mxu0
      %v3626 = vadd.f32 %v3433, %v3625
      %v3627 = vpop.f32.mrf.mxu0
      %v3628 = vadd.f32 %v3435, %v3627
      %v3629 = vpop.f32.mrf.mxu0
      %v3630 = vadd.f32 %v3437, %v3629
      %3631 = vmatprep.mubr.bf16.mxu0 0
      %3632 = vmatmul.mubr.bf16.gmra.mxu0 %v2489
      %v3633 = vpop.f32.mrf.mxu0
      %v3634 = vadd.f32 %v3441, %v3633
      %v3635 = vpop.f32.mrf.mxu0
      %v3636 = vadd.f32 %v3443, %v3635
      %v3637 = vpop.f32.mrf.mxu0
      %v3638 = vadd.f32 %v3445, %v3637
      %v3639 = vpop.f32.mrf.mxu0
      %v3640 = vadd.f32 %v3447, %v3639
      %3641 = vmatprep.mubr.bf16.mxu0 0
      %3642 = vmatmul.mubr.bf16.gmra.mxu0 %v2492
      %v3643 = vpop.f32.mrf.mxu0
      %v3644 = vadd.f32 %v3451, %v3643
      %v3645 = vpop.f32.mrf.mxu0
      %v3646 = vadd.f32 %v3453, %v3645
      %v3647 = vpop.f32.mrf.mxu0
      %v3648 = vadd.f32 %v3455, %v3647
      %v3649 = vpop.f32.mrf.mxu0
      %v3650 = vadd.f32 %v3457, %v3649
      %3651 = vdwg.mxu0
      %v3652 = vadd.f32 %v301, %v3494
      %v3653 = vadd.f32 %v302, %v3496
      %v3654 = vadd.f32 %v303, %v3498
      %v3655 = vadd.f32 %v304, %v3500
      %v3656 = vadd.f32 %v305, %v3504
      %v3657 = vadd.f32 %v306, %v3506
      %v3658 = vadd.f32 %v307, %v3508
      %v3659 = vadd.f32 %v308, %v3510
      %v3660 = vadd.f32 %v309, %v3514
      %v3661 = vadd.f32 %v310, %v3516
      %v3662 = vadd.f32 %v311, %v3518
      %v3663 = vadd.f32 %v312, %v3520
      %v3664 = vadd.f32 %v313, %v3524
      %v3665 = vadd.f32 %v314, %v3526
      %v3666 = vadd.f32 %v315, %v3528
      %v3667 = vadd.f32 %v316, %v3530
      %v3668 = vadd.f32 %v317, %v3534
      %v3669 = vadd.f32 %v318, %v3536
      %v3670 = vadd.f32 %v319, %v3538
      %v3671 = vadd.f32 %v320, %v3540
      %v3672 = vadd.f32 %v321, %v3544
      %v3673 = vadd.f32 %v322, %v3546
      %v3674 = vadd.f32 %v323, %v3548
      %v3675 = vadd.f32 %v324, %v3550
      %v3676 = vadd.f32 %v325, %v3554
      %v3677 = vadd.f32 %v326, %v3556
      %v3678 = vadd.f32 %v327, %v3558
      %v3679 = vadd.f32 %v328, %v3560
      %v3680 = vadd.f32 %v329, %v3564
      %v3681 = vadd.f32 %v330, %v3566
      %v3682 = vadd.f32 %v331, %v3568
      %v3683 = vadd.f32 %v332, %v3570
      %v3684 = vadd.f32 %v333, %v3574
      %v3685 = vadd.f32 %v334, %v3576
      %v3686 = vadd.f32 %v335, %v3578
      %v3687 = vadd.f32 %v336, %v3580
      %v3688 = vadd.f32 %v337, %v3584
      %v3689 = vadd.f32 %v338, %v3586
      %v3690 = vadd.f32 %v339, %v3588
      %v3691 = vadd.f32 %v340, %v3590
      %v3692 = vadd.f32 %v341, %v3594
      %v3693 = vadd.f32 %v342, %v3596
      %v3694 = vadd.f32 %v343, %v3598
      %v3695 = vadd.f32 %v344, %v3600
      %v3696 = vadd.f32 %v345, %v3604
      %v3697 = vadd.f32 %v346, %v3606
      %v3698 = vadd.f32 %v347, %v3608
      %v3699 = vadd.f32 %v348, %v3610
      %v3700 = vadd.f32 %v349, %v3614
      %v3701 = vadd.f32 %v350, %v3616
      %v3702 = vadd.f32 %v351, %v3618
      %v3703 = vadd.f32 %v352, %v3620
      %v3704 = vadd.f32 %v353, %v3624
      %v3705 = vadd.f32 %v354, %v3626
      %v3706 = vadd.f32 %v355, %v3628
      %v3707 = vadd.f32 %v356, %v3630
      %v3708 = vadd.f32 %v357, %v3634
      %v3709 = vadd.f32 %v358, %v3636
      %v3710 = vadd.f32 %v359, %v3638
      %v3711 = vadd.f32 %v360, %v3640
      %v3712 = vadd.f32 %v361, %v3644
      %v3713 = vadd.f32 %v362, %v3646
      %v3714 = vadd.f32 %v363, %v3648
      %v3715 = vadd.f32 %v364, %v3650
      %3716 = vst [vmem:[#allocation2] sm:$0xff] %v3652
      %3717 = vst [vmem:[#allocation2 + $0x8] sm:$0xff] %v3653
      %3718 = vst [vmem:[#allocation2 + $0x10] sm:$0xff] %v3654
      %3719 = vst [vmem:[#allocation2 + $0x18] sm:$0xff] %v3655
      %3720 = vst [vmem:[#allocation2 + $0x20] sm:$0xff] %v3656
      %3721 = vst [vmem:[#allocation2 + $0x28] sm:$0xff] %v3657
      %3722 = vst [vmem:[#allocation2 + $0x30] sm:$0xff] %v3658
      %3723 = vst [vmem:[#allocation2 + $0x38] sm:$0xff] %v3659
      %3724 = vst [vmem:[#allocation2 + $0x40] sm:$0xff] %v3660
      %3725 = vst [vmem:[#allocation2 + $0x48] sm:$0xff] %v3661
      %3726 = vst [vmem:[#allocation2 + $0x50] sm:$0xff] %v3662
      %3727 = vst [vmem:[#allocation2 + $0x58] sm:$0xff] %v3663
      %3728 = vst [vmem:[#allocation2 + $0x60] sm:$0xff] %v3664
      %3729 = vst [vmem:[#allocation2 + $0x68] sm:$0xff] %v3665
      %3730 = vst [vmem:[#allocation2 + $0x70] sm:$0xff] %v3666
      %3731 = vst [vmem:[#allocation2 + $0x78] sm:$0xff] %v3667
      %3732 = vst [vmem:[#allocation2 + $0x80] sm:$0xff] %v3668
      %3733 = vst [vmem:[#allocation2 + $0x88] sm:$0xff] %v3669
      %3734 = vst [vmem:[#allocation2 + $0x90] sm:$0xff] %v3670
      %3735 = vst [vmem:[#allocation2 + $0x98] sm:$0xff] %v3671
      %3736 = vst [vmem:[#allocation2 + $0xa0] sm:$0xff] %v3672
      %3737 = vst [vmem:[#allocation2 + $0xa8] sm:$0xff] %v3673
      %3738 = vst [vmem:[#allocation2 + $0xb0] sm:$0xff] %v3674
      %3739 = vst [vmem:[#allocation2 + $0xb8] sm:$0xff] %v3675
      %3740 = vst [vmem:[#allocation2 + $0xc0] sm:$0xff] %v3676
      %3741 = vst [vmem:[#allocation2 + $0xc8] sm:$0xff] %v3677
      %3742 = vst [vmem:[#allocation2 + $0xd0] sm:$0xff] %v3678
      %3743 = vst [vmem:[#allocation2 + $0xd8] sm:$0xff] %v3679
      %3744 = vst [vmem:[#allocation2 + $0xe0] sm:$0xff] %v3680
      %3745 = vst [vmem:[#allocation2 + $0xe8] sm:$0xff] %v3681
      %3746 = vst [vmem:[#allocation2 + $0xf0] sm:$0xff] %v3682
      %3747 = vst [vmem:[#allocation2 + $0xf8] sm:$0xff] %v3683
      %3748 = vst [vmem:[#allocation2 + $0x100] sm:$0xff] %v3684
      %3749 = vst [vmem:[#allocation2 + $0x108] sm:$0xff] %v3685
      %3750 = vst [vmem:[#allocation2 + $0x110] sm:$0xff] %v3686
      %3751 = vst [vmem:[#allocation2 + $0x118] sm:$0xff] %v3687
      %3752 = vst [vmem:[#allocation2 + $0x120] sm:$0xff] %v3688
      %3753 = vst [vmem:[#allocation2 + $0x128] sm:$0xff] %v3689
      %3754 = vst [vmem:[#allocation2 + $0x130] sm:$0xff] %v3690
      %3755 = vst [vmem:[#allocation2 + $0x138] sm:$0xff] %v3691
      %3756 = vst [vmem:[#allocation2 + $0x140] sm:$0xff] %v3692
      %3757 = vst [vmem:[#allocation2 + $0x148] sm:$0xff] %v3693
      %3758 = vst [vmem:[#allocation2 + $0x150] sm:$0xff] %v3694
      %3759 = vst [vmem:[#allocation2 + $0x158] sm:$0xff] %v3695
      %3760 = vst [vmem:[#allocation2 + $0x160] sm:$0xff] %v3696
      %3761 = vst [vmem:[#allocation2 + $0x168] sm:$0xff] %v3697
      %3762 = vst [vmem:[#allocation2 + $0x170] sm:$0xff] %v3698
      %3763 = vst [vmem:[#allocation2 + $0x178] sm:$0xff] %v3699
      %3764 = vst [vmem:[#allocation2 + $0x180] sm:$0xff] %v3700
      %3765 = vst [vmem:[#allocation2 + $0x188] sm:$0xff] %v3701
      %3766 = vst [vmem:[#allocation2 + $0x190] sm:$0xff] %v3702
      %3767 = vst [vmem:[#allocation2 + $0x198] sm:$0xff] %v3703
      %3768 = vst [vmem:[#allocation2 + $0x1a0] sm:$0xff] %v3704
      %3769 = vst [vmem:[#allocation2 + $0x1a8] sm:$0xff] %v3705
      %3770 = vst [vmem:[#allocation2 + $0x1b0] sm:$0xff] %v3706
      %3771 = vst [vmem:[#allocation2 + $0x1b8] sm:$0xff] %v3707
      %3772 = vst [vmem:[#allocation2 + $0x1c0] sm:$0xff] %v3708
      %3773 = vst [vmem:[#allocation2 + $0x1c8] sm:$0xff] %v3709
      %3774 = vst [vmem:[#allocation2 + $0x1d0] sm:$0xff] %v3710
      %3775 = vst [vmem:[#allocation2 + $0x1d8] sm:$0xff] %v3711
      %3776 = vst [vmem:[#allocation2 + $0x1e0] sm:$0xff] %v3712
      %3777 = vst [vmem:[#allocation2 + $0x1e8] sm:$0xff] %v3713
      %3778 = vst [vmem:[#allocation2 + $0x1f0] sm:$0xff] %v3714
      %3779 = vst [vmem:[#allocation2 + $0x1f8] sm:$0xff] %v3715
      // Predicated region
      $region37: #{inception_d_smaller.8} parent=31 // pred_check
        %p3780 = pneg %p233
      $region38: #{inception_d_smaller.8} parent=31 // pred_check_branch
        %3782 = sbr.rel (%p3780) target = $region40
      $region39: #{inception_d_smaller.8} parent=31 // pred_region
        %v3783 = vld [vmem:[#allocation2] sm:$0xff]
        %v3784 = vld [vmem:[#allocation2 + $0x8] sm:$0xff]
        %v3785 = vld [vmem:[#allocation2 + $0x10] sm:$0xff]
        %v3786 = vld [vmem:[#allocation2 + $0x18] sm:$0xff]
        %v3787 = vld [vmem:[#allocation2 + $0x20] sm:$0xff]
        %v3788 = vld [vmem:[#allocation2 + $0x28] sm:$0xff]
        %v3789 = vld [vmem:[#allocation2 + $0x30] sm:$0xff]
        %v3790 = vld [vmem:[#allocation2 + $0x38] sm:$0xff]
        %v3791 = vld [vmem:[#allocation2 + $0x40] sm:$0xff]
        %v3792 = vld [vmem:[#allocation2 + $0x48] sm:$0xff]
        %v3793 = vld [vmem:[#allocation2 + $0x50] sm:$0xff]
        %v3794 = vld [vmem:[#allocation2 + $0x58] sm:$0xff]
        %v3795 = vld [vmem:[#allocation2 + $0x60] sm:$0xff]
        %v3796 = vld [vmem:[#allocation2 + $0x68] sm:$0xff]
        %v3797 = vld [vmem:[#allocation2 + $0x70] sm:$0xff]
        %v3798 = vld [vmem:[#allocation2 + $0x78] sm:$0xff]
        %v3799 = vld [vmem:[#allocation2 + $0x80] sm:$0xff]
        %v3800 = vld [vmem:[#allocation2 + $0x88] sm:$0xff]
        %v3801 = vld [vmem:[#allocation2 + $0x90] sm:$0xff]
        %v3802 = vld [vmem:[#allocation2 + $0x98] sm:$0xff]
        %v3803 = vld [vmem:[#allocation2 + $0xa0] sm:$0xff]
        %v3804 = vld [vmem:[#allocation2 + $0xa8] sm:$0xff]
        %v3805 = vld [vmem:[#allocation2 + $0xb0] sm:$0xff]
        %v3806 = vld [vmem:[#allocation2 + $0xb8] sm:$0xff]
        %v3807 = vld [vmem:[#allocation2 + $0xc0] sm:$0xff]
        %v3808 = vld [vmem:[#allocation2 + $0xc8] sm:$0xff]
        %v3809 = vld [vmem:[#allocation2 + $0xd0] sm:$0xff]
        %v3810 = vld [vmem:[#allocation2 + $0xd8] sm:$0xff]
        %v3811 = vld [vmem:[#allocation2 + $0xe0] sm:$0xff]
        %v3812 = vld [vmem:[#allocation2 + $0xe8] sm:$0xff]
        %v3813 = vld [vmem:[#allocation2 + $0xf0] sm:$0xff]
        %v3814 = vld [vmem:[#allocation2 + $0xf8] sm:$0xff]
        %v3815 = vld [vmem:[#allocation2 + $0x100] sm:$0xff]
        %v3816 = vld [vmem:[#allocation2 + $0x108] sm:$0xff]
        %v3817 = vld [vmem:[#allocation2 + $0x110] sm:$0xff]
        %v3818 = vld [vmem:[#allocation2 + $0x118] sm:$0xff]
        %v3819 = vld [vmem:[#allocation2 + $0x120] sm:$0xff]
        %v3820 = vld [vmem:[#allocation2 + $0x128] sm:$0xff]
        %v3821 = vld [vmem:[#allocation2 + $0x130] sm:$0xff]
        %v3822 = vld [vmem:[#allocation2 + $0x138] sm:$0xff]
        %v3823 = vld [vmem:[#allocation2 + $0x140] sm:$0xff]
        %v3824 = vld [vmem:[#allocation2 + $0x148] sm:$0xff]
        %v3825 = vld [vmem:[#allocation2 + $0x150] sm:$0xff]
        %v3826 = vld [vmem:[#allocation2 + $0x158] sm:$0xff]
        %v3827 = vld [vmem:[#allocation2 + $0x160] sm:$0xff]
        %v3828 = vld [vmem:[#allocation2 + $0x168] sm:$0xff]
        %v3829 = vld [vmem:[#allocation2 + $0x170] sm:$0xff]
        %v3830 = vld [vmem:[#allocation2 + $0x178] sm:$0xff]
        %v3831 = vld [vmem:[#allocation2 + $0x180] sm:$0xff]
        %v3832 = vld [vmem:[#allocation2 + $0x188] sm:$0xff]
        %v3833 = vld [vmem:[#allocation2 + $0x190] sm:$0xff]
        %v3834 = vld [vmem:[#allocation2 + $0x198] sm:$0xff]
        %v3835 = vld [vmem:[#allocation2 + $0x1a0] sm:$0xff]
        %v3836 = vld [vmem:[#allocation2 + $0x1a8] sm:$0xff]
        %v3837 = vld [vmem:[#allocation2 + $0x1b0] sm:$0xff]
        %v3838 = vld [vmem:[#allocation2 + $0x1b8] sm:$0xff]
        %v3839 = vld [vmem:[#allocation2 + $0x1c0] sm:$0xff]
        %v3840 = vld [vmem:[#allocation2 + $0x1c8] sm:$0xff]
        %v3841 = vld [vmem:[#allocation2 + $0x1d0] sm:$0xff]
        %v3842 = vld [vmem:[#allocation2 + $0x1d8] sm:$0xff]
        %v3843 = vld [vmem:[#allocation2 + $0x1e0] sm:$0xff]
        %v3844 = vld [vmem:[#allocation2 + $0x1e8] sm:$0xff]
        %v3845 = vld [vmem:[#allocation2 + $0x1f0] sm:$0xff]
        %v3846 = vld [vmem:[#allocation2 + $0x1f8] sm:$0xff]
        %v3847 = vld [vmem:[%s2] sm:$0x3]
        %v3849 = vlaneseq
        %v3850 = vshrl.u32 %v3849, 7
        %v3851 = vsub.s32 0, %v3850
        %v3852 = vrot.slane %v3847, %v3851
        %v3853 = vlaneseq
        %v3854 = vshrl.u32 %v3853, 7
        %v3855 = vsub.s32 1, %v3854
        %v3856 = vrot.slane %v3847, %v3855
        %v3859 = vadd.f32 %v3783, %v3852
        %v3860 = vadd.f32 %v3784, %v3856
        %v3861 = vadd.f32 %v3785, %v3852
        %v3862 = vadd.f32 %v3786, %v3856
        %v3863 = vadd.f32 %v3787, %v3852
        %v3864 = vadd.f32 %v3788, %v3856
        %v3865 = vadd.f32 %v3789, %v3852
        %v3866 = vadd.f32 %v3790, %v3856
        %v3867 = vadd.f32 %v3791, %v3852
        %v3868 = vadd.f32 %v3792, %v3856
        %v3869 = vadd.f32 %v3793, %v3852
        %v3870 = vadd.f32 %v3794, %v3856
        %v3871 = vadd.f32 %v3795, %v3852
        %v3872 = vadd.f32 %v3796, %v3856
        %v3873 = vadd.f32 %v3797, %v3852
        %v3874 = vadd.f32 %v3798, %v3856
        %v3875 = vadd.f32 %v3799, %v3852
        %v3876 = vadd.f32 %v3800, %v3856
        %v3877 = vadd.f32 %v3801, %v3852
        %v3878 = vadd.f32 %v3802, %v3856
        %v3879 = vadd.f32 %v3803, %v3852
        %v3880 = vadd.f32 %v3804, %v3856
        %v3881 = vadd.f32 %v3805, %v3852
        %v3882 = vadd.f32 %v3806, %v3856
        %v3883 = vadd.f32 %v3807, %v3852
        %v3884 = vadd.f32 %v3808, %v3856
        %v3885 = vadd.f32 %v3809, %v3852
        %v3886 = vadd.f32 %v3810, %v3856
        %v3887 = vadd.f32 %v3811, %v3852
        %v3888 = vadd.f32 %v3812, %v3856
        %v3889 = vadd.f32 %v3813, %v3852
        %v3890 = vadd.f32 %v3814, %v3856
        %v3891 = vadd.f32 %v3815, %v3852
        %v3892 = vadd.f32 %v3816, %v3856
        %v3893 = vadd.f32 %v3817, %v3852
        %v3894 = vadd.f32 %v3818, %v3856
        %v3895 = vadd.f32 %v3819, %v3852
        %v3896 = vadd.f32 %v3820, %v3856
        %v3897 = vadd.f32 %v3821, %v3852
        %v3898 = vadd.f32 %v3822, %v3856
        %v3899 = vadd.f32 %v3823, %v3852
        %v3900 = vadd.f32 %v3824, %v3856
        %v3901 = vadd.f32 %v3825, %v3852
        %v3902 = vadd.f32 %v3826, %v3856
        %v3903 = vadd.f32 %v3827, %v3852
        %v3904 = vadd.f32 %v3828, %v3856
        %v3905 = vadd.f32 %v3829, %v3852
        %v3906 = vadd.f32 %v3830, %v3856
        %v3907 = vadd.f32 %v3831, %v3852
        %v3908 = vadd.f32 %v3832, %v3856
        %v3909 = vadd.f32 %v3833, %v3852
        %v3910 = vadd.f32 %v3834, %v3856
        %v3911 = vadd.f32 %v3835, %v3852
        %v3912 = vadd.f32 %v3836, %v3856
        %v3913 = vadd.f32 %v3837, %v3852
        %v3914 = vadd.f32 %v3838, %v3856
        %v3915 = vadd.f32 %v3839, %v3852
        %v3916 = vadd.f32 %v3840, %v3856
        %v3917 = vadd.f32 %v3841, %v3852
        %v3918 = vadd.f32 %v3842, %v3856
        %v3919 = vadd.f32 %v3843, %v3852
        %v3920 = vadd.f32 %v3844, %v3856
        %v3921 = vadd.f32 %v3845, %v3852
        %v3922 = vadd.f32 %v3846, %v3856
        %v3923 = vmax.f32 %v3859, 0.0
        %v3924 = vmax.f32 %v3860, 0.0
        %v3925 = vmax.f32 %v3861, 0.0
        %v3926 = vmax.f32 %v3862, 0.0
        %v3927 = vmax.f32 %v3863, 0.0
        %v3928 = vmax.f32 %v3864, 0.0
        %v3929 = vmax.f32 %v3865, 0.0
        %v3930 = vmax.f32 %v3866, 0.0
        %v3931 = vmax.f32 %v3867, 0.0
        %v3932 = vmax.f32 %v3868, 0.0
        %v3933 = vmax.f32 %v3869, 0.0
        %v3934 = vmax.f32 %v3870, 0.0
        %v3935 = vmax.f32 %v3871, 0.0
        %v3936 = vmax.f32 %v3872, 0.0
        %v3937 = vmax.f32 %v3873, 0.0
        %v3938 = vmax.f32 %v3874, 0.0
        %v3939 = vmax.f32 %v3875, 0.0
        %v3940 = vmax.f32 %v3876, 0.0
        %v3941 = vmax.f32 %v3877, 0.0
        %v3942 = vmax.f32 %v3878, 0.0
        %v3943 = vmax.f32 %v3879, 0.0
        %v3944 = vmax.f32 %v3880, 0.0
        %v3945 = vmax.f32 %v3881, 0.0
        %v3946 = vmax.f32 %v3882, 0.0
        %v3947 = vmax.f32 %v3883, 0.0
        %v3948 = vmax.f32 %v3884, 0.0
        %v3949 = vmax.f32 %v3885, 0.0
        %v3950 = vmax.f32 %v3886, 0.0
        %v3951 = vmax.f32 %v3887, 0.0
        %v3952 = vmax.f32 %v3888, 0.0
        %v3953 = vmax.f32 %v3889, 0.0
        %v3954 = vmax.f32 %v3890, 0.0
        %v3955 = vmax.f32 %v3891, 0.0
        %v3956 = vmax.f32 %v3892, 0.0
        %v3957 = vmax.f32 %v3893, 0.0
        %v3958 = vmax.f32 %v3894, 0.0
        %v3959 = vmax.f32 %v3895, 0.0
        %v3960 = vmax.f32 %v3896, 0.0
        %v3961 = vmax.f32 %v3897, 0.0
        %v3962 = vmax.f32 %v3898, 0.0
        %v3963 = vmax.f32 %v3899, 0.0
        %v3964 = vmax.f32 %v3900, 0.0
        %v3965 = vmax.f32 %v3901, 0.0
        %v3966 = vmax.f32 %v3902, 0.0
        %v3967 = vmax.f32 %v3903, 0.0
        %v3968 = vmax.f32 %v3904, 0.0
        %v3969 = vmax.f32 %v3905, 0.0
        %v3970 = vmax.f32 %v3906, 0.0
        %v3971 = vmax.f32 %v3907, 0.0
        %v3972 = vmax.f32 %v3908, 0.0
        %v3973 = vmax.f32 %v3909, 0.0
        %v3974 = vmax.f32 %v3910, 0.0
        %v3975 = vmax.f32 %v3911, 0.0
        %v3976 = vmax.f32 %v3912, 0.0
        %v3977 = vmax.f32 %v3913, 0.0
        %v3978 = vmax.f32 %v3914, 0.0
        %v3979 = vmax.f32 %v3915, 0.0
        %v3980 = vmax.f32 %v3916, 0.0
        %v3981 = vmax.f32 %v3917, 0.0
        %v3982 = vmax.f32 %v3918, 0.0
        %v3983 = vmax.f32 %v3919, 0.0
        %v3984 = vmax.f32 %v3920, 0.0
        %v3985 = vmax.f32 %v3921, 0.0
        %v3986 = vmax.f32 %v3922, 0.0
        %3987 = vst [vmem:[%s230] sm:$0xff] %v3923
        %3988 = vst [vmem:[%s230 + $0x8] sm:$0xff] %v3924
        %3989 = vst [vmem:[%s230 + $0x10] sm:$0xff] %v3925
        %3990 = vst [vmem:[%s230 + $0x18] sm:$0xff] %v3926
        %3991 = vst [vmem:[%s230 + $0x20] sm:$0xff] %v3927
        %3992 = vst [vmem:[%s230 + $0x28] sm:$0xff] %v3928
        %3993 = vst [vmem:[%s230 + $0x30] sm:$0xff] %v3929
        %3994 = vst [vmem:[%s230 + $0x38] sm:$0xff] %v3930
        %3995 = vst [vmem:[%s230 + $0x40] sm:$0xff] %v3931
        %3996 = vst [vmem:[%s230 + $0x48] sm:$0xff] %v3932
        %3997 = vst [vmem:[%s230 + $0x50] sm:$0xff] %v3933
        %3998 = vst [vmem:[%s230 + $0x58] sm:$0xff] %v3934
        %3999 = vst [vmem:[%s230 + $0x60] sm:$0xff] %v3935
        %4000 = vst [vmem:[%s230 + $0x68] sm:$0xff] %v3936
        %4001 = vst [vmem:[%s230 + $0x70] sm:$0xff] %v3937
        %4002 = vst [vmem:[%s230 + $0x78] sm:$0xff] %v3938
        %4003 = vst [vmem:[%s230 + $0x80] sm:$0xff] %v3939
        %4004 = vst [vmem:[%s230 + $0x88] sm:$0xff] %v3940
        %4005 = vst [vmem:[%s230 + $0x90] sm:$0xff] %v3941
        %4006 = vst [vmem:[%s230 + $0x98] sm:$0xff] %v3942
        %4007 = vst [vmem:[%s230 + $0xa0] sm:$0xff] %v3943
        %4008 = vst [vmem:[%s230 + $0xa8] sm:$0xff] %v3944
        %4009 = vst [vmem:[%s230 + $0xb0] sm:$0xff] %v3945
        %4010 = vst [vmem:[%s230 + $0xb8] sm:$0xff] %v3946
        %4011 = vst [vmem:[%s230 + $0xc0] sm:$0xff] %v3947
        %4012 = vst [vmem:[%s230 + $0xc8] sm:$0xff] %v3948
        %4013 = vst [vmem:[%s230 + $0xd0] sm:$0xff] %v3949
        %4014 = vst [vmem:[%s230 + $0xd8] sm:$0xff] %v3950
        %4015 = vst [vmem:[%s230 + $0xe0] sm:$0xff] %v3951
        %4016 = vst [vmem:[%s230 + $0xe8] sm:$0xff] %v3952
        %4017 = vst [vmem:[%s230 + $0xf0] sm:$0xff] %v3953
        %4018 = vst [vmem:[%s230 + $0xf8] sm:$0xff] %v3954
        %4019 = vst [vmem:[%s230 + $0x100] sm:$0xff] %v3955
        %4020 = vst [vmem:[%s230 + $0x108] sm:$0xff] %v3956
        %4021 = vst [vmem:[%s230 + $0x110] sm:$0xff] %v3957
        %4022 = vst [vmem:[%s230 + $0x118] sm:$0xff] %v3958
        %4023 = vst [vmem:[%s230 + $0x120] sm:$0xff] %v3959
        %4024 = vst [vmem:[%s230 + $0x128] sm:$0xff] %v3960
        %4025 = vst [vmem:[%s230 + $0x130] sm:$0xff] %v3961
        %4026 = vst [vmem:[%s230 + $0x138] sm:$0xff] %v3962
        %4027 = vst [vmem:[%s230 + $0x140] sm:$0xff] %v3963
        %4028 = vst [vmem:[%s230 + $0x148] sm:$0xff] %v3964
        %4029 = vst [vmem:[%s230 + $0x150] sm:$0xff] %v3965
        %4030 = vst [vmem:[%s230 + $0x158] sm:$0xff] %v3966
        %4031 = vst [vmem:[%s230 + $0x160] sm:$0xff] %v3967
        %4032 = vst [vmem:[%s230 + $0x168] sm:$0xff] %v3968
        %4033 = vst [vmem:[%s230 + $0x170] sm:$0xff] %v3969
        %4034 = vst [vmem:[%s230 + $0x178] sm:$0xff] %v3970
        %4035 = vst [vmem:[%s230 + $0x180] sm:$0xff] %v3971
        %4036 = vst [vmem:[%s230 + $0x188] sm:$0xff] %v3972
        %4037 = vst [vmem:[%s230 + $0x190] sm:$0xff] %v3973
        %4038 = vst [vmem:[%s230 + $0x198] sm:$0xff] %v3974
        %4039 = vst [vmem:[%s230 + $0x1a0] sm:$0xff] %v3975
        %4040 = vst [vmem:[%s230 + $0x1a8] sm:$0xff] %v3976
        %4041 = vst [vmem:[%s230 + $0x1b0] sm:$0xff] %v3977
        %4042 = vst [vmem:[%s230 + $0x1b8] sm:$0xff] %v3978
        %4043 = vst [vmem:[%s230 + $0x1c0] sm:$0xff] %v3979
        %4044 = vst [vmem:[%s230 + $0x1c8] sm:$0xff] %v3980
        %4045 = vst [vmem:[%s230 + $0x1d0] sm:$0xff] %v3981
        %4046 = vst [vmem:[%s230 + $0x1d8] sm:$0xff] %v3982
        %4047 = vst [vmem:[%s230 + $0x1e0] sm:$0xff] %v3983
        %4048 = vst [vmem:[%s230 + $0x1e8] sm:$0xff] %v3984
        %4049 = vst [vmem:[%s230 + $0x1f0] sm:$0xff] %v3985
        %4050 = vst [vmem:[%s230 + $0x1f8] sm:$0xff] %v3986
      $region40: #{inception_d_smaller.8} parent=31 // pred_fallthru
        _
      %s4051 = smul.u32 32, %s18
      %p4052 = scmp.lt.s32.totalorder %s4051, 63
      %s4053 = scalar_select %p4052, %s4051, 63
      %s4054 = smul.addr %s4053, 2
      %s4055 = smul.addr %s4054, 8
      %s4056 = scalar_lea.vmem %s3, %s4055
      // Predicated region
      $region41: #{inception_d_smaller.8} parent=31 // pred_check
        %p4057 = pneg %p119
      $region42: #{inception_d_smaller.8} parent=31 // pred_check_branch
        %4059 = sbr.rel (%p4057) target = $region44
      $region43: #{inception_d_smaller.8} parent=31 // pred_region
        %s4060 = smul.u32 32, %s18
      $region44: #{inception_d_smaller.8} parent=31 // pred_fallthru
        _
    $region32: #{inception_d_smaller.8} parent=5 // pred_fallthru
      _
    %p4061 = scmp.le.s32.totalorder 2, %s9
    // Predicated region
    $region45: #{inception_d_smaller.8} parent=5 // pred_check
      %p4062 = pneg %p4061
    $region46: #{inception_d_smaller.8} parent=5 // pred_check_branch
      %4064 = sbr.rel (%p4062) target = $region48
    $region47: #{inception_d_smaller.8} parent=5 // pred_region
      %s4065 = ssub.s32 %s9, 2
      // Predicated region
      $region49: #{inception_d_smaller.8} parent=47 // pred_check
        %p4066 = pneg %p125
      $region50: #{inception_d_smaller.8} parent=47 // pred_check_branch
        %4068 = sbr.rel (%p4066) target = $region52
      $region51: #{inception_d_smaller.8} parent=47 // pred_region
        %s4069 = smul.u32 32, %s20
        %p4070 = scmp.lt.s32.totalorder %s4069, 63
        %s4071 = scalar_select %p4070, %s4069, 63
        %s4072 = smul.addr %s4071, 2
        %s4073 = smul.addr %s4072, 8
        %s4074 = scalar_lea.vmem %s3, %s4073
      $region52: #{inception_d_smaller.8} parent=47 // pred_fallthru
        _
    $region48: #{inception_d_smaller.8} parent=5 // pred_fallthru
      _
  $region6: #{inception_d_smaller.8} parent=0 // loop_footer
    %s13 = sadd.s32 1, %s9
  $region7: #{inception_d_smaller.8} parent=0 // loop_footer_branch
    %8 = sbr.rel target = $region3
  $region8: #{inception_d_smaller.8} parent=0 // loop_exit
    _

</llo_original>
